<compile_context>
chip_gen: v6e
topology: v6e:2x2x1
jax: 0.10.0
libtpu: 0.0.40
codegen_flags: <defaults>
</compile_context>

<pallas_src>
import functools
import numpy as np

import jax
import jax.numpy as jnp
from jax.experimental import pallas as pl
from jax.experimental.pallas import tpu as pltpu

TB = 8    # images processed per grid step
HP = 32   # padded image height (28 + 2 + 2) == per-image row stride
WP = 32   # padded image width  (28 + 2 + 2)


# ---------------------------------------------------------------------------
# The fused kernel
# ---------------------------------------------------------------------------
def _lenet5_kernel(x_ref, m1_ref, b1_ref, m2_ref, b2_ref,
                   mf1_ref, bf1_ref, mf2_ref, bf2_ref, mf3_ref, bf3_ref,
                   o_ref):
    f32 = jnp.float32
    R = x_ref.shape[0]                       # TB*32 rows; row index = 32*b + h
    R4, R5, R13, R15, R31 = R - 4, R - 5, R - 13, R - 15, R - 31

    x = x_ref[...]                           # (R, 32)  zero-padded input rows
    m1 = m1_ref[...]                         # (160, 168)
    m2 = m2_ref[...]                         # (810, 160)
    mf1 = mf1_ref[...]                       # (720, 128)

    # ---- conv1 (1->6, k5, pad2) + bias + ReLU -------------------------------
    # o1[32b+h, 6w+o] = sum_{i,j} x_pad[b, h+i, w+j] * w1[o,0,i,j]
    acc = jnp.dot(x[0:R4, :], m1[0:32, :], preferred_element_type=f32)
    for i in range(1, 5):
        acc = acc + jnp.dot(x[i:i + R4, :], m1[32 * i:32 * i + 32, :],
                            preferred_element_type=f32)
    o1 = jnp.maximum(acc + b1_ref[...], 0.0)                    # (R-4, 168)

    # ---- 2x2 max-pool #1 (valid at rows 32b+2hh, lanes 12ww+o) --------------
    pw = jnp.maximum(o1[:, 0:162], o1[:, 6:168])                # width pool
    p1 = jnp.maximum(pw[0:R5, :], pw[1:R4, :])                  # height pool (R-5, 162)

    # ---- conv2 (6->16, k5, valid) + bias + ReLU -----------------------------
    # o2[32b+2h2, 16w2+o2] = sum_{i,j,c} c1p[b, h2+i, w2+j, c] * w2[o2,c,i,j]
    acc = jnp.dot(p1[0:R13, :], m2[0:162, :], preferred_element_type=f32)
    for i in range(1, 5):
        acc = acc + jnp.dot(p1[2 * i:2 * i + R13, :],
                            m2[162 * i:162 * i + 162, :],
                            preferred_element_type=f32)
    o2 = jnp.maximum(acc + b2_ref[...], 0.0)                    # (R-13, 160)

    # ---- 2x2 max-pool #2 (valid at rows 32b+4hh2, lanes 32ww2+o2) -----------
    q = jnp.maximum(o2[:, 0:144], o2[:, 16:160])
    p2 = jnp.maximum(q[0:R15, :], q[2:R13, :])                  # (R-15, 144)

    # ---- flatten(16,5,5) + fc1 (400 -> 120, padded to 128 lanes) ------------
    acc = jnp.dot(p2[0:R31, :], mf1[0:144, :], preferred_element_type=f32)
    for h in range(1, 5):
        acc = acc + jnp.dot(p2[4 * h:4 * h + R31, :],
                            mf1[144 * h:144 * h + 144, :],
                            preferred_element_type=f32)
    # compact rows: keep one row per image (row 32b)  -> (TB, 128)
    rows = jax.lax.broadcasted_iota(jnp.int32, (o_ref.shape[0], R31), 0)
    cols = jax.lax.broadcasted_iota(jnp.int32, (o_ref.shape[0], R31), 1)
    sel = (cols == rows * HP).astype(f32)
    h1 = jnp.dot(sel, acc, preferred_element_type=f32)
    h1 = jnp.maximum(h1 + bf1_ref[...], 0.0)                    # (TB, 128)

    # ---- fc2 (120 -> 84, padded 128) ----------------------------------------
    h2 = jnp.maximum(
        jnp.dot(h1, mf2_ref[...], preferred_element_type=f32) + bf2_ref[...],
        0.0)                                                    # (TB, 128)

    # ---- fc3 (84 -> 10) + softmax(dim=1) ------------------------------------
    logits = jnp.dot(h2, mf3_ref[...], preferred_element_type=f32) + bf3_ref[...]
    mx = jnp.max(logits, axis=1, keepdims=True)
    e = jnp.exp(logits - mx)
    o_ref[...] = e / jnp.sum(e, axis=1, keepdims=True)


# ---------------------------------------------------------------------------
# Parameter init (matches PyTorch default uniform init ranges) and one-time
# packing into the structured matrices the kernel consumes.
# ---------------------------------------------------------------------------
def init_params(key):
    ks = jax.random.split(key, 10)

    def uinit(k, shape, fan_in):
        bound = 1.0 / np.sqrt(float(fan_in))
        return jax.random.uniform(k, shape, jnp.float32, -bound, bound)

    return {
        "conv1_w": uinit(ks[0], (6, 1, 5, 5), 1 * 5 * 5),
        "conv1_b": uinit(ks[1], (6,), 1 * 5 * 5),
        "conv2_w": uinit(ks[2], (16, 6, 5, 5), 6 * 5 * 5),
        "conv2_b": uinit(ks[3], (16,), 6 * 5 * 5),
        "fc1_w": uinit(ks[4], (120, 400), 400),
        "fc1_b": uinit(ks[5], (120,), 400),
        "fc2_w": uinit(ks[6], (84, 120), 120),
        "fc2_b": uinit(ks[7], (84,), 120),
        "fc3_w": uinit(ks[8], (10, 84), 84),
        "fc3_b": uinit(ks[9], (10,), 84),
    }


def prepare_params(params):
    """One-time host-side packing of PyTorch-layout weights into the
    structured, kernel-ready matrices (done once; NOT in the hot path)."""
    cw1 = np.asarray(params["conv1_w"], np.float32)   # (6,1,5,5)
    cb1 = np.asarray(params["conv1_b"], np.float32)
    cw2 = np.asarray(params["conv2_w"], np.float32)   # (16,6,5,5)
    cb2 = np.asarray(params["conv2_b"], np.float32)
    fw1 = np.asarray(params["fc1_w"], np.float32)     # (120,400)
    fb1 = np.asarray(params["fc1_b"], np.float32)
    fw2 = np.asarray(params["fc2_w"], np.float32)     # (84,120)
    fb2 = np.asarray(params["fc2_b"], np.float32)
    fw3 = np.asarray(params["fc3_w"], np.float32)     # (10,84)
    fb3 = np.asarray(params["fc3_b"], np.float32)

    # conv1: per-row-tap i, M1[32*i + (w+j), 6*w + o] = w1[o,0,i,j]
    M1 = np.zeros((5 * 32, 6 * 28), np.float32)
    for i in range(5):
        for j in range(5):
            for w in range(28):
                M1[32 * i + w + j, 6 * w:6 * w + 6] = cw1[:, 0, i, j]
    b1 = np.tile(cb1, 28).reshape(1, 168)

    # conv2: input lanes of pooled c1 are l = 12*ww + c (ww 0..13, c 0..5);
    # per-row-tap block width is 162.  M2[162*i + 12*(w2+j) + c, 16*w2 + o] = w2[o,c,i,j]
    M2 = np.zeros((5 * 162, 16 * 10), np.float32)
    for i in range(5):
        for j in range(5):
            for wo in range(10):
                for c in range(6):
                    M2[162 * i + 12 * (wo + j) + c, 16 * wo:16 * wo + 16] = cw2[:, c, i, j]
    b2 = np.tile(cb2, 10).reshape(1, 160)

    # fc1: pooled-c2 lanes are l = 32*ww2 + c (ww2 0..4, c 0..15); per-height
    # block width 144.  Torch flatten index = c*25 + hh2*5 + ww2.
    Mfc1 = np.zeros((5 * 144, 128), np.float32)
    for hh in range(5):
        for ww in range(5):
            for c in range(16):
                Mfc1[144 * hh + 32 * ww + c, :120] = fw1[:, c * 25 + hh * 5 + ww]
    bf1 = np.zeros((1, 128), np.float32)
    bf1[0, :120] = fb1

    Mfc2 = np.zeros((128, 128), np.float32)
    Mfc2[:120, :84] = fw2.T
    bf2 = np.zeros((1, 128), np.float32)
    bf2[0, :84] = fb2

    Mfc3 = np.zeros((128, 10), np.float32)
    Mfc3[:84, :] = fw3.T
    bf3 = fb3.reshape(1, 10)

    return tuple(jnp.asarray(a) for a in
                 (M1, b1, M2, b2, Mfc1, bf1, Mfc2, bf2, Mfc3, bf3))


# ---------------------------------------------------------------------------
# Forward wrapper: one pallas_call for the whole network.
# ---------------------------------------------------------------------------
@jax.jit
def lenet5_forward(packed, x):
    (m1, b1, m2, b2, mf1, bf1, mf2, bf2, mf3, bf3) = packed
    B = x.shape[0]
    Bp = ((B + TB - 1) // TB) * TB

    xs = x.reshape(B, 28, 28).astype(jnp.float32)
    xs = jnp.pad(xs, ((0, Bp - B), (2, 2), (2, 2)))     # zero-pad batch + conv1 halo
    x2d = xs.reshape(Bp * HP, WP)                       # row = 32*b + h, lane = w

    const = lambda g: (0, 0)
    out = pl.pallas_call(
        _lenet5_kernel,
        out_shape=jax.ShapeDtypeStruct((Bp, 10), jnp.float32),
        grid=(Bp // TB,),
        in_specs=[
            pl.BlockSpec((TB * HP, WP), lambda g: (g, 0)),
            pl.BlockSpec(m1.shape, const),
            pl.BlockSpec(b1.shape, const),
            pl.BlockSpec(m2.shape, const),
            pl.BlockSpec(b2.shape, const),
            pl.BlockSpec(mf1.shape, const),
            pl.BlockSpec(bf1.shape, const),
            pl.BlockSpec(mf2.shape, const),
            pl.BlockSpec(bf2.shape, const),
            pl.BlockSpec(mf3.shape, const),
            pl.BlockSpec(bf3.shape, const),
        ],
        out_specs=pl.BlockSpec((TB, 10), lambda g: (g, 0)),
        compiler_params=pltpu.CompilerParams(
            dimension_semantics=("parallel",)),
    )(x2d, m1, b1, m2, b2, mf1, bf1, mf2, bf2, mf3, bf3)
    return out[:B]


# ---------------------------------------------------------------------------
# Pure-JAX reference (mirrors the PyTorch module, reg='none') for validation.
# ---------------------------------------------------------------------------
def lenet5_reference(params, x):
    c1 = jax.lax.conv_general_dilated(
        x, params["conv1_w"], window_strides=(1, 1), padding=((2, 2), (2, 2)),
        dimension_numbers=("NCHW", "OIHW", "NCHW"))
    c1 = jax.nn.relu(c1 + params["conv1_b"][None, :, None, None])
    c1 = jax.lax.reduce_window(c1, -jnp.inf, jax.lax.max,
                               (1, 1, 2, 2), (1, 1, 2, 2), "VALID")
    c2 = jax.lax.conv_general_dilated(
        c1, params["conv2_w"], window_strides=(1, 1), padding=((0, 0), (0, 0)),
        dimension_numbers=("NCHW", "OIHW", "NCHW"))
    c2 = jax.nn.relu(c2 + params["conv2_b"][None, :, None, None])
    c2 = jax.lax.reduce_window(c2, -jnp.inf, jax.lax.max,
                               (1, 1, 2, 2), (1, 1, 2, 2), "VALID")
    f = c2.reshape(x.shape[0], -1)
    h1 = jax.nn.relu(f @ params["fc1_w"].T + params["fc1_b"])
    h2 = jax.nn.relu(h1 @ params["fc2_w"].T + params["fc2_b"])
    logits = h2 @ params["fc3_w"].T + params["fc3_b"]
    return jax.nn.softmax(logits, axis=1)


if __name__ == "__main__":
    key = jax.random.PRNGKey(0)
    pkey, xkey = jax.random.split(key)
    params = init_params(pkey)
    packed = prepare_params(params)

    # LeNet-5 fixes the spatial size at 28x28 (fc1 expects 16*5*5 features).
    B = 2
    x = jax.random.normal(xkey, (B, 1, 28, 28), dtype=jnp.float32)

    probs = lenet5_forward(packed, x)
    jax.block_until_ready(probs)

    assert probs.shape == (B, 10)
    assert bool(jnp.all(jnp.isfinite(probs)))
    assert jnp.allclose(jnp.sum(probs, axis=1), jnp.ones((B,)), atol=1e-5)

    # Validate the fused kernel against the straightforward JAX reference.
    ref = lenet5_reference(params, x)
    np.testing.assert_allclose(np.asarray(probs), np.asarray(ref),
                               atol=1e-4, rtol=1e-3)

    print("KERNEL_OK")
</pallas_src>

<mosaic_0001>
module attributes {stable_mosaic.version = 11 : i64} {
  func.func @_lenet5_kernel(%arg0: i32, %arg1: memref<256x32xf32, #tpu.memory_space<vmem>>, %arg2: memref<160x168xf32, #tpu.memory_space<vmem>>, %arg3: memref<1x168xf32, #tpu.memory_space<vmem>>, %arg4: memref<810x160xf32, #tpu.memory_space<vmem>>, %arg5: memref<1x160xf32, #tpu.memory_space<vmem>>, %arg6: memref<720x128xf32, #tpu.memory_space<vmem>>, %arg7: memref<1x128xf32, #tpu.memory_space<vmem>>, %arg8: memref<128x128xf32, #tpu.memory_space<vmem>>, %arg9: memref<1x128xf32, #tpu.memory_space<vmem>>, %arg10: memref<128x10xf32, #tpu.memory_space<vmem>>, %arg11: memref<1x10xf32, #tpu.memory_space<vmem>>, %arg12: memref<8x10xf32, #tpu.memory_space<vmem>>) attributes {dimension_semantics = [#tpu.dimension_semantics<parallel>], iteration_bounds = array<i64: 1>, scalar_prefetch = 0 : i64, scratch_operands = 0 : i64, tpu.core_type = #tpu.core_type<tc>, window_params = [{transform_indices = @transform_0, window_bounds = array<i64: 256, 32>}, {pipeline_mode = #tpu.pipeline_mode<synchronous>, transform_indices = @transform_1, window_bounds = array<i64: 160, 168>}, {pipeline_mode = #tpu.pipeline_mode<synchronous>, transform_indices = @transform_2, window_bounds = array<i64: 1, 168>}, {pipeline_mode = #tpu.pipeline_mode<synchronous>, transform_indices = @transform_3, window_bounds = array<i64: 810, 160>}, {pipeline_mode = #tpu.pipeline_mode<synchronous>, transform_indices = @transform_4, window_bounds = array<i64: 1, 160>}, {pipeline_mode = #tpu.pipeline_mode<synchronous>, transform_indices = @transform_5, window_bounds = array<i64: 720, 128>}, {pipeline_mode = #tpu.pipeline_mode<synchronous>, transform_indices = @transform_6, window_bounds = array<i64: 1, 128>}, {pipeline_mode = #tpu.pipeline_mode<synchronous>, transform_indices = @transform_7, window_bounds = array<i64: 128, 128>}, {pipeline_mode = #tpu.pipeline_mode<synchronous>, transform_indices = @transform_8, window_bounds = array<i64: 1, 128>}, {pipeline_mode = #tpu.pipeline_mode<synchronous>, transform_indices = @transform_9, window_bounds = array<i64: 128, 10>}, {pipeline_mode = #tpu.pipeline_mode<synchronous>, transform_indices = @transform_10, window_bounds = array<i64: 1, 10>}, {transform_indices = @transform_11, window_bounds = array<i64: 8, 10>}]} {
    %c0 = arith.constant 0 : index
    %c0_0 = arith.constant 0 : index
    %0 = vector.load %arg1[%c0, %c0_0] : memref<256x32xf32, #tpu.memory_space<vmem>>, vector<256x32xf32>
    %c0_1 = arith.constant 0 : index
    %c0_2 = arith.constant 0 : index
    %1 = vector.load %arg2[%c0_1, %c0_2] : memref<160x168xf32, #tpu.memory_space<vmem>>, vector<160x168xf32>
    %c0_3 = arith.constant 0 : index
    %c0_4 = arith.constant 0 : index
    %2 = vector.load %arg4[%c0_3, %c0_4] : memref<810x160xf32, #tpu.memory_space<vmem>>, vector<810x160xf32>
    %c0_5 = arith.constant 0 : index
    %c0_6 = arith.constant 0 : index
    %3 = vector.load %arg6[%c0_5, %c0_6] : memref<720x128xf32, #tpu.memory_space<vmem>>, vector<720x128xf32>
    %4 = vector.extract_strided_slice %0 {offsets = [0, 0], sizes = [252, 32], strides = [1, 1]} : vector<256x32xf32> to vector<252x32xf32>
    %5 = vector.extract_strided_slice %1 {offsets = [0, 0], sizes = [32, 168], strides = [1, 1]} : vector<160x168xf32> to vector<32x168xf32>
    %cst = arith.constant dense<0.000000e+00> : vector<252x168xf32>
    %6 = tpu.matmul %4, %5, %cst {dimension_numbers = #tpu.dot_dimension_numbers<[1], [0], [0], [1], [0, 0, 1, 1], [], []>} : vector<252x32xf32>, vector<32x168xf32>, vector<252x168xf32> -> vector<252x168xf32>
    %7 = vector.extract_strided_slice %0 {offsets = [1, 0], sizes = [252, 32], strides = [1, 1]} : vector<256x32xf32> to vector<252x32xf32>
    %8 = vector.extract_strided_slice %1 {offsets = [32, 0], sizes = [32, 168], strides = [1, 1]} : vector<160x168xf32> to vector<32x168xf32>
    %cst_7 = arith.constant dense<0.000000e+00> : vector<252x168xf32>
    %9 = tpu.matmul %7, %8, %cst_7 {dimension_numbers = #tpu.dot_dimension_numbers<[1], [0], [0], [1], [0, 0, 1, 1], [], []>} : vector<252x32xf32>, vector<32x168xf32>, vector<252x168xf32> -> vector<252x168xf32>
    %10 = arith.addf %6, %9 : vector<252x168xf32>
    %11 = vector.extract_strided_slice %0 {offsets = [2, 0], sizes = [252, 32], strides = [1, 1]} : vector<256x32xf32> to vector<252x32xf32>
    %12 = vector.extract_strided_slice %1 {offsets = [64, 0], sizes = [32, 168], strides = [1, 1]} : vector<160x168xf32> to vector<32x168xf32>
    %cst_8 = arith.constant dense<0.000000e+00> : vector<252x168xf32>
    %13 = tpu.matmul %11, %12, %cst_8 {dimension_numbers = #tpu.dot_dimension_numbers<[1], [0], [0], [1], [0, 0, 1, 1], [], []>} : vector<252x32xf32>, vector<32x168xf32>, vector<252x168xf32> -> vector<252x168xf32>
    %14 = arith.addf %10, %13 : vector<252x168xf32>
    %15 = vector.extract_strided_slice %0 {offsets = [3, 0], sizes = [252, 32], strides = [1, 1]} : vector<256x32xf32> to vector<252x32xf32>
    %16 = vector.extract_strided_slice %1 {offsets = [96, 0], sizes = [32, 168], strides = [1, 1]} : vector<160x168xf32> to vector<32x168xf32>
    %cst_9 = arith.constant dense<0.000000e+00> : vector<252x168xf32>
    %17 = tpu.matmul %15, %16, %cst_9 {dimension_numbers = #tpu.dot_dimension_numbers<[1], [0], [0], [1], [0, 0, 1, 1], [], []>} : vector<252x32xf32>, vector<32x168xf32>, vector<252x168xf32> -> vector<252x168xf32>
    %18 = arith.addf %14, %17 : vector<252x168xf32>
    %19 = vector.extract_strided_slice %0 {offsets = [4, 0], sizes = [252, 32], strides = [1, 1]} : vector<256x32xf32> to vector<252x32xf32>
    %20 = vector.extract_strided_slice %1 {offsets = [128, 0], sizes = [32, 168], strides = [1, 1]} : vector<160x168xf32> to vector<32x168xf32>
    %cst_10 = arith.constant dense<0.000000e+00> : vector<252x168xf32>
    %21 = tpu.matmul %19, %20, %cst_10 {dimension_numbers = #tpu.dot_dimension_numbers<[1], [0], [0], [1], [0, 0, 1, 1], [], []>} : vector<252x32xf32>, vector<32x168xf32>, vector<252x168xf32> -> vector<252x168xf32>
    %22 = arith.addf %18, %21 : vector<252x168xf32>
    %c0_11 = arith.constant 0 : index
    %c0_12 = arith.constant 0 : index
    %23 = vector.load %arg3[%c0_11, %c0_12] : memref<1x168xf32, #tpu.memory_space<vmem>>, vector<1x168xf32>
    %24 = vector.broadcast %23 : vector<1x168xf32> to vector<252x168xf32>
    %25 = arith.addf %22, %24 : vector<252x168xf32>
    %cst_13 = arith.constant 0.000000e+00 : f32
    %26 = vector.broadcast %cst_13 : f32 to vector<252x168xf32>
    %27 = arith.maximumf %25, %26 : vector<252x168xf32>
    %28 = vector.extract_strided_slice %27 {offsets = [0, 0], sizes = [252, 162], strides = [1, 1]} : vector<252x168xf32> to vector<252x162xf32>
    %29 = vector.extract_strided_slice %27 {offsets = [0, 6], sizes = [252, 162], strides = [1, 1]} : vector<252x168xf32> to vector<252x162xf32>
    %30 = arith.maximumf %28, %29 : vector<252x162xf32>
    %31 = vector.extract_strided_slice %30 {offsets = [0, 0], sizes = [251, 162], strides = [1, 1]} : vector<252x162xf32> to vector<251x162xf32>
    %32 = vector.extract_strided_slice %30 {offsets = [1, 0], sizes = [251, 162], strides = [1, 1]} : vector<252x162xf32> to vector<251x162xf32>
    %33 = arith.maximumf %31, %32 : vector<251x162xf32>
    %34 = vector.extract_strided_slice %33 {offsets = [0, 0], sizes = [243, 162], strides = [1, 1]} : vector<251x162xf32> to vector<243x162xf32>
    %35 = vector.extract_strided_slice %2 {offsets = [0, 0], sizes = [162, 160], strides = [1, 1]} : vector<810x160xf32> to vector<162x160xf32>
    %cst_14 = arith.constant dense<0.000000e+00> : vector<243x160xf32>
    %36 = tpu.matmul %34, %35, %cst_14 {dimension_numbers = #tpu.dot_dimension_numbers<[1], [0], [0], [1], [0, 0, 1, 1], [], []>} : vector<243x162xf32>, vector<162x160xf32>, vector<243x160xf32> -> vector<243x160xf32>
    %37 = vector.extract_strided_slice %33 {offsets = [2, 0], sizes = [243, 162], strides = [1, 1]} : vector<251x162xf32> to vector<243x162xf32>
    %38 = vector.extract_strided_slice %2 {offsets = [162, 0], sizes = [162, 160], strides = [1, 1]} : vector<810x160xf32> to vector<162x160xf32>
    %cst_15 = arith.constant dense<0.000000e+00> : vector<243x160xf32>
    %39 = tpu.matmul %37, %38, %cst_15 {dimension_numbers = #tpu.dot_dimension_numbers<[1], [0], [0], [1], [0, 0, 1, 1], [], []>} : vector<243x162xf32>, vector<162x160xf32>, vector<243x160xf32> -> vector<243x160xf32>
    %40 = arith.addf %36, %39 : vector<243x160xf32>
    %41 = vector.extract_strided_slice %33 {offsets = [4, 0], sizes = [243, 162], strides = [1, 1]} : vector<251x162xf32> to vector<243x162xf32>
    %42 = vector.extract_strided_slice %2 {offsets = [324, 0], sizes = [162, 160], strides = [1, 1]} : vector<810x160xf32> to vector<162x160xf32>
    %cst_16 = arith.constant dense<0.000000e+00> : vector<243x160xf32>
    %43 = tpu.matmul %41, %42, %cst_16 {dimension_numbers = #tpu.dot_dimension_numbers<[1], [0], [0], [1], [0, 0, 1, 1], [], []>} : vector<243x162xf32>, vector<162x160xf32>, vector<243x160xf32> -> vector<243x160xf32>
    %44 = arith.addf %40, %43 : vector<243x160xf32>
    %45 = vector.extract_strided_slice %33 {offsets = [6, 0], sizes = [243, 162], strides = [1, 1]} : vector<251x162xf32> to vector<243x162xf32>
    %46 = vector.extract_strided_slice %2 {offsets = [486, 0], sizes = [162, 160], strides = [1, 1]} : vector<810x160xf32> to vector<162x160xf32>
    %cst_17 = arith.constant dense<0.000000e+00> : vector<243x160xf32>
    %47 = tpu.matmul %45, %46, %cst_17 {dimension_numbers = #tpu.dot_dimension_numbers<[1], [0], [0], [1], [0, 0, 1, 1], [], []>} : vector<243x162xf32>, vector<162x160xf32>, vector<243x160xf32> -> vector<243x160xf32>
    %48 = arith.addf %44, %47 : vector<243x160xf32>
    %49 = vector.extract_strided_slice %33 {offsets = [8, 0], sizes = [243, 162], strides = [1, 1]} : vector<251x162xf32> to vector<243x162xf32>
    %50 = vector.extract_strided_slice %2 {offsets = [648, 0], sizes = [162, 160], strides = [1, 1]} : vector<810x160xf32> to vector<162x160xf32>
    %cst_18 = arith.constant dense<0.000000e+00> : vector<243x160xf32>
    %51 = tpu.matmul %49, %50, %cst_18 {dimension_numbers = #tpu.dot_dimension_numbers<[1], [0], [0], [1], [0, 0, 1, 1], [], []>} : vector<243x162xf32>, vector<162x160xf32>, vector<243x160xf32> -> vector<243x160xf32>
    %52 = arith.addf %48, %51 : vector<243x160xf32>
    %c0_19 = arith.constant 0 : index
    %c0_20 = arith.constant 0 : index
    %53 = vector.load %arg5[%c0_19, %c0_20] : memref<1x160xf32, #tpu.memory_space<vmem>>, vector<1x160xf32>
    %54 = vector.broadcast %53 : vector<1x160xf32> to vector<243x160xf32>
    %55 = arith.addf %52, %54 : vector<243x160xf32>
    %cst_21 = arith.constant 0.000000e+00 : f32
    %56 = vector.broadcast %cst_21 : f32 to vector<243x160xf32>
    %57 = arith.maximumf %55, %56 : vector<243x160xf32>
    %58 = vector.extract_strided_slice %57 {offsets = [0, 0], sizes = [243, 144], strides = [1, 1]} : vector<243x160xf32> to vector<243x144xf32>
    %59 = vector.extract_strided_slice %57 {offsets = [0, 16], sizes = [243, 144], strides = [1, 1]} : vector<243x160xf32> to vector<243x144xf32>
    %60 = arith.maximumf %58, %59 : vector<243x144xf32>
    %61 = vector.extract_strided_slice %60 {offsets = [0, 0], sizes = [241, 144], strides = [1, 1]} : vector<243x144xf32> to vector<241x144xf32>
    %62 = vector.extract_strided_slice %60 {offsets = [2, 0], sizes = [241, 144], strides = [1, 1]} : vector<243x144xf32> to vector<241x144xf32>
    %63 = arith.maximumf %61, %62 : vector<241x144xf32>
    %64 = vector.extract_strided_slice %63 {offsets = [0, 0], sizes = [225, 144], strides = [1, 1]} : vector<241x144xf32> to vector<225x144xf32>
    %65 = vector.extract_strided_slice %3 {offsets = [0, 0], sizes = [144, 128], strides = [1, 1]} : vector<720x128xf32> to vector<144x128xf32>
    %cst_22 = arith.constant dense<0.000000e+00> : vector<225x128xf32>
    %66 = tpu.matmul %64, %65, %cst_22 {dimension_numbers = #tpu.dot_dimension_numbers<[1], [0], [0], [1], [0, 0, 1, 1], [], []>} : vector<225x144xf32>, vector<144x128xf32>, vector<225x128xf32> -> vector<225x128xf32>
    %67 = vector.extract_strided_slice %63 {offsets = [4, 0], sizes = [225, 144], strides = [1, 1]} : vector<241x144xf32> to vector<225x144xf32>
    %68 = vector.extract_strided_slice %3 {offsets = [144, 0], sizes = [144, 128], strides = [1, 1]} : vector<720x128xf32> to vector<144x128xf32>
    %cst_23 = arith.constant dense<0.000000e+00> : vector<225x128xf32>
    %69 = tpu.matmul %67, %68, %cst_23 {dimension_numbers = #tpu.dot_dimension_numbers<[1], [0], [0], [1], [0, 0, 1, 1], [], []>} : vector<225x144xf32>, vector<144x128xf32>, vector<225x128xf32> -> vector<225x128xf32>
    %70 = arith.addf %66, %69 : vector<225x128xf32>
    %71 = vector.extract_strided_slice %63 {offsets = [8, 0], sizes = [225, 144], strides = [1, 1]} : vector<241x144xf32> to vector<225x144xf32>
    %72 = vector.extract_strided_slice %3 {offsets = [288, 0], sizes = [144, 128], strides = [1, 1]} : vector<720x128xf32> to vector<144x128xf32>
    %cst_24 = arith.constant dense<0.000000e+00> : vector<225x128xf32>
    %73 = tpu.matmul %71, %72, %cst_24 {dimension_numbers = #tpu.dot_dimension_numbers<[1], [0], [0], [1], [0, 0, 1, 1], [], []>} : vector<225x144xf32>, vector<144x128xf32>, vector<225x128xf32> -> vector<225x128xf32>
    %74 = arith.addf %70, %73 : vector<225x128xf32>
    %75 = vector.extract_strided_slice %63 {offsets = [12, 0], sizes = [225, 144], strides = [1, 1]} : vector<241x144xf32> to vector<225x144xf32>
    %76 = vector.extract_strided_slice %3 {offsets = [432, 0], sizes = [144, 128], strides = [1, 1]} : vector<720x128xf32> to vector<144x128xf32>
    %cst_25 = arith.constant dense<0.000000e+00> : vector<225x128xf32>
    %77 = tpu.matmul %75, %76, %cst_25 {dimension_numbers = #tpu.dot_dimension_numbers<[1], [0], [0], [1], [0, 0, 1, 1], [], []>} : vector<225x144xf32>, vector<144x128xf32>, vector<225x128xf32> -> vector<225x128xf32>
    %78 = arith.addf %74, %77 : vector<225x128xf32>
    %79 = vector.extract_strided_slice %63 {offsets = [16, 0], sizes = [225, 144], strides = [1, 1]} : vector<241x144xf32> to vector<225x144xf32>
    %80 = vector.extract_strided_slice %3 {offsets = [576, 0], sizes = [144, 128], strides = [1, 1]} : vector<720x128xf32> to vector<144x128xf32>
    %cst_26 = arith.constant dense<0.000000e+00> : vector<225x128xf32>
    %81 = tpu.matmul %79, %80, %cst_26 {dimension_numbers = #tpu.dot_dimension_numbers<[1], [0], [0], [1], [0, 0, 1, 1], [], []>} : vector<225x144xf32>, vector<144x128xf32>, vector<225x128xf32> -> vector<225x128xf32>
    %82 = arith.addf %78, %81 : vector<225x128xf32>
    %83 = tpu.iota {dimensions = array<i32: 0>} : vector<8x225xi32>
    %84 = tpu.iota {dimensions = array<i32: 1>} : vector<8x225xi32>
    %c32_i32 = arith.constant 32 : i32
    %85 = vector.broadcast %c32_i32 : i32 to vector<8x225xi32>
    %86 = arith.muli %83, %85 : vector<8x225xi32>
    %87 = arith.cmpi eq, %84, %86 : vector<8x225xi32>
    %88 = arith.extui %87 : vector<8x225xi1> to vector<8x225xi32>
    %89 = arith.sitofp %88 : vector<8x225xi32> to vector<8x225xf32>
    %cst_27 = arith.constant dense<0.000000e+00> : vector<8x128xf32>
    %90 = tpu.matmul %89, %82, %cst_27 {dimension_numbers = #tpu.dot_dimension_numbers<[1], [0], [0], [1], [0, 0, 1, 1], [], []>} : vector<8x225xf32>, vector<225x128xf32>, vector<8x128xf32> -> vector<8x128xf32>
    %c0_28 = arith.constant 0 : index
    %c0_29 = arith.constant 0 : index
    %91 = vector.load %arg7[%c0_28, %c0_29] : memref<1x128xf32, #tpu.memory_space<vmem>>, vector<1x128xf32>
    %92 = vector.broadcast %91 : vector<1x128xf32> to vector<8x128xf32>
    %93 = arith.addf %90, %92 : vector<8x128xf32>
    %cst_30 = arith.constant 0.000000e+00 : f32
    %94 = vector.broadcast %cst_30 : f32 to vector<8x128xf32>
    %95 = arith.maximumf %93, %94 : vector<8x128xf32>
    %c0_31 = arith.constant 0 : index
    %c0_32 = arith.constant 0 : index
    %96 = vector.load %arg8[%c0_31, %c0_32] : memref<128x128xf32, #tpu.memory_space<vmem>>, vector<128x128xf32>
    %cst_33 = arith.constant dense<0.000000e+00> : vector<8x128xf32>
    %97 = tpu.matmul %95, %96, %cst_33 {dimension_numbers = #tpu.dot_dimension_numbers<[1], [0], [0], [1], [0, 0, 1, 1], [], []>} : vector<8x128xf32>, vector<128x128xf32>, vector<8x128xf32> -> vector<8x128xf32>
    %c0_34 = arith.constant 0 : index
    %c0_35 = arith.constant 0 : index
    %98 = vector.load %arg9[%c0_34, %c0_35] : memref<1x128xf32, #tpu.memory_space<vmem>>, vector<1x128xf32>
    %99 = vector.broadcast %98 : vector<1x128xf32> to vector<8x128xf32>
    %100 = arith.addf %97, %99 : vector<8x128xf32>
    %cst_36 = arith.constant 0.000000e+00 : f32
    %101 = vector.broadcast %cst_36 : f32 to vector<8x128xf32>
    %102 = arith.maximumf %100, %101 : vector<8x128xf32>
    %c0_37 = arith.constant 0 : index
    %c0_38 = arith.constant 0 : index
    %103 = vector.load %arg10[%c0_37, %c0_38] : memref<128x10xf32, #tpu.memory_space<vmem>>, vector<128x10xf32>
    %cst_39 = arith.constant dense<0.000000e+00> : vector<8x10xf32>
    %104 = tpu.matmul %102, %103, %cst_39 {dimension_numbers = #tpu.dot_dimension_numbers<[1], [0], [0], [1], [0, 0, 1, 1], [], []>} : vector<8x128xf32>, vector<128x10xf32>, vector<8x10xf32> -> vector<8x10xf32>
    %c0_40 = arith.constant 0 : index
    %c0_41 = arith.constant 0 : index
    %105 = vector.load %arg11[%c0_40, %c0_41] : memref<1x10xf32, #tpu.memory_space<vmem>>, vector<1x10xf32>
    %106 = vector.broadcast %105 : vector<1x10xf32> to vector<8x10xf32>
    %107 = arith.addf %104, %106 : vector<8x10xf32>
    %cst_42 = arith.constant dense<0xFF800000> : vector<8xf32>
    %108 = vector.multi_reduction <maximumf>, %107, %cst_42 [1] : vector<8x10xf32> to vector<8xf32>
    %109 = vector.shape_cast %108 : vector<8xf32> to vector<8x1xf32>
    %110 = vector.broadcast %109 : vector<8x1xf32> to vector<8x10xf32>
    %111 = arith.subf %107, %110 : vector<8x10xf32>
    %112 = math.exp %111 : vector<8x10xf32>
    %cst_43 = arith.constant dense<0.000000e+00> : vector<8xf32>
    %113 = vector.multi_reduction <add>, %112, %cst_43 [1] : vector<8x10xf32> to vector<8xf32>
    %114 = vector.shape_cast %113 : vector<8xf32> to vector<8x1xf32>
    %115 = vector.broadcast %114 : vector<8x1xf32> to vector<8x10xf32>
    %116 = arith.divf %112, %115 : vector<8x10xf32>
    %c0_44 = arith.constant 0 : index
    %c0_45 = arith.constant 0 : index
    %117 = vector.load %arg12[%c0_44, %c0_45] : memref<8x10xf32, #tpu.memory_space<vmem>>, vector<8x10xf32>
    tpu.vector_store %arg12[%c0_44, %c0_45], %116 {strides = array<i32>} : memref<8x10xf32, #tpu.memory_space<vmem>>, vector<8x10xf32>,
    return
  }
  func.func @transform_0(%arg0: i32) -> (i32, i32) {
    %c0_i32 = arith.constant 0 : i32
    %c0_i32_0 = arith.constant 0 : i32
    return %arg0, %c0_i32 : i32, i32
  }
  func.func @transform_1(%arg0: i32) -> (i32, i32) {
    %c0_i32 = arith.constant 0 : i32
    %c0_i32_0 = arith.constant 0 : i32
    %c0_i32_1 = arith.constant 0 : i32
    return %c0_i32, %c0_i32_0 : i32, i32
  }
  func.func @transform_2(%arg0: i32) -> (i32, i32) {
    %c0_i32 = arith.constant 0 : i32
    %c0_i32_0 = arith.constant 0 : i32
    %c0_i32_1 = arith.constant 0 : i32
    return %c0_i32, %c0_i32_0 : i32, i32
  }
  func.func @transform_3(%arg0: i32) -> (i32, i32) {
    %c0_i32 = arith.constant 0 : i32
    %c0_i32_0 = arith.constant 0 : i32
    %c0_i32_1 = arith.constant 0 : i32
    return %c0_i32, %c0_i32_0 : i32, i32
  }
  func.func @transform_4(%arg0: i32) -> (i32, i32) {
    %c0_i32 = arith.constant 0 : i32
    %c0_i32_0 = arith.constant 0 : i32
    %c0_i32_1 = arith.constant 0 : i32
    return %c0_i32, %c0_i32_0 : i32, i32
  }
  func.func @transform_5(%arg0: i32) -> (i32, i32) {
    %c0_i32 = arith.constant 0 : i32
    %c0_i32_0 = arith.constant 0 : i32
    %c0_i32_1 = arith.constant 0 : i32
    return %c0_i32, %c0_i32_0 : i32, i32
  }
  func.func @transform_6(%arg0: i32) -> (i32, i32) {
    %c0_i32 = arith.constant 0 : i32
    %c0_i32_0 = arith.constant 0 : i32
    %c0_i32_1 = arith.constant 0 : i32
    return %c0_i32, %c0_i32_0 : i32, i32
  }
  func.func @transform_7(%arg0: i32) -> (i32, i32) {
    %c0_i32 = arith.constant 0 : i32
    %c0_i32_0 = arith.constant 0 : i32
    %c0_i32_1 = arith.constant 0 : i32
    return %c0_i32, %c0_i32_0 : i32, i32
  }
  func.func @transform_8(%arg0: i32) -> (i32, i32) {
    %c0_i32 = arith.constant 0 : i32
    %c0_i32_0 = arith.constant 0 : i32
    %c0_i32_1 = arith.constant 0 : i32
    return %c0_i32, %c0_i32_0 : i32, i32
  }
  func.func @transform_9(%arg0: i32) -> (i32, i32) {
    %c0_i32 = arith.constant 0 : i32
    %c0_i32_0 = arith.constant 0 : i32
    %c0_i32_1 = arith.constant 0 : i32
    return %c0_i32, %c0_i32_0 : i32, i32
  }
  func.func @transform_10(%arg0: i32) -> (i32, i32) {
    %c0_i32 = arith.constant 0 : i32
    %c0_i32_0 = arith.constant 0 : i32
    %c0_i32_1 = arith.constant 0 : i32
    return %c0_i32, %c0_i32_0 : i32, i32
  }
  func.func @transform_11(%arg0: i32) -> (i32, i32) {
    %c0_i32 = arith.constant 0 : i32
    %c0_i32_0 = arith.constant 0 : i32
    return %arg0, %c0_i32 : i32, i32
  }
}

</mosaic_0001>

<llo_original>
// kernel: lenet5_forward.1
$region0: #{lenet5_forward.1}
  #allocation0 [shape = 'u32[]', space=smem, size = 0x4, offset = 0x4, fixed_abs, tag = 'smem constant byte address 0x4 - core index']
  #allocation1 [shape = 'u32[144,128]{1,0:T(1,128)}', space=vmem, size = 0x12000, scoped, tag = 'internal scratch']
  %s0 = inlined_call_operand.vmem [shape: f32[256,32], index: 0, kind: input, shape index: {}]
  %s1 = inlined_call_operand.vmem [shape: f32[160,168], index: 1, kind: input, shape index: {}]
  %s2 = inlined_call_operand.vmem [shape: f32[1,168], index: 2, kind: input, shape index: {}]
  %s3 = inlined_call_operand.vmem [shape: f32[810,160], index: 3, kind: input, shape index: {}]
  %s4 = inlined_call_operand.vmem [shape: f32[1,160], index: 4, kind: input, shape index: {}]
  %s5 = inlined_call_operand.vmem [shape: f32[720,128], index: 5, kind: input, shape index: {}]
  %s6 = inlined_call_operand.vmem [shape: f32[1,128], index: 6, kind: input, shape index: {}]
  %s7 = inlined_call_operand.vmem [shape: f32[128,128], index: 7, kind: input, shape index: {}]
  %s8 = inlined_call_operand.vmem [shape: f32[1,128], index: 8, kind: input, shape index: {}]
  %s9 = inlined_call_operand.vmem [shape: f32[128,10], index: 9, kind: input, shape index: {}]
  %s10 = inlined_call_operand.vmem [shape: f32[1,10], index: 10, kind: input, shape index: {}]
  %s11 = inlined_call_operand.vmem [shape: f32[8,10], index: 11, kind: output, shape index: {}]
  %s12 = sld [smem:[#allocation0]]
  $region54: #{lenet5_forward.1} parent=0
    _
  %s14 = ssub.s32 1, %s12
  %s15 = scalar_select 0, %s14, %s12
  // Predicated region
  $region2: #{lenet5_forward.1} parent=0 // pred_check
    _
  $region3: #{lenet5_forward.1} parent=0 // pred_check_branch
    %17 = sbr.rel (0) target = $region5
  $region4: #{lenet5_forward.1} parent=0 // pred_region
    _
  $region5: #{lenet5_forward.1} parent=0 // pred_fallthru
    _
  // Predicated region
  $region6: #{lenet5_forward.1} parent=0 // pred_check
    _
  $region7: #{lenet5_forward.1} parent=0 // pred_check_branch
    %19 = sbr.rel (0) target = $region9
  $region8: #{lenet5_forward.1} parent=0 // pred_region
    _
  $region9: #{lenet5_forward.1} parent=0 // pred_fallthru
    _
  // Predicated region
  $region10: #{lenet5_forward.1} parent=0 // pred_check
    _
  $region11: #{lenet5_forward.1} parent=0 // pred_check_branch
    %21 = sbr.rel (0) target = $region13
  $region12: #{lenet5_forward.1} parent=0 // pred_region
    _
  $region13: #{lenet5_forward.1} parent=0 // pred_fallthru
    _
  // Predicated region
  $region14: #{lenet5_forward.1} parent=0 // pred_check
    _
  $region15: #{lenet5_forward.1} parent=0 // pred_check_branch
    %23 = sbr.rel (0) target = $region17
  $region16: #{lenet5_forward.1} parent=0 // pred_region
    _
  $region17: #{lenet5_forward.1} parent=0 // pred_fallthru
    _
  // Predicated region
  $region18: #{lenet5_forward.1} parent=0 // pred_check
    _
  $region19: #{lenet5_forward.1} parent=0 // pred_check_branch
    %25 = sbr.rel (0) target = $region21
  $region20: #{lenet5_forward.1} parent=0 // pred_region
    _
  $region21: #{lenet5_forward.1} parent=0 // pred_fallthru
    _
  // Predicated region
  $region22: #{lenet5_forward.1} parent=0 // pred_check
    _
  $region23: #{lenet5_forward.1} parent=0 // pred_check_branch
    %27 = sbr.rel (0) target = $region25
  $region24: #{lenet5_forward.1} parent=0 // pred_region
    _
  $region25: #{lenet5_forward.1} parent=0 // pred_fallthru
    _
  // Predicated region
  $region26: #{lenet5_forward.1} parent=0 // pred_check
    _
  $region27: #{lenet5_forward.1} parent=0 // pred_check_branch
    %29 = sbr.rel (0) target = $region29
  $region28: #{lenet5_forward.1} parent=0 // pred_region
    _
  $region29: #{lenet5_forward.1} parent=0 // pred_fallthru
    _
  // Predicated region
  $region30: #{lenet5_forward.1} parent=0 // pred_check
    _
  $region31: #{lenet5_forward.1} parent=0 // pred_check_branch
    %31 = sbr.rel (0) target = $region33
  $region32: #{lenet5_forward.1} parent=0 // pred_region
    _
  $region33: #{lenet5_forward.1} parent=0 // pred_fallthru
    _
  // Predicated region
  $region34: #{lenet5_forward.1} parent=0 // pred_check
    _
  $region35: #{lenet5_forward.1} parent=0 // pred_check_branch
    %33 = sbr.rel (0) target = $region37
  $region36: #{lenet5_forward.1} parent=0 // pred_region
    _
  $region37: #{lenet5_forward.1} parent=0 // pred_fallthru
    _
  // Predicated region
  $region38: #{lenet5_forward.1} parent=0 // pred_check
    _
  $region39: #{lenet5_forward.1} parent=0 // pred_check_branch
    %35 = sbr.rel (0) target = $region41
  $region40: #{lenet5_forward.1} parent=0 // pred_region
    _
  $region41: #{lenet5_forward.1} parent=0 // pred_fallthru
    _
  // Predicated region
  $region42: #{lenet5_forward.1} parent=0 // pred_check
    _
  $region43: #{lenet5_forward.1} parent=0 // pred_check_branch
    %37 = sbr.rel (0) target = $region45
  $region44: #{lenet5_forward.1} parent=0 // pred_region
    _
  $region45: #{lenet5_forward.1} parent=0 // pred_fallthru
    _
  %v38 = vld [vmem:[%s0] sm:$0xff]
  %v39 = vld [vmem:[%s0 + $0x8] sm:$0xff]
  %v40 = vld [vmem:[%s0 + $0x10] sm:$0xff]
  %v41 = vld [vmem:[%s0 + $0x18] sm:$0xff]
  %v42 = vld [vmem:[%s0 + $0x20] sm:$0xff]
  %v43 = vld [vmem:[%s0 + $0x28] sm:$0xff]
  %v44 = vld [vmem:[%s0 + $0x30] sm:$0xff]
  %v45 = vld [vmem:[%s0 + $0x38] sm:$0xff]
  %v46 = vld [vmem:[%s0 + $0x40] sm:$0xff]
  %v47 = vld [vmem:[%s0 + $0x48] sm:$0xff]
  %v48 = vld [vmem:[%s0 + $0x50] sm:$0xff]
  %v49 = vld [vmem:[%s0 + $0x58] sm:$0xff]
  %v50 = vld [vmem:[%s0 + $0x60] sm:$0xff]
  %v51 = vld [vmem:[%s0 + $0x68] sm:$0xff]
  %v52 = vld [vmem:[%s0 + $0x70] sm:$0xff]
  %v53 = vld [vmem:[%s0 + $0x78] sm:$0xff]
  %v54 = vld [vmem:[%s0 + $0x80] sm:$0xff]
  %v55 = vld [vmem:[%s0 + $0x88] sm:$0xff]
  %v56 = vld [vmem:[%s0 + $0x90] sm:$0xff]
  %v57 = vld [vmem:[%s0 + $0x98] sm:$0xff]
  %v58 = vld [vmem:[%s0 + $0xa0] sm:$0xff]
  %v59 = vld [vmem:[%s0 + $0xa8] sm:$0xff]
  %v60 = vld [vmem:[%s0 + $0xb0] sm:$0xff]
  %v61 = vld [vmem:[%s0 + $0xb8] sm:$0xff]
  %v62 = vld [vmem:[%s0 + $0xc0] sm:$0xff]
  %v63 = vld [vmem:[%s0 + $0xc8] sm:$0xff]
  %v64 = vld [vmem:[%s0 + $0xd0] sm:$0xff]
  %v65 = vld [vmem:[%s0 + $0xd8] sm:$0xff]
  %v66 = vld [vmem:[%s0 + $0xe0] sm:$0xff]
  %v67 = vld [vmem:[%s0 + $0xe8] sm:$0xff]
  %v68 = vld [vmem:[%s0 + $0xf0] sm:$0xff]
  %v69 = vld [vmem:[%s0 + $0xf8] sm:$0xff]
  %v70 = vld [vmem:[%s1] sm:$0xff]
  %v71 = vld [vmem:[%s1 + $0x8] sm:$0xff]
  %v72 = vld [vmem:[%s1 + $0x10] sm:$0xff]
  %v73 = vld [vmem:[%s1 + $0x18] sm:$0xff]
  %v74 = vld [vmem:[%s1 + $0x20] sm:$0xff]
  %v75 = vld [vmem:[%s1 + $0x28] sm:$0xff]
  %v76 = vld [vmem:[%s1 + $0x30] sm:$0xff]
  %v77 = vld [vmem:[%s1 + $0x38] sm:$0xff]
  %v78 = vld [vmem:[%s1 + $0x40] sm:$0xff]
  %v79 = vld [vmem:[%s1 + $0x48] sm:$0xff]
  %v80 = vld [vmem:[%s1 + $0x50] sm:$0xff]
  %v81 = vld [vmem:[%s1 + $0x58] sm:$0xff]
  %v82 = vld [vmem:[%s1 + $0x60] sm:$0xff]
  %v83 = vld [vmem:[%s1 + $0x68] sm:$0xff]
  %v84 = vld [vmem:[%s1 + $0x70] sm:$0xff]
  %v85 = vld [vmem:[%s1 + $0x78] sm:$0xff]
  %v86 = vld [vmem:[%s1 + $0x80] sm:$0xff]
  %v87 = vld [vmem:[%s1 + $0x88] sm:$0xff]
  %v88 = vld [vmem:[%s1 + $0x90] sm:$0xff]
  %v89 = vld [vmem:[%s1 + $0x98] sm:$0xff]
  %v90 = vld [vmem:[%s1 + $0xa0] sm:$0xff]
  %v91 = vld [vmem:[%s1 + $0xa8] sm:$0xff]
  %v92 = vld [vmem:[%s1 + $0xb0] sm:$0xff]
  %v93 = vld [vmem:[%s1 + $0xb8] sm:$0xff]
  %v94 = vld [vmem:[%s1 + $0xc0] sm:$0xff]
  %v95 = vld [vmem:[%s1 + $0xc8] sm:$0xff]
  %v96 = vld [vmem:[%s1 + $0xd0] sm:$0xff]
  %v97 = vld [vmem:[%s1 + $0xd8] sm:$0xff]
  %v98 = vld [vmem:[%s1 + $0xe0] sm:$0xff]
  %v99 = vld [vmem:[%s1 + $0xe8] sm:$0xff]
  %v100 = vld [vmem:[%s1 + $0xf0] sm:$0xff]
  %v101 = vld [vmem:[%s1 + $0xf8] sm:$0xff]
  %v102 = vld [vmem:[%s1 + $0x100] sm:$0xff]
  %v103 = vld [vmem:[%s1 + $0x108] sm:$0xff]
  %v104 = vld [vmem:[%s1 + $0x110] sm:$0xff]
  %v105 = vld [vmem:[%s1 + $0x118] sm:$0xff]
  %v106 = vld [vmem:[%s1 + $0x120] sm:$0xff]
  %v107 = vld [vmem:[%s1 + $0x128] sm:$0xff]
  %v108 = vld [vmem:[%s1 + $0x130] sm:$0xff]
  %v109 = vld [vmem:[%s1 + $0x138] sm:$0xff]
  %v110 = vld [vmem:[%s3] sm:$0xff]
  %v111 = vld [vmem:[%s3 + $0x8] sm:$0xff]
  %v112 = vld [vmem:[%s3 + $0x10] sm:$0xff]
  %v113 = vld [vmem:[%s3 + $0x18] sm:$0xff]
  %v114 = vld [vmem:[%s3 + $0x20] sm:$0xff]
  %v115 = vld [vmem:[%s3 + $0x28] sm:$0xff]
  %v116 = vld [vmem:[%s3 + $0x30] sm:$0xff]
  %v117 = vld [vmem:[%s3 + $0x38] sm:$0xff]
  %v118 = vld [vmem:[%s3 + $0x40] sm:$0xff]
  %v119 = vld [vmem:[%s3 + $0x48] sm:$0xff]
  %v120 = vld [vmem:[%s3 + $0x50] sm:$0xff]
  %v121 = vld [vmem:[%s3 + $0x58] sm:$0xff]
  %v122 = vld [vmem:[%s3 + $0x60] sm:$0xff]
  %v123 = vld [vmem:[%s3 + $0x68] sm:$0xff]
  %v124 = vld [vmem:[%s3 + $0x70] sm:$0xff]
  %v125 = vld [vmem:[%s3 + $0x78] sm:$0xff]
  %v126 = vld [vmem:[%s3 + $0x80] sm:$0xff]
  %v127 = vld [vmem:[%s3 + $0x88] sm:$0xff]
  %v128 = vld [vmem:[%s3 + $0x90] sm:$0xff]
  %v129 = vld [vmem:[%s3 + $0x98] sm:$0xff]
  %v130 = vld [vmem:[%s3 + $0xa0] sm:$0xff]
  %v131 = vld [vmem:[%s3 + $0xa8] sm:$0xff]
  %v132 = vld [vmem:[%s3 + $0xb0] sm:$0xff]
  %v133 = vld [vmem:[%s3 + $0xb8] sm:$0xff]
  %v134 = vld [vmem:[%s3 + $0xc0] sm:$0xff]
  %v135 = vld [vmem:[%s3 + $0xc8] sm:$0xff]
  %v136 = vld [vmem:[%s3 + $0xd0] sm:$0xff]
  %v137 = vld [vmem:[%s3 + $0xd8] sm:$0xff]
  %v138 = vld [vmem:[%s3 + $0xe0] sm:$0xff]
  %v139 = vld [vmem:[%s3 + $0xe8] sm:$0xff]
  %v140 = vld [vmem:[%s3 + $0xf0] sm:$0xff]
  %v141 = vld [vmem:[%s3 + $0xf8] sm:$0xff]
  %v142 = vld [vmem:[%s3 + $0x100] sm:$0xff]
  %v143 = vld [vmem:[%s3 + $0x108] sm:$0xff]
  %v144 = vld [vmem:[%s3 + $0x110] sm:$0xff]
  %v145 = vld [vmem:[%s3 + $0x118] sm:$0xff]
  %v146 = vld [vmem:[%s3 + $0x120] sm:$0xff]
  %v147 = vld [vmem:[%s3 + $0x128] sm:$0xff]
  %v148 = vld [vmem:[%s3 + $0x130] sm:$0xff]
  %v149 = vld [vmem:[%s3 + $0x138] sm:$0xff]
  %v150 = vld [vmem:[%s3 + $0x140] sm:$0xff]
  %v151 = vld [vmem:[%s3 + $0x148] sm:$0xff]
  %v152 = vld [vmem:[%s3 + $0x150] sm:$0xff]
  %v153 = vld [vmem:[%s3 + $0x158] sm:$0xff]
  %v154 = vld [vmem:[%s3 + $0x160] sm:$0xff]
  %v155 = vld [vmem:[%s3 + $0x168] sm:$0xff]
  %v156 = vld [vmem:[%s3 + $0x170] sm:$0xff]
  %v157 = vld [vmem:[%s3 + $0x178] sm:$0xff]
  %v158 = vld [vmem:[%s3 + $0x180] sm:$0xff]
  %v159 = vld [vmem:[%s3 + $0x188] sm:$0xff]
  %v160 = vld [vmem:[%s3 + $0x190] sm:$0xff]
  %v161 = vld [vmem:[%s3 + $0x198] sm:$0xff]
  %v162 = vld [vmem:[%s3 + $0x1a0] sm:$0xff]
  %v163 = vld [vmem:[%s3 + $0x1a8] sm:$0xff]
  %v164 = vld [vmem:[%s3 + $0x1b0] sm:$0xff]
  %v165 = vld [vmem:[%s3 + $0x1b8] sm:$0xff]
  %v166 = vld [vmem:[%s3 + $0x1c0] sm:$0xff]
  %v167 = vld [vmem:[%s3 + $0x1c8] sm:$0xff]
  %v168 = vld [vmem:[%s3 + $0x1d0] sm:$0xff]
  %v169 = vld [vmem:[%s3 + $0x1d8] sm:$0xff]
  %v170 = vld [vmem:[%s3 + $0x1e0] sm:$0xff]
  %v171 = vld [vmem:[%s3 + $0x1e8] sm:$0xff]
  %v172 = vld [vmem:[%s3 + $0x1f0] sm:$0xff]
  %v173 = vld [vmem:[%s3 + $0x1f8] sm:$0xff]
  %v174 = vld [vmem:[%s3 + $0x200] sm:$0xff]
  %v175 = vld [vmem:[%s3 + $0x208] sm:$0xff]
  %v176 = vld [vmem:[%s3 + $0x210] sm:$0xff]
  %v177 = vld [vmem:[%s3 + $0x218] sm:$0xff]
  %v178 = vld [vmem:[%s3 + $0x220] sm:$0xff]
  %v179 = vld [vmem:[%s3 + $0x228] sm:$0xff]
  %v180 = vld [vmem:[%s3 + $0x230] sm:$0xff]
  %v181 = vld [vmem:[%s3 + $0x238] sm:$0xff]
  %v182 = vld [vmem:[%s3 + $0x240] sm:$0xff]
  %v183 = vld [vmem:[%s3 + $0x248] sm:$0xff]
  %v184 = vld [vmem:[%s3 + $0x250] sm:$0xff]
  %v185 = vld [vmem:[%s3 + $0x258] sm:$0xff]
  %v186 = vld [vmem:[%s3 + $0x260] sm:$0xff]
  %v187 = vld [vmem:[%s3 + $0x268] sm:$0xff]
  %v188 = vld [vmem:[%s3 + $0x270] sm:$0xff]
  %v189 = vld [vmem:[%s3 + $0x278] sm:$0xff]
  %v190 = vld [vmem:[%s3 + $0x280] sm:$0xff]
  %v191 = vld [vmem:[%s3 + $0x288] sm:$0xff]
  %v192 = vld [vmem:[%s3 + $0x290] sm:$0xff]
  %v193 = vld [vmem:[%s3 + $0x298] sm:$0xff]
  %v194 = vld [vmem:[%s3 + $0x2a0] sm:$0xff]
  %v195 = vld [vmem:[%s3 + $0x2a8] sm:$0xff]
  %v196 = vld [vmem:[%s3 + $0x2b0] sm:$0xff]
  %v197 = vld [vmem:[%s3 + $0x2b8] sm:$0xff]
  %v198 = vld [vmem:[%s3 + $0x2c0] sm:$0xff]
  %v199 = vld [vmem:[%s3 + $0x2c8] sm:$0xff]
  %v200 = vld [vmem:[%s3 + $0x2d0] sm:$0xff]
  %v201 = vld [vmem:[%s3 + $0x2d8] sm:$0xff]
  %v202 = vld [vmem:[%s3 + $0x2e0] sm:$0xff]
  %v203 = vld [vmem:[%s3 + $0x2e8] sm:$0xff]
  %v204 = vld [vmem:[%s3 + $0x2f0] sm:$0xff]
  %v205 = vld [vmem:[%s3 + $0x2f8] sm:$0xff]
  %v206 = vld [vmem:[%s3 + $0x300] sm:$0xff]
  %v207 = vld [vmem:[%s3 + $0x308] sm:$0xff]
  %v208 = vld [vmem:[%s3 + $0x310] sm:$0xff]
  %v209 = vld [vmem:[%s3 + $0x318] sm:$0xff]
  %v210 = vld [vmem:[%s3 + $0x320] sm:$0xff]
  %v211 = vld [vmem:[%s3 + $0x328] sm:$0xff]
  %v212 = vld [vmem:[%s3 + $0x330] sm:$0xff]
  %v213 = vld [vmem:[%s3 + $0x338] sm:$0xff]
  %v214 = vld [vmem:[%s3 + $0x340] sm:$0xff]
  %v215 = vld [vmem:[%s3 + $0x348] sm:$0xff]
  %v216 = vld [vmem:[%s3 + $0x350] sm:$0xff]
  %v217 = vld [vmem:[%s3 + $0x358] sm:$0xff]
  %v218 = vld [vmem:[%s3 + $0x360] sm:$0xff]
  %v219 = vld [vmem:[%s3 + $0x368] sm:$0xff]
  %v220 = vld [vmem:[%s3 + $0x370] sm:$0xff]
  %v221 = vld [vmem:[%s3 + $0x378] sm:$0xff]
  %v222 = vld [vmem:[%s3 + $0x380] sm:$0xff]
  %v223 = vld [vmem:[%s3 + $0x388] sm:$0xff]
  %v224 = vld [vmem:[%s3 + $0x390] sm:$0xff]
  %v225 = vld [vmem:[%s3 + $0x398] sm:$0xff]
  %v226 = vld [vmem:[%s3 + $0x3a0] sm:$0xff]
  %v227 = vld [vmem:[%s3 + $0x3a8] sm:$0xff]
  %v228 = vld [vmem:[%s3 + $0x3b0] sm:$0xff]
  %v229 = vld [vmem:[%s3 + $0x3b8] sm:$0xff]
  %v230 = vld [vmem:[%s3 + $0x3c0] sm:$0xff]
  %v231 = vld [vmem:[%s3 + $0x3c8] sm:$0xff]
  %v232 = vld [vmem:[%s3 + $0x3d0] sm:$0xff]
  %v233 = vld [vmem:[%s3 + $0x3d8] sm:$0xff]
  %v234 = vld [vmem:[%s3 + $0x3e0] sm:$0xff]
  %v235 = vld [vmem:[%s3 + $0x3e8] sm:$0xff]
  %v236 = vld [vmem:[%s3 + $0x3f0] sm:$0xff]
  %v237 = vld [vmem:[%s3 + $0x3f8] sm:$0xff]
  %v238 = vld [vmem:[%s3 + $0x400] sm:$0xff]
  %v239 = vld [vmem:[%s3 + $0x408] sm:$0xff]
  %v240 = vld [vmem:[%s3 + $0x410] sm:$0xff]
  %v241 = vld [vmem:[%s3 + $0x418] sm:$0xff]
  %v242 = vld [vmem:[%s3 + $0x420] sm:$0xff]
  %v243 = vld [vmem:[%s3 + $0x428] sm:$0xff]
  %v244 = vld [vmem:[%s3 + $0x430] sm:$0xff]
  %v245 = vld [vmem:[%s3 + $0x438] sm:$0xff]
  %v246 = vld [vmem:[%s3 + $0x440] sm:$0xff]
  %v247 = vld [vmem:[%s3 + $0x448] sm:$0xff]
  %v248 = vld [vmem:[%s3 + $0x450] sm:$0xff]
  %v249 = vld [vmem:[%s3 + $0x458] sm:$0xff]
  %v250 = vld [vmem:[%s3 + $0x460] sm:$0xff]
  %v251 = vld [vmem:[%s3 + $0x468] sm:$0xff]
  %v252 = vld [vmem:[%s3 + $0x470] sm:$0xff]
  %v253 = vld [vmem:[%s3 + $0x478] sm:$0xff]
  %v254 = vld [vmem:[%s3 + $0x480] sm:$0xff]
  %v255 = vld [vmem:[%s3 + $0x488] sm:$0xff]
  %v256 = vld [vmem:[%s3 + $0x490] sm:$0xff]
  %v257 = vld [vmem:[%s3 + $0x498] sm:$0xff]
  %v258 = vld [vmem:[%s3 + $0x4a0] sm:$0xff]
  %v259 = vld [vmem:[%s3 + $0x4a8] sm:$0xff]
  %v260 = vld [vmem:[%s3 + $0x4b0] sm:$0xff]
  %v261 = vld [vmem:[%s3 + $0x4b8] sm:$0xff]
  %v262 = vld [vmem:[%s3 + $0x4c0] sm:$0xff]
  %v263 = vld [vmem:[%s3 + $0x4c8] sm:$0xff]
  %v264 = vld [vmem:[%s3 + $0x4d0] sm:$0xff]
  %v265 = vld [vmem:[%s3 + $0x4d8] sm:$0xff]
  %v266 = vld [vmem:[%s3 + $0x4e0] sm:$0xff]
  %v267 = vld [vmem:[%s3 + $0x4e8] sm:$0xff]
  %v268 = vld [vmem:[%s3 + $0x4f0] sm:$0xff]
  %v269 = vld [vmem:[%s3 + $0x4f8] sm:$0xff]
  %v270 = vld [vmem:[%s3 + $0x500] sm:$0xff]
  %v271 = vld [vmem:[%s3 + $0x508] sm:$0xff]
  %v272 = vld [vmem:[%s3 + $0x510] sm:$0xff]
  %v273 = vld [vmem:[%s3 + $0x518] sm:$0xff]
  %v274 = vld [vmem:[%s3 + $0x520] sm:$0xff]
  %v275 = vld [vmem:[%s3 + $0x528] sm:$0xff]
  %v276 = vld [vmem:[%s3 + $0x530] sm:$0xff]
  %v277 = vld [vmem:[%s3 + $0x538] sm:$0xff]
  %v278 = vld [vmem:[%s3 + $0x540] sm:$0xff]
  %v279 = vld [vmem:[%s3 + $0x548] sm:$0xff]
  %v280 = vld [vmem:[%s3 + $0x550] sm:$0xff]
  %v281 = vld [vmem:[%s3 + $0x558] sm:$0xff]
  %v282 = vld [vmem:[%s3 + $0x560] sm:$0xff]
  %v283 = vld [vmem:[%s3 + $0x568] sm:$0xff]
  %v284 = vld [vmem:[%s3 + $0x570] sm:$0xff]
  %v285 = vld [vmem:[%s3 + $0x578] sm:$0xff]
  %v286 = vld [vmem:[%s3 + $0x580] sm:$0xff]
  %v287 = vld [vmem:[%s3 + $0x588] sm:$0xff]
  %v288 = vld [vmem:[%s3 + $0x590] sm:$0xff]
  %v289 = vld [vmem:[%s3 + $0x598] sm:$0xff]
  %v290 = vld [vmem:[%s3 + $0x5a0] sm:$0xff]
  %v291 = vld [vmem:[%s3 + $0x5a8] sm:$0xff]
  %v292 = vld [vmem:[%s3 + $0x5b0] sm:$0xff]
  %v293 = vld [vmem:[%s3 + $0x5b8] sm:$0xff]
  %v294 = vld [vmem:[%s3 + $0x5c0] sm:$0xff]
  %v295 = vld [vmem:[%s3 + $0x5c8] sm:$0xff]
  %v296 = vld [vmem:[%s3 + $0x5d0] sm:$0xff]
  %v297 = vld [vmem:[%s3 + $0x5d8] sm:$0xff]
  %v298 = vld [vmem:[%s3 + $0x5e0] sm:$0xff]
  %v299 = vld [vmem:[%s3 + $0x5e8] sm:$0xff]
  %v300 = vld [vmem:[%s3 + $0x5f0] sm:$0xff]
  %v301 = vld [vmem:[%s3 + $0x5f8] sm:$0xff]
  %v302 = vld [vmem:[%s3 + $0x600] sm:$0xff]
  %v303 = vld [vmem:[%s3 + $0x608] sm:$0xff]
  %v304 = vld [vmem:[%s3 + $0x610] sm:$0xff]
  %v305 = vld [vmem:[%s3 + $0x618] sm:$0xff]
  %v306 = vld [vmem:[%s3 + $0x620] sm:$0xff]
  %v307 = vld [vmem:[%s3 + $0x628] sm:$0xff]
  %v308 = vld [vmem:[%s3 + $0x630] sm:$0xff]
  %v309 = vld [vmem:[%s3 + $0x638] sm:$0xff]
  %v310 = vld [vmem:[%s3 + $0x640] sm:$0xff]
  %v311 = vld [vmem:[%s3 + $0x648] sm:$0xff]
  %v312 = vld [vmem:[%s3 + $0x650] sm:$0x3]
  %v313 = vld [vmem:[%s3 + $0x658] sm:$0x3]
  %v314 = vld [vmem:[%s5] sm:$0xff]
  %v315 = vld [vmem:[%s5 + $0x8] sm:$0xff]
  %v316 = vld [vmem:[%s5 + $0x10] sm:$0xff]
  %v317 = vld [vmem:[%s5 + $0x18] sm:$0xff]
  %v318 = vld [vmem:[%s5 + $0x20] sm:$0xff]
  %v319 = vld [vmem:[%s5 + $0x28] sm:$0xff]
  %v320 = vld [vmem:[%s5 + $0x30] sm:$0xff]
  %v321 = vld [vmem:[%s5 + $0x38] sm:$0xff]
  %v322 = vld [vmem:[%s5 + $0x40] sm:$0xff]
  %v323 = vld [vmem:[%s5 + $0x48] sm:$0xff]
  %v324 = vld [vmem:[%s5 + $0x50] sm:$0xff]
  %v325 = vld [vmem:[%s5 + $0x58] sm:$0xff]
  %v326 = vld [vmem:[%s5 + $0x60] sm:$0xff]
  %v327 = vld [vmem:[%s5 + $0x68] sm:$0xff]
  %v328 = vld [vmem:[%s5 + $0x70] sm:$0xff]
  %v329 = vld [vmem:[%s5 + $0x78] sm:$0xff]
  %v330 = vld [vmem:[%s5 + $0x80] sm:$0xff]
  %v331 = vld [vmem:[%s5 + $0x88] sm:$0xff]
  %v332 = vld [vmem:[%s5 + $0x90] sm:$0xff]
  %v333 = vld [vmem:[%s5 + $0x98] sm:$0xff]
  %v334 = vld [vmem:[%s5 + $0xa0] sm:$0xff]
  %v335 = vld [vmem:[%s5 + $0xa8] sm:$0xff]
  %v336 = vld [vmem:[%s5 + $0xb0] sm:$0xff]
  %v337 = vld [vmem:[%s5 + $0xb8] sm:$0xff]
  %v338 = vld [vmem:[%s5 + $0xc0] sm:$0xff]
  %v339 = vld [vmem:[%s5 + $0xc8] sm:$0xff]
  %v340 = vld [vmem:[%s5 + $0xd0] sm:$0xff]
  %v341 = vld [vmem:[%s5 + $0xd8] sm:$0xff]
  %v342 = vld [vmem:[%s5 + $0xe0] sm:$0xff]
  %v343 = vld [vmem:[%s5 + $0xe8] sm:$0xff]
  %v344 = vld [vmem:[%s5 + $0xf0] sm:$0xff]
  %v345 = vld [vmem:[%s5 + $0xf8] sm:$0xff]
  %v346 = vld [vmem:[%s5 + $0x100] sm:$0xff]
  %v347 = vld [vmem:[%s5 + $0x108] sm:$0xff]
  %v348 = vld [vmem:[%s5 + $0x110] sm:$0xff]
  %v349 = vld [vmem:[%s5 + $0x118] sm:$0xff]
  %v350 = vld [vmem:[%s5 + $0x120] sm:$0xff]
  %v351 = vld [vmem:[%s5 + $0x128] sm:$0xff]
  %v352 = vld [vmem:[%s5 + $0x130] sm:$0xff]
  %v353 = vld [vmem:[%s5 + $0x138] sm:$0xff]
  %v354 = vld [vmem:[%s5 + $0x140] sm:$0xff]
  %v355 = vld [vmem:[%s5 + $0x148] sm:$0xff]
  %v356 = vld [vmem:[%s5 + $0x150] sm:$0xff]
  %v357 = vld [vmem:[%s5 + $0x158] sm:$0xff]
  %v358 = vld [vmem:[%s5 + $0x160] sm:$0xff]
  %v359 = vld [vmem:[%s5 + $0x168] sm:$0xff]
  %v360 = vld [vmem:[%s5 + $0x170] sm:$0xff]
  %v361 = vld [vmem:[%s5 + $0x178] sm:$0xff]
  %v362 = vld [vmem:[%s5 + $0x180] sm:$0xff]
  %v363 = vld [vmem:[%s5 + $0x188] sm:$0xff]
  %v364 = vld [vmem:[%s5 + $0x190] sm:$0xff]
  %v365 = vld [vmem:[%s5 + $0x198] sm:$0xff]
  %v366 = vld [vmem:[%s5 + $0x1a0] sm:$0xff]
  %v367 = vld [vmem:[%s5 + $0x1a8] sm:$0xff]
  %v368 = vld [vmem:[%s5 + $0x1b0] sm:$0xff]
  %v369 = vld [vmem:[%s5 + $0x1b8] sm:$0xff]
  %v370 = vld [vmem:[%s5 + $0x1c0] sm:$0xff]
  %v371 = vld [vmem:[%s5 + $0x1c8] sm:$0xff]
  %v372 = vld [vmem:[%s5 + $0x1d0] sm:$0xff]
  %v373 = vld [vmem:[%s5 + $0x1d8] sm:$0xff]
  %v374 = vld [vmem:[%s5 + $0x1e0] sm:$0xff]
  %v375 = vld [vmem:[%s5 + $0x1e8] sm:$0xff]
  %v376 = vld [vmem:[%s5 + $0x1f0] sm:$0xff]
  %v377 = vld [vmem:[%s5 + $0x1f8] sm:$0xff]
  %v378 = vld [vmem:[%s5 + $0x200] sm:$0xff]
  %v379 = vld [vmem:[%s5 + $0x208] sm:$0xff]
  %v380 = vld [vmem:[%s5 + $0x210] sm:$0xff]
  %v381 = vld [vmem:[%s5 + $0x218] sm:$0xff]
  %v382 = vld [vmem:[%s5 + $0x220] sm:$0xff]
  %v383 = vld [vmem:[%s5 + $0x228] sm:$0xff]
  %v384 = vld [vmem:[%s5 + $0x230] sm:$0xff]
  %v385 = vld [vmem:[%s5 + $0x238] sm:$0xff]
  %v386 = vld [vmem:[%s5 + $0x240] sm:$0xff]
  %v387 = vld [vmem:[%s5 + $0x248] sm:$0xff]
  %v388 = vld [vmem:[%s5 + $0x250] sm:$0xff]
  %v389 = vld [vmem:[%s5 + $0x258] sm:$0xff]
  %v390 = vld [vmem:[%s5 + $0x260] sm:$0xff]
  %v391 = vld [vmem:[%s5 + $0x268] sm:$0xff]
  %v392 = vld [vmem:[%s5 + $0x270] sm:$0xff]
  %v393 = vld [vmem:[%s5 + $0x278] sm:$0xff]
  %v394 = vld [vmem:[%s5 + $0x280] sm:$0xff]
  %v395 = vld [vmem:[%s5 + $0x288] sm:$0xff]
  %v396 = vld [vmem:[%s5 + $0x290] sm:$0xff]
  %v397 = vld [vmem:[%s5 + $0x298] sm:$0xff]
  %v398 = vld [vmem:[%s5 + $0x2a0] sm:$0xff]
  %v399 = vld [vmem:[%s5 + $0x2a8] sm:$0xff]
  %v400 = vld [vmem:[%s5 + $0x2b0] sm:$0xff]
  %v401 = vld [vmem:[%s5 + $0x2b8] sm:$0xff]
  %v402 = vld [vmem:[%s5 + $0x2c0] sm:$0xff]
  %v403 = vld [vmem:[%s5 + $0x2c8] sm:$0xff]
  %vm436 = vcmask 1046528
  %v437 = vrot.slane %v38, 1
  %v438 = vrot.slane %v39, 1
  %v439 = vsel %vm436, %v437, %v438
  %v440 = vrot.slane %v40, 1
  %v441 = vsel %vm436, %v438, %v440
  %v442 = vrot.slane %v41, 1
  %v443 = vsel %vm436, %v440, %v442
  %v444 = vrot.slane %v42, 1
  %v445 = vsel %vm436, %v442, %v444
  %v446 = vrot.slane %v43, 1
  %v447 = vsel %vm436, %v444, %v446
  %v448 = vrot.slane %v44, 1
  %v449 = vsel %vm436, %v446, %v448
  %v450 = vrot.slane %v45, 1
  %v451 = vsel %vm436, %v448, %v450
  %v452 = vrot.slane %v46, 1
  %v453 = vsel %vm436, %v450, %v452
  %v454 = vrot.slane %v47, 1
  %v455 = vsel %vm436, %v452, %v454
  %v456 = vrot.slane %v48, 1
  %v457 = vsel %vm436, %v454, %v456
  %v458 = vrot.slane %v49, 1
  %v459 = vsel %vm436, %v456, %v458
  %v460 = vrot.slane %v50, 1
  %v461 = vsel %vm436, %v458, %v460
  %v462 = vrot.slane %v51, 1
  %v463 = vsel %vm436, %v460, %v462
  %v464 = vrot.slane %v52, 1
  %v465 = vsel %vm436, %v462, %v464
  %v466 = vrot.slane %v53, 1
  %v467 = vsel %vm436, %v464, %v466
  %v468 = vrot.slane %v54, 1
  %v469 = vsel %vm436, %v466, %v468
  %v470 = vrot.slane %v55, 1
  %v471 = vsel %vm436, %v468, %v470
  %v472 = vrot.slane %v56, 1
  %v473 = vsel %vm436, %v470, %v472
  %v474 = vrot.slane %v57, 1
  %v475 = vsel %vm436, %v472, %v474
  %v476 = vrot.slane %v58, 1
  %v477 = vsel %vm436, %v474, %v476
  %v478 = vrot.slane %v59, 1
  %v479 = vsel %vm436, %v476, %v478
  %v480 = vrot.slane %v60, 1
  %v481 = vsel %vm436, %v478, %v480
  %v482 = vrot.slane %v61, 1
  %v483 = vsel %vm436, %v480, %v482
  %v484 = vrot.slane %v62, 1
  %v485 = vsel %vm436, %v482, %v484
  %v486 = vrot.slane %v63, 1
  %v487 = vsel %vm436, %v484, %v486
  %v488 = vrot.slane %v64, 1
  %v489 = vsel %vm436, %v486, %v488
  %v490 = vrot.slane %v65, 1
  %v491 = vsel %vm436, %v488, %v490
  %v492 = vrot.slane %v66, 1
  %v493 = vsel %vm436, %v490, %v492
  %v494 = vrot.slane %v67, 1
  %v495 = vsel %vm436, %v492, %v494
  %v496 = vrot.slane %v68, 1
  %v497 = vsel %vm436, %v494, %v496
  %v498 = vrot.slane %v69, 1
  %v499 = vsel %vm436, %v496, %v498
  %vm500 = vcmask 261120
  %v501 = vsel %vm500, %v439, 0
  %v503 = vsel %vm500, %v441, 0
  %v505 = vsel %vm500, %v443, 0
  %v507 = vsel %vm500, %v445, 0
  %v509 = vsel %vm500, %v447, 0
  %v511 = vsel %vm500, %v449, 0
  %v513 = vsel %vm500, %v451, 0
  %v515 = vsel %vm500, %v453, 0
  %v517 = vsel %vm500, %v455, 0
  %v519 = vsel %vm500, %v457, 0
  %v521 = vsel %vm500, %v459, 0
  %v523 = vsel %vm500, %v461, 0
  %v525 = vsel %vm500, %v463, 0
  %v527 = vsel %vm500, %v465, 0
  %v529 = vsel %vm500, %v467, 0
  %v531 = vsel %vm500, %v469, 0
  %v533 = vsel %vm500, %v471, 0
  %v535 = vsel %vm500, %v473, 0
  %v537 = vsel %vm500, %v475, 0
  %v539 = vsel %vm500, %v477, 0
  %v541 = vsel %vm500, %v479, 0
  %v543 = vsel %vm500, %v481, 0
  %v545 = vsel %vm500, %v483, 0
  %v547 = vsel %vm500, %v485, 0
  %v549 = vsel %vm500, %v487, 0
  %v551 = vsel %vm500, %v489, 0
  %v553 = vsel %vm500, %v491, 0
  %v555 = vsel %vm500, %v493, 0
  %v557 = vsel %vm500, %v495, 0
  %v559 = vsel %vm500, %v497, 0
  %v561 = vsel %vm500, %v499, 0
  %v563 = vsel %vm500, %v498, 0
  %565 = vmatprep.subr.mxu0 0.0
  %566 = vmatpush1.msra.mxu0 0.0
  %567 = vmatprep.subr.mxu0 0.0
  %568 = vmatpush1.msra.mxu0 0.0
  %569 = vmatprep.subr.mxu0 0.0
  %570 = vmatpush1.msra.mxu0 0.0
  %571 = vmatprep.subr.mxu0 0.0
  %572 = vmatpush1.msra.mxu0 0.0
  %573 = vmatprep.subr.mxu0 0.0
  %574 = vmatpush1.msra.mxu0 0.0
  %575 = vmatprep.subr.mxu0 0.0
  %576 = vmatpush1.msra.mxu0 0.0
  %577 = vmatprep.subr.mxu0 0.0
  %578 = vmatpush1.msra.mxu0 0.0
  %579 = vmatprep.subr.mxu0 0.0
  %580 = vmatpush1.msra.mxu0 0.0
  %581 = vmatprep.subr.mxu0 0.0
  %582 = vmatpush1.msra.mxu0 0.0
  %583 = vmatprep.subr.mxu0 0.0
  %584 = vmatpush1.msra.mxu0 0.0
  %585 = vmatprep.subr.mxu0 0.0
  %586 = vmatpush1.msra.mxu0 0.0
  %587 = vmatprep.subr.mxu0 0.0
  %588 = vmatpush1.msra.mxu0 0.0
  %589 = vmatprep.subr.mxu0 %v85
  %590 = vmatpush1.msra.mxu0 %v84
  %591 = vmatprep.subr.mxu0 %v83
  %592 = vmatpush1.msra.mxu0 %v82
  %593 = vmatprep.subr.mxu0 %v81
  %594 = vmatpush1.msra.mxu0 %v80
  %595 = vmatprep.subr.mxu0 %v79
  %596 = vmatpush1.msra.mxu0 %v78
  %597 = vmatprep.subr.mxu0 0.0
  %598 = vmatpush2.msra.mxu0 0.0
  %599 = vmatprep.subr.mxu0 0.0
  %600 = vmatpush2.msra.mxu0 0.0
  %601 = vmatprep.subr.mxu0 0.0
  %602 = vmatpush2.msra.mxu0 0.0
  %603 = vmatprep.subr.mxu0 0.0
  %604 = vmatpush2.msra.mxu0 0.0
  %605 = vmatprep.subr.mxu0 0.0
  %606 = vmatpush2.msra.mxu0 0.0
  %607 = vmatprep.subr.mxu0 0.0
  %608 = vmatpush2.msra.mxu0 0.0
  %609 = vmatprep.subr.mxu0 0.0
  %610 = vmatpush2.msra.mxu0 0.0
  %611 = vmatprep.subr.mxu0 0.0
  %612 = vmatpush2.msra.mxu0 0.0
  %613 = vmatprep.subr.mxu0 0.0
  %614 = vmatpush2.msra.mxu0 0.0
  %615 = vmatprep.subr.mxu0 0.0
  %616 = vmatpush2.msra.mxu0 0.0
  %617 = vmatprep.subr.mxu0 0.0
  %618 = vmatpush2.msra.mxu0 0.0
  %619 = vmatprep.subr.mxu0 0.0
  %620 = vmatpush2.msra.mxu0 0.0
  %621 = vmatprep.subr.mxu0 0.0
  %622 = vmatpush2.msra.mxu0 0.0
  %623 = vmatprep.subr.mxu0 0.0
  %624 = vmatpush2.msra.mxu0 0.0
  %625 = vmatprep.subr.mxu0 0.0
  %626 = vmatpush2.msra.mxu0 0.0
  %627 = vmatprep.subr.mxu0 0.0
  %628 = vmatpush2.msra.mxu0 0.0
  %629 = vmatprep.mubr.f32.mxu0 0.0
  %630 = vmatmul.mubr.f32.gmra.mxu0 %v501
  %v631 = vpop.f32.mrf.mxu0
  %v632 = vadd.f32 0.0, %v631
  %v633 = vpop.f32.mrf.mxu0
  %v634 = vadd.f32 0.0, %v633
  %635 = vmatprep.mubr.f32.mxu0 0.0
  %636 = vmatmul.mubr.f32.gmra.mxu0 %v503
  %v637 = vpop.f32.mrf.mxu0
  %v638 = vadd.f32 0.0, %v637
  %v639 = vpop.f32.mrf.mxu0
  %v640 = vadd.f32 0.0, %v639
  %641 = vmatprep.mubr.f32.mxu0 0.0
  %642 = vmatmul.mubr.f32.gmra.mxu0 %v505
  %v643 = vpop.f32.mrf.mxu0
  %v644 = vadd.f32 0.0, %v643
  %v645 = vpop.f32.mrf.mxu0
  %v646 = vadd.f32 0.0, %v645
  %647 = vmatprep.mubr.f32.mxu0 0.0
  %648 = vmatmul.mubr.f32.gmra.mxu0 %v507
  %v649 = vpop.f32.mrf.mxu0
  %v650 = vadd.f32 0.0, %v649
  %v651 = vpop.f32.mrf.mxu0
  %v652 = vadd.f32 0.0, %v651
  %653 = vmatprep.mubr.f32.mxu0 0.0
  %654 = vmatmul.mubr.f32.gmra.mxu0 %v509
  %v655 = vpop.f32.mrf.mxu0
  %v656 = vadd.f32 0.0, %v655
  %v657 = vpop.f32.mrf.mxu0
  %v658 = vadd.f32 0.0, %v657
  %659 = vmatprep.mubr.f32.mxu0 0.0
  %660 = vmatmul.mubr.f32.gmra.mxu0 %v511
  %v661 = vpop.f32.mrf.mxu0
  %v662 = vadd.f32 0.0, %v661
  %v663 = vpop.f32.mrf.mxu0
  %v664 = vadd.f32 0.0, %v663
  %665 = vmatprep.mubr.f32.mxu0 0.0
  %666 = vmatmul.mubr.f32.gmra.mxu0 %v513
  %v667 = vpop.f32.mrf.mxu0
  %v668 = vadd.f32 0.0, %v667
  %v669 = vpop.f32.mrf.mxu0
  %v670 = vadd.f32 0.0, %v669
  %671 = vmatprep.mubr.f32.mxu0 0.0
  %672 = vmatmul.mubr.f32.gmra.mxu0 %v515
  %v673 = vpop.f32.mrf.mxu0
  %v674 = vadd.f32 0.0, %v673
  %v675 = vpop.f32.mrf.mxu0
  %v676 = vadd.f32 0.0, %v675
  %677 = vmatprep.mubr.f32.mxu0 0.0
  %678 = vmatmul.mubr.f32.gmra.mxu0 %v517
  %v679 = vpop.f32.mrf.mxu0
  %v680 = vadd.f32 0.0, %v679
  %v681 = vpop.f32.mrf.mxu0
  %v682 = vadd.f32 0.0, %v681
  %683 = vmatprep.mubr.f32.mxu0 0.0
  %684 = vmatmul.mubr.f32.gmra.mxu0 %v519
  %v685 = vpop.f32.mrf.mxu0
  %v686 = vadd.f32 0.0, %v685
  %v687 = vpop.f32.mrf.mxu0
  %v688 = vadd.f32 0.0, %v687
  %689 = vmatprep.mubr.f32.mxu0 0.0
  %690 = vmatmul.mubr.f32.gmra.mxu0 %v521
  %v691 = vpop.f32.mrf.mxu0
  %v692 = vadd.f32 0.0, %v691
  %v693 = vpop.f32.mrf.mxu0
  %v694 = vadd.f32 0.0, %v693
  %695 = vmatprep.mubr.f32.mxu0 0.0
  %696 = vmatmul.mubr.f32.gmra.mxu0 %v523
  %v697 = vpop.f32.mrf.mxu0
  %v698 = vadd.f32 0.0, %v697
  %v699 = vpop.f32.mrf.mxu0
  %v700 = vadd.f32 0.0, %v699
  %701 = vmatprep.mubr.f32.mxu0 0.0
  %702 = vmatmul.mubr.f32.gmra.mxu0 %v525
  %v703 = vpop.f32.mrf.mxu0
  %v704 = vadd.f32 0.0, %v703
  %v705 = vpop.f32.mrf.mxu0
  %v706 = vadd.f32 0.0, %v705
  %707 = vmatprep.mubr.f32.mxu0 0.0
  %708 = vmatmul.mubr.f32.gmra.mxu0 %v527
  %v709 = vpop.f32.mrf.mxu0
  %v710 = vadd.f32 0.0, %v709
  %v711 = vpop.f32.mrf.mxu0
  %v712 = vadd.f32 0.0, %v711
  %713 = vmatprep.mubr.f32.mxu0 0.0
  %714 = vmatmul.mubr.f32.gmra.mxu0 %v529
  %v715 = vpop.f32.mrf.mxu0
  %v716 = vadd.f32 0.0, %v715
  %v717 = vpop.f32.mrf.mxu0
  %v718 = vadd.f32 0.0, %v717
  %719 = vmatprep.mubr.f32.mxu0 0.0
  %720 = vmatmul.mubr.f32.gmra.mxu0 %v531
  %v721 = vpop.f32.mrf.mxu0
  %v722 = vadd.f32 0.0, %v721
  %v723 = vpop.f32.mrf.mxu0
  %v724 = vadd.f32 0.0, %v723
  %725 = vmatprep.mubr.f32.mxu0 0.0
  %726 = vmatmul.mubr.f32.gmra.mxu0 %v533
  %v727 = vpop.f32.mrf.mxu0
  %v728 = vadd.f32 0.0, %v727
  %v729 = vpop.f32.mrf.mxu0
  %v730 = vadd.f32 0.0, %v729
  %731 = vmatprep.mubr.f32.mxu0 0.0
  %732 = vmatmul.mubr.f32.gmra.mxu0 %v535
  %v733 = vpop.f32.mrf.mxu0
  %v734 = vadd.f32 0.0, %v733
  %v735 = vpop.f32.mrf.mxu0
  %v736 = vadd.f32 0.0, %v735
  %737 = vmatprep.mubr.f32.mxu0 0.0
  %738 = vmatmul.mubr.f32.gmra.mxu0 %v537
  %v739 = vpop.f32.mrf.mxu0
  %v740 = vadd.f32 0.0, %v739
  %v741 = vpop.f32.mrf.mxu0
  %v742 = vadd.f32 0.0, %v741
  %743 = vmatprep.mubr.f32.mxu0 0.0
  %744 = vmatmul.mubr.f32.gmra.mxu0 %v539
  %v745 = vpop.f32.mrf.mxu0
  %v746 = vadd.f32 0.0, %v745
  %v747 = vpop.f32.mrf.mxu0
  %v748 = vadd.f32 0.0, %v747
  %749 = vmatprep.mubr.f32.mxu0 0.0
  %750 = vmatmul.mubr.f32.gmra.mxu0 %v541
  %v751 = vpop.f32.mrf.mxu0
  %v752 = vadd.f32 0.0, %v751
  %v753 = vpop.f32.mrf.mxu0
  %v754 = vadd.f32 0.0, %v753
  %755 = vmatprep.mubr.f32.mxu0 0.0
  %756 = vmatmul.mubr.f32.gmra.mxu0 %v543
  %v757 = vpop.f32.mrf.mxu0
  %v758 = vadd.f32 0.0, %v757
  %v759 = vpop.f32.mrf.mxu0
  %v760 = vadd.f32 0.0, %v759
  %761 = vmatprep.mubr.f32.mxu0 0.0
  %762 = vmatmul.mubr.f32.gmra.mxu0 %v545
  %v763 = vpop.f32.mrf.mxu0
  %v764 = vadd.f32 0.0, %v763
  %v765 = vpop.f32.mrf.mxu0
  %v766 = vadd.f32 0.0, %v765
  %767 = vmatprep.mubr.f32.mxu0 0.0
  %768 = vmatmul.mubr.f32.gmra.mxu0 %v547
  %v769 = vpop.f32.mrf.mxu0
  %v770 = vadd.f32 0.0, %v769
  %v771 = vpop.f32.mrf.mxu0
  %v772 = vadd.f32 0.0, %v771
  %773 = vmatprep.mubr.f32.mxu0 0.0
  %774 = vmatmul.mubr.f32.gmra.mxu0 %v549
  %v775 = vpop.f32.mrf.mxu0
  %v776 = vadd.f32 0.0, %v775
  %v777 = vpop.f32.mrf.mxu0
  %v778 = vadd.f32 0.0, %v777
  %779 = vmatprep.mubr.f32.mxu0 0.0
  %780 = vmatmul.mubr.f32.gmra.mxu0 %v551
  %v781 = vpop.f32.mrf.mxu0
  %v782 = vadd.f32 0.0, %v781
  %v783 = vpop.f32.mrf.mxu0
  %v784 = vadd.f32 0.0, %v783
  %785 = vmatprep.mubr.f32.mxu0 0.0
  %786 = vmatmul.mubr.f32.gmra.mxu0 %v553
  %v787 = vpop.f32.mrf.mxu0
  %v788 = vadd.f32 0.0, %v787
  %v789 = vpop.f32.mrf.mxu0
  %v790 = vadd.f32 0.0, %v789
  %791 = vmatprep.mubr.f32.mxu0 0.0
  %792 = vmatmul.mubr.f32.gmra.mxu0 %v555
  %v793 = vpop.f32.mrf.mxu0
  %v794 = vadd.f32 0.0, %v793
  %v795 = vpop.f32.mrf.mxu0
  %v796 = vadd.f32 0.0, %v795
  %797 = vmatprep.mubr.f32.mxu0 0.0
  %798 = vmatmul.mubr.f32.gmra.mxu0 %v557
  %v799 = vpop.f32.mrf.mxu0
  %v800 = vadd.f32 0.0, %v799
  %v801 = vpop.f32.mrf.mxu0
  %v802 = vadd.f32 0.0, %v801
  %803 = vmatprep.mubr.f32.mxu0 0.0
  %804 = vmatmul.mubr.f32.gmra.mxu0 %v559
  %v805 = vpop.f32.mrf.mxu0
  %v806 = vadd.f32 0.0, %v805
  %v807 = vpop.f32.mrf.mxu0
  %v808 = vadd.f32 0.0, %v807
  %809 = vmatprep.mubr.f32.mxu0 0.0
  %810 = vmatmul.mubr.f32.gmra.mxu0 %v561
  %v811 = vpop.f32.mrf.mxu0
  %v812 = vadd.f32 0.0, %v811
  %v813 = vpop.f32.mrf.mxu0
  %v814 = vadd.f32 0.0, %v813
  %815 = vmatprep.mubr.f32.mxu0 0.0
  %816 = vmatmul.mubr.f32.gmra.mxu0 %v563
  %v817 = vpop.f32.mrf.mxu0
  %v818 = vadd.f32 0.0, %v817
  %v819 = vpop.f32.mrf.mxu0
  %v820 = vadd.f32 0.0, %v819
  %821 = vdwg.mxu0
  %v822 = vsel %vm500, %v38, 0
  %v824 = vsel %vm500, %v39, 0
  %v826 = vsel %vm500, %v40, 0
  %v828 = vsel %vm500, %v41, 0
  %v830 = vsel %vm500, %v42, 0
  %v832 = vsel %vm500, %v43, 0
  %v834 = vsel %vm500, %v44, 0
  %v836 = vsel %vm500, %v45, 0
  %v838 = vsel %vm500, %v46, 0
  %v840 = vsel %vm500, %v47, 0
  %v842 = vsel %vm500, %v48, 0
  %v844 = vsel %vm500, %v49, 0
  %v846 = vsel %vm500, %v50, 0
  %v848 = vsel %vm500, %v51, 0
  %v850 = vsel %vm500, %v52, 0
  %v852 = vsel %vm500, %v53, 0
  %v854 = vsel %vm500, %v54, 0
  %v856 = vsel %vm500, %v55, 0
  %v858 = vsel %vm500, %v56, 0
  %v860 = vsel %vm500, %v57, 0
  %v862 = vsel %vm500, %v58, 0
  %v864 = vsel %vm500, %v59, 0
  %v866 = vsel %vm500, %v60, 0
  %v868 = vsel %vm500, %v61, 0
  %v870 = vsel %vm500, %v62, 0
  %v872 = vsel %vm500, %v63, 0
  %v874 = vsel %vm500, %v64, 0
  %v876 = vsel %vm500, %v65, 0
  %v878 = vsel %vm500, %v66, 0
  %v880 = vsel %vm500, %v67, 0
  %v882 = vsel %vm500, %v68, 0
  %v884 = vsel %vm500, %v69, 0
  %886 = vmatprep.subr.mxu0 0.0
  %887 = vmatpush1.msra.mxu0 0.0
  %888 = vmatprep.subr.mxu0 0.0
  %889 = vmatpush1.msra.mxu0 0.0
  %890 = vmatprep.subr.mxu0 0.0
  %891 = vmatpush1.msra.mxu0 0.0
  %892 = vmatprep.subr.mxu0 0.0
  %893 = vmatpush1.msra.mxu0 0.0
  %894 = vmatprep.subr.mxu0 0.0
  %895 = vmatpush1.msra.mxu0 0.0
  %896 = vmatprep.subr.mxu0 0.0
  %897 = vmatpush1.msra.mxu0 0.0
  %898 = vmatprep.subr.mxu0 0.0
  %899 = vmatpush1.msra.mxu0 0.0
  %900 = vmatprep.subr.mxu0 0.0
  %901 = vmatpush1.msra.mxu0 0.0
  %902 = vmatprep.subr.mxu0 0.0
  %903 = vmatpush1.msra.mxu0 0.0
  %904 = vmatprep.subr.mxu0 0.0
  %905 = vmatpush1.msra.mxu0 0.0
  %906 = vmatprep.subr.mxu0 0.0
  %907 = vmatpush1.msra.mxu0 0.0
  %908 = vmatprep.subr.mxu0 0.0
  %909 = vmatpush1.msra.mxu0 0.0
  %910 = vmatprep.subr.mxu0 %v77
  %911 = vmatpush1.msra.mxu0 %v76
  %912 = vmatprep.subr.mxu0 %v75
  %913 = vmatpush1.msra.mxu0 %v74
  %914 = vmatprep.subr.mxu0 %v73
  %915 = vmatpush1.msra.mxu0 %v72
  %916 = vmatprep.subr.mxu0 %v71
  %917 = vmatpush1.msra.mxu0 %v70
  %918 = vmatprep.subr.mxu0 0.0
  %919 = vmatpush2.msra.mxu0 0.0
  %920 = vmatprep.subr.mxu0 0.0
  %921 = vmatpush2.msra.mxu0 0.0
  %922 = vmatprep.subr.mxu0 0.0
  %923 = vmatpush2.msra.mxu0 0.0
  %924 = vmatprep.subr.mxu0 0.0
  %925 = vmatpush2.msra.mxu0 0.0
  %926 = vmatprep.subr.mxu0 0.0
  %927 = vmatpush2.msra.mxu0 0.0
  %928 = vmatprep.subr.mxu0 0.0
  %929 = vmatpush2.msra.mxu0 0.0
  %930 = vmatprep.subr.mxu0 0.0
  %931 = vmatpush2.msra.mxu0 0.0
  %932 = vmatprep.subr.mxu0 0.0
  %933 = vmatpush2.msra.mxu0 0.0
  %934 = vmatprep.subr.mxu0 0.0
  %935 = vmatpush2.msra.mxu0 0.0
  %936 = vmatprep.subr.mxu0 0.0
  %937 = vmatpush2.msra.mxu0 0.0
  %938 = vmatprep.subr.mxu0 0.0
  %939 = vmatpush2.msra.mxu0 0.0
  %940 = vmatprep.subr.mxu0 0.0
  %941 = vmatpush2.msra.mxu0 0.0
  %942 = vmatprep.subr.mxu0 0.0
  %943 = vmatpush2.msra.mxu0 0.0
  %944 = vmatprep.subr.mxu0 0.0
  %945 = vmatpush2.msra.mxu0 0.0
  %946 = vmatprep.subr.mxu0 0.0
  %947 = vmatpush2.msra.mxu0 0.0
  %948 = vmatprep.subr.mxu0 0.0
  %949 = vmatpush2.msra.mxu0 0.0
  %950 = vmatprep.mubr.f32.mxu0 0.0
  %951 = vmatmul.mubr.f32.gmra.mxu0 %v822
  %v952 = vpop.f32.mrf.mxu0
  %v953 = vadd.f32 %v632, %v952
  %v954 = vpop.f32.mrf.mxu0
  %v955 = vadd.f32 %v634, %v954
  %956 = vmatprep.mubr.f32.mxu0 0.0
  %957 = vmatmul.mubr.f32.gmra.mxu0 %v824
  %v958 = vpop.f32.mrf.mxu0
  %v959 = vadd.f32 %v638, %v958
  %v960 = vpop.f32.mrf.mxu0
  %v961 = vadd.f32 %v640, %v960
  %962 = vmatprep.mubr.f32.mxu0 0.0
  %963 = vmatmul.mubr.f32.gmra.mxu0 %v826
  %v964 = vpop.f32.mrf.mxu0
  %v965 = vadd.f32 %v644, %v964
  %v966 = vpop.f32.mrf.mxu0
  %v967 = vadd.f32 %v646, %v966
  %968 = vmatprep.mubr.f32.mxu0 0.0
  %969 = vmatmul.mubr.f32.gmra.mxu0 %v828
  %v970 = vpop.f32.mrf.mxu0
  %v971 = vadd.f32 %v650, %v970
  %v972 = vpop.f32.mrf.mxu0
  %v973 = vadd.f32 %v652, %v972
  %974 = vmatprep.mubr.f32.mxu0 0.0
  %975 = vmatmul.mubr.f32.gmra.mxu0 %v830
  %v976 = vpop.f32.mrf.mxu0
  %v977 = vadd.f32 %v656, %v976
  %v978 = vpop.f32.mrf.mxu0
  %v979 = vadd.f32 %v658, %v978
  %980 = vmatprep.mubr.f32.mxu0 0.0
  %981 = vmatmul.mubr.f32.gmra.mxu0 %v832
  %v982 = vpop.f32.mrf.mxu0
  %v983 = vadd.f32 %v662, %v982
  %v984 = vpop.f32.mrf.mxu0
  %v985 = vadd.f32 %v664, %v984
  %986 = vmatprep.mubr.f32.mxu0 0.0
  %987 = vmatmul.mubr.f32.gmra.mxu0 %v834
  %v988 = vpop.f32.mrf.mxu0
  %v989 = vadd.f32 %v668, %v988
  %v990 = vpop.f32.mrf.mxu0
  %v991 = vadd.f32 %v670, %v990
  %992 = vmatprep.mubr.f32.mxu0 0.0
  %993 = vmatmul.mubr.f32.gmra.mxu0 %v836
  %v994 = vpop.f32.mrf.mxu0
  %v995 = vadd.f32 %v674, %v994
  %v996 = vpop.f32.mrf.mxu0
  %v997 = vadd.f32 %v676, %v996
  %998 = vmatprep.mubr.f32.mxu0 0.0
  %999 = vmatmul.mubr.f32.gmra.mxu0 %v838
  %v1000 = vpop.f32.mrf.mxu0
  %v1001 = vadd.f32 %v680, %v1000
  %v1002 = vpop.f32.mrf.mxu0
  %v1003 = vadd.f32 %v682, %v1002
  %1004 = vmatprep.mubr.f32.mxu0 0.0
  %1005 = vmatmul.mubr.f32.gmra.mxu0 %v840
  %v1006 = vpop.f32.mrf.mxu0
  %v1007 = vadd.f32 %v686, %v1006
  %v1008 = vpop.f32.mrf.mxu0
  %v1009 = vadd.f32 %v688, %v1008
  %1010 = vmatprep.mubr.f32.mxu0 0.0
  %1011 = vmatmul.mubr.f32.gmra.mxu0 %v842
  %v1012 = vpop.f32.mrf.mxu0
  %v1013 = vadd.f32 %v692, %v1012
  %v1014 = vpop.f32.mrf.mxu0
  %v1015 = vadd.f32 %v694, %v1014
  %1016 = vmatprep.mubr.f32.mxu0 0.0
  %1017 = vmatmul.mubr.f32.gmra.mxu0 %v844
  %v1018 = vpop.f32.mrf.mxu0
  %v1019 = vadd.f32 %v698, %v1018
  %v1020 = vpop.f32.mrf.mxu0
  %v1021 = vadd.f32 %v700, %v1020
  %1022 = vmatprep.mubr.f32.mxu0 0.0
  %1023 = vmatmul.mubr.f32.gmra.mxu0 %v846
  %v1024 = vpop.f32.mrf.mxu0
  %v1025 = vadd.f32 %v704, %v1024
  %v1026 = vpop.f32.mrf.mxu0
  %v1027 = vadd.f32 %v706, %v1026
  %1028 = vmatprep.mubr.f32.mxu0 0.0
  %1029 = vmatmul.mubr.f32.gmra.mxu0 %v848
  %v1030 = vpop.f32.mrf.mxu0
  %v1031 = vadd.f32 %v710, %v1030
  %v1032 = vpop.f32.mrf.mxu0
  %v1033 = vadd.f32 %v712, %v1032
  %1034 = vmatprep.mubr.f32.mxu0 0.0
  %1035 = vmatmul.mubr.f32.gmra.mxu0 %v850
  %v1036 = vpop.f32.mrf.mxu0
  %v1037 = vadd.f32 %v716, %v1036
  %v1038 = vpop.f32.mrf.mxu0
  %v1039 = vadd.f32 %v718, %v1038
  %1040 = vmatprep.mubr.f32.mxu0 0.0
  %1041 = vmatmul.mubr.f32.gmra.mxu0 %v852
  %v1042 = vpop.f32.mrf.mxu0
  %v1043 = vadd.f32 %v722, %v1042
  %v1044 = vpop.f32.mrf.mxu0
  %v1045 = vadd.f32 %v724, %v1044
  %1046 = vmatprep.mubr.f32.mxu0 0.0
  %1047 = vmatmul.mubr.f32.gmra.mxu0 %v854
  %v1048 = vpop.f32.mrf.mxu0
  %v1049 = vadd.f32 %v728, %v1048
  %v1050 = vpop.f32.mrf.mxu0
  %v1051 = vadd.f32 %v730, %v1050
  %1052 = vmatprep.mubr.f32.mxu0 0.0
  %1053 = vmatmul.mubr.f32.gmra.mxu0 %v856
  %v1054 = vpop.f32.mrf.mxu0
  %v1055 = vadd.f32 %v734, %v1054
  %v1056 = vpop.f32.mrf.mxu0
  %v1057 = vadd.f32 %v736, %v1056
  %1058 = vmatprep.mubr.f32.mxu0 0.0
  %1059 = vmatmul.mubr.f32.gmra.mxu0 %v858
  %v1060 = vpop.f32.mrf.mxu0
  %v1061 = vadd.f32 %v740, %v1060
  %v1062 = vpop.f32.mrf.mxu0
  %v1063 = vadd.f32 %v742, %v1062
  %1064 = vmatprep.mubr.f32.mxu0 0.0
  %1065 = vmatmul.mubr.f32.gmra.mxu0 %v860
  %v1066 = vpop.f32.mrf.mxu0
  %v1067 = vadd.f32 %v746, %v1066
  %v1068 = vpop.f32.mrf.mxu0
  %v1069 = vadd.f32 %v748, %v1068
  %1070 = vmatprep.mubr.f32.mxu0 0.0
  %1071 = vmatmul.mubr.f32.gmra.mxu0 %v862
  %v1072 = vpop.f32.mrf.mxu0
  %v1073 = vadd.f32 %v752, %v1072
  %v1074 = vpop.f32.mrf.mxu0
  %v1075 = vadd.f32 %v754, %v1074
  %1076 = vmatprep.mubr.f32.mxu0 0.0
  %1077 = vmatmul.mubr.f32.gmra.mxu0 %v864
  %v1078 = vpop.f32.mrf.mxu0
  %v1079 = vadd.f32 %v758, %v1078
  %v1080 = vpop.f32.mrf.mxu0
  %v1081 = vadd.f32 %v760, %v1080
  %1082 = vmatprep.mubr.f32.mxu0 0.0
  %1083 = vmatmul.mubr.f32.gmra.mxu0 %v866
  %v1084 = vpop.f32.mrf.mxu0
  %v1085 = vadd.f32 %v764, %v1084
  %v1086 = vpop.f32.mrf.mxu0
  %v1087 = vadd.f32 %v766, %v1086
  %1088 = vmatprep.mubr.f32.mxu0 0.0
  %1089 = vmatmul.mubr.f32.gmra.mxu0 %v868
  %v1090 = vpop.f32.mrf.mxu0
  %v1091 = vadd.f32 %v770, %v1090
  %v1092 = vpop.f32.mrf.mxu0
  %v1093 = vadd.f32 %v772, %v1092
  %1094 = vmatprep.mubr.f32.mxu0 0.0
  %1095 = vmatmul.mubr.f32.gmra.mxu0 %v870
  %v1096 = vpop.f32.mrf.mxu0
  %v1097 = vadd.f32 %v776, %v1096
  %v1098 = vpop.f32.mrf.mxu0
  %v1099 = vadd.f32 %v778, %v1098
  %1100 = vmatprep.mubr.f32.mxu0 0.0
  %1101 = vmatmul.mubr.f32.gmra.mxu0 %v872
  %v1102 = vpop.f32.mrf.mxu0
  %v1103 = vadd.f32 %v782, %v1102
  %v1104 = vpop.f32.mrf.mxu0
  %v1105 = vadd.f32 %v784, %v1104
  %1106 = vmatprep.mubr.f32.mxu0 0.0
  %1107 = vmatmul.mubr.f32.gmra.mxu0 %v874
  %v1108 = vpop.f32.mrf.mxu0
  %v1109 = vadd.f32 %v788, %v1108
  %v1110 = vpop.f32.mrf.mxu0
  %v1111 = vadd.f32 %v790, %v1110
  %1112 = vmatprep.mubr.f32.mxu0 0.0
  %1113 = vmatmul.mubr.f32.gmra.mxu0 %v876
  %v1114 = vpop.f32.mrf.mxu0
  %v1115 = vadd.f32 %v794, %v1114
  %v1116 = vpop.f32.mrf.mxu0
  %v1117 = vadd.f32 %v796, %v1116
  %1118 = vmatprep.mubr.f32.mxu0 0.0
  %1119 = vmatmul.mubr.f32.gmra.mxu0 %v878
  %v1120 = vpop.f32.mrf.mxu0
  %v1121 = vadd.f32 %v800, %v1120
  %v1122 = vpop.f32.mrf.mxu0
  %v1123 = vadd.f32 %v802, %v1122
  %1124 = vmatprep.mubr.f32.mxu0 0.0
  %1125 = vmatmul.mubr.f32.gmra.mxu0 %v880
  %v1126 = vpop.f32.mrf.mxu0
  %v1127 = vadd.f32 %v806, %v1126
  %v1128 = vpop.f32.mrf.mxu0
  %v1129 = vadd.f32 %v808, %v1128
  %1130 = vmatprep.mubr.f32.mxu0 0.0
  %1131 = vmatmul.mubr.f32.gmra.mxu0 %v882
  %v1132 = vpop.f32.mrf.mxu0
  %v1133 = vadd.f32 %v812, %v1132
  %v1134 = vpop.f32.mrf.mxu0
  %v1135 = vadd.f32 %v814, %v1134
  %1136 = vmatprep.mubr.f32.mxu0 0.0
  %1137 = vmatmul.mubr.f32.gmra.mxu0 %v884
  %v1138 = vpop.f32.mrf.mxu0
  %v1139 = vadd.f32 %v818, %v1138
  %v1140 = vpop.f32.mrf.mxu0
  %v1141 = vadd.f32 %v820, %v1140
  %1142 = vdwg.mxu0
  %vm1143 = vcmask 1045504
  %v1144 = vrot.slane %v38, 2
  %v1145 = vrot.slane %v39, 2
  %v1146 = vsel %vm1143, %v1144, %v1145
  %v1147 = vrot.slane %v40, 2
  %v1148 = vsel %vm1143, %v1145, %v1147
  %v1149 = vrot.slane %v41, 2
  %v1150 = vsel %vm1143, %v1147, %v1149
  %v1151 = vrot.slane %v42, 2
  %v1152 = vsel %vm1143, %v1149, %v1151
  %v1153 = vrot.slane %v43, 2
  %v1154 = vsel %vm1143, %v1151, %v1153
  %v1155 = vrot.slane %v44, 2
  %v1156 = vsel %vm1143, %v1153, %v1155
  %v1157 = vrot.slane %v45, 2
  %v1158 = vsel %vm1143, %v1155, %v1157
  %v1159 = vrot.slane %v46, 2
  %v1160 = vsel %vm1143, %v1157, %v1159
  %v1161 = vrot.slane %v47, 2
  %v1162 = vsel %vm1143, %v1159, %v1161
  %v1163 = vrot.slane %v48, 2
  %v1164 = vsel %vm1143, %v1161, %v1163
  %v1165 = vrot.slane %v49, 2
  %v1166 = vsel %vm1143, %v1163, %v1165
  %v1167 = vrot.slane %v50, 2
  %v1168 = vsel %vm1143, %v1165, %v1167
  %v1169 = vrot.slane %v51, 2
  %v1170 = vsel %vm1143, %v1167, %v1169
  %v1171 = vrot.slane %v52, 2
  %v1172 = vsel %vm1143, %v1169, %v1171
  %v1173 = vrot.slane %v53, 2
  %v1174 = vsel %vm1143, %v1171, %v1173
  %v1175 = vrot.slane %v54, 2
  %v1176 = vsel %vm1143, %v1173, %v1175
  %v1177 = vrot.slane %v55, 2
  %v1178 = vsel %vm1143, %v1175, %v1177
  %v1179 = vrot.slane %v56, 2
  %v1180 = vsel %vm1143, %v1177, %v1179
  %v1181 = vrot.slane %v57, 2
  %v1182 = vsel %vm1143, %v1179, %v1181
  %v1183 = vrot.slane %v58, 2
  %v1184 = vsel %vm1143, %v1181, %v1183
  %v1185 = vrot.slane %v59, 2
  %v1186 = vsel %vm1143, %v1183, %v1185
  %v1187 = vrot.slane %v60, 2
  %v1188 = vsel %vm1143, %v1185, %v1187
  %v1189 = vrot.slane %v61, 2
  %v1190 = vsel %vm1143, %v1187, %v1189
  %v1191 = vrot.slane %v62, 2
  %v1192 = vsel %vm1143, %v1189, %v1191
  %v1193 = vrot.slane %v63, 2
  %v1194 = vsel %vm1143, %v1191, %v1193
  %v1195 = vrot.slane %v64, 2
  %v1196 = vsel %vm1143, %v1193, %v1195
  %v1197 = vrot.slane %v65, 2
  %v1198 = vsel %vm1143, %v1195, %v1197
  %v1199 = vrot.slane %v66, 2
  %v1200 = vsel %vm1143, %v1197, %v1199
  %v1201 = vrot.slane %v67, 2
  %v1202 = vsel %vm1143, %v1199, %v1201
  %v1203 = vrot.slane %v68, 2
  %v1204 = vsel %vm1143, %v1201, %v1203
  %v1205 = vrot.slane %v69, 2
  %v1206 = vsel %vm1143, %v1203, %v1205
  %v1207 = vsel %vm500, %v1146, 0
  %v1209 = vsel %vm500, %v1148, 0
  %v1211 = vsel %vm500, %v1150, 0
  %v1213 = vsel %vm500, %v1152, 0
  %v1215 = vsel %vm500, %v1154, 0
  %v1217 = vsel %vm500, %v1156, 0
  %v1219 = vsel %vm500, %v1158, 0
  %v1221 = vsel %vm500, %v1160, 0
  %v1223 = vsel %vm500, %v1162, 0
  %v1225 = vsel %vm500, %v1164, 0
  %v1227 = vsel %vm500, %v1166, 0
  %v1229 = vsel %vm500, %v1168, 0
  %v1231 = vsel %vm500, %v1170, 0
  %v1233 = vsel %vm500, %v1172, 0
  %v1235 = vsel %vm500, %v1174, 0
  %v1237 = vsel %vm500, %v1176, 0
  %v1239 = vsel %vm500, %v1178, 0
  %v1241 = vsel %vm500, %v1180, 0
  %v1243 = vsel %vm500, %v1182, 0
  %v1245 = vsel %vm500, %v1184, 0
  %v1247 = vsel %vm500, %v1186, 0
  %v1249 = vsel %vm500, %v1188, 0
  %v1251 = vsel %vm500, %v1190, 0
  %v1253 = vsel %vm500, %v1192, 0
  %v1255 = vsel %vm500, %v1194, 0
  %v1257 = vsel %vm500, %v1196, 0
  %v1259 = vsel %vm500, %v1198, 0
  %v1261 = vsel %vm500, %v1200, 0
  %v1263 = vsel %vm500, %v1202, 0
  %v1265 = vsel %vm500, %v1204, 0
  %v1267 = vsel %vm500, %v1206, 0
  %v1269 = vsel %vm500, %v1205, 0
  %1271 = vmatprep.subr.mxu0 0.0
  %1272 = vmatpush1.msra.mxu0 0.0
  %1273 = vmatprep.subr.mxu0 0.0
  %1274 = vmatpush1.msra.mxu0 0.0
  %1275 = vmatprep.subr.mxu0 0.0
  %1276 = vmatpush1.msra.mxu0 0.0
  %1277 = vmatprep.subr.mxu0 0.0
  %1278 = vmatpush1.msra.mxu0 0.0
  %1279 = vmatprep.subr.mxu0 0.0
  %1280 = vmatpush1.msra.mxu0 0.0
  %1281 = vmatprep.subr.mxu0 0.0
  %1282 = vmatpush1.msra.mxu0 0.0
  %1283 = vmatprep.subr.mxu0 0.0
  %1284 = vmatpush1.msra.mxu0 0.0
  %1285 = vmatprep.subr.mxu0 0.0
  %1286 = vmatpush1.msra.mxu0 0.0
  %1287 = vmatprep.subr.mxu0 0.0
  %1288 = vmatpush1.msra.mxu0 0.0
  %1289 = vmatprep.subr.mxu0 0.0
  %1290 = vmatpush1.msra.mxu0 0.0
  %1291 = vmatprep.subr.mxu0 0.0
  %1292 = vmatpush1.msra.mxu0 0.0
  %1293 = vmatprep.subr.mxu0 0.0
  %1294 = vmatpush1.msra.mxu0 0.0
  %1295 = vmatprep.subr.mxu0 %v93
  %1296 = vmatpush1.msra.mxu0 %v92
  %1297 = vmatprep.subr.mxu0 %v91
  %1298 = vmatpush1.msra.mxu0 %v90
  %1299 = vmatprep.subr.mxu0 %v89
  %1300 = vmatpush1.msra.mxu0 %v88
  %1301 = vmatprep.subr.mxu0 %v87
  %1302 = vmatpush1.msra.mxu0 %v86
  %1303 = vmatprep.subr.mxu0 0.0
  %1304 = vmatpush2.msra.mxu0 0.0
  %1305 = vmatprep.subr.mxu0 0.0
  %1306 = vmatpush2.msra.mxu0 0.0
  %1307 = vmatprep.subr.mxu0 0.0
  %1308 = vmatpush2.msra.mxu0 0.0
  %1309 = vmatprep.subr.mxu0 0.0
  %1310 = vmatpush2.msra.mxu0 0.0
  %1311 = vmatprep.subr.mxu0 0.0
  %1312 = vmatpush2.msra.mxu0 0.0
  %1313 = vmatprep.subr.mxu0 0.0
  %1314 = vmatpush2.msra.mxu0 0.0
  %1315 = vmatprep.subr.mxu0 0.0
  %1316 = vmatpush2.msra.mxu0 0.0
  %1317 = vmatprep.subr.mxu0 0.0
  %1318 = vmatpush2.msra.mxu0 0.0
  %1319 = vmatprep.subr.mxu0 0.0
  %1320 = vmatpush2.msra.mxu0 0.0
  %1321 = vmatprep.subr.mxu0 0.0
  %1322 = vmatpush2.msra.mxu0 0.0
  %1323 = vmatprep.subr.mxu0 0.0
  %1324 = vmatpush2.msra.mxu0 0.0
  %1325 = vmatprep.subr.mxu0 0.0
  %1326 = vmatpush2.msra.mxu0 0.0
  %1327 = vmatprep.subr.mxu0 0.0
  %1328 = vmatpush2.msra.mxu0 0.0
  %1329 = vmatprep.subr.mxu0 0.0
  %1330 = vmatpush2.msra.mxu0 0.0
  %1331 = vmatprep.subr.mxu0 0.0
  %1332 = vmatpush2.msra.mxu0 0.0
  %1333 = vmatprep.subr.mxu0 0.0
  %1334 = vmatpush2.msra.mxu0 0.0
  %1335 = vmatprep.mubr.f32.mxu0 0.0
  %1336 = vmatmul.mubr.f32.gmra.mxu0 %v1207
  %v1337 = vpop.f32.mrf.mxu0
  %v1338 = vadd.f32 0.0, %v1337
  %v1339 = vpop.f32.mrf.mxu0
  %v1340 = vadd.f32 0.0, %v1339
  %1341 = vmatprep.mubr.f32.mxu0 0.0
  %1342 = vmatmul.mubr.f32.gmra.mxu0 %v1209
  %v1343 = vpop.f32.mrf.mxu0
  %v1344 = vadd.f32 0.0, %v1343
  %v1345 = vpop.f32.mrf.mxu0
  %v1346 = vadd.f32 0.0, %v1345
  %1347 = vmatprep.mubr.f32.mxu0 0.0
  %1348 = vmatmul.mubr.f32.gmra.mxu0 %v1211
  %v1349 = vpop.f32.mrf.mxu0
  %v1350 = vadd.f32 0.0, %v1349
  %v1351 = vpop.f32.mrf.mxu0
  %v1352 = vadd.f32 0.0, %v1351
  %1353 = vmatprep.mubr.f32.mxu0 0.0
  %1354 = vmatmul.mubr.f32.gmra.mxu0 %v1213
  %v1355 = vpop.f32.mrf.mxu0
  %v1356 = vadd.f32 0.0, %v1355
  %v1357 = vpop.f32.mrf.mxu0
  %v1358 = vadd.f32 0.0, %v1357
  %1359 = vmatprep.mubr.f32.mxu0 0.0
  %1360 = vmatmul.mubr.f32.gmra.mxu0 %v1215
  %v1361 = vpop.f32.mrf.mxu0
  %v1362 = vadd.f32 0.0, %v1361
  %v1363 = vpop.f32.mrf.mxu0
  %v1364 = vadd.f32 0.0, %v1363
  %1365 = vmatprep.mubr.f32.mxu0 0.0
  %1366 = vmatmul.mubr.f32.gmra.mxu0 %v1217
  %v1367 = vpop.f32.mrf.mxu0
  %v1368 = vadd.f32 0.0, %v1367
  %v1369 = vpop.f32.mrf.mxu0
  %v1370 = vadd.f32 0.0, %v1369
  %1371 = vmatprep.mubr.f32.mxu0 0.0
  %1372 = vmatmul.mubr.f32.gmra.mxu0 %v1219
  %v1373 = vpop.f32.mrf.mxu0
  %v1374 = vadd.f32 0.0, %v1373
  %v1375 = vpop.f32.mrf.mxu0
  %v1376 = vadd.f32 0.0, %v1375
  %1377 = vmatprep.mubr.f32.mxu0 0.0
  %1378 = vmatmul.mubr.f32.gmra.mxu0 %v1221
  %v1379 = vpop.f32.mrf.mxu0
  %v1380 = vadd.f32 0.0, %v1379
  %v1381 = vpop.f32.mrf.mxu0
  %v1382 = vadd.f32 0.0, %v1381
  %1383 = vmatprep.mubr.f32.mxu0 0.0
  %1384 = vmatmul.mubr.f32.gmra.mxu0 %v1223
  %v1385 = vpop.f32.mrf.mxu0
  %v1386 = vadd.f32 0.0, %v1385
  %v1387 = vpop.f32.mrf.mxu0
  %v1388 = vadd.f32 0.0, %v1387
  %1389 = vmatprep.mubr.f32.mxu0 0.0
  %1390 = vmatmul.mubr.f32.gmra.mxu0 %v1225
  %v1391 = vpop.f32.mrf.mxu0
  %v1392 = vadd.f32 0.0, %v1391
  %v1393 = vpop.f32.mrf.mxu0
  %v1394 = vadd.f32 0.0, %v1393
  %1395 = vmatprep.mubr.f32.mxu0 0.0
  %1396 = vmatmul.mubr.f32.gmra.mxu0 %v1227
  %v1397 = vpop.f32.mrf.mxu0
  %v1398 = vadd.f32 0.0, %v1397
  %v1399 = vpop.f32.mrf.mxu0
  %v1400 = vadd.f32 0.0, %v1399
  %1401 = vmatprep.mubr.f32.mxu0 0.0
  %1402 = vmatmul.mubr.f32.gmra.mxu0 %v1229
  %v1403 = vpop.f32.mrf.mxu0
  %v1404 = vadd.f32 0.0, %v1403
  %v1405 = vpop.f32.mrf.mxu0
  %v1406 = vadd.f32 0.0, %v1405
  %1407 = vmatprep.mubr.f32.mxu0 0.0
  %1408 = vmatmul.mubr.f32.gmra.mxu0 %v1231
  %v1409 = vpop.f32.mrf.mxu0
  %v1410 = vadd.f32 0.0, %v1409
  %v1411 = vpop.f32.mrf.mxu0
  %v1412 = vadd.f32 0.0, %v1411
  %1413 = vmatprep.mubr.f32.mxu0 0.0
  %1414 = vmatmul.mubr.f32.gmra.mxu0 %v1233
  %v1415 = vpop.f32.mrf.mxu0
  %v1416 = vadd.f32 0.0, %v1415
  %v1417 = vpop.f32.mrf.mxu0
  %v1418 = vadd.f32 0.0, %v1417
  %1419 = vmatprep.mubr.f32.mxu0 0.0
  %1420 = vmatmul.mubr.f32.gmra.mxu0 %v1235
  %v1421 = vpop.f32.mrf.mxu0
  %v1422 = vadd.f32 0.0, %v1421
  %v1423 = vpop.f32.mrf.mxu0
  %v1424 = vadd.f32 0.0, %v1423
  %1425 = vmatprep.mubr.f32.mxu0 0.0
  %1426 = vmatmul.mubr.f32.gmra.mxu0 %v1237
  %v1427 = vpop.f32.mrf.mxu0
  %v1428 = vadd.f32 0.0, %v1427
  %v1429 = vpop.f32.mrf.mxu0
  %v1430 = vadd.f32 0.0, %v1429
  %1431 = vmatprep.mubr.f32.mxu0 0.0
  %1432 = vmatmul.mubr.f32.gmra.mxu0 %v1239
  %v1433 = vpop.f32.mrf.mxu0
  %v1434 = vadd.f32 0.0, %v1433
  %v1435 = vpop.f32.mrf.mxu0
  %v1436 = vadd.f32 0.0, %v1435
  %1437 = vmatprep.mubr.f32.mxu0 0.0
  %1438 = vmatmul.mubr.f32.gmra.mxu0 %v1241
  %v1439 = vpop.f32.mrf.mxu0
  %v1440 = vadd.f32 0.0, %v1439
  %v1441 = vpop.f32.mrf.mxu0
  %v1442 = vadd.f32 0.0, %v1441
  %1443 = vmatprep.mubr.f32.mxu0 0.0
  %1444 = vmatmul.mubr.f32.gmra.mxu0 %v1243
  %v1445 = vpop.f32.mrf.mxu0
  %v1446 = vadd.f32 0.0, %v1445
  %v1447 = vpop.f32.mrf.mxu0
  %v1448 = vadd.f32 0.0, %v1447
  %1449 = vmatprep.mubr.f32.mxu0 0.0
  %1450 = vmatmul.mubr.f32.gmra.mxu0 %v1245
  %v1451 = vpop.f32.mrf.mxu0
  %v1452 = vadd.f32 0.0, %v1451
  %v1453 = vpop.f32.mrf.mxu0
  %v1454 = vadd.f32 0.0, %v1453
  %1455 = vmatprep.mubr.f32.mxu0 0.0
  %1456 = vmatmul.mubr.f32.gmra.mxu0 %v1247
  %v1457 = vpop.f32.mrf.mxu0
  %v1458 = vadd.f32 0.0, %v1457
  %v1459 = vpop.f32.mrf.mxu0
  %v1460 = vadd.f32 0.0, %v1459
  %1461 = vmatprep.mubr.f32.mxu0 0.0
  %1462 = vmatmul.mubr.f32.gmra.mxu0 %v1249
  %v1463 = vpop.f32.mrf.mxu0
  %v1464 = vadd.f32 0.0, %v1463
  %v1465 = vpop.f32.mrf.mxu0
  %v1466 = vadd.f32 0.0, %v1465
  %1467 = vmatprep.mubr.f32.mxu0 0.0
  %1468 = vmatmul.mubr.f32.gmra.mxu0 %v1251
  %v1469 = vpop.f32.mrf.mxu0
  %v1470 = vadd.f32 0.0, %v1469
  %v1471 = vpop.f32.mrf.mxu0
  %v1472 = vadd.f32 0.0, %v1471
  %1473 = vmatprep.mubr.f32.mxu0 0.0
  %1474 = vmatmul.mubr.f32.gmra.mxu0 %v1253
  %v1475 = vpop.f32.mrf.mxu0
  %v1476 = vadd.f32 0.0, %v1475
  %v1477 = vpop.f32.mrf.mxu0
  %v1478 = vadd.f32 0.0, %v1477
  %1479 = vmatprep.mubr.f32.mxu0 0.0
  %1480 = vmatmul.mubr.f32.gmra.mxu0 %v1255
  %v1481 = vpop.f32.mrf.mxu0
  %v1482 = vadd.f32 0.0, %v1481
  %v1483 = vpop.f32.mrf.mxu0
  %v1484 = vadd.f32 0.0, %v1483
  %1485 = vmatprep.mubr.f32.mxu0 0.0
  %1486 = vmatmul.mubr.f32.gmra.mxu0 %v1257
  %v1487 = vpop.f32.mrf.mxu0
  %v1488 = vadd.f32 0.0, %v1487
  %v1489 = vpop.f32.mrf.mxu0
  %v1490 = vadd.f32 0.0, %v1489
  %1491 = vmatprep.mubr.f32.mxu0 0.0
  %1492 = vmatmul.mubr.f32.gmra.mxu0 %v1259
  %v1493 = vpop.f32.mrf.mxu0
  %v1494 = vadd.f32 0.0, %v1493
  %v1495 = vpop.f32.mrf.mxu0
  %v1496 = vadd.f32 0.0, %v1495
  %1497 = vmatprep.mubr.f32.mxu0 0.0
  %1498 = vmatmul.mubr.f32.gmra.mxu0 %v1261
  %v1499 = vpop.f32.mrf.mxu0
  %v1500 = vadd.f32 0.0, %v1499
  %v1501 = vpop.f32.mrf.mxu0
  %v1502 = vadd.f32 0.0, %v1501
  %1503 = vmatprep.mubr.f32.mxu0 0.0
  %1504 = vmatmul.mubr.f32.gmra.mxu0 %v1263
  %v1505 = vpop.f32.mrf.mxu0
  %v1506 = vadd.f32 0.0, %v1505
  %v1507 = vpop.f32.mrf.mxu0
  %v1508 = vadd.f32 0.0, %v1507
  %1509 = vmatprep.mubr.f32.mxu0 0.0
  %1510 = vmatmul.mubr.f32.gmra.mxu0 %v1265
  %v1511 = vpop.f32.mrf.mxu0
  %v1512 = vadd.f32 0.0, %v1511
  %v1513 = vpop.f32.mrf.mxu0
  %v1514 = vadd.f32 0.0, %v1513
  %1515 = vmatprep.mubr.f32.mxu0 0.0
  %1516 = vmatmul.mubr.f32.gmra.mxu0 %v1267
  %v1517 = vpop.f32.mrf.mxu0
  %v1518 = vadd.f32 0.0, %v1517
  %v1519 = vpop.f32.mrf.mxu0
  %v1520 = vadd.f32 0.0, %v1519
  %1521 = vmatprep.mubr.f32.mxu0 0.0
  %1522 = vmatmul.mubr.f32.gmra.mxu0 %v1269
  %v1523 = vpop.f32.mrf.mxu0
  %v1524 = vadd.f32 0.0, %v1523
  %v1525 = vpop.f32.mrf.mxu0
  %v1526 = vadd.f32 0.0, %v1525
  %1527 = vdwg.mxu0
  %v1528 = vadd.f32 %v953, %v1338
  %v1529 = vadd.f32 %v955, %v1340
  %v1530 = vadd.f32 %v959, %v1344
  %v1531 = vadd.f32 %v961, %v1346
  %v1532 = vadd.f32 %v965, %v1350
  %v1533 = vadd.f32 %v967, %v1352
  %v1534 = vadd.f32 %v971, %v1356
  %v1535 = vadd.f32 %v973, %v1358
  %v1536 = vadd.f32 %v977, %v1362
  %v1537 = vadd.f32 %v979, %v1364
  %v1538 = vadd.f32 %v983, %v1368
  %v1539 = vadd.f32 %v985, %v1370
  %v1540 = vadd.f32 %v989, %v1374
  %v1541 = vadd.f32 %v991, %v1376
  %v1542 = vadd.f32 %v995, %v1380
  %v1543 = vadd.f32 %v997, %v1382
  %v1544 = vadd.f32 %v1001, %v1386
  %v1545 = vadd.f32 %v1003, %v1388
  %v1546 = vadd.f32 %v1007, %v1392
  %v1547 = vadd.f32 %v1009, %v1394
  %v1548 = vadd.f32 %v1013, %v1398
  %v1549 = vadd.f32 %v1015, %v1400
  %v1550 = vadd.f32 %v1019, %v1404
  %v1551 = vadd.f32 %v1021, %v1406
  %v1552 = vadd.f32 %v1025, %v1410
  %v1553 = vadd.f32 %v1027, %v1412
  %v1554 = vadd.f32 %v1031, %v1416
  %v1555 = vadd.f32 %v1033, %v1418
  %v1556 = vadd.f32 %v1037, %v1422
  %v1557 = vadd.f32 %v1039, %v1424
  %v1558 = vadd.f32 %v1043, %v1428
  %v1559 = vadd.f32 %v1045, %v1430
  %v1560 = vadd.f32 %v1049, %v1434
  %v1561 = vadd.f32 %v1051, %v1436
  %v1562 = vadd.f32 %v1055, %v1440
  %v1563 = vadd.f32 %v1057, %v1442
  %v1564 = vadd.f32 %v1061, %v1446
  %v1565 = vadd.f32 %v1063, %v1448
  %v1566 = vadd.f32 %v1067, %v1452
  %v1567 = vadd.f32 %v1069, %v1454
  %v1568 = vadd.f32 %v1073, %v1458
  %v1569 = vadd.f32 %v1075, %v1460
  %v1570 = vadd.f32 %v1079, %v1464
  %v1571 = vadd.f32 %v1081, %v1466
  %v1572 = vadd.f32 %v1085, %v1470
  %v1573 = vadd.f32 %v1087, %v1472
  %v1574 = vadd.f32 %v1091, %v1476
  %v1575 = vadd.f32 %v1093, %v1478
  %v1576 = vadd.f32 %v1097, %v1482
  %v1577 = vadd.f32 %v1099, %v1484
  %v1578 = vadd.f32 %v1103, %v1488
  %v1579 = vadd.f32 %v1105, %v1490
  %v1580 = vadd.f32 %v1109, %v1494
  %v1581 = vadd.f32 %v1111, %v1496
  %v1582 = vadd.f32 %v1115, %v1500
  %v1583 = vadd.f32 %v1117, %v1502
  %v1584 = vadd.f32 %v1121, %v1506
  %v1585 = vadd.f32 %v1123, %v1508
  %v1586 = vadd.f32 %v1127, %v1512
  %v1587 = vadd.f32 %v1129, %v1514
  %v1588 = vadd.f32 %v1133, %v1518
  %v1589 = vadd.f32 %v1135, %v1520
  %v1590 = vadd.f32 %v1139, %v1524
  %v1591 = vadd.f32 %v1141, %v1526
  %vm1592 = vcmask 1044480
  %v1593 = vrot.slane %v38, 3
  %v1594 = vrot.slane %v39, 3
  %v1595 = vsel %vm1592, %v1593, %v1594
  %v1596 = vrot.slane %v40, 3
  %v1597 = vsel %vm1592, %v1594, %v1596
  %v1598 = vrot.slane %v41, 3
  %v1599 = vsel %vm1592, %v1596, %v1598
  %v1600 = vrot.slane %v42, 3
  %v1601 = vsel %vm1592, %v1598, %v1600
  %v1602 = vrot.slane %v43, 3
  %v1603 = vsel %vm1592, %v1600, %v1602
  %v1604 = vrot.slane %v44, 3
  %v1605 = vsel %vm1592, %v1602, %v1604
  %v1606 = vrot.slane %v45, 3
  %v1607 = vsel %vm1592, %v1604, %v1606
  %v1608 = vrot.slane %v46, 3
  %v1609 = vsel %vm1592, %v1606, %v1608
  %v1610 = vrot.slane %v47, 3
  %v1611 = vsel %vm1592, %v1608, %v1610
  %v1612 = vrot.slane %v48, 3
  %v1613 = vsel %vm1592, %v1610, %v1612
  %v1614 = vrot.slane %v49, 3
  %v1615 = vsel %vm1592, %v1612, %v1614
  %v1616 = vrot.slane %v50, 3
  %v1617 = vsel %vm1592, %v1614, %v1616
  %v1618 = vrot.slane %v51, 3
  %v1619 = vsel %vm1592, %v1616, %v1618
  %v1620 = vrot.slane %v52, 3
  %v1621 = vsel %vm1592, %v1618, %v1620
  %v1622 = vrot.slane %v53, 3
  %v1623 = vsel %vm1592, %v1620, %v1622
  %v1624 = vrot.slane %v54, 3
  %v1625 = vsel %vm1592, %v1622, %v1624
  %v1626 = vrot.slane %v55, 3
  %v1627 = vsel %vm1592, %v1624, %v1626
  %v1628 = vrot.slane %v56, 3
  %v1629 = vsel %vm1592, %v1626, %v1628
  %v1630 = vrot.slane %v57, 3
  %v1631 = vsel %vm1592, %v1628, %v1630
  %v1632 = vrot.slane %v58, 3
  %v1633 = vsel %vm1592, %v1630, %v1632
  %v1634 = vrot.slane %v59, 3
  %v1635 = vsel %vm1592, %v1632, %v1634
  %v1636 = vrot.slane %v60, 3
  %v1637 = vsel %vm1592, %v1634, %v1636
  %v1638 = vrot.slane %v61, 3
  %v1639 = vsel %vm1592, %v1636, %v1638
  %v1640 = vrot.slane %v62, 3
  %v1641 = vsel %vm1592, %v1638, %v1640
  %v1642 = vrot.slane %v63, 3
  %v1643 = vsel %vm1592, %v1640, %v1642
  %v1644 = vrot.slane %v64, 3
  %v1645 = vsel %vm1592, %v1642, %v1644
  %v1646 = vrot.slane %v65, 3
  %v1647 = vsel %vm1592, %v1644, %v1646
  %v1648 = vrot.slane %v66, 3
  %v1649 = vsel %vm1592, %v1646, %v1648
  %v1650 = vrot.slane %v67, 3
  %v1651 = vsel %vm1592, %v1648, %v1650
  %v1652 = vrot.slane %v68, 3
  %v1653 = vsel %vm1592, %v1650, %v1652
  %v1654 = vrot.slane %v69, 3
  %v1655 = vsel %vm1592, %v1652, %v1654
  %v1656 = vsel %vm500, %v1595, 0
  %v1658 = vsel %vm500, %v1597, 0
  %v1660 = vsel %vm500, %v1599, 0
  %v1662 = vsel %vm500, %v1601, 0
  %v1664 = vsel %vm500, %v1603, 0
  %v1666 = vsel %vm500, %v1605, 0
  %v1668 = vsel %vm500, %v1607, 0
  %v1670 = vsel %vm500, %v1609, 0
  %v1672 = vsel %vm500, %v1611, 0
  %v1674 = vsel %vm500, %v1613, 0
  %v1676 = vsel %vm500, %v1615, 0
  %v1678 = vsel %vm500, %v1617, 0
  %v1680 = vsel %vm500, %v1619, 0
  %v1682 = vsel %vm500, %v1621, 0
  %v1684 = vsel %vm500, %v1623, 0
  %v1686 = vsel %vm500, %v1625, 0
  %v1688 = vsel %vm500, %v1627, 0
  %v1690 = vsel %vm500, %v1629, 0
  %v1692 = vsel %vm500, %v1631, 0
  %v1694 = vsel %vm500, %v1633, 0
  %v1696 = vsel %vm500, %v1635, 0
  %v1698 = vsel %vm500, %v1637, 0
  %v1700 = vsel %vm500, %v1639, 0
  %v1702 = vsel %vm500, %v1641, 0
  %v1704 = vsel %vm500, %v1643, 0
  %v1706 = vsel %vm500, %v1645, 0
  %v1708 = vsel %vm500, %v1647, 0
  %v1710 = vsel %vm500, %v1649, 0
  %v1712 = vsel %vm500, %v1651, 0
  %v1714 = vsel %vm500, %v1653, 0
  %v1716 = vsel %vm500, %v1655, 0
  %v1718 = vsel %vm500, %v1654, 0
  %1720 = vmatprep.subr.mxu0 0.0
  %1721 = vmatpush1.msra.mxu0 0.0
  %1722 = vmatprep.subr.mxu0 0.0
  %1723 = vmatpush1.msra.mxu0 0.0
  %1724 = vmatprep.subr.mxu0 0.0
  %1725 = vmatpush1.msra.mxu0 0.0
  %1726 = vmatprep.subr.mxu0 0.0
  %1727 = vmatpush1.msra.mxu0 0.0
  %1728 = vmatprep.subr.mxu0 0.0
  %1729 = vmatpush1.msra.mxu0 0.0
  %1730 = vmatprep.subr.mxu0 0.0
  %1731 = vmatpush1.msra.mxu0 0.0
  %1732 = vmatprep.subr.mxu0 0.0
  %1733 = vmatpush1.msra.mxu0 0.0
  %1734 = vmatprep.subr.mxu0 0.0
  %1735 = vmatpush1.msra.mxu0 0.0
  %1736 = vmatprep.subr.mxu0 0.0
  %1737 = vmatpush1.msra.mxu0 0.0
  %1738 = vmatprep.subr.mxu0 0.0
  %1739 = vmatpush1.msra.mxu0 0.0
  %1740 = vmatprep.subr.mxu0 0.0
  %1741 = vmatpush1.msra.mxu0 0.0
  %1742 = vmatprep.subr.mxu0 0.0
  %1743 = vmatpush1.msra.mxu0 0.0
  %1744 = vmatprep.subr.mxu0 %v101
  %1745 = vmatpush1.msra.mxu0 %v100
  %1746 = vmatprep.subr.mxu0 %v99
  %1747 = vmatpush1.msra.mxu0 %v98
  %1748 = vmatprep.subr.mxu0 %v97
  %1749 = vmatpush1.msra.mxu0 %v96
  %1750 = vmatprep.subr.mxu0 %v95
  %1751 = vmatpush1.msra.mxu0 %v94
  %1752 = vmatprep.subr.mxu0 0.0
  %1753 = vmatpush2.msra.mxu0 0.0
  %1754 = vmatprep.subr.mxu0 0.0
  %1755 = vmatpush2.msra.mxu0 0.0
  %1756 = vmatprep.subr.mxu0 0.0
  %1757 = vmatpush2.msra.mxu0 0.0
  %1758 = vmatprep.subr.mxu0 0.0
  %1759 = vmatpush2.msra.mxu0 0.0
  %1760 = vmatprep.subr.mxu0 0.0
  %1761 = vmatpush2.msra.mxu0 0.0
  %1762 = vmatprep.subr.mxu0 0.0
  %1763 = vmatpush2.msra.mxu0 0.0
  %1764 = vmatprep.subr.mxu0 0.0
  %1765 = vmatpush2.msra.mxu0 0.0
  %1766 = vmatprep.subr.mxu0 0.0
  %1767 = vmatpush2.msra.mxu0 0.0
  %1768 = vmatprep.subr.mxu0 0.0
  %1769 = vmatpush2.msra.mxu0 0.0
  %1770 = vmatprep.subr.mxu0 0.0
  %1771 = vmatpush2.msra.mxu0 0.0
  %1772 = vmatprep.subr.mxu0 0.0
  %1773 = vmatpush2.msra.mxu0 0.0
  %1774 = vmatprep.subr.mxu0 0.0
  %1775 = vmatpush2.msra.mxu0 0.0
  %1776 = vmatprep.subr.mxu0 0.0
  %1777 = vmatpush2.msra.mxu0 0.0
  %1778 = vmatprep.subr.mxu0 0.0
  %1779 = vmatpush2.msra.mxu0 0.0
  %1780 = vmatprep.subr.mxu0 0.0
  %1781 = vmatpush2.msra.mxu0 0.0
  %1782 = vmatprep.subr.mxu0 0.0
  %1783 = vmatpush2.msra.mxu0 0.0
  %1784 = vmatprep.mubr.f32.mxu0 0.0
  %1785 = vmatmul.mubr.f32.gmra.mxu0 %v1656
  %v1786 = vpop.f32.mrf.mxu0
  %v1787 = vadd.f32 0.0, %v1786
  %v1788 = vpop.f32.mrf.mxu0
  %v1789 = vadd.f32 0.0, %v1788
  %1790 = vmatprep.mubr.f32.mxu0 0.0
  %1791 = vmatmul.mubr.f32.gmra.mxu0 %v1658
  %v1792 = vpop.f32.mrf.mxu0
  %v1793 = vadd.f32 0.0, %v1792
  %v1794 = vpop.f32.mrf.mxu0
  %v1795 = vadd.f32 0.0, %v1794
  %1796 = vmatprep.mubr.f32.mxu0 0.0
  %1797 = vmatmul.mubr.f32.gmra.mxu0 %v1660
  %v1798 = vpop.f32.mrf.mxu0
  %v1799 = vadd.f32 0.0, %v1798
  %v1800 = vpop.f32.mrf.mxu0
  %v1801 = vadd.f32 0.0, %v1800
  %1802 = vmatprep.mubr.f32.mxu0 0.0
  %1803 = vmatmul.mubr.f32.gmra.mxu0 %v1662
  %v1804 = vpop.f32.mrf.mxu0
  %v1805 = vadd.f32 0.0, %v1804
  %v1806 = vpop.f32.mrf.mxu0
  %v1807 = vadd.f32 0.0, %v1806
  %1808 = vmatprep.mubr.f32.mxu0 0.0
  %1809 = vmatmul.mubr.f32.gmra.mxu0 %v1664
  %v1810 = vpop.f32.mrf.mxu0
  %v1811 = vadd.f32 0.0, %v1810
  %v1812 = vpop.f32.mrf.mxu0
  %v1813 = vadd.f32 0.0, %v1812
  %1814 = vmatprep.mubr.f32.mxu0 0.0
  %1815 = vmatmul.mubr.f32.gmra.mxu0 %v1666
  %v1816 = vpop.f32.mrf.mxu0
  %v1817 = vadd.f32 0.0, %v1816
  %v1818 = vpop.f32.mrf.mxu0
  %v1819 = vadd.f32 0.0, %v1818
  %1820 = vmatprep.mubr.f32.mxu0 0.0
  %1821 = vmatmul.mubr.f32.gmra.mxu0 %v1668
  %v1822 = vpop.f32.mrf.mxu0
  %v1823 = vadd.f32 0.0, %v1822
  %v1824 = vpop.f32.mrf.mxu0
  %v1825 = vadd.f32 0.0, %v1824
  %1826 = vmatprep.mubr.f32.mxu0 0.0
  %1827 = vmatmul.mubr.f32.gmra.mxu0 %v1670
  %v1828 = vpop.f32.mrf.mxu0
  %v1829 = vadd.f32 0.0, %v1828
  %v1830 = vpop.f32.mrf.mxu0
  %v1831 = vadd.f32 0.0, %v1830
  %1832 = vmatprep.mubr.f32.mxu0 0.0
  %1833 = vmatmul.mubr.f32.gmra.mxu0 %v1672
  %v1834 = vpop.f32.mrf.mxu0
  %v1835 = vadd.f32 0.0, %v1834
  %v1836 = vpop.f32.mrf.mxu0
  %v1837 = vadd.f32 0.0, %v1836
  %1838 = vmatprep.mubr.f32.mxu0 0.0
  %1839 = vmatmul.mubr.f32.gmra.mxu0 %v1674
  %v1840 = vpop.f32.mrf.mxu0
  %v1841 = vadd.f32 0.0, %v1840
  %v1842 = vpop.f32.mrf.mxu0
  %v1843 = vadd.f32 0.0, %v1842
  %1844 = vmatprep.mubr.f32.mxu0 0.0
  %1845 = vmatmul.mubr.f32.gmra.mxu0 %v1676
  %v1846 = vpop.f32.mrf.mxu0
  %v1847 = vadd.f32 0.0, %v1846
  %v1848 = vpop.f32.mrf.mxu0
  %v1849 = vadd.f32 0.0, %v1848
  %1850 = vmatprep.mubr.f32.mxu0 0.0
  %1851 = vmatmul.mubr.f32.gmra.mxu0 %v1678
  %v1852 = vpop.f32.mrf.mxu0
  %v1853 = vadd.f32 0.0, %v1852
  %v1854 = vpop.f32.mrf.mxu0
  %v1855 = vadd.f32 0.0, %v1854
  %1856 = vmatprep.mubr.f32.mxu0 0.0
  %1857 = vmatmul.mubr.f32.gmra.mxu0 %v1680
  %v1858 = vpop.f32.mrf.mxu0
  %v1859 = vadd.f32 0.0, %v1858
  %v1860 = vpop.f32.mrf.mxu0
  %v1861 = vadd.f32 0.0, %v1860
  %1862 = vmatprep.mubr.f32.mxu0 0.0
  %1863 = vmatmul.mubr.f32.gmra.mxu0 %v1682
  %v1864 = vpop.f32.mrf.mxu0
  %v1865 = vadd.f32 0.0, %v1864
  %v1866 = vpop.f32.mrf.mxu0
  %v1867 = vadd.f32 0.0, %v1866
  %1868 = vmatprep.mubr.f32.mxu0 0.0
  %1869 = vmatmul.mubr.f32.gmra.mxu0 %v1684
  %v1870 = vpop.f32.mrf.mxu0
  %v1871 = vadd.f32 0.0, %v1870
  %v1872 = vpop.f32.mrf.mxu0
  %v1873 = vadd.f32 0.0, %v1872
  %1874 = vmatprep.mubr.f32.mxu0 0.0
  %1875 = vmatmul.mubr.f32.gmra.mxu0 %v1686
  %v1876 = vpop.f32.mrf.mxu0
  %v1877 = vadd.f32 0.0, %v1876
  %v1878 = vpop.f32.mrf.mxu0
  %v1879 = vadd.f32 0.0, %v1878
  %1880 = vmatprep.mubr.f32.mxu0 0.0
  %1881 = vmatmul.mubr.f32.gmra.mxu0 %v1688
  %v1882 = vpop.f32.mrf.mxu0
  %v1883 = vadd.f32 0.0, %v1882
  %v1884 = vpop.f32.mrf.mxu0
  %v1885 = vadd.f32 0.0, %v1884
  %1886 = vmatprep.mubr.f32.mxu0 0.0
  %1887 = vmatmul.mubr.f32.gmra.mxu0 %v1690
  %v1888 = vpop.f32.mrf.mxu0
  %v1889 = vadd.f32 0.0, %v1888
  %v1890 = vpop.f32.mrf.mxu0
  %v1891 = vadd.f32 0.0, %v1890
  %1892 = vmatprep.mubr.f32.mxu0 0.0
  %1893 = vmatmul.mubr.f32.gmra.mxu0 %v1692
  %v1894 = vpop.f32.mrf.mxu0
  %v1895 = vadd.f32 0.0, %v1894
  %v1896 = vpop.f32.mrf.mxu0
  %v1897 = vadd.f32 0.0, %v1896
  %1898 = vmatprep.mubr.f32.mxu0 0.0
  %1899 = vmatmul.mubr.f32.gmra.mxu0 %v1694
  %v1900 = vpop.f32.mrf.mxu0
  %v1901 = vadd.f32 0.0, %v1900
  %v1902 = vpop.f32.mrf.mxu0
  %v1903 = vadd.f32 0.0, %v1902
  %1904 = vmatprep.mubr.f32.mxu0 0.0
  %1905 = vmatmul.mubr.f32.gmra.mxu0 %v1696
  %v1906 = vpop.f32.mrf.mxu0
  %v1907 = vadd.f32 0.0, %v1906
  %v1908 = vpop.f32.mrf.mxu0
  %v1909 = vadd.f32 0.0, %v1908
  %1910 = vmatprep.mubr.f32.mxu0 0.0
  %1911 = vmatmul.mubr.f32.gmra.mxu0 %v1698
  %v1912 = vpop.f32.mrf.mxu0
  %v1913 = vadd.f32 0.0, %v1912
  %v1914 = vpop.f32.mrf.mxu0
  %v1915 = vadd.f32 0.0, %v1914
  %1916 = vmatprep.mubr.f32.mxu0 0.0
  %1917 = vmatmul.mubr.f32.gmra.mxu0 %v1700
  %v1918 = vpop.f32.mrf.mxu0
  %v1919 = vadd.f32 0.0, %v1918
  %v1920 = vpop.f32.mrf.mxu0
  %v1921 = vadd.f32 0.0, %v1920
  %1922 = vmatprep.mubr.f32.mxu0 0.0
  %1923 = vmatmul.mubr.f32.gmra.mxu0 %v1702
  %v1924 = vpop.f32.mrf.mxu0
  %v1925 = vadd.f32 0.0, %v1924
  %v1926 = vpop.f32.mrf.mxu0
  %v1927 = vadd.f32 0.0, %v1926
  %1928 = vmatprep.mubr.f32.mxu0 0.0
  %1929 = vmatmul.mubr.f32.gmra.mxu0 %v1704
  %v1930 = vpop.f32.mrf.mxu0
  %v1931 = vadd.f32 0.0, %v1930
  %v1932 = vpop.f32.mrf.mxu0
  %v1933 = vadd.f32 0.0, %v1932
  %1934 = vmatprep.mubr.f32.mxu0 0.0
  %1935 = vmatmul.mubr.f32.gmra.mxu0 %v1706
  %v1936 = vpop.f32.mrf.mxu0
  %v1937 = vadd.f32 0.0, %v1936
  %v1938 = vpop.f32.mrf.mxu0
  %v1939 = vadd.f32 0.0, %v1938
  %1940 = vmatprep.mubr.f32.mxu0 0.0
  %1941 = vmatmul.mubr.f32.gmra.mxu0 %v1708
  %v1942 = vpop.f32.mrf.mxu0
  %v1943 = vadd.f32 0.0, %v1942
  %v1944 = vpop.f32.mrf.mxu0
  %v1945 = vadd.f32 0.0, %v1944
  %1946 = vmatprep.mubr.f32.mxu0 0.0
  %1947 = vmatmul.mubr.f32.gmra.mxu0 %v1710
  %v1948 = vpop.f32.mrf.mxu0
  %v1949 = vadd.f32 0.0, %v1948
  %v1950 = vpop.f32.mrf.mxu0
  %v1951 = vadd.f32 0.0, %v1950
  %1952 = vmatprep.mubr.f32.mxu0 0.0
  %1953 = vmatmul.mubr.f32.gmra.mxu0 %v1712
  %v1954 = vpop.f32.mrf.mxu0
  %v1955 = vadd.f32 0.0, %v1954
  %v1956 = vpop.f32.mrf.mxu0
  %v1957 = vadd.f32 0.0, %v1956
  %1958 = vmatprep.mubr.f32.mxu0 0.0
  %1959 = vmatmul.mubr.f32.gmra.mxu0 %v1714
  %v1960 = vpop.f32.mrf.mxu0
  %v1961 = vadd.f32 0.0, %v1960
  %v1962 = vpop.f32.mrf.mxu0
  %v1963 = vadd.f32 0.0, %v1962
  %1964 = vmatprep.mubr.f32.mxu0 0.0
  %1965 = vmatmul.mubr.f32.gmra.mxu0 %v1716
  %v1966 = vpop.f32.mrf.mxu0
  %v1967 = vadd.f32 0.0, %v1966
  %v1968 = vpop.f32.mrf.mxu0
  %v1969 = vadd.f32 0.0, %v1968
  %1970 = vmatprep.mubr.f32.mxu0 0.0
  %1971 = vmatmul.mubr.f32.gmra.mxu0 %v1718
  %v1972 = vpop.f32.mrf.mxu0
  %v1973 = vadd.f32 0.0, %v1972
  %v1974 = vpop.f32.mrf.mxu0
  %v1975 = vadd.f32 0.0, %v1974
  %1976 = vdwg.mxu0
  %v1977 = vadd.f32 %v1528, %v1787
  %v1978 = vadd.f32 %v1529, %v1789
  %v1979 = vadd.f32 %v1530, %v1793
  %v1980 = vadd.f32 %v1531, %v1795
  %v1981 = vadd.f32 %v1532, %v1799
  %v1982 = vadd.f32 %v1533, %v1801
  %v1983 = vadd.f32 %v1534, %v1805
  %v1984 = vadd.f32 %v1535, %v1807
  %v1985 = vadd.f32 %v1536, %v1811
  %v1986 = vadd.f32 %v1537, %v1813
  %v1987 = vadd.f32 %v1538, %v1817
  %v1988 = vadd.f32 %v1539, %v1819
  %v1989 = vadd.f32 %v1540, %v1823
  %v1990 = vadd.f32 %v1541, %v1825
  %v1991 = vadd.f32 %v1542, %v1829
  %v1992 = vadd.f32 %v1543, %v1831
  %v1993 = vadd.f32 %v1544, %v1835
  %v1994 = vadd.f32 %v1545, %v1837
  %v1995 = vadd.f32 %v1546, %v1841
  %v1996 = vadd.f32 %v1547, %v1843
  %v1997 = vadd.f32 %v1548, %v1847
  %v1998 = vadd.f32 %v1549, %v1849
  %v1999 = vadd.f32 %v1550, %v1853
  %v2000 = vadd.f32 %v1551, %v1855
  %v2001 = vadd.f32 %v1552, %v1859
  %v2002 = vadd.f32 %v1553, %v1861
  %v2003 = vadd.f32 %v1554, %v1865
  %v2004 = vadd.f32 %v1555, %v1867
  %v2005 = vadd.f32 %v1556, %v1871
  %v2006 = vadd.f32 %v1557, %v1873
  %v2007 = vadd.f32 %v1558, %v1877
  %v2008 = vadd.f32 %v1559, %v1879
  %v2009 = vadd.f32 %v1560, %v1883
  %v2010 = vadd.f32 %v1561, %v1885
  %v2011 = vadd.f32 %v1562, %v1889
  %v2012 = vadd.f32 %v1563, %v1891
  %v2013 = vadd.f32 %v1564, %v1895
  %v2014 = vadd.f32 %v1565, %v1897
  %v2015 = vadd.f32 %v1566, %v1901
  %v2016 = vadd.f32 %v1567, %v1903
  %v2017 = vadd.f32 %v1568, %v1907
  %v2018 = vadd.f32 %v1569, %v1909
  %v2019 = vadd.f32 %v1570, %v1913
  %v2020 = vadd.f32 %v1571, %v1915
  %v2021 = vadd.f32 %v1572, %v1919
  %v2022 = vadd.f32 %v1573, %v1921
  %v2023 = vadd.f32 %v1574, %v1925
  %v2024 = vadd.f32 %v1575, %v1927
  %v2025 = vadd.f32 %v1576, %v1931
  %v2026 = vadd.f32 %v1577, %v1933
  %v2027 = vadd.f32 %v1578, %v1937
  %v2028 = vadd.f32 %v1579, %v1939
  %v2029 = vadd.f32 %v1580, %v1943
  %v2030 = vadd.f32 %v1581, %v1945
  %v2031 = vadd.f32 %v1582, %v1949
  %v2032 = vadd.f32 %v1583, %v1951
  %v2033 = vadd.f32 %v1584, %v1955
  %v2034 = vadd.f32 %v1585, %v1957
  %v2035 = vadd.f32 %v1586, %v1961
  %v2036 = vadd.f32 %v1587, %v1963
  %v2037 = vadd.f32 %v1588, %v1967
  %v2038 = vadd.f32 %v1589, %v1969
  %v2039 = vadd.f32 %v1590, %v1973
  %v2040 = vadd.f32 %v1591, %v1975
  %vm2041 = vcmask 1043456
  %v2042 = vrot.slane %v38, 4
  %v2043 = vrot.slane %v39, 4
  %v2044 = vsel %vm2041, %v2042, %v2043
  %v2045 = vrot.slane %v40, 4
  %v2046 = vsel %vm2041, %v2043, %v2045
  %v2047 = vrot.slane %v41, 4
  %v2048 = vsel %vm2041, %v2045, %v2047
  %v2049 = vrot.slane %v42, 4
  %v2050 = vsel %vm2041, %v2047, %v2049
  %v2051 = vrot.slane %v43, 4
  %v2052 = vsel %vm2041, %v2049, %v2051
  %v2053 = vrot.slane %v44, 4
  %v2054 = vsel %vm2041, %v2051, %v2053
  %v2055 = vrot.slane %v45, 4
  %v2056 = vsel %vm2041, %v2053, %v2055
  %v2057 = vrot.slane %v46, 4
  %v2058 = vsel %vm2041, %v2055, %v2057
  %v2059 = vrot.slane %v47, 4
  %v2060 = vsel %vm2041, %v2057, %v2059
  %v2061 = vrot.slane %v48, 4
  %v2062 = vsel %vm2041, %v2059, %v2061
  %v2063 = vrot.slane %v49, 4
  %v2064 = vsel %vm2041, %v2061, %v2063
  %v2065 = vrot.slane %v50, 4
  %v2066 = vsel %vm2041, %v2063, %v2065
  %v2067 = vrot.slane %v51, 4
  %v2068 = vsel %vm2041, %v2065, %v2067
  %v2069 = vrot.slane %v52, 4
  %v2070 = vsel %vm2041, %v2067, %v2069
  %v2071 = vrot.slane %v53, 4
  %v2072 = vsel %vm2041, %v2069, %v2071
  %v2073 = vrot.slane %v54, 4
  %v2074 = vsel %vm2041, %v2071, %v2073
  %v2075 = vrot.slane %v55, 4
  %v2076 = vsel %vm2041, %v2073, %v2075
  %v2077 = vrot.slane %v56, 4
  %v2078 = vsel %vm2041, %v2075, %v2077
  %v2079 = vrot.slane %v57, 4
  %v2080 = vsel %vm2041, %v2077, %v2079
  %v2081 = vrot.slane %v58, 4
  %v2082 = vsel %vm2041, %v2079, %v2081
  %v2083 = vrot.slane %v59, 4
  %v2084 = vsel %vm2041, %v2081, %v2083
  %v2085 = vrot.slane %v60, 4
  %v2086 = vsel %vm2041, %v2083, %v2085
  %v2087 = vrot.slane %v61, 4
  %v2088 = vsel %vm2041, %v2085, %v2087
  %v2089 = vrot.slane %v62, 4
  %v2090 = vsel %vm2041, %v2087, %v2089
  %v2091 = vrot.slane %v63, 4
  %v2092 = vsel %vm2041, %v2089, %v2091
  %v2093 = vrot.slane %v64, 4
  %v2094 = vsel %vm2041, %v2091, %v2093
  %v2095 = vrot.slane %v65, 4
  %v2096 = vsel %vm2041, %v2093, %v2095
  %v2097 = vrot.slane %v66, 4
  %v2098 = vsel %vm2041, %v2095, %v2097
  %v2099 = vrot.slane %v67, 4
  %v2100 = vsel %vm2041, %v2097, %v2099
  %v2101 = vrot.slane %v68, 4
  %v2102 = vsel %vm2041, %v2099, %v2101
  %v2103 = vrot.slane %v69, 4
  %v2104 = vsel %vm2041, %v2101, %v2103
  %v2105 = vsel %vm500, %v2044, 0
  %v2107 = vsel %vm500, %v2046, 0
  %v2109 = vsel %vm500, %v2048, 0
  %v2111 = vsel %vm500, %v2050, 0
  %v2113 = vsel %vm500, %v2052, 0
  %v2115 = vsel %vm500, %v2054, 0
  %v2117 = vsel %vm500, %v2056, 0
  %v2119 = vsel %vm500, %v2058, 0
  %v2121 = vsel %vm500, %v2060, 0
  %v2123 = vsel %vm500, %v2062, 0
  %v2125 = vsel %vm500, %v2064, 0
  %v2127 = vsel %vm500, %v2066, 0
  %v2129 = vsel %vm500, %v2068, 0
  %v2131 = vsel %vm500, %v2070, 0
  %v2133 = vsel %vm500, %v2072, 0
  %v2135 = vsel %vm500, %v2074, 0
  %v2137 = vsel %vm500, %v2076, 0
  %v2139 = vsel %vm500, %v2078, 0
  %v2141 = vsel %vm500, %v2080, 0
  %v2143 = vsel %vm500, %v2082, 0
  %v2145 = vsel %vm500, %v2084, 0
  %v2147 = vsel %vm500, %v2086, 0
  %v2149 = vsel %vm500, %v2088, 0
  %v2151 = vsel %vm500, %v2090, 0
  %v2153 = vsel %vm500, %v2092, 0
  %v2155 = vsel %vm500, %v2094, 0
  %v2157 = vsel %vm500, %v2096, 0
  %v2159 = vsel %vm500, %v2098, 0
  %v2161 = vsel %vm500, %v2100, 0
  %v2163 = vsel %vm500, %v2102, 0
  %v2165 = vsel %vm500, %v2104, 0
  %v2167 = vsel %vm500, %v2103, 0
  %2169 = vmatprep.subr.mxu0 0.0
  %2170 = vmatpush1.msra.mxu0 0.0
  %2171 = vmatprep.subr.mxu0 0.0
  %2172 = vmatpush1.msra.mxu0 0.0
  %2173 = vmatprep.subr.mxu0 0.0
  %2174 = vmatpush1.msra.mxu0 0.0
  %2175 = vmatprep.subr.mxu0 0.0
  %2176 = vmatpush1.msra.mxu0 0.0
  %2177 = vmatprep.subr.mxu0 0.0
  %2178 = vmatpush1.msra.mxu0 0.0
  %2179 = vmatprep.subr.mxu0 0.0
  %2180 = vmatpush1.msra.mxu0 0.0
  %2181 = vmatprep.subr.mxu0 0.0
  %2182 = vmatpush1.msra.mxu0 0.0
  %2183 = vmatprep.subr.mxu0 0.0
  %2184 = vmatpush1.msra.mxu0 0.0
  %2185 = vmatprep.subr.mxu0 0.0
  %2186 = vmatpush1.msra.mxu0 0.0
  %2187 = vmatprep.subr.mxu0 0.0
  %2188 = vmatpush1.msra.mxu0 0.0
  %2189 = vmatprep.subr.mxu0 0.0
  %2190 = vmatpush1.msra.mxu0 0.0
  %2191 = vmatprep.subr.mxu0 0.0
  %2192 = vmatpush1.msra.mxu0 0.0
  %2193 = vmatprep.subr.mxu0 %v109
  %2194 = vmatpush1.msra.mxu0 %v108
  %2195 = vmatprep.subr.mxu0 %v107
  %2196 = vmatpush1.msra.mxu0 %v106
  %2197 = vmatprep.subr.mxu0 %v105
  %2198 = vmatpush1.msra.mxu0 %v104
  %2199 = vmatprep.subr.mxu0 %v103
  %2200 = vmatpush1.msra.mxu0 %v102
  %2201 = vmatprep.subr.mxu0 0.0
  %2202 = vmatpush2.msra.mxu0 0.0
  %2203 = vmatprep.subr.mxu0 0.0
  %2204 = vmatpush2.msra.mxu0 0.0
  %2205 = vmatprep.subr.mxu0 0.0
  %2206 = vmatpush2.msra.mxu0 0.0
  %2207 = vmatprep.subr.mxu0 0.0
  %2208 = vmatpush2.msra.mxu0 0.0
  %2209 = vmatprep.subr.mxu0 0.0
  %2210 = vmatpush2.msra.mxu0 0.0
  %2211 = vmatprep.subr.mxu0 0.0
  %2212 = vmatpush2.msra.mxu0 0.0
  %2213 = vmatprep.subr.mxu0 0.0
  %2214 = vmatpush2.msra.mxu0 0.0
  %2215 = vmatprep.subr.mxu0 0.0
  %2216 = vmatpush2.msra.mxu0 0.0
  %2217 = vmatprep.subr.mxu0 0.0
  %2218 = vmatpush2.msra.mxu0 0.0
  %2219 = vmatprep.subr.mxu0 0.0
  %2220 = vmatpush2.msra.mxu0 0.0
  %2221 = vmatprep.subr.mxu0 0.0
  %2222 = vmatpush2.msra.mxu0 0.0
  %2223 = vmatprep.subr.mxu0 0.0
  %2224 = vmatpush2.msra.mxu0 0.0
  %2225 = vmatprep.subr.mxu0 0.0
  %2226 = vmatpush2.msra.mxu0 0.0
  %2227 = vmatprep.subr.mxu0 0.0
  %2228 = vmatpush2.msra.mxu0 0.0
  %2229 = vmatprep.subr.mxu0 0.0
  %2230 = vmatpush2.msra.mxu0 0.0
  %2231 = vmatprep.subr.mxu0 0.0
  %2232 = vmatpush2.msra.mxu0 0.0
  %2233 = vmatprep.mubr.f32.mxu0 0.0
  %2234 = vmatmul.mubr.f32.gmra.mxu0 %v2105
  %v2235 = vpop.f32.mrf.mxu0
  %v2236 = vadd.f32 0.0, %v2235
  %v2237 = vpop.f32.mrf.mxu0
  %v2238 = vadd.f32 0.0, %v2237
  %2239 = vmatprep.mubr.f32.mxu0 0.0
  %2240 = vmatmul.mubr.f32.gmra.mxu0 %v2107
  %v2241 = vpop.f32.mrf.mxu0
  %v2242 = vadd.f32 0.0, %v2241
  %v2243 = vpop.f32.mrf.mxu0
  %v2244 = vadd.f32 0.0, %v2243
  %2245 = vmatprep.mubr.f32.mxu0 0.0
  %2246 = vmatmul.mubr.f32.gmra.mxu0 %v2109
  %v2247 = vpop.f32.mrf.mxu0
  %v2248 = vadd.f32 0.0, %v2247
  %v2249 = vpop.f32.mrf.mxu0
  %v2250 = vadd.f32 0.0, %v2249
  %2251 = vmatprep.mubr.f32.mxu0 0.0
  %2252 = vmatmul.mubr.f32.gmra.mxu0 %v2111
  %v2253 = vpop.f32.mrf.mxu0
  %v2254 = vadd.f32 0.0, %v2253
  %v2255 = vpop.f32.mrf.mxu0
  %v2256 = vadd.f32 0.0, %v2255
  %2257 = vmatprep.mubr.f32.mxu0 0.0
  %2258 = vmatmul.mubr.f32.gmra.mxu0 %v2113
  %v2259 = vpop.f32.mrf.mxu0
  %v2260 = vadd.f32 0.0, %v2259
  %v2261 = vpop.f32.mrf.mxu0
  %v2262 = vadd.f32 0.0, %v2261
  %2263 = vmatprep.mubr.f32.mxu0 0.0
  %2264 = vmatmul.mubr.f32.gmra.mxu0 %v2115
  %v2265 = vpop.f32.mrf.mxu0
  %v2266 = vadd.f32 0.0, %v2265
  %v2267 = vpop.f32.mrf.mxu0
  %v2268 = vadd.f32 0.0, %v2267
  %2269 = vmatprep.mubr.f32.mxu0 0.0
  %2270 = vmatmul.mubr.f32.gmra.mxu0 %v2117
  %v2271 = vpop.f32.mrf.mxu0
  %v2272 = vadd.f32 0.0, %v2271
  %v2273 = vpop.f32.mrf.mxu0
  %v2274 = vadd.f32 0.0, %v2273
  %2275 = vmatprep.mubr.f32.mxu0 0.0
  %2276 = vmatmul.mubr.f32.gmra.mxu0 %v2119
  %v2277 = vpop.f32.mrf.mxu0
  %v2278 = vadd.f32 0.0, %v2277
  %v2279 = vpop.f32.mrf.mxu0
  %v2280 = vadd.f32 0.0, %v2279
  %2281 = vmatprep.mubr.f32.mxu0 0.0
  %2282 = vmatmul.mubr.f32.gmra.mxu0 %v2121
  %v2283 = vpop.f32.mrf.mxu0
  %v2284 = vadd.f32 0.0, %v2283
  %v2285 = vpop.f32.mrf.mxu0
  %v2286 = vadd.f32 0.0, %v2285
  %2287 = vmatprep.mubr.f32.mxu0 0.0
  %2288 = vmatmul.mubr.f32.gmra.mxu0 %v2123
  %v2289 = vpop.f32.mrf.mxu0
  %v2290 = vadd.f32 0.0, %v2289
  %v2291 = vpop.f32.mrf.mxu0
  %v2292 = vadd.f32 0.0, %v2291
  %2293 = vmatprep.mubr.f32.mxu0 0.0
  %2294 = vmatmul.mubr.f32.gmra.mxu0 %v2125
  %v2295 = vpop.f32.mrf.mxu0
  %v2296 = vadd.f32 0.0, %v2295
  %v2297 = vpop.f32.mrf.mxu0
  %v2298 = vadd.f32 0.0, %v2297
  %2299 = vmatprep.mubr.f32.mxu0 0.0
  %2300 = vmatmul.mubr.f32.gmra.mxu0 %v2127
  %v2301 = vpop.f32.mrf.mxu0
  %v2302 = vadd.f32 0.0, %v2301
  %v2303 = vpop.f32.mrf.mxu0
  %v2304 = vadd.f32 0.0, %v2303
  %2305 = vmatprep.mubr.f32.mxu0 0.0
  %2306 = vmatmul.mubr.f32.gmra.mxu0 %v2129
  %v2307 = vpop.f32.mrf.mxu0
  %v2308 = vadd.f32 0.0, %v2307
  %v2309 = vpop.f32.mrf.mxu0
  %v2310 = vadd.f32 0.0, %v2309
  %2311 = vmatprep.mubr.f32.mxu0 0.0
  %2312 = vmatmul.mubr.f32.gmra.mxu0 %v2131
  %v2313 = vpop.f32.mrf.mxu0
  %v2314 = vadd.f32 0.0, %v2313
  %v2315 = vpop.f32.mrf.mxu0
  %v2316 = vadd.f32 0.0, %v2315
  %2317 = vmatprep.mubr.f32.mxu0 0.0
  %2318 = vmatmul.mubr.f32.gmra.mxu0 %v2133
  %v2319 = vpop.f32.mrf.mxu0
  %v2320 = vadd.f32 0.0, %v2319
  %v2321 = vpop.f32.mrf.mxu0
  %v2322 = vadd.f32 0.0, %v2321
  %2323 = vmatprep.mubr.f32.mxu0 0.0
  %2324 = vmatmul.mubr.f32.gmra.mxu0 %v2135
  %v2325 = vpop.f32.mrf.mxu0
  %v2326 = vadd.f32 0.0, %v2325
  %v2327 = vpop.f32.mrf.mxu0
  %v2328 = vadd.f32 0.0, %v2327
  %2329 = vmatprep.mubr.f32.mxu0 0.0
  %2330 = vmatmul.mubr.f32.gmra.mxu0 %v2137
  %v2331 = vpop.f32.mrf.mxu0
  %v2332 = vadd.f32 0.0, %v2331
  %v2333 = vpop.f32.mrf.mxu0
  %v2334 = vadd.f32 0.0, %v2333
  %2335 = vmatprep.mubr.f32.mxu0 0.0
  %2336 = vmatmul.mubr.f32.gmra.mxu0 %v2139
  %v2337 = vpop.f32.mrf.mxu0
  %v2338 = vadd.f32 0.0, %v2337
  %v2339 = vpop.f32.mrf.mxu0
  %v2340 = vadd.f32 0.0, %v2339
  %2341 = vmatprep.mubr.f32.mxu0 0.0
  %2342 = vmatmul.mubr.f32.gmra.mxu0 %v2141
  %v2343 = vpop.f32.mrf.mxu0
  %v2344 = vadd.f32 0.0, %v2343
  %v2345 = vpop.f32.mrf.mxu0
  %v2346 = vadd.f32 0.0, %v2345
  %2347 = vmatprep.mubr.f32.mxu0 0.0
  %2348 = vmatmul.mubr.f32.gmra.mxu0 %v2143
  %v2349 = vpop.f32.mrf.mxu0
  %v2350 = vadd.f32 0.0, %v2349
  %v2351 = vpop.f32.mrf.mxu0
  %v2352 = vadd.f32 0.0, %v2351
  %2353 = vmatprep.mubr.f32.mxu0 0.0
  %2354 = vmatmul.mubr.f32.gmra.mxu0 %v2145
  %v2355 = vpop.f32.mrf.mxu0
  %v2356 = vadd.f32 0.0, %v2355
  %v2357 = vpop.f32.mrf.mxu0
  %v2358 = vadd.f32 0.0, %v2357
  %2359 = vmatprep.mubr.f32.mxu0 0.0
  %2360 = vmatmul.mubr.f32.gmra.mxu0 %v2147
  %v2361 = vpop.f32.mrf.mxu0
  %v2362 = vadd.f32 0.0, %v2361
  %v2363 = vpop.f32.mrf.mxu0
  %v2364 = vadd.f32 0.0, %v2363
  %2365 = vmatprep.mubr.f32.mxu0 0.0
  %2366 = vmatmul.mubr.f32.gmra.mxu0 %v2149
  %v2367 = vpop.f32.mrf.mxu0
  %v2368 = vadd.f32 0.0, %v2367
  %v2369 = vpop.f32.mrf.mxu0
  %v2370 = vadd.f32 0.0, %v2369
  %2371 = vmatprep.mubr.f32.mxu0 0.0
  %2372 = vmatmul.mubr.f32.gmra.mxu0 %v2151
  %v2373 = vpop.f32.mrf.mxu0
  %v2374 = vadd.f32 0.0, %v2373
  %v2375 = vpop.f32.mrf.mxu0
  %v2376 = vadd.f32 0.0, %v2375
  %2377 = vmatprep.mubr.f32.mxu0 0.0
  %2378 = vmatmul.mubr.f32.gmra.mxu0 %v2153
  %v2379 = vpop.f32.mrf.mxu0
  %v2380 = vadd.f32 0.0, %v2379
  %v2381 = vpop.f32.mrf.mxu0
  %v2382 = vadd.f32 0.0, %v2381
  %2383 = vmatprep.mubr.f32.mxu0 0.0
  %2384 = vmatmul.mubr.f32.gmra.mxu0 %v2155
  %v2385 = vpop.f32.mrf.mxu0
  %v2386 = vadd.f32 0.0, %v2385
  %v2387 = vpop.f32.mrf.mxu0
  %v2388 = vadd.f32 0.0, %v2387
  %2389 = vmatprep.mubr.f32.mxu0 0.0
  %2390 = vmatmul.mubr.f32.gmra.mxu0 %v2157
  %v2391 = vpop.f32.mrf.mxu0
  %v2392 = vadd.f32 0.0, %v2391
  %v2393 = vpop.f32.mrf.mxu0
  %v2394 = vadd.f32 0.0, %v2393
  %2395 = vmatprep.mubr.f32.mxu0 0.0
  %2396 = vmatmul.mubr.f32.gmra.mxu0 %v2159
  %v2397 = vpop.f32.mrf.mxu0
  %v2398 = vadd.f32 0.0, %v2397
  %v2399 = vpop.f32.mrf.mxu0
  %v2400 = vadd.f32 0.0, %v2399
  %2401 = vmatprep.mubr.f32.mxu0 0.0
  %2402 = vmatmul.mubr.f32.gmra.mxu0 %v2161
  %v2403 = vpop.f32.mrf.mxu0
  %v2404 = vadd.f32 0.0, %v2403
  %v2405 = vpop.f32.mrf.mxu0
  %v2406 = vadd.f32 0.0, %v2405
  %2407 = vmatprep.mubr.f32.mxu0 0.0
  %2408 = vmatmul.mubr.f32.gmra.mxu0 %v2163
  %v2409 = vpop.f32.mrf.mxu0
  %v2410 = vadd.f32 0.0, %v2409
  %v2411 = vpop.f32.mrf.mxu0
  %v2412 = vadd.f32 0.0, %v2411
  %2413 = vmatprep.mubr.f32.mxu0 0.0
  %2414 = vmatmul.mubr.f32.gmra.mxu0 %v2165
  %v2415 = vpop.f32.mrf.mxu0
  %v2416 = vadd.f32 0.0, %v2415
  %v2417 = vpop.f32.mrf.mxu0
  %v2418 = vadd.f32 0.0, %v2417
  %2419 = vmatprep.mubr.f32.mxu0 0.0
  %2420 = vmatmul.mubr.f32.gmra.mxu0 %v2167
  %v2421 = vpop.f32.mrf.mxu0
  %v2422 = vadd.f32 0.0, %v2421
  %v2423 = vpop.f32.mrf.mxu0
  %v2424 = vadd.f32 0.0, %v2423
  %2425 = vdwg.mxu0
  %v2426 = vadd.f32 %v1977, %v2236
  %v2427 = vadd.f32 %v1978, %v2238
  %v2428 = vadd.f32 %v1979, %v2242
  %v2429 = vadd.f32 %v1980, %v2244
  %v2430 = vadd.f32 %v1981, %v2248
  %v2431 = vadd.f32 %v1982, %v2250
  %v2432 = vadd.f32 %v1983, %v2254
  %v2433 = vadd.f32 %v1984, %v2256
  %v2434 = vadd.f32 %v1985, %v2260
  %v2435 = vadd.f32 %v1986, %v2262
  %v2436 = vadd.f32 %v1987, %v2266
  %v2437 = vadd.f32 %v1988, %v2268
  %v2438 = vadd.f32 %v1989, %v2272
  %v2439 = vadd.f32 %v1990, %v2274
  %v2440 = vadd.f32 %v1991, %v2278
  %v2441 = vadd.f32 %v1992, %v2280
  %v2442 = vadd.f32 %v1993, %v2284
  %v2443 = vadd.f32 %v1994, %v2286
  %v2444 = vadd.f32 %v1995, %v2290
  %v2445 = vadd.f32 %v1996, %v2292
  %v2446 = vadd.f32 %v1997, %v2296
  %v2447 = vadd.f32 %v1998, %v2298
  %v2448 = vadd.f32 %v1999, %v2302
  %v2449 = vadd.f32 %v2000, %v2304
  %v2450 = vadd.f32 %v2001, %v2308
  %v2451 = vadd.f32 %v2002, %v2310
  %v2452 = vadd.f32 %v2003, %v2314
  %v2453 = vadd.f32 %v2004, %v2316
  %v2454 = vadd.f32 %v2005, %v2320
  %v2455 = vadd.f32 %v2006, %v2322
  %v2456 = vadd.f32 %v2007, %v2326
  %v2457 = vadd.f32 %v2008, %v2328
  %v2458 = vadd.f32 %v2009, %v2332
  %v2459 = vadd.f32 %v2010, %v2334
  %v2460 = vadd.f32 %v2011, %v2338
  %v2461 = vadd.f32 %v2012, %v2340
  %v2462 = vadd.f32 %v2013, %v2344
  %v2463 = vadd.f32 %v2014, %v2346
  %v2464 = vadd.f32 %v2015, %v2350
  %v2465 = vadd.f32 %v2016, %v2352
  %v2466 = vadd.f32 %v2017, %v2356
  %v2467 = vadd.f32 %v2018, %v2358
  %v2468 = vadd.f32 %v2019, %v2362
  %v2469 = vadd.f32 %v2020, %v2364
  %v2470 = vadd.f32 %v2021, %v2368
  %v2471 = vadd.f32 %v2022, %v2370
  %v2472 = vadd.f32 %v2023, %v2374
  %v2473 = vadd.f32 %v2024, %v2376
  %v2474 = vadd.f32 %v2025, %v2380
  %v2475 = vadd.f32 %v2026, %v2382
  %v2476 = vadd.f32 %v2027, %v2386
  %v2477 = vadd.f32 %v2028, %v2388
  %v2478 = vadd.f32 %v2029, %v2392
  %v2479 = vadd.f32 %v2030, %v2394
  %v2480 = vadd.f32 %v2031, %v2398
  %v2481 = vadd.f32 %v2032, %v2400
  %v2482 = vadd.f32 %v2033, %v2404
  %v2483 = vadd.f32 %v2034, %v2406
  %v2484 = vadd.f32 %v2035, %v2410
  %v2485 = vadd.f32 %v2036, %v2412
  %v2486 = vadd.f32 %v2037, %v2416
  %v2487 = vadd.f32 %v2038, %v2418
  %v2488 = vadd.f32 %v2039, %v2422
  %v2489 = vadd.f32 %v2040, %v2424
  %v2490 = vld [vmem:[%s2] sm:$0x3]
  %v2492 = vlaneseq
  %v2493 = vshrl.u32 %v2492, 7
  %v2494 = vsub.s32 0, %v2493
  %v2495 = vrot.slane %v2490, %v2494
  %v2496 = vlaneseq
  %v2497 = vshrl.u32 %v2496, 7
  %v2498 = vsub.s32 1, %v2497
  %v2499 = vrot.slane %v2490, %v2498
  %v2502 = vadd.f32 %v2426, %v2495
  %v2503 = vadd.f32 %v2427, %v2499
  %v2504 = vadd.f32 %v2428, %v2495
  %v2505 = vadd.f32 %v2429, %v2499
  %v2506 = vadd.f32 %v2430, %v2495
  %v2507 = vadd.f32 %v2431, %v2499
  %v2508 = vadd.f32 %v2432, %v2495
  %v2509 = vadd.f32 %v2433, %v2499
  %v2510 = vadd.f32 %v2434, %v2495
  %v2511 = vadd.f32 %v2435, %v2499
  %v2512 = vadd.f32 %v2436, %v2495
  %v2513 = vadd.f32 %v2437, %v2499
  %v2514 = vadd.f32 %v2438, %v2495
  %v2515 = vadd.f32 %v2439, %v2499
  %v2516 = vadd.f32 %v2440, %v2495
  %v2517 = vadd.f32 %v2441, %v2499
  %v2518 = vadd.f32 %v2442, %v2495
  %v2519 = vadd.f32 %v2443, %v2499
  %v2520 = vadd.f32 %v2444, %v2495
  %v2521 = vadd.f32 %v2445, %v2499
  %v2522 = vadd.f32 %v2446, %v2495
  %v2523 = vadd.f32 %v2447, %v2499
  %v2524 = vadd.f32 %v2448, %v2495
  %v2525 = vadd.f32 %v2449, %v2499
  %v2526 = vadd.f32 %v2450, %v2495
  %v2527 = vadd.f32 %v2451, %v2499
  %v2528 = vadd.f32 %v2452, %v2495
  %v2529 = vadd.f32 %v2453, %v2499
  %v2530 = vadd.f32 %v2454, %v2495
  %v2531 = vadd.f32 %v2455, %v2499
  %v2532 = vadd.f32 %v2456, %v2495
  %v2533 = vadd.f32 %v2457, %v2499
  %v2534 = vadd.f32 %v2458, %v2495
  %v2535 = vadd.f32 %v2459, %v2499
  %v2536 = vadd.f32 %v2460, %v2495
  %v2537 = vadd.f32 %v2461, %v2499
  %v2538 = vadd.f32 %v2462, %v2495
  %v2539 = vadd.f32 %v2463, %v2499
  %v2540 = vadd.f32 %v2464, %v2495
  %v2541 = vadd.f32 %v2465, %v2499
  %v2542 = vadd.f32 %v2466, %v2495
  %v2543 = vadd.f32 %v2467, %v2499
  %v2544 = vadd.f32 %v2468, %v2495
  %v2545 = vadd.f32 %v2469, %v2499
  %v2546 = vadd.f32 %v2470, %v2495
  %v2547 = vadd.f32 %v2471, %v2499
  %v2548 = vadd.f32 %v2472, %v2495
  %v2549 = vadd.f32 %v2473, %v2499
  %v2550 = vadd.f32 %v2474, %v2495
  %v2551 = vadd.f32 %v2475, %v2499
  %v2552 = vadd.f32 %v2476, %v2495
  %v2553 = vadd.f32 %v2477, %v2499
  %v2554 = vadd.f32 %v2478, %v2495
  %v2555 = vadd.f32 %v2479, %v2499
  %v2556 = vadd.f32 %v2480, %v2495
  %v2557 = vadd.f32 %v2481, %v2499
  %v2558 = vadd.f32 %v2482, %v2495
  %v2559 = vadd.f32 %v2483, %v2499
  %v2560 = vadd.f32 %v2484, %v2495
  %v2561 = vadd.f32 %v2485, %v2499
  %v2562 = vadd.f32 %v2486, %v2495
  %v2563 = vadd.f32 %v2487, %v2499
  %v2564 = vadd.f32 %v2488, %v2495
  %v2565 = vadd.f32 %v2489, %v2499
  %v2566 = vmax.f32 %v2502, 0.0
  %v2567 = vmax.f32 %v2503, 0.0
  %v2568 = vmax.f32 %v2504, 0.0
  %v2569 = vmax.f32 %v2505, 0.0
  %v2570 = vmax.f32 %v2506, 0.0
  %v2571 = vmax.f32 %v2507, 0.0
  %v2572 = vmax.f32 %v2508, 0.0
  %v2573 = vmax.f32 %v2509, 0.0
  %v2574 = vmax.f32 %v2510, 0.0
  %v2575 = vmax.f32 %v2511, 0.0
  %v2576 = vmax.f32 %v2512, 0.0
  %v2577 = vmax.f32 %v2513, 0.0
  %v2578 = vmax.f32 %v2514, 0.0
  %v2579 = vmax.f32 %v2515, 0.0
  %v2580 = vmax.f32 %v2516, 0.0
  %v2581 = vmax.f32 %v2517, 0.0
  %v2582 = vmax.f32 %v2518, 0.0
  %v2583 = vmax.f32 %v2519, 0.0
  %v2584 = vmax.f32 %v2520, 0.0
  %v2585 = vmax.f32 %v2521, 0.0
  %v2586 = vmax.f32 %v2522, 0.0
  %v2587 = vmax.f32 %v2523, 0.0
  %v2588 = vmax.f32 %v2524, 0.0
  %v2589 = vmax.f32 %v2525, 0.0
  %v2590 = vmax.f32 %v2526, 0.0
  %v2591 = vmax.f32 %v2527, 0.0
  %v2592 = vmax.f32 %v2528, 0.0
  %v2593 = vmax.f32 %v2529, 0.0
  %v2594 = vmax.f32 %v2530, 0.0
  %v2595 = vmax.f32 %v2531, 0.0
  %v2596 = vmax.f32 %v2532, 0.0
  %v2597 = vmax.f32 %v2533, 0.0
  %v2598 = vmax.f32 %v2534, 0.0
  %v2599 = vmax.f32 %v2535, 0.0
  %v2600 = vmax.f32 %v2536, 0.0
  %v2601 = vmax.f32 %v2537, 0.0
  %v2602 = vmax.f32 %v2538, 0.0
  %v2603 = vmax.f32 %v2539, 0.0
  %v2604 = vmax.f32 %v2540, 0.0
  %v2605 = vmax.f32 %v2541, 0.0
  %v2606 = vmax.f32 %v2542, 0.0
  %v2607 = vmax.f32 %v2543, 0.0
  %v2608 = vmax.f32 %v2544, 0.0
  %v2609 = vmax.f32 %v2545, 0.0
  %v2610 = vmax.f32 %v2546, 0.0
  %v2611 = vmax.f32 %v2547, 0.0
  %v2612 = vmax.f32 %v2548, 0.0
  %v2613 = vmax.f32 %v2549, 0.0
  %v2614 = vmax.f32 %v2550, 0.0
  %v2615 = vmax.f32 %v2551, 0.0
  %v2616 = vmax.f32 %v2552, 0.0
  %v2617 = vmax.f32 %v2553, 0.0
  %v2618 = vmax.f32 %v2554, 0.0
  %v2619 = vmax.f32 %v2555, 0.0
  %v2620 = vmax.f32 %v2556, 0.0
  %v2621 = vmax.f32 %v2557, 0.0
  %v2622 = vmax.f32 %v2558, 0.0
  %v2623 = vmax.f32 %v2559, 0.0
  %v2624 = vmax.f32 %v2560, 0.0
  %v2625 = vmax.f32 %v2561, 0.0
  %v2626 = vmax.f32 %v2562, 0.0
  %v2627 = vmax.f32 %v2563, 0.0
  %v2628 = vmax.f32 %v2564, 0.0
  %v2629 = vmax.f32 %v2565, 0.0
  %2694 = vrot.lane.b32.xlu0 %v2566, 122
  %v2695 = vpop.permute.xlu0 %2694
  %2696 = vrot.lane.b32.xlu0 %v2567, 122
  %v2697 = vpop.permute.xlu0 %2696
  %2698 = vrot.lane.b32.xlu0 %v2568, 122
  %v2699 = vpop.permute.xlu0 %2698
  %2700 = vrot.lane.b32.xlu0 %v2569, 122
  %v2701 = vpop.permute.xlu0 %2700
  %2702 = vrot.lane.b32.xlu0 %v2570, 122
  %v2703 = vpop.permute.xlu0 %2702
  %2704 = vrot.lane.b32.xlu0 %v2571, 122
  %v2705 = vpop.permute.xlu0 %2704
  %2706 = vrot.lane.b32.xlu0 %v2572, 122
  %v2707 = vpop.permute.xlu0 %2706
  %2708 = vrot.lane.b32.xlu0 %v2573, 122
  %v2709 = vpop.permute.xlu0 %2708
  %2710 = vrot.lane.b32.xlu0 %v2574, 122
  %v2711 = vpop.permute.xlu0 %2710
  %2712 = vrot.lane.b32.xlu0 %v2575, 122
  %v2713 = vpop.permute.xlu0 %2712
  %2714 = vrot.lane.b32.xlu0 %v2576, 122
  %v2715 = vpop.permute.xlu0 %2714
  %2716 = vrot.lane.b32.xlu0 %v2577, 122
  %v2717 = vpop.permute.xlu0 %2716
  %2718 = vrot.lane.b32.xlu0 %v2578, 122
  %v2719 = vpop.permute.xlu0 %2718
  %2720 = vrot.lane.b32.xlu0 %v2579, 122
  %v2721 = vpop.permute.xlu0 %2720
  %2722 = vrot.lane.b32.xlu0 %v2580, 122
  %v2723 = vpop.permute.xlu0 %2722
  %2724 = vrot.lane.b32.xlu0 %v2581, 122
  %v2725 = vpop.permute.xlu0 %2724
  %2726 = vrot.lane.b32.xlu0 %v2582, 122
  %v2727 = vpop.permute.xlu0 %2726
  %2728 = vrot.lane.b32.xlu0 %v2583, 122
  %v2729 = vpop.permute.xlu0 %2728
  %2730 = vrot.lane.b32.xlu0 %v2584, 122
  %v2731 = vpop.permute.xlu0 %2730
  %2732 = vrot.lane.b32.xlu0 %v2585, 122
  %v2733 = vpop.permute.xlu0 %2732
  %2734 = vrot.lane.b32.xlu0 %v2586, 122
  %v2735 = vpop.permute.xlu0 %2734
  %2736 = vrot.lane.b32.xlu0 %v2587, 122
  %v2737 = vpop.permute.xlu0 %2736
  %2738 = vrot.lane.b32.xlu0 %v2588, 122
  %v2739 = vpop.permute.xlu0 %2738
  %2740 = vrot.lane.b32.xlu0 %v2589, 122
  %v2741 = vpop.permute.xlu0 %2740
  %2742 = vrot.lane.b32.xlu0 %v2590, 122
  %v2743 = vpop.permute.xlu0 %2742
  %2744 = vrot.lane.b32.xlu0 %v2591, 122
  %v2745 = vpop.permute.xlu0 %2744
  %2746 = vrot.lane.b32.xlu0 %v2592, 122
  %v2747 = vpop.permute.xlu0 %2746
  %2748 = vrot.lane.b32.xlu0 %v2593, 122
  %v2749 = vpop.permute.xlu0 %2748
  %2750 = vrot.lane.b32.xlu0 %v2594, 122
  %v2751 = vpop.permute.xlu0 %2750
  %2752 = vrot.lane.b32.xlu0 %v2595, 122
  %v2753 = vpop.permute.xlu0 %2752
  %2754 = vrot.lane.b32.xlu0 %v2596, 122
  %v2755 = vpop.permute.xlu0 %2754
  %2756 = vrot.lane.b32.xlu0 %v2597, 122
  %v2757 = vpop.permute.xlu0 %2756
  %2758 = vrot.lane.b32.xlu0 %v2598, 122
  %v2759 = vpop.permute.xlu0 %2758
  %2760 = vrot.lane.b32.xlu0 %v2599, 122
  %v2761 = vpop.permute.xlu0 %2760
  %2762 = vrot.lane.b32.xlu0 %v2600, 122
  %v2763 = vpop.permute.xlu0 %2762
  %2764 = vrot.lane.b32.xlu0 %v2601, 122
  %v2765 = vpop.permute.xlu0 %2764
  %2766 = vrot.lane.b32.xlu0 %v2602, 122
  %v2767 = vpop.permute.xlu0 %2766
  %2768 = vrot.lane.b32.xlu0 %v2603, 122
  %v2769 = vpop.permute.xlu0 %2768
  %2770 = vrot.lane.b32.xlu0 %v2604, 122
  %v2771 = vpop.permute.xlu0 %2770
  %2772 = vrot.lane.b32.xlu0 %v2605, 122
  %v2773 = vpop.permute.xlu0 %2772
  %2774 = vrot.lane.b32.xlu0 %v2606, 122
  %v2775 = vpop.permute.xlu0 %2774
  %2776 = vrot.lane.b32.xlu0 %v2607, 122
  %v2777 = vpop.permute.xlu0 %2776
  %2778 = vrot.lane.b32.xlu0 %v2608, 122
  %v2779 = vpop.permute.xlu0 %2778
  %2780 = vrot.lane.b32.xlu0 %v2609, 122
  %v2781 = vpop.permute.xlu0 %2780
  %2782 = vrot.lane.b32.xlu0 %v2610, 122
  %v2783 = vpop.permute.xlu0 %2782
  %2784 = vrot.lane.b32.xlu0 %v2611, 122
  %v2785 = vpop.permute.xlu0 %2784
  %2786 = vrot.lane.b32.xlu0 %v2612, 122
  %v2787 = vpop.permute.xlu0 %2786
  %2788 = vrot.lane.b32.xlu0 %v2613, 122
  %v2789 = vpop.permute.xlu0 %2788
  %2790 = vrot.lane.b32.xlu0 %v2614, 122
  %v2791 = vpop.permute.xlu0 %2790
  %2792 = vrot.lane.b32.xlu0 %v2615, 122
  %v2793 = vpop.permute.xlu0 %2792
  %2794 = vrot.lane.b32.xlu0 %v2616, 122
  %v2795 = vpop.permute.xlu0 %2794
  %2796 = vrot.lane.b32.xlu0 %v2617, 122
  %v2797 = vpop.permute.xlu0 %2796
  %2798 = vrot.lane.b32.xlu0 %v2618, 122
  %v2799 = vpop.permute.xlu0 %2798
  %2800 = vrot.lane.b32.xlu0 %v2619, 122
  %v2801 = vpop.permute.xlu0 %2800
  %2802 = vrot.lane.b32.xlu0 %v2620, 122
  %v2803 = vpop.permute.xlu0 %2802
  %2804 = vrot.lane.b32.xlu0 %v2621, 122
  %v2805 = vpop.permute.xlu0 %2804
  %2806 = vrot.lane.b32.xlu0 %v2622, 122
  %v2807 = vpop.permute.xlu0 %2806
  %2808 = vrot.lane.b32.xlu0 %v2623, 122
  %v2809 = vpop.permute.xlu0 %2808
  %2810 = vrot.lane.b32.xlu0 %v2624, 122
  %v2811 = vpop.permute.xlu0 %2810
  %2812 = vrot.lane.b32.xlu0 %v2625, 122
  %v2813 = vpop.permute.xlu0 %2812
  %2814 = vrot.lane.b32.xlu0 %v2626, 122
  %v2815 = vpop.permute.xlu0 %2814
  %2816 = vrot.lane.b32.xlu0 %v2627, 122
  %v2817 = vpop.permute.xlu0 %2816
  %2818 = vrot.lane.b32.xlu0 %v2628, 122
  %v2819 = vpop.permute.xlu0 %2818
  %2820 = vrot.lane.b32.xlu0 %v2629, 122
  %v2821 = vpop.permute.xlu0 %2820
  %vm2822 = vcmask 998400
  %v2823 = vsel %vm2822, %v2695, %v2697
  %v2824 = vsel %vm2822, %v2699, %v2701
  %v2825 = vsel %vm2822, %v2703, %v2705
  %v2826 = vsel %vm2822, %v2707, %v2709
  %v2827 = vsel %vm2822, %v2711, %v2713
  %v2828 = vsel %vm2822, %v2715, %v2717
  %v2829 = vsel %vm2822, %v2719, %v2721
  %v2830 = vsel %vm2822, %v2723, %v2725
  %v2831 = vsel %vm2822, %v2727, %v2729
  %v2832 = vsel %vm2822, %v2731, %v2733
  %v2833 = vsel %vm2822, %v2735, %v2737
  %v2834 = vsel %vm2822, %v2739, %v2741
  %v2835 = vsel %vm2822, %v2743, %v2745
  %v2836 = vsel %vm2822, %v2747, %v2749
  %v2837 = vsel %vm2822, %v2751, %v2753
  %v2838 = vsel %vm2822, %v2755, %v2757
  %v2839 = vsel %vm2822, %v2759, %v2761
  %v2840 = vsel %vm2822, %v2763, %v2765
  %v2841 = vsel %vm2822, %v2767, %v2769
  %v2842 = vsel %vm2822, %v2771, %v2773
  %v2843 = vsel %vm2822, %v2775, %v2777
  %v2844 = vsel %vm2822, %v2779, %v2781
  %v2845 = vsel %vm2822, %v2783, %v2785
  %v2846 = vsel %vm2822, %v2787, %v2789
  %v2847 = vsel %vm2822, %v2791, %v2793
  %v2848 = vsel %vm2822, %v2795, %v2797
  %v2849 = vsel %vm2822, %v2799, %v2801
  %v2850 = vsel %vm2822, %v2803, %v2805
  %v2851 = vsel %vm2822, %v2807, %v2809
  %v2852 = vsel %vm2822, %v2811, %v2813
  %v2853 = vsel %vm2822, %v2815, %v2817
  %v2854 = vsel %vm2822, %v2819, %v2821
  %v2919 = vmax.f32 %v2566, %v2823
  %v2920 = vmax.f32 %v2567, %v2697
  %v2921 = vmax.f32 %v2568, %v2824
  %v2922 = vmax.f32 %v2569, %v2701
  %v2923 = vmax.f32 %v2570, %v2825
  %v2924 = vmax.f32 %v2571, %v2705
  %v2925 = vmax.f32 %v2572, %v2826
  %v2926 = vmax.f32 %v2573, %v2709
  %v2927 = vmax.f32 %v2574, %v2827
  %v2928 = vmax.f32 %v2575, %v2713
  %v2929 = vmax.f32 %v2576, %v2828
  %v2930 = vmax.f32 %v2577, %v2717
  %v2931 = vmax.f32 %v2578, %v2829
  %v2932 = vmax.f32 %v2579, %v2721
  %v2933 = vmax.f32 %v2580, %v2830
  %v2934 = vmax.f32 %v2581, %v2725
  %v2935 = vmax.f32 %v2582, %v2831
  %v2936 = vmax.f32 %v2583, %v2729
  %v2937 = vmax.f32 %v2584, %v2832
  %v2938 = vmax.f32 %v2585, %v2733
  %v2939 = vmax.f32 %v2586, %v2833
  %v2940 = vmax.f32 %v2587, %v2737
  %v2941 = vmax.f32 %v2588, %v2834
  %v2942 = vmax.f32 %v2589, %v2741
  %v2943 = vmax.f32 %v2590, %v2835
  %v2944 = vmax.f32 %v2591, %v2745
  %v2945 = vmax.f32 %v2592, %v2836
  %v2946 = vmax.f32 %v2593, %v2749
  %v2947 = vmax.f32 %v2594, %v2837
  %v2948 = vmax.f32 %v2595, %v2753
  %v2949 = vmax.f32 %v2596, %v2838
  %v2950 = vmax.f32 %v2597, %v2757
  %v2951 = vmax.f32 %v2598, %v2839
  %v2952 = vmax.f32 %v2599, %v2761
  %v2953 = vmax.f32 %v2600, %v2840
  %v2954 = vmax.f32 %v2601, %v2765
  %v2955 = vmax.f32 %v2602, %v2841
  %v2956 = vmax.f32 %v2603, %v2769
  %v2957 = vmax.f32 %v2604, %v2842
  %v2958 = vmax.f32 %v2605, %v2773
  %v2959 = vmax.f32 %v2606, %v2843
  %v2960 = vmax.f32 %v2607, %v2777
  %v2961 = vmax.f32 %v2608, %v2844
  %v2962 = vmax.f32 %v2609, %v2781
  %v2963 = vmax.f32 %v2610, %v2845
  %v2964 = vmax.f32 %v2611, %v2785
  %v2965 = vmax.f32 %v2612, %v2846
  %v2966 = vmax.f32 %v2613, %v2789
  %v2967 = vmax.f32 %v2614, %v2847
  %v2968 = vmax.f32 %v2615, %v2793
  %v2969 = vmax.f32 %v2616, %v2848
  %v2970 = vmax.f32 %v2617, %v2797
  %v2971 = vmax.f32 %v2618, %v2849
  %v2972 = vmax.f32 %v2619, %v2801
  %v2973 = vmax.f32 %v2620, %v2850
  %v2974 = vmax.f32 %v2621, %v2805
  %v2975 = vmax.f32 %v2622, %v2851
  %v2976 = vmax.f32 %v2623, %v2809
  %v2977 = vmax.f32 %v2624, %v2852
  %v2978 = vmax.f32 %v2625, %v2813
  %v2979 = vmax.f32 %v2626, %v2853
  %v2980 = vmax.f32 %v2627, %v2817
  %v2981 = vmax.f32 %v2628, %v2854
  %v2982 = vmax.f32 %v2629, %v2821
  %v3047 = vrot.slane %v2919, 1
  %v3048 = vrot.slane %v2921, 1
  %v3049 = vsel %vm436, %v3047, %v3048
  %v3050 = vrot.slane %v2920, 1
  %v3051 = vrot.slane %v2922, 1
  %v3052 = vsel %vm436, %v3050, %v3051
  %v3053 = vrot.slane %v2923, 1
  %v3054 = vsel %vm436, %v3048, %v3053
  %v3055 = vrot.slane %v2924, 1
  %v3056 = vsel %vm436, %v3051, %v3055
  %v3057 = vrot.slane %v2925, 1
  %v3058 = vsel %vm436, %v3053, %v3057
  %v3059 = vrot.slane %v2926, 1
  %v3060 = vsel %vm436, %v3055, %v3059
  %v3061 = vrot.slane %v2927, 1
  %v3062 = vsel %vm436, %v3057, %v3061
  %v3063 = vrot.slane %v2928, 1
  %v3064 = vsel %vm436, %v3059, %v3063
  %v3065 = vrot.slane %v2929, 1
  %v3066 = vsel %vm436, %v3061, %v3065
  %v3067 = vrot.slane %v2930, 1
  %v3068 = vsel %vm436, %v3063, %v3067
  %v3069 = vrot.slane %v2931, 1
  %v3070 = vsel %vm436, %v3065, %v3069
  %v3071 = vrot.slane %v2932, 1
  %v3072 = vsel %vm436, %v3067, %v3071
  %v3073 = vrot.slane %v2933, 1
  %v3074 = vsel %vm436, %v3069, %v3073
  %v3075 = vrot.slane %v2934, 1
  %v3076 = vsel %vm436, %v3071, %v3075
  %v3077 = vrot.slane %v2935, 1
  %v3078 = vsel %vm436, %v3073, %v3077
  %v3079 = vrot.slane %v2936, 1
  %v3080 = vsel %vm436, %v3075, %v3079
  %v3081 = vrot.slane %v2937, 1
  %v3082 = vsel %vm436, %v3077, %v3081
  %v3083 = vrot.slane %v2938, 1
  %v3084 = vsel %vm436, %v3079, %v3083
  %v3085 = vrot.slane %v2939, 1
  %v3086 = vsel %vm436, %v3081, %v3085
  %v3087 = vrot.slane %v2940, 1
  %v3088 = vsel %vm436, %v3083, %v3087
  %v3089 = vrot.slane %v2941, 1
  %v3090 = vsel %vm436, %v3085, %v3089
  %v3091 = vrot.slane %v2942, 1
  %v3092 = vsel %vm436, %v3087, %v3091
  %v3093 = vrot.slane %v2943, 1
  %v3094 = vsel %vm436, %v3089, %v3093
  %v3095 = vrot.slane %v2944, 1
  %v3096 = vsel %vm436, %v3091, %v3095
  %v3097 = vrot.slane %v2945, 1
  %v3098 = vsel %vm436, %v3093, %v3097
  %v3099 = vrot.slane %v2946, 1
  %v3100 = vsel %vm436, %v3095, %v3099
  %v3101 = vrot.slane %v2947, 1
  %v3102 = vsel %vm436, %v3097, %v3101
  %v3103 = vrot.slane %v2948, 1
  %v3104 = vsel %vm436, %v3099, %v3103
  %v3105 = vrot.slane %v2949, 1
  %v3106 = vsel %vm436, %v3101, %v3105
  %v3107 = vrot.slane %v2950, 1
  %v3108 = vsel %vm436, %v3103, %v3107
  %v3109 = vrot.slane %v2951, 1
  %v3110 = vsel %vm436, %v3105, %v3109
  %v3111 = vrot.slane %v2952, 1
  %v3112 = vsel %vm436, %v3107, %v3111
  %v3113 = vrot.slane %v2953, 1
  %v3114 = vsel %vm436, %v3109, %v3113
  %v3115 = vrot.slane %v2954, 1
  %v3116 = vsel %vm436, %v3111, %v3115
  %v3117 = vrot.slane %v2955, 1
  %v3118 = vsel %vm436, %v3113, %v3117
  %v3119 = vrot.slane %v2956, 1
  %v3120 = vsel %vm436, %v3115, %v3119
  %v3121 = vrot.slane %v2957, 1
  %v3122 = vsel %vm436, %v3117, %v3121
  %v3123 = vrot.slane %v2958, 1
  %v3124 = vsel %vm436, %v3119, %v3123
  %v3125 = vrot.slane %v2959, 1
  %v3126 = vsel %vm436, %v3121, %v3125
  %v3127 = vrot.slane %v2960, 1
  %v3128 = vsel %vm436, %v3123, %v3127
  %v3129 = vrot.slane %v2961, 1
  %v3130 = vsel %vm436, %v3125, %v3129
  %v3131 = vrot.slane %v2962, 1
  %v3132 = vsel %vm436, %v3127, %v3131
  %v3133 = vrot.slane %v2963, 1
  %v3134 = vsel %vm436, %v3129, %v3133
  %v3135 = vrot.slane %v2964, 1
  %v3136 = vsel %vm436, %v3131, %v3135
  %v3137 = vrot.slane %v2965, 1
  %v3138 = vsel %vm436, %v3133, %v3137
  %v3139 = vrot.slane %v2966, 1
  %v3140 = vsel %vm436, %v3135, %v3139
  %v3141 = vrot.slane %v2967, 1
  %v3142 = vsel %vm436, %v3137, %v3141
  %v3143 = vrot.slane %v2968, 1
  %v3144 = vsel %vm436, %v3139, %v3143
  %v3145 = vrot.slane %v2969, 1
  %v3146 = vsel %vm436, %v3141, %v3145
  %v3147 = vrot.slane %v2970, 1
  %v3148 = vsel %vm436, %v3143, %v3147
  %v3149 = vrot.slane %v2971, 1
  %v3150 = vsel %vm436, %v3145, %v3149
  %v3151 = vrot.slane %v2972, 1
  %v3152 = vsel %vm436, %v3147, %v3151
  %v3153 = vrot.slane %v2973, 1
  %v3154 = vsel %vm436, %v3149, %v3153
  %v3155 = vrot.slane %v2974, 1
  %v3156 = vsel %vm436, %v3151, %v3155
  %v3157 = vrot.slane %v2975, 1
  %v3158 = vsel %vm436, %v3153, %v3157
  %v3159 = vrot.slane %v2976, 1
  %v3160 = vsel %vm436, %v3155, %v3159
  %v3161 = vrot.slane %v2977, 1
  %v3162 = vsel %vm436, %v3157, %v3161
  %v3163 = vrot.slane %v2978, 1
  %v3164 = vsel %vm436, %v3159, %v3163
  %v3165 = vrot.slane %v2979, 1
  %v3166 = vsel %vm436, %v3161, %v3165
  %v3167 = vrot.slane %v2980, 1
  %v3168 = vsel %vm436, %v3163, %v3167
  %v3169 = vrot.slane %v2981, 1
  %v3170 = vsel %vm436, %v3165, %v3169
  %v3171 = vrot.slane %v2982, 1
  %v3172 = vsel %vm436, %v3167, %v3171
  %v3237 = vmax.f32 %v2919, %v3049
  %v3238 = vmax.f32 %v2920, %v3052
  %v3239 = vmax.f32 %v2921, %v3054
  %v3240 = vmax.f32 %v2922, %v3056
  %v3241 = vmax.f32 %v2923, %v3058
  %v3242 = vmax.f32 %v2924, %v3060
  %v3243 = vmax.f32 %v2925, %v3062
  %v3244 = vmax.f32 %v2926, %v3064
  %v3245 = vmax.f32 %v2927, %v3066
  %v3246 = vmax.f32 %v2928, %v3068
  %v3247 = vmax.f32 %v2929, %v3070
  %v3248 = vmax.f32 %v2930, %v3072
  %v3249 = vmax.f32 %v2931, %v3074
  %v3250 = vmax.f32 %v2932, %v3076
  %v3251 = vmax.f32 %v2933, %v3078
  %v3252 = vmax.f32 %v2934, %v3080
  %v3253 = vmax.f32 %v2935, %v3082
  %v3254 = vmax.f32 %v2936, %v3084
  %v3255 = vmax.f32 %v2937, %v3086
  %v3256 = vmax.f32 %v2938, %v3088
  %v3257 = vmax.f32 %v2939, %v3090
  %v3258 = vmax.f32 %v2940, %v3092
  %v3259 = vmax.f32 %v2941, %v3094
  %v3260 = vmax.f32 %v2942, %v3096
  %v3261 = vmax.f32 %v2943, %v3098
  %v3262 = vmax.f32 %v2944, %v3100
  %v3263 = vmax.f32 %v2945, %v3102
  %v3264 = vmax.f32 %v2946, %v3104
  %v3265 = vmax.f32 %v2947, %v3106
  %v3266 = vmax.f32 %v2948, %v3108
  %v3267 = vmax.f32 %v2949, %v3110
  %v3268 = vmax.f32 %v2950, %v3112
  %v3269 = vmax.f32 %v2951, %v3114
  %v3270 = vmax.f32 %v2952, %v3116
  %v3271 = vmax.f32 %v2953, %v3118
  %v3272 = vmax.f32 %v2954, %v3120
  %v3273 = vmax.f32 %v2955, %v3122
  %v3274 = vmax.f32 %v2956, %v3124
  %v3275 = vmax.f32 %v2957, %v3126
  %v3276 = vmax.f32 %v2958, %v3128
  %v3277 = vmax.f32 %v2959, %v3130
  %v3278 = vmax.f32 %v2960, %v3132
  %v3279 = vmax.f32 %v2961, %v3134
  %v3280 = vmax.f32 %v2962, %v3136
  %v3281 = vmax.f32 %v2963, %v3138
  %v3282 = vmax.f32 %v2964, %v3140
  %v3283 = vmax.f32 %v2965, %v3142
  %v3284 = vmax.f32 %v2966, %v3144
  %v3285 = vmax.f32 %v2967, %v3146
  %v3286 = vmax.f32 %v2968, %v3148
  %v3287 = vmax.f32 %v2969, %v3150
  %v3288 = vmax.f32 %v2970, %v3152
  %v3289 = vmax.f32 %v2971, %v3154
  %v3290 = vmax.f32 %v2972, %v3156
  %v3291 = vmax.f32 %v2973, %v3158
  %v3292 = vmax.f32 %v2974, %v3160
  %v3293 = vmax.f32 %v2975, %v3162
  %v3294 = vmax.f32 %v2976, %v3164
  %v3295 = vmax.f32 %v2977, %v3166
  %v3296 = vmax.f32 %v2978, %v3168
  %v3297 = vmax.f32 %v2979, %v3170
  %v3298 = vmax.f32 %v2980, %v3172
  %v3299 = vmax.f32 %v2981, %v3169
  %v3300 = vmax.f32 %v2982, %v3171
  %v3363 = vrot.slane %v3237, 2
  %v3364 = vrot.slane %v3239, 2
  %v3365 = vsel %vm1143, %v3363, %v3364
  %v3366 = vrot.slane %v3238, 2
  %v3367 = vrot.slane %v3240, 2
  %v3368 = vsel %vm1143, %v3366, %v3367
  %v3369 = vrot.slane %v3241, 2
  %v3370 = vsel %vm1143, %v3364, %v3369
  %v3371 = vrot.slane %v3242, 2
  %v3372 = vsel %vm1143, %v3367, %v3371
  %v3373 = vrot.slane %v3243, 2
  %v3374 = vsel %vm1143, %v3369, %v3373
  %v3375 = vrot.slane %v3244, 2
  %v3376 = vsel %vm1143, %v3371, %v3375
  %v3377 = vrot.slane %v3245, 2
  %v3378 = vsel %vm1143, %v3373, %v3377
  %v3379 = vrot.slane %v3246, 2
  %v3380 = vsel %vm1143, %v3375, %v3379
  %v3381 = vrot.slane %v3247, 2
  %v3382 = vsel %vm1143, %v3377, %v3381
  %v3383 = vrot.slane %v3248, 2
  %v3384 = vsel %vm1143, %v3379, %v3383
  %v3385 = vrot.slane %v3249, 2
  %v3386 = vsel %vm1143, %v3381, %v3385
  %v3387 = vrot.slane %v3250, 2
  %v3388 = vsel %vm1143, %v3383, %v3387
  %v3389 = vrot.slane %v3251, 2
  %v3390 = vsel %vm1143, %v3385, %v3389
  %v3391 = vrot.slane %v3252, 2
  %v3392 = vsel %vm1143, %v3387, %v3391
  %v3393 = vrot.slane %v3253, 2
  %v3394 = vsel %vm1143, %v3389, %v3393
  %v3395 = vrot.slane %v3254, 2
  %v3396 = vsel %vm1143, %v3391, %v3395
  %v3397 = vrot.slane %v3255, 2
  %v3398 = vsel %vm1143, %v3393, %v3397
  %v3399 = vrot.slane %v3256, 2
  %v3400 = vsel %vm1143, %v3395, %v3399
  %v3401 = vrot.slane %v3257, 2
  %v3402 = vsel %vm1143, %v3397, %v3401
  %v3403 = vrot.slane %v3258, 2
  %v3404 = vsel %vm1143, %v3399, %v3403
  %v3405 = vrot.slane %v3259, 2
  %v3406 = vsel %vm1143, %v3401, %v3405
  %v3407 = vrot.slane %v3260, 2
  %v3408 = vsel %vm1143, %v3403, %v3407
  %v3409 = vrot.slane %v3261, 2
  %v3410 = vsel %vm1143, %v3405, %v3409
  %v3411 = vrot.slane %v3262, 2
  %v3412 = vsel %vm1143, %v3407, %v3411
  %v3413 = vrot.slane %v3263, 2
  %v3414 = vsel %vm1143, %v3409, %v3413
  %v3415 = vrot.slane %v3264, 2
  %v3416 = vsel %vm1143, %v3411, %v3415
  %v3417 = vrot.slane %v3265, 2
  %v3418 = vsel %vm1143, %v3413, %v3417
  %v3419 = vrot.slane %v3266, 2
  %v3420 = vsel %vm1143, %v3415, %v3419
  %v3421 = vrot.slane %v3267, 2
  %v3422 = vsel %vm1143, %v3417, %v3421
  %v3423 = vrot.slane %v3268, 2
  %v3424 = vsel %vm1143, %v3419, %v3423
  %v3425 = vrot.slane %v3269, 2
  %v3426 = vsel %vm1143, %v3421, %v3425
  %v3427 = vrot.slane %v3270, 2
  %v3428 = vsel %vm1143, %v3423, %v3427
  %v3429 = vrot.slane %v3271, 2
  %v3430 = vsel %vm1143, %v3425, %v3429
  %v3431 = vrot.slane %v3272, 2
  %v3432 = vsel %vm1143, %v3427, %v3431
  %v3433 = vrot.slane %v3273, 2
  %v3434 = vsel %vm1143, %v3429, %v3433
  %v3435 = vrot.slane %v3274, 2
  %v3436 = vsel %vm1143, %v3431, %v3435
  %v3437 = vrot.slane %v3275, 2
  %v3438 = vsel %vm1143, %v3433, %v3437
  %v3439 = vrot.slane %v3276, 2
  %v3440 = vsel %vm1143, %v3435, %v3439
  %v3441 = vrot.slane %v3277, 2
  %v3442 = vsel %vm1143, %v3437, %v3441
  %v3443 = vrot.slane %v3278, 2
  %v3444 = vsel %vm1143, %v3439, %v3443
  %v3445 = vrot.slane %v3279, 2
  %v3446 = vsel %vm1143, %v3441, %v3445
  %v3447 = vrot.slane %v3280, 2
  %v3448 = vsel %vm1143, %v3443, %v3447
  %v3449 = vrot.slane %v3281, 2
  %v3450 = vsel %vm1143, %v3445, %v3449
  %v3451 = vrot.slane %v3282, 2
  %v3452 = vsel %vm1143, %v3447, %v3451
  %v3453 = vrot.slane %v3283, 2
  %v3454 = vsel %vm1143, %v3449, %v3453
  %v3455 = vrot.slane %v3284, 2
  %v3456 = vsel %vm1143, %v3451, %v3455
  %v3457 = vrot.slane %v3285, 2
  %v3458 = vsel %vm1143, %v3453, %v3457
  %v3459 = vrot.slane %v3286, 2
  %v3460 = vsel %vm1143, %v3455, %v3459
  %v3461 = vrot.slane %v3287, 2
  %v3462 = vsel %vm1143, %v3457, %v3461
  %v3463 = vrot.slane %v3288, 2
  %v3464 = vsel %vm1143, %v3459, %v3463
  %v3465 = vrot.slane %v3289, 2
  %v3466 = vsel %vm1143, %v3461, %v3465
  %v3467 = vrot.slane %v3290, 2
  %v3468 = vsel %vm1143, %v3463, %v3467
  %v3469 = vrot.slane %v3291, 2
  %v3470 = vsel %vm1143, %v3465, %v3469
  %v3471 = vrot.slane %v3292, 2
  %v3472 = vsel %vm1143, %v3467, %v3471
  %v3473 = vrot.slane %v3293, 2
  %v3474 = vsel %vm1143, %v3469, %v3473
  %v3475 = vrot.slane %v3294, 2
  %v3476 = vsel %vm1143, %v3471, %v3475
  %v3477 = vrot.slane %v3295, 2
  %v3478 = vsel %vm1143, %v3473, %v3477
  %v3479 = vrot.slane %v3296, 2
  %v3480 = vsel %vm1143, %v3475, %v3479
  %v3481 = vrot.slane %v3297, 2
  %v3482 = vsel %vm1143, %v3477, %v3481
  %v3483 = vrot.slane %v3298, 2
  %v3484 = vsel %vm1143, %v3479, %v3483
  %v3558 = vrot.slane %v150, 2
  %v3559 = vrot.slane %v152, 2
  %v3560 = vsel %vm1143, %v3558, %v3559
  %v3561 = vrot.slane %v151, 2
  %v3562 = vrot.slane %v153, 2
  %v3563 = vsel %vm1143, %v3561, %v3562
  %v3564 = vrot.slane %v154, 2
  %v3565 = vsel %vm1143, %v3559, %v3564
  %v3566 = vrot.slane %v155, 2
  %v3567 = vsel %vm1143, %v3562, %v3566
  %v3568 = vrot.slane %v156, 2
  %v3569 = vsel %vm1143, %v3564, %v3568
  %v3570 = vrot.slane %v157, 2
  %v3571 = vsel %vm1143, %v3566, %v3570
  %v3572 = vrot.slane %v158, 2
  %v3573 = vsel %vm1143, %v3568, %v3572
  %v3574 = vrot.slane %v159, 2
  %v3575 = vsel %vm1143, %v3570, %v3574
  %v3576 = vrot.slane %v160, 2
  %v3577 = vsel %vm1143, %v3572, %v3576
  %v3578 = vrot.slane %v161, 2
  %v3579 = vsel %vm1143, %v3574, %v3578
  %v3580 = vrot.slane %v162, 2
  %v3581 = vsel %vm1143, %v3576, %v3580
  %v3582 = vrot.slane %v163, 2
  %v3583 = vsel %vm1143, %v3578, %v3582
  %v3584 = vrot.slane %v164, 2
  %v3585 = vsel %vm1143, %v3580, %v3584
  %v3586 = vrot.slane %v165, 2
  %v3587 = vsel %vm1143, %v3582, %v3586
  %v3588 = vrot.slane %v166, 2
  %v3589 = vsel %vm1143, %v3584, %v3588
  %v3590 = vrot.slane %v167, 2
  %v3591 = vsel %vm1143, %v3586, %v3590
  %v3592 = vrot.slane %v168, 2
  %v3593 = vsel %vm1143, %v3588, %v3592
  %v3594 = vrot.slane %v169, 2
  %v3595 = vsel %vm1143, %v3590, %v3594
  %v3596 = vrot.slane %v170, 2
  %v3597 = vsel %vm1143, %v3592, %v3596
  %v3598 = vrot.slane %v171, 2
  %v3599 = vsel %vm1143, %v3594, %v3598
  %v3600 = vrot.slane %v172, 2
  %v3601 = vsel %vm1143, %v3596, %v3600
  %v3602 = vrot.slane %v173, 2
  %v3603 = vsel %vm1143, %v3598, %v3602
  %v3604 = vrot.slane %v174, 2
  %v3605 = vsel %vm1143, %v3600, %v3604
  %v3606 = vrot.slane %v175, 2
  %v3607 = vsel %vm1143, %v3602, %v3606
  %v3608 = vrot.slane %v176, 2
  %v3609 = vsel %vm1143, %v3604, %v3608
  %v3610 = vrot.slane %v177, 2
  %v3611 = vsel %vm1143, %v3606, %v3610
  %v3612 = vrot.slane %v178, 2
  %v3613 = vsel %vm1143, %v3608, %v3612
  %v3614 = vrot.slane %v179, 2
  %v3615 = vsel %vm1143, %v3610, %v3614
  %v3616 = vrot.slane %v180, 2
  %v3617 = vsel %vm1143, %v3612, %v3616
  %v3618 = vrot.slane %v181, 2
  %v3619 = vsel %vm1143, %v3614, %v3618
  %v3620 = vrot.slane %v182, 2
  %v3621 = vsel %vm1143, %v3616, %v3620
  %v3622 = vrot.slane %v183, 2
  %v3623 = vsel %vm1143, %v3618, %v3622
  %v3624 = vrot.slane %v184, 2
  %v3625 = vsel %vm1143, %v3620, %v3624
  %v3626 = vrot.slane %v185, 2
  %v3627 = vsel %vm1143, %v3622, %v3626
  %v3628 = vrot.slane %v186, 2
  %v3629 = vsel %vm1143, %v3624, %v3628
  %v3630 = vrot.slane %v187, 2
  %v3631 = vsel %vm1143, %v3626, %v3630
  %v3632 = vrot.slane %v188, 2
  %v3633 = vsel %vm1143, %v3628, %v3632
  %v3634 = vrot.slane %v189, 2
  %v3635 = vsel %vm1143, %v3630, %v3634
  %v3636 = vrot.slane %v190, 2
  %v3637 = vsel %vm1143, %v3632, %v3636
  %v3638 = vrot.slane %v191, 2
  %v3639 = vsel %vm1143, %v3634, %v3638
  %vm3680 = vcmask 277504
  %v3681 = vsel %vm3680, %v3368, 0
  %v3683 = vsel %vm3680, %v3372, 0
  %v3685 = vsel %vm3680, %v3376, 0
  %v3687 = vsel %vm3680, %v3380, 0
  %v3689 = vsel %vm3680, %v3384, 0
  %v3691 = vsel %vm3680, %v3388, 0
  %v3693 = vsel %vm3680, %v3392, 0
  %v3695 = vsel %vm3680, %v3396, 0
  %v3697 = vsel %vm3680, %v3400, 0
  %v3699 = vsel %vm3680, %v3404, 0
  %v3701 = vsel %vm3680, %v3408, 0
  %v3703 = vsel %vm3680, %v3412, 0
  %v3705 = vsel %vm3680, %v3416, 0
  %v3707 = vsel %vm3680, %v3420, 0
  %v3709 = vsel %vm3680, %v3424, 0
  %v3711 = vsel %vm3680, %v3428, 0
  %v3713 = vsel %vm3680, %v3432, 0
  %v3715 = vsel %vm3680, %v3436, 0
  %v3717 = vsel %vm3680, %v3440, 0
  %v3719 = vsel %vm3680, %v3444, 0
  %v3721 = vsel %vm3680, %v3448, 0
  %v3723 = vsel %vm3680, %v3452, 0
  %v3725 = vsel %vm3680, %v3456, 0
  %v3727 = vsel %vm3680, %v3460, 0
  %v3729 = vsel %vm3680, %v3464, 0
  %v3731 = vsel %vm3680, %v3468, 0
  %v3733 = vsel %vm3680, %v3472, 0
  %v3735 = vsel %vm3680, %v3476, 0
  %v3737 = vsel %vm3680, %v3480, 0
  %v3739 = vsel %vm3680, %v3484, 0
  %v3741 = vsel %vm3680, %v3483, 0
  %vm3743 = vcmask 1041408
  %v3744 = vsel %vm3743, %v3636, 0
  %v3746 = vsel %vm3743, %v3638, 0
  %3748 = vmatprep.subr.mxu0 %v3623
  %3749 = vmatpush1.msra.mxu0 %v3621
  %3750 = vmatprep.subr.mxu0 %v3619
  %3751 = vmatpush1.msra.mxu0 %v3617
  %3752 = vmatprep.subr.mxu0 %v3615
  %3753 = vmatpush1.msra.mxu0 %v3613
  %3754 = vmatprep.subr.mxu0 %v3611
  %3755 = vmatpush1.msra.mxu0 %v3609
  %3756 = vmatprep.subr.mxu0 %v3607
  %3757 = vmatpush1.msra.mxu0 %v3605
  %3758 = vmatprep.subr.mxu0 %v3603
  %3759 = vmatpush1.msra.mxu0 %v3601
  %3760 = vmatprep.subr.mxu0 %v3599
  %3761 = vmatpush1.msra.mxu0 %v3597
  %3762 = vmatprep.subr.mxu0 %v3595
  %3763 = vmatpush1.msra.mxu0 %v3593
  %3764 = vmatprep.subr.mxu0 %v3591
  %3765 = vmatpush1.msra.mxu0 %v3589
  %3766 = vmatprep.subr.mxu0 %v3587
  %3767 = vmatpush1.msra.mxu0 %v3585
  %3768 = vmatprep.subr.mxu0 %v3583
  %3769 = vmatpush1.msra.mxu0 %v3581
  %3770 = vmatprep.subr.mxu0 %v3579
  %3771 = vmatpush1.msra.mxu0 %v3577
  %3772 = vmatprep.subr.mxu0 %v3575
  %3773 = vmatpush1.msra.mxu0 %v3573
  %3774 = vmatprep.subr.mxu0 %v3571
  %3775 = vmatpush1.msra.mxu0 %v3569
  %3776 = vmatprep.subr.mxu0 %v3567
  %3777 = vmatpush1.msra.mxu0 %v3565
  %3778 = vmatprep.subr.mxu0 %v3563
  %3779 = vmatpush1.msra.mxu0 %v3560
  %3780 = vmatprep.subr.mxu0 0.0
  %3781 = vmatpush2.msra.mxu0 0.0
  %3782 = vmatprep.subr.mxu0 0.0
  %3783 = vmatpush2.msra.mxu0 0.0
  %3784 = vmatprep.subr.mxu0 0.0
  %3785 = vmatpush2.msra.mxu0 0.0
  %3786 = vmatprep.subr.mxu0 0.0
  %3787 = vmatpush2.msra.mxu0 0.0
  %3788 = vmatprep.subr.mxu0 0.0
  %3789 = vmatpush2.msra.mxu0 0.0
  %3790 = vmatprep.subr.mxu0 0.0
  %3791 = vmatpush2.msra.mxu0 0.0
  %3792 = vmatprep.subr.mxu0 0.0
  %3793 = vmatpush2.msra.mxu0 0.0
  %3794 = vmatprep.subr.mxu0 0.0
  %3795 = vmatpush2.msra.mxu0 0.0
  %3796 = vmatprep.subr.mxu0 0.0
  %3797 = vmatpush2.msra.mxu0 0.0
  %3798 = vmatprep.subr.mxu0 0.0
  %3799 = vmatpush2.msra.mxu0 0.0
  %3800 = vmatprep.subr.mxu0 0.0
  %3801 = vmatpush2.msra.mxu0 0.0
  %3802 = vmatprep.subr.mxu0 %v3746
  %3803 = vmatpush2.msra.mxu0 %v3744
  %3804 = vmatprep.subr.mxu0 %v3639
  %3805 = vmatpush2.msra.mxu0 %v3637
  %3806 = vmatprep.subr.mxu0 %v3635
  %3807 = vmatpush2.msra.mxu0 %v3633
  %3808 = vmatprep.subr.mxu0 %v3631
  %3809 = vmatpush2.msra.mxu0 %v3629
  %3810 = vmatprep.subr.mxu0 %v3627
  %3811 = vmatpush2.msra.mxu0 %v3625
  %3812 = vmatprep.mubr.f32.mxu0 %v3681
  %3813 = vmatmul.mubr.f32.gmra.mxu0 %v3365
  %v3814 = vpop.f32.mrf.mxu0
  %v3815 = vadd.f32 0.0, %v3814
  %v3816 = vpop.f32.mrf.mxu0
  %v3817 = vadd.f32 0.0, %v3816
  %3818 = vmatprep.mubr.f32.mxu0 %v3683
  %3819 = vmatmul.mubr.f32.gmra.mxu0 %v3370
  %v3820 = vpop.f32.mrf.mxu0
  %v3821 = vadd.f32 0.0, %v3820
  %v3822 = vpop.f32.mrf.mxu0
  %v3823 = vadd.f32 0.0, %v3822
  %3824 = vmatprep.mubr.f32.mxu0 %v3685
  %3825 = vmatmul.mubr.f32.gmra.mxu0 %v3374
  %v3826 = vpop.f32.mrf.mxu0
  %v3827 = vadd.f32 0.0, %v3826
  %v3828 = vpop.f32.mrf.mxu0
  %v3829 = vadd.f32 0.0, %v3828
  %3830 = vmatprep.mubr.f32.mxu0 %v3687
  %3831 = vmatmul.mubr.f32.gmra.mxu0 %v3378
  %v3832 = vpop.f32.mrf.mxu0
  %v3833 = vadd.f32 0.0, %v3832
  %v3834 = vpop.f32.mrf.mxu0
  %v3835 = vadd.f32 0.0, %v3834
  %3836 = vmatprep.mubr.f32.mxu0 %v3689
  %3837 = vmatmul.mubr.f32.gmra.mxu0 %v3382
  %v3838 = vpop.f32.mrf.mxu0
  %v3839 = vadd.f32 0.0, %v3838
  %v3840 = vpop.f32.mrf.mxu0
  %v3841 = vadd.f32 0.0, %v3840
  %3842 = vmatprep.mubr.f32.mxu0 %v3691
  %3843 = vmatmul.mubr.f32.gmra.mxu0 %v3386
  %v3844 = vpop.f32.mrf.mxu0
  %v3845 = vadd.f32 0.0, %v3844
  %v3846 = vpop.f32.mrf.mxu0
  %v3847 = vadd.f32 0.0, %v3846
  %3848 = vmatprep.mubr.f32.mxu0 %v3693
  %3849 = vmatmul.mubr.f32.gmra.mxu0 %v3390
  %v3850 = vpop.f32.mrf.mxu0
  %v3851 = vadd.f32 0.0, %v3850
  %v3852 = vpop.f32.mrf.mxu0
  %v3853 = vadd.f32 0.0, %v3852
  %3854 = vmatprep.mubr.f32.mxu0 %v3695
  %3855 = vmatmul.mubr.f32.gmra.mxu0 %v3394
  %v3856 = vpop.f32.mrf.mxu0
  %v3857 = vadd.f32 0.0, %v3856
  %v3858 = vpop.f32.mrf.mxu0
  %v3859 = vadd.f32 0.0, %v3858
  %3860 = vmatprep.mubr.f32.mxu0 %v3697
  %3861 = vmatmul.mubr.f32.gmra.mxu0 %v3398
  %v3862 = vpop.f32.mrf.mxu0
  %v3863 = vadd.f32 0.0, %v3862
  %v3864 = vpop.f32.mrf.mxu0
  %v3865 = vadd.f32 0.0, %v3864
  %3866 = vmatprep.mubr.f32.mxu0 %v3699
  %3867 = vmatmul.mubr.f32.gmra.mxu0 %v3402
  %v3868 = vpop.f32.mrf.mxu0
  %v3869 = vadd.f32 0.0, %v3868
  %v3870 = vpop.f32.mrf.mxu0
  %v3871 = vadd.f32 0.0, %v3870
  %3872 = vmatprep.mubr.f32.mxu0 %v3701
  %3873 = vmatmul.mubr.f32.gmra.mxu0 %v3406
  %v3874 = vpop.f32.mrf.mxu0
  %v3875 = vadd.f32 0.0, %v3874
  %v3876 = vpop.f32.mrf.mxu0
  %v3877 = vadd.f32 0.0, %v3876
  %3878 = vmatprep.mubr.f32.mxu0 %v3703
  %3879 = vmatmul.mubr.f32.gmra.mxu0 %v3410
  %v3880 = vpop.f32.mrf.mxu0
  %v3881 = vadd.f32 0.0, %v3880
  %v3882 = vpop.f32.mrf.mxu0
  %v3883 = vadd.f32 0.0, %v3882
  %3884 = vmatprep.mubr.f32.mxu0 %v3705
  %3885 = vmatmul.mubr.f32.gmra.mxu0 %v3414
  %v3886 = vpop.f32.mrf.mxu0
  %v3887 = vadd.f32 0.0, %v3886
  %v3888 = vpop.f32.mrf.mxu0
  %v3889 = vadd.f32 0.0, %v3888
  %3890 = vmatprep.mubr.f32.mxu0 %v3707
  %3891 = vmatmul.mubr.f32.gmra.mxu0 %v3418
  %v3892 = vpop.f32.mrf.mxu0
  %v3893 = vadd.f32 0.0, %v3892
  %v3894 = vpop.f32.mrf.mxu0
  %v3895 = vadd.f32 0.0, %v3894
  %3896 = vmatprep.mubr.f32.mxu0 %v3709
  %3897 = vmatmul.mubr.f32.gmra.mxu0 %v3422
  %v3898 = vpop.f32.mrf.mxu0
  %v3899 = vadd.f32 0.0, %v3898
  %v3900 = vpop.f32.mrf.mxu0
  %v3901 = vadd.f32 0.0, %v3900
  %3902 = vmatprep.mubr.f32.mxu0 %v3711
  %3903 = vmatmul.mubr.f32.gmra.mxu0 %v3426
  %v3904 = vpop.f32.mrf.mxu0
  %v3905 = vadd.f32 0.0, %v3904
  %v3906 = vpop.f32.mrf.mxu0
  %v3907 = vadd.f32 0.0, %v3906
  %3908 = vmatprep.mubr.f32.mxu0 %v3713
  %3909 = vmatmul.mubr.f32.gmra.mxu0 %v3430
  %v3910 = vpop.f32.mrf.mxu0
  %v3911 = vadd.f32 0.0, %v3910
  %v3912 = vpop.f32.mrf.mxu0
  %v3913 = vadd.f32 0.0, %v3912
  %3914 = vmatprep.mubr.f32.mxu0 %v3715
  %3915 = vmatmul.mubr.f32.gmra.mxu0 %v3434
  %v3916 = vpop.f32.mrf.mxu0
  %v3917 = vadd.f32 0.0, %v3916
  %v3918 = vpop.f32.mrf.mxu0
  %v3919 = vadd.f32 0.0, %v3918
  %3920 = vmatprep.mubr.f32.mxu0 %v3717
  %3921 = vmatmul.mubr.f32.gmra.mxu0 %v3438
  %v3922 = vpop.f32.mrf.mxu0
  %v3923 = vadd.f32 0.0, %v3922
  %v3924 = vpop.f32.mrf.mxu0
  %v3925 = vadd.f32 0.0, %v3924
  %3926 = vmatprep.mubr.f32.mxu0 %v3719
  %3927 = vmatmul.mubr.f32.gmra.mxu0 %v3442
  %v3928 = vpop.f32.mrf.mxu0
  %v3929 = vadd.f32 0.0, %v3928
  %v3930 = vpop.f32.mrf.mxu0
  %v3931 = vadd.f32 0.0, %v3930
  %3932 = vmatprep.mubr.f32.mxu0 %v3721
  %3933 = vmatmul.mubr.f32.gmra.mxu0 %v3446
  %v3934 = vpop.f32.mrf.mxu0
  %v3935 = vadd.f32 0.0, %v3934
  %v3936 = vpop.f32.mrf.mxu0
  %v3937 = vadd.f32 0.0, %v3936
  %3938 = vmatprep.mubr.f32.mxu0 %v3723
  %3939 = vmatmul.mubr.f32.gmra.mxu0 %v3450
  %v3940 = vpop.f32.mrf.mxu0
  %v3941 = vadd.f32 0.0, %v3940
  %v3942 = vpop.f32.mrf.mxu0
  %v3943 = vadd.f32 0.0, %v3942
  %3944 = vmatprep.mubr.f32.mxu0 %v3725
  %3945 = vmatmul.mubr.f32.gmra.mxu0 %v3454
  %v3946 = vpop.f32.mrf.mxu0
  %v3947 = vadd.f32 0.0, %v3946
  %v3948 = vpop.f32.mrf.mxu0
  %v3949 = vadd.f32 0.0, %v3948
  %3950 = vmatprep.mubr.f32.mxu0 %v3727
  %3951 = vmatmul.mubr.f32.gmra.mxu0 %v3458
  %v3952 = vpop.f32.mrf.mxu0
  %v3953 = vadd.f32 0.0, %v3952
  %v3954 = vpop.f32.mrf.mxu0
  %v3955 = vadd.f32 0.0, %v3954
  %3956 = vmatprep.mubr.f32.mxu0 %v3729
  %3957 = vmatmul.mubr.f32.gmra.mxu0 %v3462
  %v3958 = vpop.f32.mrf.mxu0
  %v3959 = vadd.f32 0.0, %v3958
  %v3960 = vpop.f32.mrf.mxu0
  %v3961 = vadd.f32 0.0, %v3960
  %3962 = vmatprep.mubr.f32.mxu0 %v3731
  %3963 = vmatmul.mubr.f32.gmra.mxu0 %v3466
  %v3964 = vpop.f32.mrf.mxu0
  %v3965 = vadd.f32 0.0, %v3964
  %v3966 = vpop.f32.mrf.mxu0
  %v3967 = vadd.f32 0.0, %v3966
  %3968 = vmatprep.mubr.f32.mxu0 %v3733
  %3969 = vmatmul.mubr.f32.gmra.mxu0 %v3470
  %v3970 = vpop.f32.mrf.mxu0
  %v3971 = vadd.f32 0.0, %v3970
  %v3972 = vpop.f32.mrf.mxu0
  %v3973 = vadd.f32 0.0, %v3972
  %3974 = vmatprep.mubr.f32.mxu0 %v3735
  %3975 = vmatmul.mubr.f32.gmra.mxu0 %v3474
  %v3976 = vpop.f32.mrf.mxu0
  %v3977 = vadd.f32 0.0, %v3976
  %v3978 = vpop.f32.mrf.mxu0
  %v3979 = vadd.f32 0.0, %v3978
  %3980 = vmatprep.mubr.f32.mxu0 %v3737
  %3981 = vmatmul.mubr.f32.gmra.mxu0 %v3478
  %v3982 = vpop.f32.mrf.mxu0
  %v3983 = vadd.f32 0.0, %v3982
  %v3984 = vpop.f32.mrf.mxu0
  %v3985 = vadd.f32 0.0, %v3984
  %3986 = vmatprep.mubr.f32.mxu0 %v3739
  %3987 = vmatmul.mubr.f32.gmra.mxu0 %v3482
  %v3988 = vpop.f32.mrf.mxu0
  %v3989 = vadd.f32 0.0, %v3988
  %v3990 = vpop.f32.mrf.mxu0
  %v3991 = vadd.f32 0.0, %v3990
  %3992 = vmatprep.mubr.f32.mxu0 %v3741
  %3993 = vmatmul.mubr.f32.gmra.mxu0 %v3481
  %v3994 = vpop.f32.mrf.mxu0
  %v3995 = vadd.f32 0.0, %v3994
  %v3996 = vpop.f32.mrf.mxu0
  %v3997 = vadd.f32 0.0, %v3996
  %3998 = vdwg.mxu0
  %v3999 = vsel %vm3680, %v3238, 0
  %v4001 = vsel %vm3680, %v3240, 0
  %v4003 = vsel %vm3680, %v3242, 0
  %v4005 = vsel %vm3680, %v3244, 0
  %v4007 = vsel %vm3680, %v3246, 0
  %v4009 = vsel %vm3680, %v3248, 0
  %v4011 = vsel %vm3680, %v3250, 0
  %v4013 = vsel %vm3680, %v3252, 0
  %v4015 = vsel %vm3680, %v3254, 0
  %v4017 = vsel %vm3680, %v3256, 0
  %v4019 = vsel %vm3680, %v3258, 0
  %v4021 = vsel %vm3680, %v3260, 0
  %v4023 = vsel %vm3680, %v3262, 0
  %v4025 = vsel %vm3680, %v3264, 0
  %v4027 = vsel %vm3680, %v3266, 0
  %v4029 = vsel %vm3680, %v3268, 0
  %v4031 = vsel %vm3680, %v3270, 0
  %v4033 = vsel %vm3680, %v3272, 0
  %v4035 = vsel %vm3680, %v3274, 0
  %v4037 = vsel %vm3680, %v3276, 0
  %v4039 = vsel %vm3680, %v3278, 0
  %v4041 = vsel %vm3680, %v3280, 0
  %v4043 = vsel %vm3680, %v3282, 0
  %v4045 = vsel %vm3680, %v3284, 0
  %v4047 = vsel %vm3680, %v3286, 0
  %v4049 = vsel %vm3680, %v3288, 0
  %v4051 = vsel %vm3680, %v3290, 0
  %v4053 = vsel %vm3680, %v3292, 0
  %v4055 = vsel %vm3680, %v3294, 0
  %v4057 = vsel %vm3680, %v3296, 0
  %v4059 = vsel %vm3680, %v3298, 0
  %v4061 = vsel %vm3743, %v150, 0
  %v4063 = vsel %vm3743, %v151, 0
  %4065 = vmatprep.subr.mxu0 %v141
  %4066 = vmatpush1.msra.mxu0 %v140
  %4067 = vmatprep.subr.mxu0 %v139
  %4068 = vmatpush1.msra.mxu0 %v138
  %4069 = vmatprep.subr.mxu0 %v137
  %4070 = vmatpush1.msra.mxu0 %v136
  %4071 = vmatprep.subr.mxu0 %v135
  %4072 = vmatpush1.msra.mxu0 %v134
  %4073 = vmatprep.subr.mxu0 %v133
  %4074 = vmatpush1.msra.mxu0 %v132
  %4075 = vmatprep.subr.mxu0 %v131
  %4076 = vmatpush1.msra.mxu0 %v130
  %4077 = vmatprep.subr.mxu0 %v129
  %4078 = vmatpush1.msra.mxu0 %v128
  %4079 = vmatprep.subr.mxu0 %v127
  %4080 = vmatpush1.msra.mxu0 %v126
  %4081 = vmatprep.subr.mxu0 %v125
  %4082 = vmatpush1.msra.mxu0 %v124
  %4083 = vmatprep.subr.mxu0 %v123
  %4084 = vmatpush1.msra.mxu0 %v122
  %4085 = vmatprep.subr.mxu0 %v121
  %4086 = vmatpush1.msra.mxu0 %v120
  %4087 = vmatprep.subr.mxu0 %v119
  %4088 = vmatpush1.msra.mxu0 %v118
  %4089 = vmatprep.subr.mxu0 %v117
  %4090 = vmatpush1.msra.mxu0 %v116
  %4091 = vmatprep.subr.mxu0 %v115
  %4092 = vmatpush1.msra.mxu0 %v114
  %4093 = vmatprep.subr.mxu0 %v113
  %4094 = vmatpush1.msra.mxu0 %v112
  %4095 = vmatprep.subr.mxu0 %v111
  %4096 = vmatpush1.msra.mxu0 %v110
  %4097 = vmatprep.subr.mxu0 0.0
  %4098 = vmatpush2.msra.mxu0 0.0
  %4099 = vmatprep.subr.mxu0 0.0
  %4100 = vmatpush2.msra.mxu0 0.0
  %4101 = vmatprep.subr.mxu0 0.0
  %4102 = vmatpush2.msra.mxu0 0.0
  %4103 = vmatprep.subr.mxu0 0.0
  %4104 = vmatpush2.msra.mxu0 0.0
  %4105 = vmatprep.subr.mxu0 0.0
  %4106 = vmatpush2.msra.mxu0 0.0
  %4107 = vmatprep.subr.mxu0 0.0
  %4108 = vmatpush2.msra.mxu0 0.0
  %4109 = vmatprep.subr.mxu0 0.0
  %4110 = vmatpush2.msra.mxu0 0.0
  %4111 = vmatprep.subr.mxu0 0.0
  %4112 = vmatpush2.msra.mxu0 0.0
  %4113 = vmatprep.subr.mxu0 0.0
  %4114 = vmatpush2.msra.mxu0 0.0
  %4115 = vmatprep.subr.mxu0 0.0
  %4116 = vmatpush2.msra.mxu0 0.0
  %4117 = vmatprep.subr.mxu0 0.0
  %4118 = vmatpush2.msra.mxu0 0.0
  %4119 = vmatprep.subr.mxu0 %v4063
  %4120 = vmatpush2.msra.mxu0 %v4061
  %4121 = vmatprep.subr.mxu0 %v149
  %4122 = vmatpush2.msra.mxu0 %v148
  %4123 = vmatprep.subr.mxu0 %v147
  %4124 = vmatpush2.msra.mxu0 %v146
  %4125 = vmatprep.subr.mxu0 %v145
  %4126 = vmatpush2.msra.mxu0 %v144
  %4127 = vmatprep.subr.mxu0 %v143
  %4128 = vmatpush2.msra.mxu0 %v142
  %4129 = vmatprep.mubr.f32.mxu0 %v3999
  %4130 = vmatmul.mubr.f32.gmra.mxu0 %v3237
  %v4131 = vpop.f32.mrf.mxu0
  %v4132 = vadd.f32 %v3815, %v4131
  %v4133 = vpop.f32.mrf.mxu0
  %v4134 = vadd.f32 %v3817, %v4133
  %4135 = vmatprep.mubr.f32.mxu0 %v4001
  %4136 = vmatmul.mubr.f32.gmra.mxu0 %v3239
  %v4137 = vpop.f32.mrf.mxu0
  %v4138 = vadd.f32 %v3821, %v4137
  %v4139 = vpop.f32.mrf.mxu0
  %v4140 = vadd.f32 %v3823, %v4139
  %4141 = vmatprep.mubr.f32.mxu0 %v4003
  %4142 = vmatmul.mubr.f32.gmra.mxu0 %v3241
  %v4143 = vpop.f32.mrf.mxu0
  %v4144 = vadd.f32 %v3827, %v4143
  %v4145 = vpop.f32.mrf.mxu0
  %v4146 = vadd.f32 %v3829, %v4145
  %4147 = vmatprep.mubr.f32.mxu0 %v4005
  %4148 = vmatmul.mubr.f32.gmra.mxu0 %v3243
  %v4149 = vpop.f32.mrf.mxu0
  %v4150 = vadd.f32 %v3833, %v4149
  %v4151 = vpop.f32.mrf.mxu0
  %v4152 = vadd.f32 %v3835, %v4151
  %4153 = vmatprep.mubr.f32.mxu0 %v4007
  %4154 = vmatmul.mubr.f32.gmra.mxu0 %v3245
  %v4155 = vpop.f32.mrf.mxu0
  %v4156 = vadd.f32 %v3839, %v4155
  %v4157 = vpop.f32.mrf.mxu0
  %v4158 = vadd.f32 %v3841, %v4157
  %4159 = vmatprep.mubr.f32.mxu0 %v4009
  %4160 = vmatmul.mubr.f32.gmra.mxu0 %v3247
  %v4161 = vpop.f32.mrf.mxu0
  %v4162 = vadd.f32 %v3845, %v4161
  %v4163 = vpop.f32.mrf.mxu0
  %v4164 = vadd.f32 %v3847, %v4163
  %4165 = vmatprep.mubr.f32.mxu0 %v4011
  %4166 = vmatmul.mubr.f32.gmra.mxu0 %v3249
  %v4167 = vpop.f32.mrf.mxu0
  %v4168 = vadd.f32 %v3851, %v4167
  %v4169 = vpop.f32.mrf.mxu0
  %v4170 = vadd.f32 %v3853, %v4169
  %4171 = vmatprep.mubr.f32.mxu0 %v4013
  %4172 = vmatmul.mubr.f32.gmra.mxu0 %v3251
  %v4173 = vpop.f32.mrf.mxu0
  %v4174 = vadd.f32 %v3857, %v4173
  %v4175 = vpop.f32.mrf.mxu0
  %v4176 = vadd.f32 %v3859, %v4175
  %4177 = vmatprep.mubr.f32.mxu0 %v4015
  %4178 = vmatmul.mubr.f32.gmra.mxu0 %v3253
  %v4179 = vpop.f32.mrf.mxu0
  %v4180 = vadd.f32 %v3863, %v4179
  %v4181 = vpop.f32.mrf.mxu0
  %v4182 = vadd.f32 %v3865, %v4181
  %4183 = vmatprep.mubr.f32.mxu0 %v4017
  %4184 = vmatmul.mubr.f32.gmra.mxu0 %v3255
  %v4185 = vpop.f32.mrf.mxu0
  %v4186 = vadd.f32 %v3869, %v4185
  %v4187 = vpop.f32.mrf.mxu0
  %v4188 = vadd.f32 %v3871, %v4187
  %4189 = vmatprep.mubr.f32.mxu0 %v4019
  %4190 = vmatmul.mubr.f32.gmra.mxu0 %v3257
  %v4191 = vpop.f32.mrf.mxu0
  %v4192 = vadd.f32 %v3875, %v4191
  %v4193 = vpop.f32.mrf.mxu0
  %v4194 = vadd.f32 %v3877, %v4193
  %4195 = vmatprep.mubr.f32.mxu0 %v4021
  %4196 = vmatmul.mubr.f32.gmra.mxu0 %v3259
  %v4197 = vpop.f32.mrf.mxu0
  %v4198 = vadd.f32 %v3881, %v4197
  %v4199 = vpop.f32.mrf.mxu0
  %v4200 = vadd.f32 %v3883, %v4199
  %4201 = vmatprep.mubr.f32.mxu0 %v4023
  %4202 = vmatmul.mubr.f32.gmra.mxu0 %v3261
  %v4203 = vpop.f32.mrf.mxu0
  %v4204 = vadd.f32 %v3887, %v4203
  %v4205 = vpop.f32.mrf.mxu0
  %v4206 = vadd.f32 %v3889, %v4205
  %4207 = vmatprep.mubr.f32.mxu0 %v4025
  %4208 = vmatmul.mubr.f32.gmra.mxu0 %v3263
  %v4209 = vpop.f32.mrf.mxu0
  %v4210 = vadd.f32 %v3893, %v4209
  %v4211 = vpop.f32.mrf.mxu0
  %v4212 = vadd.f32 %v3895, %v4211
  %4213 = vmatprep.mubr.f32.mxu0 %v4027
  %4214 = vmatmul.mubr.f32.gmra.mxu0 %v3265
  %v4215 = vpop.f32.mrf.mxu0
  %v4216 = vadd.f32 %v3899, %v4215
  %v4217 = vpop.f32.mrf.mxu0
  %v4218 = vadd.f32 %v3901, %v4217
  %4219 = vmatprep.mubr.f32.mxu0 %v4029
  %4220 = vmatmul.mubr.f32.gmra.mxu0 %v3267
  %v4221 = vpop.f32.mrf.mxu0
  %v4222 = vadd.f32 %v3905, %v4221
  %v4223 = vpop.f32.mrf.mxu0
  %v4224 = vadd.f32 %v3907, %v4223
  %4225 = vmatprep.mubr.f32.mxu0 %v4031
  %4226 = vmatmul.mubr.f32.gmra.mxu0 %v3269
  %v4227 = vpop.f32.mrf.mxu0
  %v4228 = vadd.f32 %v3911, %v4227
  %v4229 = vpop.f32.mrf.mxu0
  %v4230 = vadd.f32 %v3913, %v4229
  %4231 = vmatprep.mubr.f32.mxu0 %v4033
  %4232 = vmatmul.mubr.f32.gmra.mxu0 %v3271
  %v4233 = vpop.f32.mrf.mxu0
  %v4234 = vadd.f32 %v3917, %v4233
  %v4235 = vpop.f32.mrf.mxu0
  %v4236 = vadd.f32 %v3919, %v4235
  %4237 = vmatprep.mubr.f32.mxu0 %v4035
  %4238 = vmatmul.mubr.f32.gmra.mxu0 %v3273
  %v4239 = vpop.f32.mrf.mxu0
  %v4240 = vadd.f32 %v3923, %v4239
  %v4241 = vpop.f32.mrf.mxu0
  %v4242 = vadd.f32 %v3925, %v4241
  %4243 = vmatprep.mubr.f32.mxu0 %v4037
  %4244 = vmatmul.mubr.f32.gmra.mxu0 %v3275
  %v4245 = vpop.f32.mrf.mxu0
  %v4246 = vadd.f32 %v3929, %v4245
  %v4247 = vpop.f32.mrf.mxu0
  %v4248 = vadd.f32 %v3931, %v4247
  %4249 = vmatprep.mubr.f32.mxu0 %v4039
  %4250 = vmatmul.mubr.f32.gmra.mxu0 %v3277
  %v4251 = vpop.f32.mrf.mxu0
  %v4252 = vadd.f32 %v3935, %v4251
  %v4253 = vpop.f32.mrf.mxu0
  %v4254 = vadd.f32 %v3937, %v4253
  %4255 = vmatprep.mubr.f32.mxu0 %v4041
  %4256 = vmatmul.mubr.f32.gmra.mxu0 %v3279
  %v4257 = vpop.f32.mrf.mxu0
  %v4258 = vadd.f32 %v3941, %v4257
  %v4259 = vpop.f32.mrf.mxu0
  %v4260 = vadd.f32 %v3943, %v4259
  %4261 = vmatprep.mubr.f32.mxu0 %v4043
  %4262 = vmatmul.mubr.f32.gmra.mxu0 %v3281
  %v4263 = vpop.f32.mrf.mxu0
  %v4264 = vadd.f32 %v3947, %v4263
  %v4265 = vpop.f32.mrf.mxu0
  %v4266 = vadd.f32 %v3949, %v4265
  %4267 = vmatprep.mubr.f32.mxu0 %v4045
  %4268 = vmatmul.mubr.f32.gmra.mxu0 %v3283
  %v4269 = vpop.f32.mrf.mxu0
  %v4270 = vadd.f32 %v3953, %v4269
  %v4271 = vpop.f32.mrf.mxu0
  %v4272 = vadd.f32 %v3955, %v4271
  %4273 = vmatprep.mubr.f32.mxu0 %v4047
  %4274 = vmatmul.mubr.f32.gmra.mxu0 %v3285
  %v4275 = vpop.f32.mrf.mxu0
  %v4276 = vadd.f32 %v3959, %v4275
  %v4277 = vpop.f32.mrf.mxu0
  %v4278 = vadd.f32 %v3961, %v4277
  %4279 = vmatprep.mubr.f32.mxu0 %v4049
  %4280 = vmatmul.mubr.f32.gmra.mxu0 %v3287
  %v4281 = vpop.f32.mrf.mxu0
  %v4282 = vadd.f32 %v3965, %v4281
  %v4283 = vpop.f32.mrf.mxu0
  %v4284 = vadd.f32 %v3967, %v4283
  %4285 = vmatprep.mubr.f32.mxu0 %v4051
  %4286 = vmatmul.mubr.f32.gmra.mxu0 %v3289
  %v4287 = vpop.f32.mrf.mxu0
  %v4288 = vadd.f32 %v3971, %v4287
  %v4289 = vpop.f32.mrf.mxu0
  %v4290 = vadd.f32 %v3973, %v4289
  %4291 = vmatprep.mubr.f32.mxu0 %v4053
  %4292 = vmatmul.mubr.f32.gmra.mxu0 %v3291
  %v4293 = vpop.f32.mrf.mxu0
  %v4294 = vadd.f32 %v3977, %v4293
  %v4295 = vpop.f32.mrf.mxu0
  %v4296 = vadd.f32 %v3979, %v4295
  %4297 = vmatprep.mubr.f32.mxu0 %v4055
  %4298 = vmatmul.mubr.f32.gmra.mxu0 %v3293
  %v4299 = vpop.f32.mrf.mxu0
  %v4300 = vadd.f32 %v3983, %v4299
  %v4301 = vpop.f32.mrf.mxu0
  %v4302 = vadd.f32 %v3985, %v4301
  %4303 = vmatprep.mubr.f32.mxu0 %v4057
  %4304 = vmatmul.mubr.f32.gmra.mxu0 %v3295
  %v4305 = vpop.f32.mrf.mxu0
  %v4306 = vadd.f32 %v3989, %v4305
  %v4307 = vpop.f32.mrf.mxu0
  %v4308 = vadd.f32 %v3991, %v4307
  %4309 = vmatprep.mubr.f32.mxu0 %v4059
  %4310 = vmatmul.mubr.f32.gmra.mxu0 %v3297
  %v4311 = vpop.f32.mrf.mxu0
  %v4312 = vadd.f32 %v3995, %v4311
  %v4313 = vpop.f32.mrf.mxu0
  %v4314 = vadd.f32 %v3997, %v4313
  %4315 = vdwg.mxu0
  %v4316 = vrot.slane %v3237, 4
  %v4317 = vrot.slane %v3239, 4
  %v4318 = vsel %vm2041, %v4316, %v4317
  %v4319 = vrot.slane %v3238, 4
  %v4320 = vrot.slane %v3240, 4
  %v4321 = vsel %vm2041, %v4319, %v4320
  %v4322 = vrot.slane %v3241, 4
  %v4323 = vsel %vm2041, %v4317, %v4322
  %v4324 = vrot.slane %v3242, 4
  %v4325 = vsel %vm2041, %v4320, %v4324
  %v4326 = vrot.slane %v3243, 4
  %v4327 = vsel %vm2041, %v4322, %v4326
  %v4328 = vrot.slane %v3244, 4
  %v4329 = vsel %vm2041, %v4324, %v4328
  %v4330 = vrot.slane %v3245, 4
  %v4331 = vsel %vm2041, %v4326, %v4330
  %v4332 = vrot.slane %v3246, 4
  %v4333 = vsel %vm2041, %v4328, %v4332
  %v4334 = vrot.slane %v3247, 4
  %v4335 = vsel %vm2041, %v4330, %v4334
  %v4336 = vrot.slane %v3248, 4
  %v4337 = vsel %vm2041, %v4332, %v4336
  %v4338 = vrot.slane %v3249, 4
  %v4339 = vsel %vm2041, %v4334, %v4338
  %v4340 = vrot.slane %v3250, 4
  %v4341 = vsel %vm2041, %v4336, %v4340
  %v4342 = vrot.slane %v3251, 4
  %v4343 = vsel %vm2041, %v4338, %v4342
  %v4344 = vrot.slane %v3252, 4
  %v4345 = vsel %vm2041, %v4340, %v4344
  %v4346 = vrot.slane %v3253, 4
  %v4347 = vsel %vm2041, %v4342, %v4346
  %v4348 = vrot.slane %v3254, 4
  %v4349 = vsel %vm2041, %v4344, %v4348
  %v4350 = vrot.slane %v3255, 4
  %v4351 = vsel %vm2041, %v4346, %v4350
  %v4352 = vrot.slane %v3256, 4
  %v4353 = vsel %vm2041, %v4348, %v4352
  %v4354 = vrot.slane %v3257, 4
  %v4355 = vsel %vm2041, %v4350, %v4354
  %v4356 = vrot.slane %v3258, 4
  %v4357 = vsel %vm2041, %v4352, %v4356
  %v4358 = vrot.slane %v3259, 4
  %v4359 = vsel %vm2041, %v4354, %v4358
  %v4360 = vrot.slane %v3260, 4
  %v4361 = vsel %vm2041, %v4356, %v4360
  %v4362 = vrot.slane %v3261, 4
  %v4363 = vsel %vm2041, %v4358, %v4362
  %v4364 = vrot.slane %v3262, 4
  %v4365 = vsel %vm2041, %v4360, %v4364
  %v4366 = vrot.slane %v3263, 4
  %v4367 = vsel %vm2041, %v4362, %v4366
  %v4368 = vrot.slane %v3264, 4
  %v4369 = vsel %vm2041, %v4364, %v4368
  %v4370 = vrot.slane %v3265, 4
  %v4371 = vsel %vm2041, %v4366, %v4370
  %v4372 = vrot.slane %v3266, 4
  %v4373 = vsel %vm2041, %v4368, %v4372
  %v4374 = vrot.slane %v3267, 4
  %v4375 = vsel %vm2041, %v4370, %v4374
  %v4376 = vrot.slane %v3268, 4
  %v4377 = vsel %vm2041, %v4372, %v4376
  %v4378 = vrot.slane %v3269, 4
  %v4379 = vsel %vm2041, %v4374, %v4378
  %v4380 = vrot.slane %v3270, 4
  %v4381 = vsel %vm2041, %v4376, %v4380
  %v4382 = vrot.slane %v3271, 4
  %v4383 = vsel %vm2041, %v4378, %v4382
  %v4384 = vrot.slane %v3272, 4
  %v4385 = vsel %vm2041, %v4380, %v4384
  %v4386 = vrot.slane %v3273, 4
  %v4387 = vsel %vm2041, %v4382, %v4386
  %v4388 = vrot.slane %v3274, 4
  %v4389 = vsel %vm2041, %v4384, %v4388
  %v4390 = vrot.slane %v3275, 4
  %v4391 = vsel %vm2041, %v4386, %v4390
  %v4392 = vrot.slane %v3276, 4
  %v4393 = vsel %vm2041, %v4388, %v4392
  %v4394 = vrot.slane %v3277, 4
  %v4395 = vsel %vm2041, %v4390, %v4394
  %v4396 = vrot.slane %v3278, 4
  %v4397 = vsel %vm2041, %v4392, %v4396
  %v4398 = vrot.slane %v3279, 4
  %v4399 = vsel %vm2041, %v4394, %v4398
  %v4400 = vrot.slane %v3280, 4
  %v4401 = vsel %vm2041, %v4396, %v4400
  %v4402 = vrot.slane %v3281, 4
  %v4403 = vsel %vm2041, %v4398, %v4402
  %v4404 = vrot.slane %v3282, 4
  %v4405 = vsel %vm2041, %v4400, %v4404
  %v4406 = vrot.slane %v3283, 4
  %v4407 = vsel %vm2041, %v4402, %v4406
  %v4408 = vrot.slane %v3284, 4
  %v4409 = vsel %vm2041, %v4404, %v4408
  %v4410 = vrot.slane %v3285, 4
  %v4411 = vsel %vm2041, %v4406, %v4410
  %v4412 = vrot.slane %v3286, 4
  %v4413 = vsel %vm2041, %v4408, %v4412
  %v4414 = vrot.slane %v3287, 4
  %v4415 = vsel %vm2041, %v4410, %v4414
  %v4416 = vrot.slane %v3288, 4
  %v4417 = vsel %vm2041, %v4412, %v4416
  %v4418 = vrot.slane %v3289, 4
  %v4419 = vsel %vm2041, %v4414, %v4418
  %v4420 = vrot.slane %v3290, 4
  %v4421 = vsel %vm2041, %v4416, %v4420
  %v4422 = vrot.slane %v3291, 4
  %v4423 = vsel %vm2041, %v4418, %v4422
  %v4424 = vrot.slane %v3292, 4
  %v4425 = vsel %vm2041, %v4420, %v4424
  %v4426 = vrot.slane %v3293, 4
  %v4427 = vsel %vm2041, %v4422, %v4426
  %v4428 = vrot.slane %v3294, 4
  %v4429 = vsel %vm2041, %v4424, %v4428
  %v4430 = vrot.slane %v3295, 4
  %v4431 = vsel %vm2041, %v4426, %v4430
  %v4432 = vrot.slane %v3296, 4
  %v4433 = vsel %vm2041, %v4428, %v4432
  %v4434 = vrot.slane %v3297, 4
  %v4435 = vsel %vm2041, %v4430, %v4434
  %v4436 = vrot.slane %v3298, 4
  %v4437 = vsel %vm2041, %v4432, %v4436
  %v4509 = vrot.slane %v190, 4
  %v4510 = vrot.slane %v192, 4
  %v4511 = vsel %vm2041, %v4509, %v4510
  %v4512 = vrot.slane %v191, 4
  %v4513 = vrot.slane %v193, 4
  %v4514 = vsel %vm2041, %v4512, %v4513
  %v4515 = vrot.slane %v194, 4
  %v4516 = vsel %vm2041, %v4510, %v4515
  %v4517 = vrot.slane %v195, 4
  %v4518 = vsel %vm2041, %v4513, %v4517
  %v4519 = vrot.slane %v196, 4
  %v4520 = vsel %vm2041, %v4515, %v4519
  %v4521 = vrot.slane %v197, 4
  %v4522 = vsel %vm2041, %v4517, %v4521
  %v4523 = vrot.slane %v198, 4
  %v4524 = vsel %vm2041, %v4519, %v4523
  %v4525 = vrot.slane %v199, 4
  %v4526 = vsel %vm2041, %v4521, %v4525
  %v4527 = vrot.slane %v200, 4
  %v4528 = vsel %vm2041, %v4523, %v4527
  %v4529 = vrot.slane %v201, 4
  %v4530 = vsel %vm2041, %v4525, %v4529
  %v4531 = vrot.slane %v202, 4
  %v4532 = vsel %vm2041, %v4527, %v4531
  %v4533 = vrot.slane %v203, 4
  %v4534 = vsel %vm2041, %v4529, %v4533
  %v4535 = vrot.slane %v204, 4
  %v4536 = vsel %vm2041, %v4531, %v4535
  %v4537 = vrot.slane %v205, 4
  %v4538 = vsel %vm2041, %v4533, %v4537
  %v4539 = vrot.slane %v206, 4
  %v4540 = vsel %vm2041, %v4535, %v4539
  %v4541 = vrot.slane %v207, 4
  %v4542 = vsel %vm2041, %v4537, %v4541
  %v4543 = vrot.slane %v208, 4
  %v4544 = vsel %vm2041, %v4539, %v4543
  %v4545 = vrot.slane %v209, 4
  %v4546 = vsel %vm2041, %v4541, %v4545
  %v4547 = vrot.slane %v210, 4
  %v4548 = vsel %vm2041, %v4543, %v4547
  %v4549 = vrot.slane %v211, 4
  %v4550 = vsel %vm2041, %v4545, %v4549
  %v4551 = vrot.slane %v212, 4
  %v4552 = vsel %vm2041, %v4547, %v4551
  %v4553 = vrot.slane %v213, 4
  %v4554 = vsel %vm2041, %v4549, %v4553
  %v4555 = vrot.slane %v214, 4
  %v4556 = vsel %vm2041, %v4551, %v4555
  %v4557 = vrot.slane %v215, 4
  %v4558 = vsel %vm2041, %v4553, %v4557
  %v4559 = vrot.slane %v216, 4
  %v4560 = vsel %vm2041, %v4555, %v4559
  %v4561 = vrot.slane %v217, 4
  %v4562 = vsel %vm2041, %v4557, %v4561
  %v4563 = vrot.slane %v218, 4
  %v4564 = vsel %vm2041, %v4559, %v4563
  %v4565 = vrot.slane %v219, 4
  %v4566 = vsel %vm2041, %v4561, %v4565
  %v4567 = vrot.slane %v220, 4
  %v4568 = vsel %vm2041, %v4563, %v4567
  %v4569 = vrot.slane %v221, 4
  %v4570 = vsel %vm2041, %v4565, %v4569
  %v4571 = vrot.slane %v222, 4
  %v4572 = vsel %vm2041, %v4567, %v4571
  %v4573 = vrot.slane %v223, 4
  %v4574 = vsel %vm2041, %v4569, %v4573
  %v4575 = vrot.slane %v224, 4
  %v4576 = vsel %vm2041, %v4571, %v4575
  %v4577 = vrot.slane %v225, 4
  %v4578 = vsel %vm2041, %v4573, %v4577
  %v4579 = vrot.slane %v226, 4
  %v4580 = vsel %vm2041, %v4575, %v4579
  %v4581 = vrot.slane %v227, 4
  %v4582 = vsel %vm2041, %v4577, %v4581
  %v4583 = vrot.slane %v228, 4
  %v4584 = vsel %vm2041, %v4579, %v4583
  %v4585 = vrot.slane %v229, 4
  %v4586 = vsel %vm2041, %v4581, %v4585
  %v4587 = vrot.slane %v230, 4
  %v4588 = vsel %vm2041, %v4583, %v4587
  %v4589 = vrot.slane %v231, 4
  %v4590 = vsel %vm2041, %v4585, %v4589
  %v4631 = vsel %vm3680, %v4321, 0
  %v4633 = vsel %vm3680, %v4325, 0
  %v4635 = vsel %vm3680, %v4329, 0
  %v4637 = vsel %vm3680, %v4333, 0
  %v4639 = vsel %vm3680, %v4337, 0
  %v4641 = vsel %vm3680, %v4341, 0
  %v4643 = vsel %vm3680, %v4345, 0
  %v4645 = vsel %vm3680, %v4349, 0
  %v4647 = vsel %vm3680, %v4353, 0
  %v4649 = vsel %vm3680, %v4357, 0
  %v4651 = vsel %vm3680, %v4361, 0
  %v4653 = vsel %vm3680, %v4365, 0
  %v4655 = vsel %vm3680, %v4369, 0
  %v4657 = vsel %vm3680, %v4373, 0
  %v4659 = vsel %vm3680, %v4377, 0
  %v4661 = vsel %vm3680, %v4381, 0
  %v4663 = vsel %vm3680, %v4385, 0
  %v4665 = vsel %vm3680, %v4389, 0
  %v4667 = vsel %vm3680, %v4393, 0
  %v4669 = vsel %vm3680, %v4397, 0
  %v4671 = vsel %vm3680, %v4401, 0
  %v4673 = vsel %vm3680, %v4405, 0
  %v4675 = vsel %vm3680, %v4409, 0
  %v4677 = vsel %vm3680, %v4413, 0
  %v4679 = vsel %vm3680, %v4417, 0
  %v4681 = vsel %vm3680, %v4421, 0
  %v4683 = vsel %vm3680, %v4425, 0
  %v4685 = vsel %vm3680, %v4429, 0
  %v4687 = vsel %vm3680, %v4433, 0
  %v4689 = vsel %vm3680, %v4437, 0
  %v4691 = vsel %vm3680, %v4436, 0
  %v4693 = vsel %vm3743, %v4587, 0
  %v4695 = vsel %vm3743, %v4589, 0
  %4697 = vmatprep.subr.mxu0 %v4574
  %4698 = vmatpush1.msra.mxu0 %v4572
  %4699 = vmatprep.subr.mxu0 %v4570
  %4700 = vmatpush1.msra.mxu0 %v4568
  %4701 = vmatprep.subr.mxu0 %v4566
  %4702 = vmatpush1.msra.mxu0 %v4564
  %4703 = vmatprep.subr.mxu0 %v4562
  %4704 = vmatpush1.msra.mxu0 %v4560
  %4705 = vmatprep.subr.mxu0 %v4558
  %4706 = vmatpush1.msra.mxu0 %v4556
  %4707 = vmatprep.subr.mxu0 %v4554
  %4708 = vmatpush1.msra.mxu0 %v4552
  %4709 = vmatprep.subr.mxu0 %v4550
  %4710 = vmatpush1.msra.mxu0 %v4548
  %4711 = vmatprep.subr.mxu0 %v4546
  %4712 = vmatpush1.msra.mxu0 %v4544
  %4713 = vmatprep.subr.mxu0 %v4542
  %4714 = vmatpush1.msra.mxu0 %v4540
  %4715 = vmatprep.subr.mxu0 %v4538
  %4716 = vmatpush1.msra.mxu0 %v4536
  %4717 = vmatprep.subr.mxu0 %v4534
  %4718 = vmatpush1.msra.mxu0 %v4532
  %4719 = vmatprep.subr.mxu0 %v4530
  %4720 = vmatpush1.msra.mxu0 %v4528
  %4721 = vmatprep.subr.mxu0 %v4526
  %4722 = vmatpush1.msra.mxu0 %v4524
  %4723 = vmatprep.subr.mxu0 %v4522
  %4724 = vmatpush1.msra.mxu0 %v4520
  %4725 = vmatprep.subr.mxu0 %v4518
  %4726 = vmatpush1.msra.mxu0 %v4516
  %4727 = vmatprep.subr.mxu0 %v4514
  %4728 = vmatpush1.msra.mxu0 %v4511
  %4729 = vmatprep.subr.mxu0 0.0
  %4730 = vmatpush2.msra.mxu0 0.0
  %4731 = vmatprep.subr.mxu0 0.0
  %4732 = vmatpush2.msra.mxu0 0.0
  %4733 = vmatprep.subr.mxu0 0.0
  %4734 = vmatpush2.msra.mxu0 0.0
  %4735 = vmatprep.subr.mxu0 0.0
  %4736 = vmatpush2.msra.mxu0 0.0
  %4737 = vmatprep.subr.mxu0 0.0
  %4738 = vmatpush2.msra.mxu0 0.0
  %4739 = vmatprep.subr.mxu0 0.0
  %4740 = vmatpush2.msra.mxu0 0.0
  %4741 = vmatprep.subr.mxu0 0.0
  %4742 = vmatpush2.msra.mxu0 0.0
  %4743 = vmatprep.subr.mxu0 0.0
  %4744 = vmatpush2.msra.mxu0 0.0
  %4745 = vmatprep.subr.mxu0 0.0
  %4746 = vmatpush2.msra.mxu0 0.0
  %4747 = vmatprep.subr.mxu0 0.0
  %4748 = vmatpush2.msra.mxu0 0.0
  %4749 = vmatprep.subr.mxu0 0.0
  %4750 = vmatpush2.msra.mxu0 0.0
  %4751 = vmatprep.subr.mxu0 %v4695
  %4752 = vmatpush2.msra.mxu0 %v4693
  %4753 = vmatprep.subr.mxu0 %v4590
  %4754 = vmatpush2.msra.mxu0 %v4588
  %4755 = vmatprep.subr.mxu0 %v4586
  %4756 = vmatpush2.msra.mxu0 %v4584
  %4757 = vmatprep.subr.mxu0 %v4582
  %4758 = vmatpush2.msra.mxu0 %v4580
  %4759 = vmatprep.subr.mxu0 %v4578
  %4760 = vmatpush2.msra.mxu0 %v4576
  %4761 = vmatprep.mubr.f32.mxu0 %v4631
  %4762 = vmatmul.mubr.f32.gmra.mxu0 %v4318
  %v4763 = vpop.f32.mrf.mxu0
  %v4764 = vadd.f32 0.0, %v4763
  %v4765 = vpop.f32.mrf.mxu0
  %v4766 = vadd.f32 0.0, %v4765
  %4767 = vmatprep.mubr.f32.mxu0 %v4633
  %4768 = vmatmul.mubr.f32.gmra.mxu0 %v4323
  %v4769 = vpop.f32.mrf.mxu0
  %v4770 = vadd.f32 0.0, %v4769
  %v4771 = vpop.f32.mrf.mxu0
  %v4772 = vadd.f32 0.0, %v4771
  %4773 = vmatprep.mubr.f32.mxu0 %v4635
  %4774 = vmatmul.mubr.f32.gmra.mxu0 %v4327
  %v4775 = vpop.f32.mrf.mxu0
  %v4776 = vadd.f32 0.0, %v4775
  %v4777 = vpop.f32.mrf.mxu0
  %v4778 = vadd.f32 0.0, %v4777
  %4779 = vmatprep.mubr.f32.mxu0 %v4637
  %4780 = vmatmul.mubr.f32.gmra.mxu0 %v4331
  %v4781 = vpop.f32.mrf.mxu0
  %v4782 = vadd.f32 0.0, %v4781
  %v4783 = vpop.f32.mrf.mxu0
  %v4784 = vadd.f32 0.0, %v4783
  %4785 = vmatprep.mubr.f32.mxu0 %v4639
  %4786 = vmatmul.mubr.f32.gmra.mxu0 %v4335
  %v4787 = vpop.f32.mrf.mxu0
  %v4788 = vadd.f32 0.0, %v4787
  %v4789 = vpop.f32.mrf.mxu0
  %v4790 = vadd.f32 0.0, %v4789
  %4791 = vmatprep.mubr.f32.mxu0 %v4641
  %4792 = vmatmul.mubr.f32.gmra.mxu0 %v4339
  %v4793 = vpop.f32.mrf.mxu0
  %v4794 = vadd.f32 0.0, %v4793
  %v4795 = vpop.f32.mrf.mxu0
  %v4796 = vadd.f32 0.0, %v4795
  %4797 = vmatprep.mubr.f32.mxu0 %v4643
  %4798 = vmatmul.mubr.f32.gmra.mxu0 %v4343
  %v4799 = vpop.f32.mrf.mxu0
  %v4800 = vadd.f32 0.0, %v4799
  %v4801 = vpop.f32.mrf.mxu0
  %v4802 = vadd.f32 0.0, %v4801
  %4803 = vmatprep.mubr.f32.mxu0 %v4645
  %4804 = vmatmul.mubr.f32.gmra.mxu0 %v4347
  %v4805 = vpop.f32.mrf.mxu0
  %v4806 = vadd.f32 0.0, %v4805
  %v4807 = vpop.f32.mrf.mxu0
  %v4808 = vadd.f32 0.0, %v4807
  %4809 = vmatprep.mubr.f32.mxu0 %v4647
  %4810 = vmatmul.mubr.f32.gmra.mxu0 %v4351
  %v4811 = vpop.f32.mrf.mxu0
  %v4812 = vadd.f32 0.0, %v4811
  %v4813 = vpop.f32.mrf.mxu0
  %v4814 = vadd.f32 0.0, %v4813
  %4815 = vmatprep.mubr.f32.mxu0 %v4649
  %4816 = vmatmul.mubr.f32.gmra.mxu0 %v4355
  %v4817 = vpop.f32.mrf.mxu0
  %v4818 = vadd.f32 0.0, %v4817
  %v4819 = vpop.f32.mrf.mxu0
  %v4820 = vadd.f32 0.0, %v4819
  %4821 = vmatprep.mubr.f32.mxu0 %v4651
  %4822 = vmatmul.mubr.f32.gmra.mxu0 %v4359
  %v4823 = vpop.f32.mrf.mxu0
  %v4824 = vadd.f32 0.0, %v4823
  %v4825 = vpop.f32.mrf.mxu0
  %v4826 = vadd.f32 0.0, %v4825
  %4827 = vmatprep.mubr.f32.mxu0 %v4653
  %4828 = vmatmul.mubr.f32.gmra.mxu0 %v4363
  %v4829 = vpop.f32.mrf.mxu0
  %v4830 = vadd.f32 0.0, %v4829
  %v4831 = vpop.f32.mrf.mxu0
  %v4832 = vadd.f32 0.0, %v4831
  %4833 = vmatprep.mubr.f32.mxu0 %v4655
  %4834 = vmatmul.mubr.f32.gmra.mxu0 %v4367
  %v4835 = vpop.f32.mrf.mxu0
  %v4836 = vadd.f32 0.0, %v4835
  %v4837 = vpop.f32.mrf.mxu0
  %v4838 = vadd.f32 0.0, %v4837
  %4839 = vmatprep.mubr.f32.mxu0 %v4657
  %4840 = vmatmul.mubr.f32.gmra.mxu0 %v4371
  %v4841 = vpop.f32.mrf.mxu0
  %v4842 = vadd.f32 0.0, %v4841
  %v4843 = vpop.f32.mrf.mxu0
  %v4844 = vadd.f32 0.0, %v4843
  %4845 = vmatprep.mubr.f32.mxu0 %v4659
  %4846 = vmatmul.mubr.f32.gmra.mxu0 %v4375
  %v4847 = vpop.f32.mrf.mxu0
  %v4848 = vadd.f32 0.0, %v4847
  %v4849 = vpop.f32.mrf.mxu0
  %v4850 = vadd.f32 0.0, %v4849
  %4851 = vmatprep.mubr.f32.mxu0 %v4661
  %4852 = vmatmul.mubr.f32.gmra.mxu0 %v4379
  %v4853 = vpop.f32.mrf.mxu0
  %v4854 = vadd.f32 0.0, %v4853
  %v4855 = vpop.f32.mrf.mxu0
  %v4856 = vadd.f32 0.0, %v4855
  %4857 = vmatprep.mubr.f32.mxu0 %v4663
  %4858 = vmatmul.mubr.f32.gmra.mxu0 %v4383
  %v4859 = vpop.f32.mrf.mxu0
  %v4860 = vadd.f32 0.0, %v4859
  %v4861 = vpop.f32.mrf.mxu0
  %v4862 = vadd.f32 0.0, %v4861
  %4863 = vmatprep.mubr.f32.mxu0 %v4665
  %4864 = vmatmul.mubr.f32.gmra.mxu0 %v4387
  %v4865 = vpop.f32.mrf.mxu0
  %v4866 = vadd.f32 0.0, %v4865
  %v4867 = vpop.f32.mrf.mxu0
  %v4868 = vadd.f32 0.0, %v4867
  %4869 = vmatprep.mubr.f32.mxu0 %v4667
  %4870 = vmatmul.mubr.f32.gmra.mxu0 %v4391
  %v4871 = vpop.f32.mrf.mxu0
  %v4872 = vadd.f32 0.0, %v4871
  %v4873 = vpop.f32.mrf.mxu0
  %v4874 = vadd.f32 0.0, %v4873
  %4875 = vmatprep.mubr.f32.mxu0 %v4669
  %4876 = vmatmul.mubr.f32.gmra.mxu0 %v4395
  %v4877 = vpop.f32.mrf.mxu0
  %v4878 = vadd.f32 0.0, %v4877
  %v4879 = vpop.f32.mrf.mxu0
  %v4880 = vadd.f32 0.0, %v4879
  %4881 = vmatprep.mubr.f32.mxu0 %v4671
  %4882 = vmatmul.mubr.f32.gmra.mxu0 %v4399
  %v4883 = vpop.f32.mrf.mxu0
  %v4884 = vadd.f32 0.0, %v4883
  %v4885 = vpop.f32.mrf.mxu0
  %v4886 = vadd.f32 0.0, %v4885
  %4887 = vmatprep.mubr.f32.mxu0 %v4673
  %4888 = vmatmul.mubr.f32.gmra.mxu0 %v4403
  %v4889 = vpop.f32.mrf.mxu0
  %v4890 = vadd.f32 0.0, %v4889
  %v4891 = vpop.f32.mrf.mxu0
  %v4892 = vadd.f32 0.0, %v4891
  %4893 = vmatprep.mubr.f32.mxu0 %v4675
  %4894 = vmatmul.mubr.f32.gmra.mxu0 %v4407
  %v4895 = vpop.f32.mrf.mxu0
  %v4896 = vadd.f32 0.0, %v4895
  %v4897 = vpop.f32.mrf.mxu0
  %v4898 = vadd.f32 0.0, %v4897
  %4899 = vmatprep.mubr.f32.mxu0 %v4677
  %4900 = vmatmul.mubr.f32.gmra.mxu0 %v4411
  %v4901 = vpop.f32.mrf.mxu0
  %v4902 = vadd.f32 0.0, %v4901
  %v4903 = vpop.f32.mrf.mxu0
  %v4904 = vadd.f32 0.0, %v4903
  %4905 = vmatprep.mubr.f32.mxu0 %v4679
  %4906 = vmatmul.mubr.f32.gmra.mxu0 %v4415
  %v4907 = vpop.f32.mrf.mxu0
  %v4908 = vadd.f32 0.0, %v4907
  %v4909 = vpop.f32.mrf.mxu0
  %v4910 = vadd.f32 0.0, %v4909
  %4911 = vmatprep.mubr.f32.mxu0 %v4681
  %4912 = vmatmul.mubr.f32.gmra.mxu0 %v4419
  %v4913 = vpop.f32.mrf.mxu0
  %v4914 = vadd.f32 0.0, %v4913
  %v4915 = vpop.f32.mrf.mxu0
  %v4916 = vadd.f32 0.0, %v4915
  %4917 = vmatprep.mubr.f32.mxu0 %v4683
  %4918 = vmatmul.mubr.f32.gmra.mxu0 %v4423
  %v4919 = vpop.f32.mrf.mxu0
  %v4920 = vadd.f32 0.0, %v4919
  %v4921 = vpop.f32.mrf.mxu0
  %v4922 = vadd.f32 0.0, %v4921
  %4923 = vmatprep.mubr.f32.mxu0 %v4685
  %4924 = vmatmul.mubr.f32.gmra.mxu0 %v4427
  %v4925 = vpop.f32.mrf.mxu0
  %v4926 = vadd.f32 0.0, %v4925
  %v4927 = vpop.f32.mrf.mxu0
  %v4928 = vadd.f32 0.0, %v4927
  %4929 = vmatprep.mubr.f32.mxu0 %v4687
  %4930 = vmatmul.mubr.f32.gmra.mxu0 %v4431
  %v4931 = vpop.f32.mrf.mxu0
  %v4932 = vadd.f32 0.0, %v4931
  %v4933 = vpop.f32.mrf.mxu0
  %v4934 = vadd.f32 0.0, %v4933
  %4935 = vmatprep.mubr.f32.mxu0 %v4689
  %4936 = vmatmul.mubr.f32.gmra.mxu0 %v4435
  %v4937 = vpop.f32.mrf.mxu0
  %v4938 = vadd.f32 0.0, %v4937
  %v4939 = vpop.f32.mrf.mxu0
  %v4940 = vadd.f32 0.0, %v4939
  %4941 = vmatprep.mubr.f32.mxu0 %v4691
  %4942 = vmatmul.mubr.f32.gmra.mxu0 %v4434
  %v4943 = vpop.f32.mrf.mxu0
  %v4944 = vadd.f32 0.0, %v4943
  %v4945 = vpop.f32.mrf.mxu0
  %v4946 = vadd.f32 0.0, %v4945
  %4947 = vdwg.mxu0
  %v4948 = vadd.f32 %v4132, %v4764
  %v4949 = vadd.f32 %v4134, %v4766
  %v4950 = vadd.f32 %v4138, %v4770
  %v4951 = vadd.f32 %v4140, %v4772
  %v4952 = vadd.f32 %v4144, %v4776
  %v4953 = vadd.f32 %v4146, %v4778
  %v4954 = vadd.f32 %v4150, %v4782
  %v4955 = vadd.f32 %v4152, %v4784
  %v4956 = vadd.f32 %v4156, %v4788
  %v4957 = vadd.f32 %v4158, %v4790
  %v4958 = vadd.f32 %v4162, %v4794
  %v4959 = vadd.f32 %v4164, %v4796
  %v4960 = vadd.f32 %v4168, %v4800
  %v4961 = vadd.f32 %v4170, %v4802
  %v4962 = vadd.f32 %v4174, %v4806
  %v4963 = vadd.f32 %v4176, %v4808
  %v4964 = vadd.f32 %v4180, %v4812
  %v4965 = vadd.f32 %v4182, %v4814
  %v4966 = vadd.f32 %v4186, %v4818
  %v4967 = vadd.f32 %v4188, %v4820
  %v4968 = vadd.f32 %v4192, %v4824
  %v4969 = vadd.f32 %v4194, %v4826
  %v4970 = vadd.f32 %v4198, %v4830
  %v4971 = vadd.f32 %v4200, %v4832
  %v4972 = vadd.f32 %v4204, %v4836
  %v4973 = vadd.f32 %v4206, %v4838
  %v4974 = vadd.f32 %v4210, %v4842
  %v4975 = vadd.f32 %v4212, %v4844
  %v4976 = vadd.f32 %v4216, %v4848
  %v4977 = vadd.f32 %v4218, %v4850
  %v4978 = vadd.f32 %v4222, %v4854
  %v4979 = vadd.f32 %v4224, %v4856
  %v4980 = vadd.f32 %v4228, %v4860
  %v4981 = vadd.f32 %v4230, %v4862
  %v4982 = vadd.f32 %v4234, %v4866
  %v4983 = vadd.f32 %v4236, %v4868
  %v4984 = vadd.f32 %v4240, %v4872
  %v4985 = vadd.f32 %v4242, %v4874
  %v4986 = vadd.f32 %v4246, %v4878
  %v4987 = vadd.f32 %v4248, %v4880
  %v4988 = vadd.f32 %v4252, %v4884
  %v4989 = vadd.f32 %v4254, %v4886
  %v4990 = vadd.f32 %v4258, %v4890
  %v4991 = vadd.f32 %v4260, %v4892
  %v4992 = vadd.f32 %v4264, %v4896
  %v4993 = vadd.f32 %v4266, %v4898
  %v4994 = vadd.f32 %v4270, %v4902
  %v4995 = vadd.f32 %v4272, %v4904
  %v4996 = vadd.f32 %v4276, %v4908
  %v4997 = vadd.f32 %v4278, %v4910
  %v4998 = vadd.f32 %v4282, %v4914
  %v4999 = vadd.f32 %v4284, %v4916
  %v5000 = vadd.f32 %v4288, %v4920
  %v5001 = vadd.f32 %v4290, %v4922
  %v5002 = vadd.f32 %v4294, %v4926
  %v5003 = vadd.f32 %v4296, %v4928
  %v5004 = vadd.f32 %v4300, %v4932
  %v5005 = vadd.f32 %v4302, %v4934
  %v5006 = vadd.f32 %v4306, %v4938
  %v5007 = vadd.f32 %v4308, %v4940
  %v5008 = vadd.f32 %v4312, %v4944
  %v5009 = vadd.f32 %v4314, %v4946
  %v5012 = vrot.slane %v3237, 6
  %v5013 = vrot.slane %v3239, 6
  %v5014 = vsel %vm3743, %v5012, %v5013
  %v5015 = vrot.slane %v3238, 6
  %v5016 = vrot.slane %v3240, 6
  %v5017 = vsel %vm3743, %v5015, %v5016
  %v5018 = vrot.slane %v3241, 6
  %v5019 = vsel %vm3743, %v5013, %v5018
  %v5020 = vrot.slane %v3242, 6
  %v5021 = vsel %vm3743, %v5016, %v5020
  %v5022 = vrot.slane %v3243, 6
  %v5023 = vsel %vm3743, %v5018, %v5022
  %v5024 = vrot.slane %v3244, 6
  %v5025 = vsel %vm3743, %v5020, %v5024
  %v5026 = vrot.slane %v3245, 6
  %v5027 = vsel %vm3743, %v5022, %v5026
  %v5028 = vrot.slane %v3246, 6
  %v5029 = vsel %vm3743, %v5024, %v5028
  %v5030 = vrot.slane %v3247, 6
  %v5031 = vsel %vm3743, %v5026, %v5030
  %v5032 = vrot.slane %v3248, 6
  %v5033 = vsel %vm3743, %v5028, %v5032
  %v5034 = vrot.slane %v3249, 6
  %v5035 = vsel %vm3743, %v5030, %v5034
  %v5036 = vrot.slane %v3250, 6
  %v5037 = vsel %vm3743, %v5032, %v5036
  %v5038 = vrot.slane %v3251, 6
  %v5039 = vsel %vm3743, %v5034, %v5038
  %v5040 = vrot.slane %v3252, 6
  %v5041 = vsel %vm3743, %v5036, %v5040
  %v5042 = vrot.slane %v3253, 6
  %v5043 = vsel %vm3743, %v5038, %v5042
  %v5044 = vrot.slane %v3254, 6
  %v5045 = vsel %vm3743, %v5040, %v5044
  %v5046 = vrot.slane %v3255, 6
  %v5047 = vsel %vm3743, %v5042, %v5046
  %v5048 = vrot.slane %v3256, 6
  %v5049 = vsel %vm3743, %v5044, %v5048
  %v5050 = vrot.slane %v3257, 6
  %v5051 = vsel %vm3743, %v5046, %v5050
  %v5052 = vrot.slane %v3258, 6
  %v5053 = vsel %vm3743, %v5048, %v5052
  %v5054 = vrot.slane %v3259, 6
  %v5055 = vsel %vm3743, %v5050, %v5054
  %v5056 = vrot.slane %v3260, 6
  %v5057 = vsel %vm3743, %v5052, %v5056
  %v5058 = vrot.slane %v3261, 6
  %v5059 = vsel %vm3743, %v5054, %v5058
  %v5060 = vrot.slane %v3262, 6
  %v5061 = vsel %vm3743, %v5056, %v5060
  %v5062 = vrot.slane %v3263, 6
  %v5063 = vsel %vm3743, %v5058, %v5062
  %v5064 = vrot.slane %v3264, 6
  %v5065 = vsel %vm3743, %v5060, %v5064
  %v5066 = vrot.slane %v3265, 6
  %v5067 = vsel %vm3743, %v5062, %v5066
  %v5068 = vrot.slane %v3266, 6
  %v5069 = vsel %vm3743, %v5064, %v5068
  %v5070 = vrot.slane %v3267, 6
  %v5071 = vsel %vm3743, %v5066, %v5070
  %v5072 = vrot.slane %v3268, 6
  %v5073 = vsel %vm3743, %v5068, %v5072
  %v5074 = vrot.slane %v3269, 6
  %v5075 = vsel %vm3743, %v5070, %v5074
  %v5076 = vrot.slane %v3270, 6
  %v5077 = vsel %vm3743, %v5072, %v5076
  %v5078 = vrot.slane %v3271, 6
  %v5079 = vsel %vm3743, %v5074, %v5078
  %v5080 = vrot.slane %v3272, 6
  %v5081 = vsel %vm3743, %v5076, %v5080
  %v5082 = vrot.slane %v3273, 6
  %v5083 = vsel %vm3743, %v5078, %v5082
  %v5084 = vrot.slane %v3274, 6
  %v5085 = vsel %vm3743, %v5080, %v5084
  %v5086 = vrot.slane %v3275, 6
  %v5087 = vsel %vm3743, %v5082, %v5086
  %v5088 = vrot.slane %v3276, 6
  %v5089 = vsel %vm3743, %v5084, %v5088
  %v5090 = vrot.slane %v3277, 6
  %v5091 = vsel %vm3743, %v5086, %v5090
  %v5092 = vrot.slane %v3278, 6
  %v5093 = vsel %vm3743, %v5088, %v5092
  %v5094 = vrot.slane %v3279, 6
  %v5095 = vsel %vm3743, %v5090, %v5094
  %v5096 = vrot.slane %v3280, 6
  %v5097 = vsel %vm3743, %v5092, %v5096
  %v5098 = vrot.slane %v3281, 6
  %v5099 = vsel %vm3743, %v5094, %v5098
  %v5100 = vrot.slane %v3282, 6
  %v5101 = vsel %vm3743, %v5096, %v5100
  %v5102 = vrot.slane %v3283, 6
  %v5103 = vsel %vm3743, %v5098, %v5102
  %v5104 = vrot.slane %v3284, 6
  %v5105 = vsel %vm3743, %v5100, %v5104
  %v5106 = vrot.slane %v3285, 6
  %v5107 = vsel %vm3743, %v5102, %v5106
  %v5108 = vrot.slane %v3286, 6
  %v5109 = vsel %vm3743, %v5104, %v5108
  %v5110 = vrot.slane %v3287, 6
  %v5111 = vsel %vm3743, %v5106, %v5110
  %v5112 = vrot.slane %v3288, 6
  %v5113 = vsel %vm3743, %v5108, %v5112
  %v5114 = vrot.slane %v3289, 6
  %v5115 = vsel %vm3743, %v5110, %v5114
  %v5116 = vrot.slane %v3290, 6
  %v5117 = vsel %vm3743, %v5112, %v5116
  %v5118 = vrot.slane %v3291, 6
  %v5119 = vsel %vm3743, %v5114, %v5118
  %v5120 = vrot.slane %v3292, 6
  %v5121 = vsel %vm3743, %v5116, %v5120
  %v5122 = vrot.slane %v3293, 6
  %v5123 = vsel %vm3743, %v5118, %v5122
  %v5124 = vrot.slane %v3294, 6
  %v5125 = vsel %vm3743, %v5120, %v5124
  %v5126 = vrot.slane %v3295, 6
  %v5127 = vsel %vm3743, %v5122, %v5126
  %v5128 = vrot.slane %v3296, 6
  %v5129 = vsel %vm3743, %v5124, %v5128
  %v5130 = vrot.slane %v3297, 6
  %v5131 = vsel %vm3743, %v5126, %v5130
  %v5132 = vrot.slane %v3298, 6
  %v5133 = vsel %vm3743, %v5128, %v5132
  %v5134 = vrot.slane %v3299, 6
  %v5135 = vsel %vm3743, %v5130, %v5134
  %v5136 = vrot.slane %v3300, 6
  %v5137 = vsel %vm3743, %v5132, %v5136
  %v5209 = vrot.slane %v230, 6
  %v5210 = vrot.slane %v232, 6
  %v5211 = vsel %vm3743, %v5209, %v5210
  %v5212 = vrot.slane %v231, 6
  %v5213 = vrot.slane %v233, 6
  %v5214 = vsel %vm3743, %v5212, %v5213
  %v5215 = vrot.slane %v234, 6
  %v5216 = vsel %vm3743, %v5210, %v5215
  %v5217 = vrot.slane %v235, 6
  %v5218 = vsel %vm3743, %v5213, %v5217
  %v5219 = vrot.slane %v236, 6
  %v5220 = vsel %vm3743, %v5215, %v5219
  %v5221 = vrot.slane %v237, 6
  %v5222 = vsel %vm3743, %v5217, %v5221
  %v5223 = vrot.slane %v238, 6
  %v5224 = vsel %vm3743, %v5219, %v5223
  %v5225 = vrot.slane %v239, 6
  %v5226 = vsel %vm3743, %v5221, %v5225
  %v5227 = vrot.slane %v240, 6
  %v5228 = vsel %vm3743, %v5223, %v5227
  %v5229 = vrot.slane %v241, 6
  %v5230 = vsel %vm3743, %v5225, %v5229
  %v5231 = vrot.slane %v242, 6
  %v5232 = vsel %vm3743, %v5227, %v5231
  %v5233 = vrot.slane %v243, 6
  %v5234 = vsel %vm3743, %v5229, %v5233
  %v5235 = vrot.slane %v244, 6
  %v5236 = vsel %vm3743, %v5231, %v5235
  %v5237 = vrot.slane %v245, 6
  %v5238 = vsel %vm3743, %v5233, %v5237
  %v5239 = vrot.slane %v246, 6
  %v5240 = vsel %vm3743, %v5235, %v5239
  %v5241 = vrot.slane %v247, 6
  %v5242 = vsel %vm3743, %v5237, %v5241
  %v5243 = vrot.slane %v248, 6
  %v5244 = vsel %vm3743, %v5239, %v5243
  %v5245 = vrot.slane %v249, 6
  %v5246 = vsel %vm3743, %v5241, %v5245
  %v5247 = vrot.slane %v250, 6
  %v5248 = vsel %vm3743, %v5243, %v5247
  %v5249 = vrot.slane %v251, 6
  %v5250 = vsel %vm3743, %v5245, %v5249
  %v5251 = vrot.slane %v252, 6
  %v5252 = vsel %vm3743, %v5247, %v5251
  %v5253 = vrot.slane %v253, 6
  %v5254 = vsel %vm3743, %v5249, %v5253
  %v5255 = vrot.slane %v254, 6
  %v5256 = vsel %vm3743, %v5251, %v5255
  %v5257 = vrot.slane %v255, 6
  %v5258 = vsel %vm3743, %v5253, %v5257
  %v5259 = vrot.slane %v256, 6
  %v5260 = vsel %vm3743, %v5255, %v5259
  %v5261 = vrot.slane %v257, 6
  %v5262 = vsel %vm3743, %v5257, %v5261
  %v5263 = vrot.slane %v258, 6
  %v5264 = vsel %vm3743, %v5259, %v5263
  %v5265 = vrot.slane %v259, 6
  %v5266 = vsel %vm3743, %v5261, %v5265
  %v5267 = vrot.slane %v260, 6
  %v5268 = vsel %vm3743, %v5263, %v5267
  %v5269 = vrot.slane %v261, 6
  %v5270 = vsel %vm3743, %v5265, %v5269
  %v5271 = vrot.slane %v262, 6
  %v5272 = vsel %vm3743, %v5267, %v5271
  %v5273 = vrot.slane %v263, 6
  %v5274 = vsel %vm3743, %v5269, %v5273
  %v5275 = vrot.slane %v264, 6
  %v5276 = vsel %vm3743, %v5271, %v5275
  %v5277 = vrot.slane %v265, 6
  %v5278 = vsel %vm3743, %v5273, %v5277
  %v5279 = vrot.slane %v266, 6
  %v5280 = vsel %vm3743, %v5275, %v5279
  %v5281 = vrot.slane %v267, 6
  %v5282 = vsel %vm3743, %v5277, %v5281
  %v5283 = vrot.slane %v268, 6
  %v5284 = vsel %vm3743, %v5279, %v5283
  %v5285 = vrot.slane %v269, 6
  %v5286 = vsel %vm3743, %v5281, %v5285
  %v5287 = vrot.slane %v270, 6
  %v5288 = vsel %vm3743, %v5283, %v5287
  %v5289 = vrot.slane %v271, 6
  %v5290 = vsel %vm3743, %v5285, %v5289
  %v5331 = vsel %vm3680, %v5017, 0
  %v5333 = vsel %vm3680, %v5021, 0
  %v5335 = vsel %vm3680, %v5025, 0
  %v5337 = vsel %vm3680, %v5029, 0
  %v5339 = vsel %vm3680, %v5033, 0
  %v5341 = vsel %vm3680, %v5037, 0
  %v5343 = vsel %vm3680, %v5041, 0
  %v5345 = vsel %vm3680, %v5045, 0
  %v5347 = vsel %vm3680, %v5049, 0
  %v5349 = vsel %vm3680, %v5053, 0
  %v5351 = vsel %vm3680, %v5057, 0
  %v5353 = vsel %vm3680, %v5061, 0
  %v5355 = vsel %vm3680, %v5065, 0
  %v5357 = vsel %vm3680, %v5069, 0
  %v5359 = vsel %vm3680, %v5073, 0
  %v5361 = vsel %vm3680, %v5077, 0
  %v5363 = vsel %vm3680, %v5081, 0
  %v5365 = vsel %vm3680, %v5085, 0
  %v5367 = vsel %vm3680, %v5089, 0
  %v5369 = vsel %vm3680, %v5093, 0
  %v5371 = vsel %vm3680, %v5097, 0
  %v5373 = vsel %vm3680, %v5101, 0
  %v5375 = vsel %vm3680, %v5105, 0
  %v5377 = vsel %vm3680, %v5109, 0
  %v5379 = vsel %vm3680, %v5113, 0
  %v5381 = vsel %vm3680, %v5117, 0
  %v5383 = vsel %vm3680, %v5121, 0
  %v5385 = vsel %vm3680, %v5125, 0
  %v5387 = vsel %vm3680, %v5129, 0
  %v5389 = vsel %vm3680, %v5133, 0
  %v5391 = vsel %vm3680, %v5137, 0
  %v5393 = vsel %vm3743, %v5287, 0
  %v5395 = vsel %vm3743, %v5289, 0
  %5397 = vmatprep.subr.mxu0 %v5274
  %5398 = vmatpush1.msra.mxu0 %v5272
  %5399 = vmatprep.subr.mxu0 %v5270
  %5400 = vmatpush1.msra.mxu0 %v5268
  %5401 = vmatprep.subr.mxu0 %v5266
  %5402 = vmatpush1.msra.mxu0 %v5264
  %5403 = vmatprep.subr.mxu0 %v5262
  %5404 = vmatpush1.msra.mxu0 %v5260
  %5405 = vmatprep.subr.mxu0 %v5258
  %5406 = vmatpush1.msra.mxu0 %v5256
  %5407 = vmatprep.subr.mxu0 %v5254
  %5408 = vmatpush1.msra.mxu0 %v5252
  %5409 = vmatprep.subr.mxu0 %v5250
  %5410 = vmatpush1.msra.mxu0 %v5248
  %5411 = vmatprep.subr.mxu0 %v5246
  %5412 = vmatpush1.msra.mxu0 %v5244
  %5413 = vmatprep.subr.mxu0 %v5242
  %5414 = vmatpush1.msra.mxu0 %v5240
  %5415 = vmatprep.subr.mxu0 %v5238
  %5416 = vmatpush1.msra.mxu0 %v5236
  %5417 = vmatprep.subr.mxu0 %v5234
  %5418 = vmatpush1.msra.mxu0 %v5232
  %5419 = vmatprep.subr.mxu0 %v5230
  %5420 = vmatpush1.msra.mxu0 %v5228
  %5421 = vmatprep.subr.mxu0 %v5226
  %5422 = vmatpush1.msra.mxu0 %v5224
  %5423 = vmatprep.subr.mxu0 %v5222
  %5424 = vmatpush1.msra.mxu0 %v5220
  %5425 = vmatprep.subr.mxu0 %v5218
  %5426 = vmatpush1.msra.mxu0 %v5216
  %5427 = vmatprep.subr.mxu0 %v5214
  %5428 = vmatpush1.msra.mxu0 %v5211
  %5429 = vmatprep.subr.mxu0 0.0
  %5430 = vmatpush2.msra.mxu0 0.0
  %5431 = vmatprep.subr.mxu0 0.0
  %5432 = vmatpush2.msra.mxu0 0.0
  %5433 = vmatprep.subr.mxu0 0.0
  %5434 = vmatpush2.msra.mxu0 0.0
  %5435 = vmatprep.subr.mxu0 0.0
  %5436 = vmatpush2.msra.mxu0 0.0
  %5437 = vmatprep.subr.mxu0 0.0
  %5438 = vmatpush2.msra.mxu0 0.0
  %5439 = vmatprep.subr.mxu0 0.0
  %5440 = vmatpush2.msra.mxu0 0.0
  %5441 = vmatprep.subr.mxu0 0.0
  %5442 = vmatpush2.msra.mxu0 0.0
  %5443 = vmatprep.subr.mxu0 0.0
  %5444 = vmatpush2.msra.mxu0 0.0
  %5445 = vmatprep.subr.mxu0 0.0
  %5446 = vmatpush2.msra.mxu0 0.0
  %5447 = vmatprep.subr.mxu0 0.0
  %5448 = vmatpush2.msra.mxu0 0.0
  %5449 = vmatprep.subr.mxu0 0.0
  %5450 = vmatpush2.msra.mxu0 0.0
  %5451 = vmatprep.subr.mxu0 %v5395
  %5452 = vmatpush2.msra.mxu0 %v5393
  %5453 = vmatprep.subr.mxu0 %v5290
  %5454 = vmatpush2.msra.mxu0 %v5288
  %5455 = vmatprep.subr.mxu0 %v5286
  %5456 = vmatpush2.msra.mxu0 %v5284
  %5457 = vmatprep.subr.mxu0 %v5282
  %5458 = vmatpush2.msra.mxu0 %v5280
  %5459 = vmatprep.subr.mxu0 %v5278
  %5460 = vmatpush2.msra.mxu0 %v5276
  %5461 = vmatprep.mubr.f32.mxu0 %v5331
  %5462 = vmatmul.mubr.f32.gmra.mxu0 %v5014
  %v5463 = vpop.f32.mrf.mxu0
  %v5464 = vadd.f32 0.0, %v5463
  %v5465 = vpop.f32.mrf.mxu0
  %v5466 = vadd.f32 0.0, %v5465
  %5467 = vmatprep.mubr.f32.mxu0 %v5333
  %5468 = vmatmul.mubr.f32.gmra.mxu0 %v5019
  %v5469 = vpop.f32.mrf.mxu0
  %v5470 = vadd.f32 0.0, %v5469
  %v5471 = vpop.f32.mrf.mxu0
  %v5472 = vadd.f32 0.0, %v5471
  %5473 = vmatprep.mubr.f32.mxu0 %v5335
  %5474 = vmatmul.mubr.f32.gmra.mxu0 %v5023
  %v5475 = vpop.f32.mrf.mxu0
  %v5476 = vadd.f32 0.0, %v5475
  %v5477 = vpop.f32.mrf.mxu0
  %v5478 = vadd.f32 0.0, %v5477
  %5479 = vmatprep.mubr.f32.mxu0 %v5337
  %5480 = vmatmul.mubr.f32.gmra.mxu0 %v5027
  %v5481 = vpop.f32.mrf.mxu0
  %v5482 = vadd.f32 0.0, %v5481
  %v5483 = vpop.f32.mrf.mxu0
  %v5484 = vadd.f32 0.0, %v5483
  %5485 = vmatprep.mubr.f32.mxu0 %v5339
  %5486 = vmatmul.mubr.f32.gmra.mxu0 %v5031
  %v5487 = vpop.f32.mrf.mxu0
  %v5488 = vadd.f32 0.0, %v5487
  %v5489 = vpop.f32.mrf.mxu0
  %v5490 = vadd.f32 0.0, %v5489
  %5491 = vmatprep.mubr.f32.mxu0 %v5341
  %5492 = vmatmul.mubr.f32.gmra.mxu0 %v5035
  %v5493 = vpop.f32.mrf.mxu0
  %v5494 = vadd.f32 0.0, %v5493
  %v5495 = vpop.f32.mrf.mxu0
  %v5496 = vadd.f32 0.0, %v5495
  %5497 = vmatprep.mubr.f32.mxu0 %v5343
  %5498 = vmatmul.mubr.f32.gmra.mxu0 %v5039
  %v5499 = vpop.f32.mrf.mxu0
  %v5500 = vadd.f32 0.0, %v5499
  %v5501 = vpop.f32.mrf.mxu0
  %v5502 = vadd.f32 0.0, %v5501
  %5503 = vmatprep.mubr.f32.mxu0 %v5345
  %5504 = vmatmul.mubr.f32.gmra.mxu0 %v5043
  %v5505 = vpop.f32.mrf.mxu0
  %v5506 = vadd.f32 0.0, %v5505
  %v5507 = vpop.f32.mrf.mxu0
  %v5508 = vadd.f32 0.0, %v5507
  %5509 = vmatprep.mubr.f32.mxu0 %v5347
  %5510 = vmatmul.mubr.f32.gmra.mxu0 %v5047
  %v5511 = vpop.f32.mrf.mxu0
  %v5512 = vadd.f32 0.0, %v5511
  %v5513 = vpop.f32.mrf.mxu0
  %v5514 = vadd.f32 0.0, %v5513
  %5515 = vmatprep.mubr.f32.mxu0 %v5349
  %5516 = vmatmul.mubr.f32.gmra.mxu0 %v5051
  %v5517 = vpop.f32.mrf.mxu0
  %v5518 = vadd.f32 0.0, %v5517
  %v5519 = vpop.f32.mrf.mxu0
  %v5520 = vadd.f32 0.0, %v5519
  %5521 = vmatprep.mubr.f32.mxu0 %v5351
  %5522 = vmatmul.mubr.f32.gmra.mxu0 %v5055
  %v5523 = vpop.f32.mrf.mxu0
  %v5524 = vadd.f32 0.0, %v5523
  %v5525 = vpop.f32.mrf.mxu0
  %v5526 = vadd.f32 0.0, %v5525
  %5527 = vmatprep.mubr.f32.mxu0 %v5353
  %5528 = vmatmul.mubr.f32.gmra.mxu0 %v5059
  %v5529 = vpop.f32.mrf.mxu0
  %v5530 = vadd.f32 0.0, %v5529
  %v5531 = vpop.f32.mrf.mxu0
  %v5532 = vadd.f32 0.0, %v5531
  %5533 = vmatprep.mubr.f32.mxu0 %v5355
  %5534 = vmatmul.mubr.f32.gmra.mxu0 %v5063
  %v5535 = vpop.f32.mrf.mxu0
  %v5536 = vadd.f32 0.0, %v5535
  %v5537 = vpop.f32.mrf.mxu0
  %v5538 = vadd.f32 0.0, %v5537
  %5539 = vmatprep.mubr.f32.mxu0 %v5357
  %5540 = vmatmul.mubr.f32.gmra.mxu0 %v5067
  %v5541 = vpop.f32.mrf.mxu0
  %v5542 = vadd.f32 0.0, %v5541
  %v5543 = vpop.f32.mrf.mxu0
  %v5544 = vadd.f32 0.0, %v5543
  %5545 = vmatprep.mubr.f32.mxu0 %v5359
  %5546 = vmatmul.mubr.f32.gmra.mxu0 %v5071
  %v5547 = vpop.f32.mrf.mxu0
  %v5548 = vadd.f32 0.0, %v5547
  %v5549 = vpop.f32.mrf.mxu0
  %v5550 = vadd.f32 0.0, %v5549
  %5551 = vmatprep.mubr.f32.mxu0 %v5361
  %5552 = vmatmul.mubr.f32.gmra.mxu0 %v5075
  %v5553 = vpop.f32.mrf.mxu0
  %v5554 = vadd.f32 0.0, %v5553
  %v5555 = vpop.f32.mrf.mxu0
  %v5556 = vadd.f32 0.0, %v5555
  %5557 = vmatprep.mubr.f32.mxu0 %v5363
  %5558 = vmatmul.mubr.f32.gmra.mxu0 %v5079
  %v5559 = vpop.f32.mrf.mxu0
  %v5560 = vadd.f32 0.0, %v5559
  %v5561 = vpop.f32.mrf.mxu0
  %v5562 = vadd.f32 0.0, %v5561
  %5563 = vmatprep.mubr.f32.mxu0 %v5365
  %5564 = vmatmul.mubr.f32.gmra.mxu0 %v5083
  %v5565 = vpop.f32.mrf.mxu0
  %v5566 = vadd.f32 0.0, %v5565
  %v5567 = vpop.f32.mrf.mxu0
  %v5568 = vadd.f32 0.0, %v5567
  %5569 = vmatprep.mubr.f32.mxu0 %v5367
  %5570 = vmatmul.mubr.f32.gmra.mxu0 %v5087
  %v5571 = vpop.f32.mrf.mxu0
  %v5572 = vadd.f32 0.0, %v5571
  %v5573 = vpop.f32.mrf.mxu0
  %v5574 = vadd.f32 0.0, %v5573
  %5575 = vmatprep.mubr.f32.mxu0 %v5369
  %5576 = vmatmul.mubr.f32.gmra.mxu0 %v5091
  %v5577 = vpop.f32.mrf.mxu0
  %v5578 = vadd.f32 0.0, %v5577
  %v5579 = vpop.f32.mrf.mxu0
  %v5580 = vadd.f32 0.0, %v5579
  %5581 = vmatprep.mubr.f32.mxu0 %v5371
  %5582 = vmatmul.mubr.f32.gmra.mxu0 %v5095
  %v5583 = vpop.f32.mrf.mxu0
  %v5584 = vadd.f32 0.0, %v5583
  %v5585 = vpop.f32.mrf.mxu0
  %v5586 = vadd.f32 0.0, %v5585
  %5587 = vmatprep.mubr.f32.mxu0 %v5373
  %5588 = vmatmul.mubr.f32.gmra.mxu0 %v5099
  %v5589 = vpop.f32.mrf.mxu0
  %v5590 = vadd.f32 0.0, %v5589
  %v5591 = vpop.f32.mrf.mxu0
  %v5592 = vadd.f32 0.0, %v5591
  %5593 = vmatprep.mubr.f32.mxu0 %v5375
  %5594 = vmatmul.mubr.f32.gmra.mxu0 %v5103
  %v5595 = vpop.f32.mrf.mxu0
  %v5596 = vadd.f32 0.0, %v5595
  %v5597 = vpop.f32.mrf.mxu0
  %v5598 = vadd.f32 0.0, %v5597
  %5599 = vmatprep.mubr.f32.mxu0 %v5377
  %5600 = vmatmul.mubr.f32.gmra.mxu0 %v5107
  %v5601 = vpop.f32.mrf.mxu0
  %v5602 = vadd.f32 0.0, %v5601
  %v5603 = vpop.f32.mrf.mxu0
  %v5604 = vadd.f32 0.0, %v5603
  %5605 = vmatprep.mubr.f32.mxu0 %v5379
  %5606 = vmatmul.mubr.f32.gmra.mxu0 %v5111
  %v5607 = vpop.f32.mrf.mxu0
  %v5608 = vadd.f32 0.0, %v5607
  %v5609 = vpop.f32.mrf.mxu0
  %v5610 = vadd.f32 0.0, %v5609
  %5611 = vmatprep.mubr.f32.mxu0 %v5381
  %5612 = vmatmul.mubr.f32.gmra.mxu0 %v5115
  %v5613 = vpop.f32.mrf.mxu0
  %v5614 = vadd.f32 0.0, %v5613
  %v5615 = vpop.f32.mrf.mxu0
  %v5616 = vadd.f32 0.0, %v5615
  %5617 = vmatprep.mubr.f32.mxu0 %v5383
  %5618 = vmatmul.mubr.f32.gmra.mxu0 %v5119
  %v5619 = vpop.f32.mrf.mxu0
  %v5620 = vadd.f32 0.0, %v5619
  %v5621 = vpop.f32.mrf.mxu0
  %v5622 = vadd.f32 0.0, %v5621
  %5623 = vmatprep.mubr.f32.mxu0 %v5385
  %5624 = vmatmul.mubr.f32.gmra.mxu0 %v5123
  %v5625 = vpop.f32.mrf.mxu0
  %v5626 = vadd.f32 0.0, %v5625
  %v5627 = vpop.f32.mrf.mxu0
  %v5628 = vadd.f32 0.0, %v5627
  %5629 = vmatprep.mubr.f32.mxu0 %v5387
  %5630 = vmatmul.mubr.f32.gmra.mxu0 %v5127
  %v5631 = vpop.f32.mrf.mxu0
  %v5632 = vadd.f32 0.0, %v5631
  %v5633 = vpop.f32.mrf.mxu0
  %v5634 = vadd.f32 0.0, %v5633
  %5635 = vmatprep.mubr.f32.mxu0 %v5389
  %5636 = vmatmul.mubr.f32.gmra.mxu0 %v5131
  %v5637 = vpop.f32.mrf.mxu0
  %v5638 = vadd.f32 0.0, %v5637
  %v5639 = vpop.f32.mrf.mxu0
  %v5640 = vadd.f32 0.0, %v5639
  %5641 = vmatprep.mubr.f32.mxu0 %v5391
  %5642 = vmatmul.mubr.f32.gmra.mxu0 %v5135
  %v5643 = vpop.f32.mrf.mxu0
  %v5644 = vadd.f32 0.0, %v5643
  %v5645 = vpop.f32.mrf.mxu0
  %v5646 = vadd.f32 0.0, %v5645
  %5647 = vdwg.mxu0
  %v5648 = vadd.f32 %v4948, %v5464
  %v5649 = vadd.f32 %v4949, %v5466
  %v5650 = vadd.f32 %v4950, %v5470
  %v5651 = vadd.f32 %v4951, %v5472
  %v5652 = vadd.f32 %v4952, %v5476
  %v5653 = vadd.f32 %v4953, %v5478
  %v5654 = vadd.f32 %v4954, %v5482
  %v5655 = vadd.f32 %v4955, %v5484
  %v5656 = vadd.f32 %v4956, %v5488
  %v5657 = vadd.f32 %v4957, %v5490
  %v5658 = vadd.f32 %v4958, %v5494
  %v5659 = vadd.f32 %v4959, %v5496
  %v5660 = vadd.f32 %v4960, %v5500
  %v5661 = vadd.f32 %v4961, %v5502
  %v5662 = vadd.f32 %v4962, %v5506
  %v5663 = vadd.f32 %v4963, %v5508
  %v5664 = vadd.f32 %v4964, %v5512
  %v5665 = vadd.f32 %v4965, %v5514
  %v5666 = vadd.f32 %v4966, %v5518
  %v5667 = vadd.f32 %v4967, %v5520
  %v5668 = vadd.f32 %v4968, %v5524
  %v5669 = vadd.f32 %v4969, %v5526
  %v5670 = vadd.f32 %v4970, %v5530
  %v5671 = vadd.f32 %v4971, %v5532
  %v5672 = vadd.f32 %v4972, %v5536
  %v5673 = vadd.f32 %v4973, %v5538
  %v5674 = vadd.f32 %v4974, %v5542
  %v5675 = vadd.f32 %v4975, %v5544
  %v5676 = vadd.f32 %v4976, %v5548
  %v5677 = vadd.f32 %v4977, %v5550
  %v5678 = vadd.f32 %v4978, %v5554
  %v5679 = vadd.f32 %v4979, %v5556
  %v5680 = vadd.f32 %v4980, %v5560
  %v5681 = vadd.f32 %v4981, %v5562
  %v5682 = vadd.f32 %v4982, %v5566
  %v5683 = vadd.f32 %v4983, %v5568
  %v5684 = vadd.f32 %v4984, %v5572
  %v5685 = vadd.f32 %v4985, %v5574
  %v5686 = vadd.f32 %v4986, %v5578
  %v5687 = vadd.f32 %v4987, %v5580
  %v5688 = vadd.f32 %v4988, %v5584
  %v5689 = vadd.f32 %v4989, %v5586
  %v5690 = vadd.f32 %v4990, %v5590
  %v5691 = vadd.f32 %v4991, %v5592
  %v5692 = vadd.f32 %v4992, %v5596
  %v5693 = vadd.f32 %v4993, %v5598
  %v5694 = vadd.f32 %v4994, %v5602
  %v5695 = vadd.f32 %v4995, %v5604
  %v5696 = vadd.f32 %v4996, %v5608
  %v5697 = vadd.f32 %v4997, %v5610
  %v5698 = vadd.f32 %v4998, %v5614
  %v5699 = vadd.f32 %v4999, %v5616
  %v5700 = vadd.f32 %v5000, %v5620
  %v5701 = vadd.f32 %v5001, %v5622
  %v5702 = vadd.f32 %v5002, %v5626
  %v5703 = vadd.f32 %v5003, %v5628
  %v5704 = vadd.f32 %v5004, %v5632
  %v5705 = vadd.f32 %v5005, %v5634
  %v5706 = vadd.f32 %v5006, %v5638
  %v5707 = vadd.f32 %v5007, %v5640
  %v5708 = vadd.f32 %v5008, %v5644
  %v5709 = vadd.f32 %v5009, %v5646
  %v5710 = vsel %vm3680, %v3300, 0
  %v5713 = vsel %vm3743, %v312, 0
  %v5716 = vsel %vm3743, %v313, 0
  %5718 = vmatprep.subr.mxu0 %v303
  %5719 = vmatpush1.msra.mxu0 %v302
  %5720 = vmatprep.subr.mxu0 %v301
  %5721 = vmatpush1.msra.mxu0 %v300
  %5722 = vmatprep.subr.mxu0 %v299
  %5723 = vmatpush1.msra.mxu0 %v298
  %5724 = vmatprep.subr.mxu0 %v297
  %5725 = vmatpush1.msra.mxu0 %v296
  %5726 = vmatprep.subr.mxu0 %v295
  %5727 = vmatpush1.msra.mxu0 %v294
  %5728 = vmatprep.subr.mxu0 %v293
  %5729 = vmatpush1.msra.mxu0 %v292
  %5730 = vmatprep.subr.mxu0 %v291
  %5731 = vmatpush1.msra.mxu0 %v290
  %5732 = vmatprep.subr.mxu0 %v289
  %5733 = vmatpush1.msra.mxu0 %v288
  %5734 = vmatprep.subr.mxu0 %v287
  %5735 = vmatpush1.msra.mxu0 %v286
  %5736 = vmatprep.subr.mxu0 %v285
  %5737 = vmatpush1.msra.mxu0 %v284
  %5738 = vmatprep.subr.mxu0 %v283
  %5739 = vmatpush1.msra.mxu0 %v282
  %5740 = vmatprep.subr.mxu0 %v281
  %5741 = vmatpush1.msra.mxu0 %v280
  %5742 = vmatprep.subr.mxu0 %v279
  %5743 = vmatpush1.msra.mxu0 %v278
  %5744 = vmatprep.subr.mxu0 %v277
  %5745 = vmatpush1.msra.mxu0 %v276
  %5746 = vmatprep.subr.mxu0 %v275
  %5747 = vmatpush1.msra.mxu0 %v274
  %5748 = vmatprep.subr.mxu0 %v273
  %5749 = vmatpush1.msra.mxu0 %v272
  %5750 = vmatprep.subr.mxu0 0.0
  %5751 = vmatpush2.msra.mxu0 0.0
  %5752 = vmatprep.subr.mxu0 0.0
  %5753 = vmatpush2.msra.mxu0 0.0
  %5754 = vmatprep.subr.mxu0 0.0
  %5755 = vmatpush2.msra.mxu0 0.0
  %5756 = vmatprep.subr.mxu0 0.0
  %5757 = vmatpush2.msra.mxu0 0.0
  %5758 = vmatprep.subr.mxu0 0.0
  %5759 = vmatpush2.msra.mxu0 0.0
  %5760 = vmatprep.subr.mxu0 0.0
  %5761 = vmatpush2.msra.mxu0 0.0
  %5762 = vmatprep.subr.mxu0 0.0
  %5763 = vmatpush2.msra.mxu0 0.0
  %5764 = vmatprep.subr.mxu0 0.0
  %5765 = vmatpush2.msra.mxu0 0.0
  %5766 = vmatprep.subr.mxu0 0.0
  %5767 = vmatpush2.msra.mxu0 0.0
  %5768 = vmatprep.subr.mxu0 0.0
  %5769 = vmatpush2.msra.mxu0 0.0
  %5770 = vmatprep.subr.mxu0 0.0
  %5771 = vmatpush2.msra.mxu0 0.0
  %5772 = vmatprep.subr.mxu0 %v5716
  %5773 = vmatpush2.msra.mxu0 %v5713
  %5774 = vmatprep.subr.mxu0 %v311
  %5775 = vmatpush2.msra.mxu0 %v310
  %5776 = vmatprep.subr.mxu0 %v309
  %5777 = vmatpush2.msra.mxu0 %v308
  %5778 = vmatprep.subr.mxu0 %v307
  %5779 = vmatpush2.msra.mxu0 %v306
  %5780 = vmatprep.subr.mxu0 %v305
  %5781 = vmatpush2.msra.mxu0 %v304
  %5782 = vmatprep.mubr.f32.mxu0 %v4001
  %5783 = vmatmul.mubr.f32.gmra.mxu0 %v3239
  %v5784 = vpop.f32.mrf.mxu0
  %v5785 = vadd.f32 0.0, %v5784
  %v5786 = vpop.f32.mrf.mxu0
  %v5787 = vadd.f32 0.0, %v5786
  %5788 = vmatprep.mubr.f32.mxu0 %v4003
  %5789 = vmatmul.mubr.f32.gmra.mxu0 %v3241
  %v5790 = vpop.f32.mrf.mxu0
  %v5791 = vadd.f32 0.0, %v5790
  %v5792 = vpop.f32.mrf.mxu0
  %v5793 = vadd.f32 0.0, %v5792
  %5794 = vmatprep.mubr.f32.mxu0 %v4005
  %5795 = vmatmul.mubr.f32.gmra.mxu0 %v3243
  %v5796 = vpop.f32.mrf.mxu0
  %v5797 = vadd.f32 0.0, %v5796
  %v5798 = vpop.f32.mrf.mxu0
  %v5799 = vadd.f32 0.0, %v5798
  %5800 = vmatprep.mubr.f32.mxu0 %v4007
  %5801 = vmatmul.mubr.f32.gmra.mxu0 %v3245
  %v5802 = vpop.f32.mrf.mxu0
  %v5803 = vadd.f32 0.0, %v5802
  %v5804 = vpop.f32.mrf.mxu0
  %v5805 = vadd.f32 0.0, %v5804
  %5806 = vmatprep.mubr.f32.mxu0 %v4009
  %5807 = vmatmul.mubr.f32.gmra.mxu0 %v3247
  %v5808 = vpop.f32.mrf.mxu0
  %v5809 = vadd.f32 0.0, %v5808
  %v5810 = vpop.f32.mrf.mxu0
  %v5811 = vadd.f32 0.0, %v5810
  %5812 = vmatprep.mubr.f32.mxu0 %v4011
  %5813 = vmatmul.mubr.f32.gmra.mxu0 %v3249
  %v5814 = vpop.f32.mrf.mxu0
  %v5815 = vadd.f32 0.0, %v5814
  %v5816 = vpop.f32.mrf.mxu0
  %v5817 = vadd.f32 0.0, %v5816
  %5818 = vmatprep.mubr.f32.mxu0 %v4013
  %5819 = vmatmul.mubr.f32.gmra.mxu0 %v3251
  %v5820 = vpop.f32.mrf.mxu0
  %v5821 = vadd.f32 0.0, %v5820
  %v5822 = vpop.f32.mrf.mxu0
  %v5823 = vadd.f32 0.0, %v5822
  %5824 = vmatprep.mubr.f32.mxu0 %v4015
  %5825 = vmatmul.mubr.f32.gmra.mxu0 %v3253
  %v5826 = vpop.f32.mrf.mxu0
  %v5827 = vadd.f32 0.0, %v5826
  %v5828 = vpop.f32.mrf.mxu0
  %v5829 = vadd.f32 0.0, %v5828
  %5830 = vmatprep.mubr.f32.mxu0 %v4017
  %5831 = vmatmul.mubr.f32.gmra.mxu0 %v3255
  %v5832 = vpop.f32.mrf.mxu0
  %v5833 = vadd.f32 0.0, %v5832
  %v5834 = vpop.f32.mrf.mxu0
  %v5835 = vadd.f32 0.0, %v5834
  %5836 = vmatprep.mubr.f32.mxu0 %v4019
  %5837 = vmatmul.mubr.f32.gmra.mxu0 %v3257
  %v5838 = vpop.f32.mrf.mxu0
  %v5839 = vadd.f32 0.0, %v5838
  %v5840 = vpop.f32.mrf.mxu0
  %v5841 = vadd.f32 0.0, %v5840
  %5842 = vmatprep.mubr.f32.mxu0 %v4021
  %5843 = vmatmul.mubr.f32.gmra.mxu0 %v3259
  %v5844 = vpop.f32.mrf.mxu0
  %v5845 = vadd.f32 0.0, %v5844
  %v5846 = vpop.f32.mrf.mxu0
  %v5847 = vadd.f32 0.0, %v5846
  %5848 = vmatprep.mubr.f32.mxu0 %v4023
  %5849 = vmatmul.mubr.f32.gmra.mxu0 %v3261
  %v5850 = vpop.f32.mrf.mxu0
  %v5851 = vadd.f32 0.0, %v5850
  %v5852 = vpop.f32.mrf.mxu0
  %v5853 = vadd.f32 0.0, %v5852
  %5854 = vmatprep.mubr.f32.mxu0 %v4025
  %5855 = vmatmul.mubr.f32.gmra.mxu0 %v3263
  %v5856 = vpop.f32.mrf.mxu0
  %v5857 = vadd.f32 0.0, %v5856
  %v5858 = vpop.f32.mrf.mxu0
  %v5859 = vadd.f32 0.0, %v5858
  %5860 = vmatprep.mubr.f32.mxu0 %v4027
  %5861 = vmatmul.mubr.f32.gmra.mxu0 %v3265
  %v5862 = vpop.f32.mrf.mxu0
  %v5863 = vadd.f32 0.0, %v5862
  %v5864 = vpop.f32.mrf.mxu0
  %v5865 = vadd.f32 0.0, %v5864
  %5866 = vmatprep.mubr.f32.mxu0 %v4029
  %5867 = vmatmul.mubr.f32.gmra.mxu0 %v3267
  %v5868 = vpop.f32.mrf.mxu0
  %v5869 = vadd.f32 0.0, %v5868
  %v5870 = vpop.f32.mrf.mxu0
  %v5871 = vadd.f32 0.0, %v5870
  %5872 = vmatprep.mubr.f32.mxu0 %v4031
  %5873 = vmatmul.mubr.f32.gmra.mxu0 %v3269
  %v5874 = vpop.f32.mrf.mxu0
  %v5875 = vadd.f32 0.0, %v5874
  %v5876 = vpop.f32.mrf.mxu0
  %v5877 = vadd.f32 0.0, %v5876
  %5878 = vmatprep.mubr.f32.mxu0 %v4033
  %5879 = vmatmul.mubr.f32.gmra.mxu0 %v3271
  %v5880 = vpop.f32.mrf.mxu0
  %v5881 = vadd.f32 0.0, %v5880
  %v5882 = vpop.f32.mrf.mxu0
  %v5883 = vadd.f32 0.0, %v5882
  %5884 = vmatprep.mubr.f32.mxu0 %v4035
  %5885 = vmatmul.mubr.f32.gmra.mxu0 %v3273
  %v5886 = vpop.f32.mrf.mxu0
  %v5887 = vadd.f32 0.0, %v5886
  %v5888 = vpop.f32.mrf.mxu0
  %v5889 = vadd.f32 0.0, %v5888
  %5890 = vmatprep.mubr.f32.mxu0 %v4037
  %5891 = vmatmul.mubr.f32.gmra.mxu0 %v3275
  %v5892 = vpop.f32.mrf.mxu0
  %v5893 = vadd.f32 0.0, %v5892
  %v5894 = vpop.f32.mrf.mxu0
  %v5895 = vadd.f32 0.0, %v5894
  %5896 = vmatprep.mubr.f32.mxu0 %v4039
  %5897 = vmatmul.mubr.f32.gmra.mxu0 %v3277
  %v5898 = vpop.f32.mrf.mxu0
  %v5899 = vadd.f32 0.0, %v5898
  %v5900 = vpop.f32.mrf.mxu0
  %v5901 = vadd.f32 0.0, %v5900
  %5902 = vmatprep.mubr.f32.mxu0 %v4041
  %5903 = vmatmul.mubr.f32.gmra.mxu0 %v3279
  %v5904 = vpop.f32.mrf.mxu0
  %v5905 = vadd.f32 0.0, %v5904
  %v5906 = vpop.f32.mrf.mxu0
  %v5907 = vadd.f32 0.0, %v5906
  %5908 = vmatprep.mubr.f32.mxu0 %v4043
  %5909 = vmatmul.mubr.f32.gmra.mxu0 %v3281
  %v5910 = vpop.f32.mrf.mxu0
  %v5911 = vadd.f32 0.0, %v5910
  %v5912 = vpop.f32.mrf.mxu0
  %v5913 = vadd.f32 0.0, %v5912
  %5914 = vmatprep.mubr.f32.mxu0 %v4045
  %5915 = vmatmul.mubr.f32.gmra.mxu0 %v3283
  %v5916 = vpop.f32.mrf.mxu0
  %v5917 = vadd.f32 0.0, %v5916
  %v5918 = vpop.f32.mrf.mxu0
  %v5919 = vadd.f32 0.0, %v5918
  %5920 = vmatprep.mubr.f32.mxu0 %v4047
  %5921 = vmatmul.mubr.f32.gmra.mxu0 %v3285
  %v5922 = vpop.f32.mrf.mxu0
  %v5923 = vadd.f32 0.0, %v5922
  %v5924 = vpop.f32.mrf.mxu0
  %v5925 = vadd.f32 0.0, %v5924
  %5926 = vmatprep.mubr.f32.mxu0 %v4049
  %5927 = vmatmul.mubr.f32.gmra.mxu0 %v3287
  %v5928 = vpop.f32.mrf.mxu0
  %v5929 = vadd.f32 0.0, %v5928
  %v5930 = vpop.f32.mrf.mxu0
  %v5931 = vadd.f32 0.0, %v5930
  %5932 = vmatprep.mubr.f32.mxu0 %v4051
  %5933 = vmatmul.mubr.f32.gmra.mxu0 %v3289
  %v5934 = vpop.f32.mrf.mxu0
  %v5935 = vadd.f32 0.0, %v5934
  %v5936 = vpop.f32.mrf.mxu0
  %v5937 = vadd.f32 0.0, %v5936
  %5938 = vmatprep.mubr.f32.mxu0 %v4053
  %5939 = vmatmul.mubr.f32.gmra.mxu0 %v3291
  %v5940 = vpop.f32.mrf.mxu0
  %v5941 = vadd.f32 0.0, %v5940
  %v5942 = vpop.f32.mrf.mxu0
  %v5943 = vadd.f32 0.0, %v5942
  %5944 = vmatprep.mubr.f32.mxu0 %v4055
  %5945 = vmatmul.mubr.f32.gmra.mxu0 %v3293
  %v5946 = vpop.f32.mrf.mxu0
  %v5947 = vadd.f32 0.0, %v5946
  %v5948 = vpop.f32.mrf.mxu0
  %v5949 = vadd.f32 0.0, %v5948
  %5950 = vmatprep.mubr.f32.mxu0 %v4057
  %5951 = vmatmul.mubr.f32.gmra.mxu0 %v3295
  %v5952 = vpop.f32.mrf.mxu0
  %v5953 = vadd.f32 0.0, %v5952
  %v5954 = vpop.f32.mrf.mxu0
  %v5955 = vadd.f32 0.0, %v5954
  %5956 = vmatprep.mubr.f32.mxu0 %v4059
  %5957 = vmatmul.mubr.f32.gmra.mxu0 %v3297
  %v5958 = vpop.f32.mrf.mxu0
  %v5959 = vadd.f32 0.0, %v5958
  %v5960 = vpop.f32.mrf.mxu0
  %v5961 = vadd.f32 0.0, %v5960
  %5962 = vmatprep.mubr.f32.mxu0 %v5710
  %5963 = vmatmul.mubr.f32.gmra.mxu0 %v3299
  %v5964 = vpop.f32.mrf.mxu0
  %v5965 = vadd.f32 0.0, %v5964
  %v5966 = vpop.f32.mrf.mxu0
  %v5967 = vadd.f32 0.0, %v5966
  %5968 = vdwg.mxu0
  %v5969 = vadd.f32 %v5648, %v5785
  %v5970 = vadd.f32 %v5649, %v5787
  %v5971 = vadd.f32 %v5650, %v5791
  %v5972 = vadd.f32 %v5651, %v5793
  %v5973 = vadd.f32 %v5652, %v5797
  %v5974 = vadd.f32 %v5653, %v5799
  %v5975 = vadd.f32 %v5654, %v5803
  %v5976 = vadd.f32 %v5655, %v5805
  %v5977 = vadd.f32 %v5656, %v5809
  %v5978 = vadd.f32 %v5657, %v5811
  %v5979 = vadd.f32 %v5658, %v5815
  %v5980 = vadd.f32 %v5659, %v5817
  %v5981 = vadd.f32 %v5660, %v5821
  %v5982 = vadd.f32 %v5661, %v5823
  %v5983 = vadd.f32 %v5662, %v5827
  %v5984 = vadd.f32 %v5663, %v5829
  %v5985 = vadd.f32 %v5664, %v5833
  %v5986 = vadd.f32 %v5665, %v5835
  %v5987 = vadd.f32 %v5666, %v5839
  %v5988 = vadd.f32 %v5667, %v5841
  %v5989 = vadd.f32 %v5668, %v5845
  %v5990 = vadd.f32 %v5669, %v5847
  %v5991 = vadd.f32 %v5670, %v5851
  %v5992 = vadd.f32 %v5671, %v5853
  %v5993 = vadd.f32 %v5672, %v5857
  %v5994 = vadd.f32 %v5673, %v5859
  %v5995 = vadd.f32 %v5674, %v5863
  %v5996 = vadd.f32 %v5675, %v5865
  %v5997 = vadd.f32 %v5676, %v5869
  %v5998 = vadd.f32 %v5677, %v5871
  %v5999 = vadd.f32 %v5678, %v5875
  %v6000 = vadd.f32 %v5679, %v5877
  %v6001 = vadd.f32 %v5680, %v5881
  %v6002 = vadd.f32 %v5681, %v5883
  %v6003 = vadd.f32 %v5682, %v5887
  %v6004 = vadd.f32 %v5683, %v5889
  %v6005 = vadd.f32 %v5684, %v5893
  %v6006 = vadd.f32 %v5685, %v5895
  %v6007 = vadd.f32 %v5686, %v5899
  %v6008 = vadd.f32 %v5687, %v5901
  %v6009 = vadd.f32 %v5688, %v5905
  %v6010 = vadd.f32 %v5689, %v5907
  %v6011 = vadd.f32 %v5690, %v5911
  %v6012 = vadd.f32 %v5691, %v5913
  %v6013 = vadd.f32 %v5692, %v5917
  %v6014 = vadd.f32 %v5693, %v5919
  %v6015 = vadd.f32 %v5694, %v5923
  %v6016 = vadd.f32 %v5695, %v5925
  %v6017 = vadd.f32 %v5696, %v5929
  %v6018 = vadd.f32 %v5697, %v5931
  %v6019 = vadd.f32 %v5698, %v5935
  %v6020 = vadd.f32 %v5699, %v5937
  %v6021 = vadd.f32 %v5700, %v5941
  %v6022 = vadd.f32 %v5701, %v5943
  %v6023 = vadd.f32 %v5702, %v5947
  %v6024 = vadd.f32 %v5703, %v5949
  %v6025 = vadd.f32 %v5704, %v5953
  %v6026 = vadd.f32 %v5705, %v5955
  %v6027 = vadd.f32 %v5706, %v5959
  %v6028 = vadd.f32 %v5707, %v5961
  %v6029 = vadd.f32 %v5708, %v5965
  %v6030 = vadd.f32 %v5709, %v5967
  %v6031 = vld [vmem:[%s4] sm:$0x3]
  %v6033 = vlaneseq
  %v6034 = vshrl.u32 %v6033, 7
  %v6035 = vsub.s32 0, %v6034
  %v6036 = vrot.slane %v6031, %v6035
  %v6037 = vlaneseq
  %v6038 = vshrl.u32 %v6037, 7
  %v6039 = vsub.s32 1, %v6038
  %v6040 = vrot.slane %v6031, %v6039
  %v6043 = vadd.f32 %v5969, %v6036
  %v6044 = vadd.f32 %v5970, %v6040
  %v6045 = vadd.f32 %v5971, %v6036
  %v6046 = vadd.f32 %v5972, %v6040
  %v6047 = vadd.f32 %v5973, %v6036
  %v6048 = vadd.f32 %v5974, %v6040
  %v6049 = vadd.f32 %v5975, %v6036
  %v6050 = vadd.f32 %v5976, %v6040
  %v6051 = vadd.f32 %v5977, %v6036
  %v6052 = vadd.f32 %v5978, %v6040
  %v6053 = vadd.f32 %v5979, %v6036
  %v6054 = vadd.f32 %v5980, %v6040
  %v6055 = vadd.f32 %v5981, %v6036
  %v6056 = vadd.f32 %v5982, %v6040
  %v6057 = vadd.f32 %v5983, %v6036
  %v6058 = vadd.f32 %v5984, %v6040
  %v6059 = vadd.f32 %v5985, %v6036
  %v6060 = vadd.f32 %v5986, %v6040
  %v6061 = vadd.f32 %v5987, %v6036
  %v6062 = vadd.f32 %v5988, %v6040
  %v6063 = vadd.f32 %v5989, %v6036
  %v6064 = vadd.f32 %v5990, %v6040
  %v6065 = vadd.f32 %v5991, %v6036
  %v6066 = vadd.f32 %v5992, %v6040
  %v6067 = vadd.f32 %v5993, %v6036
  %v6068 = vadd.f32 %v5994, %v6040
  %v6069 = vadd.f32 %v5995, %v6036
  %v6070 = vadd.f32 %v5996, %v6040
  %v6071 = vadd.f32 %v5997, %v6036
  %v6072 = vadd.f32 %v5998, %v6040
  %v6073 = vadd.f32 %v5999, %v6036
  %v6074 = vadd.f32 %v6000, %v6040
  %v6075 = vadd.f32 %v6001, %v6036
  %v6076 = vadd.f32 %v6002, %v6040
  %v6077 = vadd.f32 %v6003, %v6036
  %v6078 = vadd.f32 %v6004, %v6040
  %v6079 = vadd.f32 %v6005, %v6036
  %v6080 = vadd.f32 %v6006, %v6040
  %v6081 = vadd.f32 %v6007, %v6036
  %v6082 = vadd.f32 %v6008, %v6040
  %v6083 = vadd.f32 %v6009, %v6036
  %v6084 = vadd.f32 %v6010, %v6040
  %v6085 = vadd.f32 %v6011, %v6036
  %v6086 = vadd.f32 %v6012, %v6040
  %v6087 = vadd.f32 %v6013, %v6036
  %v6088 = vadd.f32 %v6014, %v6040
  %v6089 = vadd.f32 %v6015, %v6036
  %v6090 = vadd.f32 %v6016, %v6040
  %v6091 = vadd.f32 %v6017, %v6036
  %v6092 = vadd.f32 %v6018, %v6040
  %v6093 = vadd.f32 %v6019, %v6036
  %v6094 = vadd.f32 %v6020, %v6040
  %v6095 = vadd.f32 %v6021, %v6036
  %v6096 = vadd.f32 %v6022, %v6040
  %v6097 = vadd.f32 %v6023, %v6036
  %v6098 = vadd.f32 %v6024, %v6040
  %v6099 = vadd.f32 %v6025, %v6036
  %v6100 = vadd.f32 %v6026, %v6040
  %v6101 = vadd.f32 %v6027, %v6036
  %v6102 = vadd.f32 %v6028, %v6040
  %v6103 = vadd.f32 %v6029, %v6036
  %v6104 = vadd.f32 %v6030, %v6040
  %v6105 = vmax.f32 %v6043, 0.0
  %v6106 = vmax.f32 %v6044, 0.0
  %v6107 = vmax.f32 %v6045, 0.0
  %v6108 = vmax.f32 %v6046, 0.0
  %v6109 = vmax.f32 %v6047, 0.0
  %v6110 = vmax.f32 %v6048, 0.0
  %v6111 = vmax.f32 %v6049, 0.0
  %v6112 = vmax.f32 %v6050, 0.0
  %v6113 = vmax.f32 %v6051, 0.0
  %v6114 = vmax.f32 %v6052, 0.0
  %v6115 = vmax.f32 %v6053, 0.0
  %v6116 = vmax.f32 %v6054, 0.0
  %v6117 = vmax.f32 %v6055, 0.0
  %v6118 = vmax.f32 %v6056, 0.0
  %v6119 = vmax.f32 %v6057, 0.0
  %v6120 = vmax.f32 %v6058, 0.0
  %v6121 = vmax.f32 %v6059, 0.0
  %v6122 = vmax.f32 %v6060, 0.0
  %v6123 = vmax.f32 %v6061, 0.0
  %v6124 = vmax.f32 %v6062, 0.0
  %v6125 = vmax.f32 %v6063, 0.0
  %v6126 = vmax.f32 %v6064, 0.0
  %v6127 = vmax.f32 %v6065, 0.0
  %v6128 = vmax.f32 %v6066, 0.0
  %v6129 = vmax.f32 %v6067, 0.0
  %v6130 = vmax.f32 %v6068, 0.0
  %v6131 = vmax.f32 %v6069, 0.0
  %v6132 = vmax.f32 %v6070, 0.0
  %v6133 = vmax.f32 %v6071, 0.0
  %v6134 = vmax.f32 %v6072, 0.0
  %v6135 = vmax.f32 %v6073, 0.0
  %v6136 = vmax.f32 %v6074, 0.0
  %v6137 = vmax.f32 %v6075, 0.0
  %v6138 = vmax.f32 %v6076, 0.0
  %v6139 = vmax.f32 %v6077, 0.0
  %v6140 = vmax.f32 %v6078, 0.0
  %v6141 = vmax.f32 %v6079, 0.0
  %v6142 = vmax.f32 %v6080, 0.0
  %v6143 = vmax.f32 %v6081, 0.0
  %v6144 = vmax.f32 %v6082, 0.0
  %v6145 = vmax.f32 %v6083, 0.0
  %v6146 = vmax.f32 %v6084, 0.0
  %v6147 = vmax.f32 %v6085, 0.0
  %v6148 = vmax.f32 %v6086, 0.0
  %v6149 = vmax.f32 %v6087, 0.0
  %v6150 = vmax.f32 %v6088, 0.0
  %v6151 = vmax.f32 %v6089, 0.0
  %v6152 = vmax.f32 %v6090, 0.0
  %v6153 = vmax.f32 %v6091, 0.0
  %v6154 = vmax.f32 %v6092, 0.0
  %v6155 = vmax.f32 %v6093, 0.0
  %v6156 = vmax.f32 %v6094, 0.0
  %v6157 = vmax.f32 %v6095, 0.0
  %v6158 = vmax.f32 %v6096, 0.0
  %v6159 = vmax.f32 %v6097, 0.0
  %v6160 = vmax.f32 %v6098, 0.0
  %v6161 = vmax.f32 %v6099, 0.0
  %v6162 = vmax.f32 %v6100, 0.0
  %v6163 = vmax.f32 %v6101, 0.0
  %v6164 = vmax.f32 %v6102, 0.0
  %v6165 = vmax.f32 %v6103, 0.0
  %v6166 = vmax.f32 %v6104, 0.0
  %6229 = vrot.lane.b32.xlu0 %v6105, 112
  %v6230 = vpop.permute.xlu0 %6229
  %6231 = vrot.lane.b32.xlu0 %v6106, 112
  %v6232 = vpop.permute.xlu0 %6231
  %6233 = vrot.lane.b32.xlu0 %v6107, 112
  %v6234 = vpop.permute.xlu0 %6233
  %6235 = vrot.lane.b32.xlu0 %v6108, 112
  %v6236 = vpop.permute.xlu0 %6235
  %6237 = vrot.lane.b32.xlu0 %v6109, 112
  %v6238 = vpop.permute.xlu0 %6237
  %6239 = vrot.lane.b32.xlu0 %v6110, 112
  %v6240 = vpop.permute.xlu0 %6239
  %6241 = vrot.lane.b32.xlu0 %v6111, 112
  %v6242 = vpop.permute.xlu0 %6241
  %6243 = vrot.lane.b32.xlu0 %v6112, 112
  %v6244 = vpop.permute.xlu0 %6243
  %6245 = vrot.lane.b32.xlu0 %v6113, 112
  %v6246 = vpop.permute.xlu0 %6245
  %6247 = vrot.lane.b32.xlu0 %v6114, 112
  %v6248 = vpop.permute.xlu0 %6247
  %6249 = vrot.lane.b32.xlu0 %v6115, 112
  %v6250 = vpop.permute.xlu0 %6249
  %6251 = vrot.lane.b32.xlu0 %v6116, 112
  %v6252 = vpop.permute.xlu0 %6251
  %6253 = vrot.lane.b32.xlu0 %v6117, 112
  %v6254 = vpop.permute.xlu0 %6253
  %6255 = vrot.lane.b32.xlu0 %v6118, 112
  %v6256 = vpop.permute.xlu0 %6255
  %6257 = vrot.lane.b32.xlu0 %v6119, 112
  %v6258 = vpop.permute.xlu0 %6257
  %6259 = vrot.lane.b32.xlu0 %v6120, 112
  %v6260 = vpop.permute.xlu0 %6259
  %6261 = vrot.lane.b32.xlu0 %v6121, 112
  %v6262 = vpop.permute.xlu0 %6261
  %6263 = vrot.lane.b32.xlu0 %v6122, 112
  %v6264 = vpop.permute.xlu0 %6263
  %6265 = vrot.lane.b32.xlu0 %v6123, 112
  %v6266 = vpop.permute.xlu0 %6265
  %6267 = vrot.lane.b32.xlu0 %v6124, 112
  %v6268 = vpop.permute.xlu0 %6267
  %6269 = vrot.lane.b32.xlu0 %v6125, 112
  %v6270 = vpop.permute.xlu0 %6269
  %6271 = vrot.lane.b32.xlu0 %v6126, 112
  %v6272 = vpop.permute.xlu0 %6271
  %6273 = vrot.lane.b32.xlu0 %v6127, 112
  %v6274 = vpop.permute.xlu0 %6273
  %6275 = vrot.lane.b32.xlu0 %v6128, 112
  %v6276 = vpop.permute.xlu0 %6275
  %6277 = vrot.lane.b32.xlu0 %v6129, 112
  %v6278 = vpop.permute.xlu0 %6277
  %6279 = vrot.lane.b32.xlu0 %v6130, 112
  %v6280 = vpop.permute.xlu0 %6279
  %6281 = vrot.lane.b32.xlu0 %v6131, 112
  %v6282 = vpop.permute.xlu0 %6281
  %6283 = vrot.lane.b32.xlu0 %v6132, 112
  %v6284 = vpop.permute.xlu0 %6283
  %6285 = vrot.lane.b32.xlu0 %v6133, 112
  %v6286 = vpop.permute.xlu0 %6285
  %6287 = vrot.lane.b32.xlu0 %v6134, 112
  %v6288 = vpop.permute.xlu0 %6287
  %6289 = vrot.lane.b32.xlu0 %v6135, 112
  %v6290 = vpop.permute.xlu0 %6289
  %6291 = vrot.lane.b32.xlu0 %v6136, 112
  %v6292 = vpop.permute.xlu0 %6291
  %6293 = vrot.lane.b32.xlu0 %v6137, 112
  %v6294 = vpop.permute.xlu0 %6293
  %6295 = vrot.lane.b32.xlu0 %v6138, 112
  %v6296 = vpop.permute.xlu0 %6295
  %6297 = vrot.lane.b32.xlu0 %v6139, 112
  %v6298 = vpop.permute.xlu0 %6297
  %6299 = vrot.lane.b32.xlu0 %v6140, 112
  %v6300 = vpop.permute.xlu0 %6299
  %6301 = vrot.lane.b32.xlu0 %v6141, 112
  %v6302 = vpop.permute.xlu0 %6301
  %6303 = vrot.lane.b32.xlu0 %v6142, 112
  %v6304 = vpop.permute.xlu0 %6303
  %6305 = vrot.lane.b32.xlu0 %v6143, 112
  %v6306 = vpop.permute.xlu0 %6305
  %6307 = vrot.lane.b32.xlu0 %v6144, 112
  %v6308 = vpop.permute.xlu0 %6307
  %6309 = vrot.lane.b32.xlu0 %v6145, 112
  %v6310 = vpop.permute.xlu0 %6309
  %6311 = vrot.lane.b32.xlu0 %v6146, 112
  %v6312 = vpop.permute.xlu0 %6311
  %6313 = vrot.lane.b32.xlu0 %v6147, 112
  %v6314 = vpop.permute.xlu0 %6313
  %6315 = vrot.lane.b32.xlu0 %v6148, 112
  %v6316 = vpop.permute.xlu0 %6315
  %6317 = vrot.lane.b32.xlu0 %v6149, 112
  %v6318 = vpop.permute.xlu0 %6317
  %6319 = vrot.lane.b32.xlu0 %v6150, 112
  %v6320 = vpop.permute.xlu0 %6319
  %6321 = vrot.lane.b32.xlu0 %v6151, 112
  %v6322 = vpop.permute.xlu0 %6321
  %6323 = vrot.lane.b32.xlu0 %v6152, 112
  %v6324 = vpop.permute.xlu0 %6323
  %6325 = vrot.lane.b32.xlu0 %v6153, 112
  %v6326 = vpop.permute.xlu0 %6325
  %6327 = vrot.lane.b32.xlu0 %v6154, 112
  %v6328 = vpop.permute.xlu0 %6327
  %6329 = vrot.lane.b32.xlu0 %v6155, 112
  %v6330 = vpop.permute.xlu0 %6329
  %6331 = vrot.lane.b32.xlu0 %v6156, 112
  %v6332 = vpop.permute.xlu0 %6331
  %6333 = vrot.lane.b32.xlu0 %v6157, 112
  %v6334 = vpop.permute.xlu0 %6333
  %6335 = vrot.lane.b32.xlu0 %v6158, 112
  %v6336 = vpop.permute.xlu0 %6335
  %6337 = vrot.lane.b32.xlu0 %v6159, 112
  %v6338 = vpop.permute.xlu0 %6337
  %6339 = vrot.lane.b32.xlu0 %v6160, 112
  %v6340 = vpop.permute.xlu0 %6339
  %6341 = vrot.lane.b32.xlu0 %v6161, 112
  %v6342 = vpop.permute.xlu0 %6341
  %6343 = vrot.lane.b32.xlu0 %v6162, 112
  %v6344 = vpop.permute.xlu0 %6343
  %6345 = vrot.lane.b32.xlu0 %v6163, 112
  %v6346 = vpop.permute.xlu0 %6345
  %6347 = vrot.lane.b32.xlu0 %v6164, 112
  %v6348 = vpop.permute.xlu0 %6347
  %6349 = vrot.lane.b32.xlu0 %v6165, 112
  %v6350 = vpop.permute.xlu0 %6349
  %6351 = vrot.lane.b32.xlu0 %v6166, 112
  %v6352 = vpop.permute.xlu0 %6351
  %vm6353 = vcmask 916480
  %v6354 = vsel %vm6353, %v6230, %v6232
  %v6355 = vsel %vm6353, %v6234, %v6236
  %v6356 = vsel %vm6353, %v6238, %v6240
  %v6357 = vsel %vm6353, %v6242, %v6244
  %v6358 = vsel %vm6353, %v6246, %v6248
  %v6359 = vsel %vm6353, %v6250, %v6252
  %v6360 = vsel %vm6353, %v6254, %v6256
  %v6361 = vsel %vm6353, %v6258, %v6260
  %v6362 = vsel %vm6353, %v6262, %v6264
  %v6363 = vsel %vm6353, %v6266, %v6268
  %v6364 = vsel %vm6353, %v6270, %v6272
  %v6365 = vsel %vm6353, %v6274, %v6276
  %v6366 = vsel %vm6353, %v6278, %v6280
  %v6367 = vsel %vm6353, %v6282, %v6284
  %v6368 = vsel %vm6353, %v6286, %v6288
  %v6369 = vsel %vm6353, %v6290, %v6292
  %v6370 = vsel %vm6353, %v6294, %v6296
  %v6371 = vsel %vm6353, %v6298, %v6300
  %v6372 = vsel %vm6353, %v6302, %v6304
  %v6373 = vsel %vm6353, %v6306, %v6308
  %v6374 = vsel %vm6353, %v6310, %v6312
  %v6375 = vsel %vm6353, %v6314, %v6316
  %v6376 = vsel %vm6353, %v6318, %v6320
  %v6377 = vsel %vm6353, %v6322, %v6324
  %v6378 = vsel %vm6353, %v6326, %v6328
  %v6379 = vsel %vm6353, %v6330, %v6332
  %v6380 = vsel %vm6353, %v6334, %v6336
  %v6381 = vsel %vm6353, %v6338, %v6340
  %v6382 = vsel %vm6353, %v6342, %v6344
  %v6383 = vsel %vm6353, %v6346, %v6348
  %v6384 = vsel %vm6353, %v6350, %v6352
  %v6447 = vmax.f32 %v6105, %v6354
  %v6448 = vmax.f32 %v6106, %v6232
  %v6449 = vmax.f32 %v6107, %v6355
  %v6450 = vmax.f32 %v6108, %v6236
  %v6451 = vmax.f32 %v6109, %v6356
  %v6452 = vmax.f32 %v6110, %v6240
  %v6453 = vmax.f32 %v6111, %v6357
  %v6454 = vmax.f32 %v6112, %v6244
  %v6455 = vmax.f32 %v6113, %v6358
  %v6456 = vmax.f32 %v6114, %v6248
  %v6457 = vmax.f32 %v6115, %v6359
  %v6458 = vmax.f32 %v6116, %v6252
  %v6459 = vmax.f32 %v6117, %v6360
  %v6460 = vmax.f32 %v6118, %v6256
  %v6461 = vmax.f32 %v6119, %v6361
  %v6462 = vmax.f32 %v6120, %v6260
  %v6463 = vmax.f32 %v6121, %v6362
  %v6464 = vmax.f32 %v6122, %v6264
  %v6465 = vmax.f32 %v6123, %v6363
  %v6466 = vmax.f32 %v6124, %v6268
  %v6467 = vmax.f32 %v6125, %v6364
  %v6468 = vmax.f32 %v6126, %v6272
  %v6469 = vmax.f32 %v6127, %v6365
  %v6470 = vmax.f32 %v6128, %v6276
  %v6471 = vmax.f32 %v6129, %v6366
  %v6472 = vmax.f32 %v6130, %v6280
  %v6473 = vmax.f32 %v6131, %v6367
  %v6474 = vmax.f32 %v6132, %v6284
  %v6475 = vmax.f32 %v6133, %v6368
  %v6476 = vmax.f32 %v6134, %v6288
  %v6477 = vmax.f32 %v6135, %v6369
  %v6478 = vmax.f32 %v6136, %v6292
  %v6479 = vmax.f32 %v6137, %v6370
  %v6480 = vmax.f32 %v6138, %v6296
  %v6481 = vmax.f32 %v6139, %v6371
  %v6482 = vmax.f32 %v6140, %v6300
  %v6483 = vmax.f32 %v6141, %v6372
  %v6484 = vmax.f32 %v6142, %v6304
  %v6485 = vmax.f32 %v6143, %v6373
  %v6486 = vmax.f32 %v6144, %v6308
  %v6487 = vmax.f32 %v6145, %v6374
  %v6488 = vmax.f32 %v6146, %v6312
  %v6489 = vmax.f32 %v6147, %v6375
  %v6490 = vmax.f32 %v6148, %v6316
  %v6491 = vmax.f32 %v6149, %v6376
  %v6492 = vmax.f32 %v6150, %v6320
  %v6493 = vmax.f32 %v6151, %v6377
  %v6494 = vmax.f32 %v6152, %v6324
  %v6495 = vmax.f32 %v6153, %v6378
  %v6496 = vmax.f32 %v6154, %v6328
  %v6497 = vmax.f32 %v6155, %v6379
  %v6498 = vmax.f32 %v6156, %v6332
  %v6499 = vmax.f32 %v6157, %v6380
  %v6500 = vmax.f32 %v6158, %v6336
  %v6501 = vmax.f32 %v6159, %v6381
  %v6502 = vmax.f32 %v6160, %v6340
  %v6503 = vmax.f32 %v6161, %v6382
  %v6504 = vmax.f32 %v6162, %v6344
  %v6505 = vmax.f32 %v6163, %v6383
  %v6506 = vmax.f32 %v6164, %v6348
  %v6507 = vmax.f32 %v6165, %v6384
  %v6508 = vmax.f32 %v6166, %v6352
  %v6571 = vrot.slane %v6447, 2
  %v6572 = vrot.slane %v6449, 2
  %v6573 = vsel %vm1143, %v6571, %v6572
  %v6574 = vrot.slane %v6448, 2
  %v6575 = vrot.slane %v6450, 2
  %v6576 = vsel %vm1143, %v6574, %v6575
  %v6577 = vrot.slane %v6451, 2
  %v6578 = vsel %vm1143, %v6572, %v6577
  %v6579 = vrot.slane %v6452, 2
  %v6580 = vsel %vm1143, %v6575, %v6579
  %v6581 = vrot.slane %v6453, 2
  %v6582 = vsel %vm1143, %v6577, %v6581
  %v6583 = vrot.slane %v6454, 2
  %v6584 = vsel %vm1143, %v6579, %v6583
  %v6585 = vrot.slane %v6455, 2
  %v6586 = vsel %vm1143, %v6581, %v6585
  %v6587 = vrot.slane %v6456, 2
  %v6588 = vsel %vm1143, %v6583, %v6587
  %v6589 = vrot.slane %v6457, 2
  %v6590 = vsel %vm1143, %v6585, %v6589
  %v6591 = vrot.slane %v6458, 2
  %v6592 = vsel %vm1143, %v6587, %v6591
  %v6593 = vrot.slane %v6459, 2
  %v6594 = vsel %vm1143, %v6589, %v6593
  %v6595 = vrot.slane %v6460, 2
  %v6596 = vsel %vm1143, %v6591, %v6595
  %v6597 = vrot.slane %v6461, 2
  %v6598 = vsel %vm1143, %v6593, %v6597
  %v6599 = vrot.slane %v6462, 2
  %v6600 = vsel %vm1143, %v6595, %v6599
  %v6601 = vrot.slane %v6463, 2
  %v6602 = vsel %vm1143, %v6597, %v6601
  %v6603 = vrot.slane %v6464, 2
  %v6604 = vsel %vm1143, %v6599, %v6603
  %v6605 = vrot.slane %v6465, 2
  %v6606 = vsel %vm1143, %v6601, %v6605
  %v6607 = vrot.slane %v6466, 2
  %v6608 = vsel %vm1143, %v6603, %v6607
  %v6609 = vrot.slane %v6467, 2
  %v6610 = vsel %vm1143, %v6605, %v6609
  %v6611 = vrot.slane %v6468, 2
  %v6612 = vsel %vm1143, %v6607, %v6611
  %v6613 = vrot.slane %v6469, 2
  %v6614 = vsel %vm1143, %v6609, %v6613
  %v6615 = vrot.slane %v6470, 2
  %v6616 = vsel %vm1143, %v6611, %v6615
  %v6617 = vrot.slane %v6471, 2
  %v6618 = vsel %vm1143, %v6613, %v6617
  %v6619 = vrot.slane %v6472, 2
  %v6620 = vsel %vm1143, %v6615, %v6619
  %v6621 = vrot.slane %v6473, 2
  %v6622 = vsel %vm1143, %v6617, %v6621
  %v6623 = vrot.slane %v6474, 2
  %v6624 = vsel %vm1143, %v6619, %v6623
  %v6625 = vrot.slane %v6475, 2
  %v6626 = vsel %vm1143, %v6621, %v6625
  %v6627 = vrot.slane %v6476, 2
  %v6628 = vsel %vm1143, %v6623, %v6627
  %v6629 = vrot.slane %v6477, 2
  %v6630 = vsel %vm1143, %v6625, %v6629
  %v6631 = vrot.slane %v6478, 2
  %v6632 = vsel %vm1143, %v6627, %v6631
  %v6633 = vrot.slane %v6479, 2
  %v6634 = vsel %vm1143, %v6629, %v6633
  %v6635 = vrot.slane %v6480, 2
  %v6636 = vsel %vm1143, %v6631, %v6635
  %v6637 = vrot.slane %v6481, 2
  %v6638 = vsel %vm1143, %v6633, %v6637
  %v6639 = vrot.slane %v6482, 2
  %v6640 = vsel %vm1143, %v6635, %v6639
  %v6641 = vrot.slane %v6483, 2
  %v6642 = vsel %vm1143, %v6637, %v6641
  %v6643 = vrot.slane %v6484, 2
  %v6644 = vsel %vm1143, %v6639, %v6643
  %v6645 = vrot.slane %v6485, 2
  %v6646 = vsel %vm1143, %v6641, %v6645
  %v6647 = vrot.slane %v6486, 2
  %v6648 = vsel %vm1143, %v6643, %v6647
  %v6649 = vrot.slane %v6487, 2
  %v6650 = vsel %vm1143, %v6645, %v6649
  %v6651 = vrot.slane %v6488, 2
  %v6652 = vsel %vm1143, %v6647, %v6651
  %v6653 = vrot.slane %v6489, 2
  %v6654 = vsel %vm1143, %v6649, %v6653
  %v6655 = vrot.slane %v6490, 2
  %v6656 = vsel %vm1143, %v6651, %v6655
  %v6657 = vrot.slane %v6491, 2
  %v6658 = vsel %vm1143, %v6653, %v6657
  %v6659 = vrot.slane %v6492, 2
  %v6660 = vsel %vm1143, %v6655, %v6659
  %v6661 = vrot.slane %v6493, 2
  %v6662 = vsel %vm1143, %v6657, %v6661
  %v6663 = vrot.slane %v6494, 2
  %v6664 = vsel %vm1143, %v6659, %v6663
  %v6665 = vrot.slane %v6495, 2
  %v6666 = vsel %vm1143, %v6661, %v6665
  %v6667 = vrot.slane %v6496, 2
  %v6668 = vsel %vm1143, %v6663, %v6667
  %v6669 = vrot.slane %v6497, 2
  %v6670 = vsel %vm1143, %v6665, %v6669
  %v6671 = vrot.slane %v6498, 2
  %v6672 = vsel %vm1143, %v6667, %v6671
  %v6673 = vrot.slane %v6499, 2
  %v6674 = vsel %vm1143, %v6669, %v6673
  %v6675 = vrot.slane %v6500, 2
  %v6676 = vsel %vm1143, %v6671, %v6675
  %v6677 = vrot.slane %v6501, 2
  %v6678 = vsel %vm1143, %v6673, %v6677
  %v6679 = vrot.slane %v6502, 2
  %v6680 = vsel %vm1143, %v6675, %v6679
  %v6681 = vrot.slane %v6503, 2
  %v6682 = vsel %vm1143, %v6677, %v6681
  %v6683 = vrot.slane %v6504, 2
  %v6684 = vsel %vm1143, %v6679, %v6683
  %v6685 = vrot.slane %v6505, 2
  %v6686 = vsel %vm1143, %v6681, %v6685
  %v6687 = vrot.slane %v6506, 2
  %v6688 = vsel %vm1143, %v6683, %v6687
  %v6689 = vrot.slane %v6507, 2
  %v6690 = vsel %vm1143, %v6685, %v6689
  %v6691 = vrot.slane %v6508, 2
  %v6692 = vsel %vm1143, %v6687, %v6691
  %v6755 = vmax.f32 %v6447, %v6573
  %v6756 = vmax.f32 %v6448, %v6576
  %v6757 = vmax.f32 %v6449, %v6578
  %v6758 = vmax.f32 %v6450, %v6580
  %v6759 = vmax.f32 %v6451, %v6582
  %v6760 = vmax.f32 %v6452, %v6584
  %v6761 = vmax.f32 %v6453, %v6586
  %v6762 = vmax.f32 %v6454, %v6588
  %v6763 = vmax.f32 %v6455, %v6590
  %v6764 = vmax.f32 %v6456, %v6592
  %v6765 = vmax.f32 %v6457, %v6594
  %v6766 = vmax.f32 %v6458, %v6596
  %v6767 = vmax.f32 %v6459, %v6598
  %v6768 = vmax.f32 %v6460, %v6600
  %v6769 = vmax.f32 %v6461, %v6602
  %v6770 = vmax.f32 %v6462, %v6604
  %v6771 = vmax.f32 %v6463, %v6606
  %v6772 = vmax.f32 %v6464, %v6608
  %v6773 = vmax.f32 %v6465, %v6610
  %v6774 = vmax.f32 %v6466, %v6612
  %v6775 = vmax.f32 %v6467, %v6614
  %v6776 = vmax.f32 %v6468, %v6616
  %v6777 = vmax.f32 %v6469, %v6618
  %v6778 = vmax.f32 %v6470, %v6620
  %v6779 = vmax.f32 %v6471, %v6622
  %v6780 = vmax.f32 %v6472, %v6624
  %v6781 = vmax.f32 %v6473, %v6626
  %v6782 = vmax.f32 %v6474, %v6628
  %v6783 = vmax.f32 %v6475, %v6630
  %v6784 = vmax.f32 %v6476, %v6632
  %v6785 = vmax.f32 %v6477, %v6634
  %v6786 = vmax.f32 %v6478, %v6636
  %v6787 = vmax.f32 %v6479, %v6638
  %v6788 = vmax.f32 %v6480, %v6640
  %v6789 = vmax.f32 %v6481, %v6642
  %v6790 = vmax.f32 %v6482, %v6644
  %v6791 = vmax.f32 %v6483, %v6646
  %v6792 = vmax.f32 %v6484, %v6648
  %v6793 = vmax.f32 %v6485, %v6650
  %v6794 = vmax.f32 %v6486, %v6652
  %v6795 = vmax.f32 %v6487, %v6654
  %v6796 = vmax.f32 %v6488, %v6656
  %v6797 = vmax.f32 %v6489, %v6658
  %v6798 = vmax.f32 %v6490, %v6660
  %v6799 = vmax.f32 %v6491, %v6662
  %v6800 = vmax.f32 %v6492, %v6664
  %v6801 = vmax.f32 %v6493, %v6666
  %v6802 = vmax.f32 %v6494, %v6668
  %v6803 = vmax.f32 %v6495, %v6670
  %v6804 = vmax.f32 %v6496, %v6672
  %v6805 = vmax.f32 %v6497, %v6674
  %v6806 = vmax.f32 %v6498, %v6676
  %v6807 = vmax.f32 %v6499, %v6678
  %v6808 = vmax.f32 %v6500, %v6680
  %v6809 = vmax.f32 %v6501, %v6682
  %v6810 = vmax.f32 %v6502, %v6684
  %v6811 = vmax.f32 %v6503, %v6686
  %v6812 = vmax.f32 %v6504, %v6688
  %v6813 = vmax.f32 %v6505, %v6690
  %v6814 = vmax.f32 %v6506, %v6692
  %v6815 = vmax.f32 %v6507, %v6689
  %v6816 = vmax.f32 %v6508, %v6691
  %v6875 = vrot.slane %v6755, 4
  %v6876 = vrot.slane %v6757, 4
  %v6877 = vsel %vm2041, %v6875, %v6876
  %v6878 = vrot.slane %v6756, 4
  %v6879 = vrot.slane %v6758, 4
  %v6880 = vsel %vm2041, %v6878, %v6879
  %v6881 = vrot.slane %v6759, 4
  %v6882 = vsel %vm2041, %v6876, %v6881
  %v6883 = vrot.slane %v6760, 4
  %v6884 = vsel %vm2041, %v6879, %v6883
  %v6885 = vrot.slane %v6761, 4
  %v6886 = vsel %vm2041, %v6881, %v6885
  %v6887 = vrot.slane %v6762, 4
  %v6888 = vsel %vm2041, %v6883, %v6887
  %v6889 = vrot.slane %v6763, 4
  %v6890 = vsel %vm2041, %v6885, %v6889
  %v6891 = vrot.slane %v6764, 4
  %v6892 = vsel %vm2041, %v6887, %v6891
  %v6893 = vrot.slane %v6765, 4
  %v6894 = vsel %vm2041, %v6889, %v6893
  %v6895 = vrot.slane %v6766, 4
  %v6896 = vsel %vm2041, %v6891, %v6895
  %v6897 = vrot.slane %v6767, 4
  %v6898 = vsel %vm2041, %v6893, %v6897
  %v6899 = vrot.slane %v6768, 4
  %v6900 = vsel %vm2041, %v6895, %v6899
  %v6901 = vrot.slane %v6769, 4
  %v6902 = vsel %vm2041, %v6897, %v6901
  %v6903 = vrot.slane %v6770, 4
  %v6904 = vsel %vm2041, %v6899, %v6903
  %v6905 = vrot.slane %v6771, 4
  %v6906 = vsel %vm2041, %v6901, %v6905
  %v6907 = vrot.slane %v6772, 4
  %v6908 = vsel %vm2041, %v6903, %v6907
  %v6909 = vrot.slane %v6773, 4
  %v6910 = vsel %vm2041, %v6905, %v6909
  %v6911 = vrot.slane %v6774, 4
  %v6912 = vsel %vm2041, %v6907, %v6911
  %v6913 = vrot.slane %v6775, 4
  %v6914 = vsel %vm2041, %v6909, %v6913
  %v6915 = vrot.slane %v6776, 4
  %v6916 = vsel %vm2041, %v6911, %v6915
  %v6917 = vrot.slane %v6777, 4
  %v6918 = vsel %vm2041, %v6913, %v6917
  %v6919 = vrot.slane %v6778, 4
  %v6920 = vsel %vm2041, %v6915, %v6919
  %v6921 = vrot.slane %v6779, 4
  %v6922 = vsel %vm2041, %v6917, %v6921
  %v6923 = vrot.slane %v6780, 4
  %v6924 = vsel %vm2041, %v6919, %v6923
  %v6925 = vrot.slane %v6781, 4
  %v6926 = vsel %vm2041, %v6921, %v6925
  %v6927 = vrot.slane %v6782, 4
  %v6928 = vsel %vm2041, %v6923, %v6927
  %v6929 = vrot.slane %v6783, 4
  %v6930 = vsel %vm2041, %v6925, %v6929
  %v6931 = vrot.slane %v6784, 4
  %v6932 = vsel %vm2041, %v6927, %v6931
  %v6933 = vrot.slane %v6785, 4
  %v6934 = vsel %vm2041, %v6929, %v6933
  %v6935 = vrot.slane %v6786, 4
  %v6936 = vsel %vm2041, %v6931, %v6935
  %v6937 = vrot.slane %v6787, 4
  %v6938 = vsel %vm2041, %v6933, %v6937
  %v6939 = vrot.slane %v6788, 4
  %v6940 = vsel %vm2041, %v6935, %v6939
  %v6941 = vrot.slane %v6789, 4
  %v6942 = vsel %vm2041, %v6937, %v6941
  %v6943 = vrot.slane %v6790, 4
  %v6944 = vsel %vm2041, %v6939, %v6943
  %v6945 = vrot.slane %v6791, 4
  %v6946 = vsel %vm2041, %v6941, %v6945
  %v6947 = vrot.slane %v6792, 4
  %v6948 = vsel %vm2041, %v6943, %v6947
  %v6949 = vrot.slane %v6793, 4
  %v6950 = vsel %vm2041, %v6945, %v6949
  %v6951 = vrot.slane %v6794, 4
  %v6952 = vsel %vm2041, %v6947, %v6951
  %v6953 = vrot.slane %v6795, 4
  %v6954 = vsel %vm2041, %v6949, %v6953
  %v6955 = vrot.slane %v6796, 4
  %v6956 = vsel %vm2041, %v6951, %v6955
  %v6957 = vrot.slane %v6797, 4
  %v6958 = vsel %vm2041, %v6953, %v6957
  %v6959 = vrot.slane %v6798, 4
  %v6960 = vsel %vm2041, %v6955, %v6959
  %v6961 = vrot.slane %v6799, 4
  %v6962 = vsel %vm2041, %v6957, %v6961
  %v6963 = vrot.slane %v6800, 4
  %v6964 = vsel %vm2041, %v6959, %v6963
  %v6965 = vrot.slane %v6801, 4
  %v6966 = vsel %vm2041, %v6961, %v6965
  %v6967 = vrot.slane %v6802, 4
  %v6968 = vsel %vm2041, %v6963, %v6967
  %v6969 = vrot.slane %v6803, 4
  %v6970 = vsel %vm2041, %v6965, %v6969
  %v6971 = vrot.slane %v6804, 4
  %v6972 = vsel %vm2041, %v6967, %v6971
  %v6973 = vrot.slane %v6805, 4
  %v6974 = vsel %vm2041, %v6969, %v6973
  %v6975 = vrot.slane %v6806, 4
  %v6976 = vsel %vm2041, %v6971, %v6975
  %v6977 = vrot.slane %v6807, 4
  %v6978 = vsel %vm2041, %v6973, %v6977
  %v6979 = vrot.slane %v6808, 4
  %v6980 = vsel %vm2041, %v6975, %v6979
  %v6981 = vrot.slane %v6809, 4
  %v6982 = vsel %vm2041, %v6977, %v6981
  %v6983 = vrot.slane %v6810, 4
  %v6984 = vsel %vm2041, %v6979, %v6983
  %v6985 = vrot.slane %v6811, 4
  %v6986 = vsel %vm2041, %v6981, %v6985
  %v6987 = vrot.slane %v6812, 4
  %v6988 = vsel %vm2041, %v6983, %v6987
  %vm7018 = vcmask 130048
  %v7019 = vsel %vm7018, %v6880, 0
  %v7021 = vsel %vm7018, %v6884, 0
  %v7023 = vsel %vm7018, %v6888, 0
  %v7025 = vsel %vm7018, %v6892, 0
  %v7027 = vsel %vm7018, %v6896, 0
  %v7029 = vsel %vm7018, %v6900, 0
  %v7031 = vsel %vm7018, %v6904, 0
  %v7033 = vsel %vm7018, %v6908, 0
  %v7035 = vsel %vm7018, %v6912, 0
  %v7037 = vsel %vm7018, %v6916, 0
  %v7039 = vsel %vm7018, %v6920, 0
  %v7041 = vsel %vm7018, %v6924, 0
  %v7043 = vsel %vm7018, %v6928, 0
  %v7045 = vsel %vm7018, %v6932, 0
  %v7047 = vsel %vm7018, %v6936, 0
  %v7049 = vsel %vm7018, %v6940, 0
  %v7051 = vsel %vm7018, %v6944, 0
  %v7053 = vsel %vm7018, %v6948, 0
  %v7055 = vsel %vm7018, %v6952, 0
  %v7057 = vsel %vm7018, %v6956, 0
  %v7059 = vsel %vm7018, %v6960, 0
  %v7061 = vsel %vm7018, %v6964, 0
  %v7063 = vsel %vm7018, %v6968, 0
  %v7065 = vsel %vm7018, %v6972, 0
  %v7067 = vsel %vm7018, %v6976, 0
  %v7069 = vsel %vm7018, %v6980, 0
  %v7071 = vsel %vm7018, %v6984, 0
  %v7073 = vsel %vm7018, %v6988, 0
  %v7075 = vsel %vm7018, %v6987, 0
  %7077 = vmatprep.subr.mxu0 0.0
  %7078 = vmatpush1.msra.mxu0 %v347
  %7079 = vmatprep.subr.mxu0 0.0
  %7080 = vmatpush1.msra.mxu0 %v346
  %7081 = vmatprep.subr.mxu0 0.0
  %7082 = vmatpush1.msra.mxu0 %v345
  %7083 = vmatprep.subr.mxu0 0.0
  %7084 = vmatpush1.msra.mxu0 %v344
  %7085 = vmatprep.subr.mxu0 0.0
  %7086 = vmatpush1.msra.mxu0 %v343
  %7087 = vmatprep.subr.mxu0 0.0
  %7088 = vmatpush1.msra.mxu0 %v342
  %7089 = vmatprep.subr.mxu0 0.0
  %7090 = vmatpush1.msra.mxu0 %v341
  %7091 = vmatprep.subr.mxu0 0.0
  %7092 = vmatpush1.msra.mxu0 %v340
  %7093 = vmatprep.subr.mxu0 0.0
  %7094 = vmatpush1.msra.mxu0 %v339
  %7095 = vmatprep.subr.mxu0 0.0
  %7096 = vmatpush1.msra.mxu0 %v338
  %7097 = vmatprep.subr.mxu0 0.0
  %7098 = vmatpush1.msra.mxu0 %v337
  %7099 = vmatprep.subr.mxu0 0.0
  %7100 = vmatpush1.msra.mxu0 %v336
  %7101 = vmatprep.subr.mxu0 0.0
  %7102 = vmatpush1.msra.mxu0 %v335
  %7103 = vmatprep.subr.mxu0 0.0
  %7104 = vmatpush1.msra.mxu0 %v334
  %7105 = vmatprep.subr.mxu0 0.0
  %7106 = vmatpush1.msra.mxu0 %v333
  %7107 = vmatprep.subr.mxu0 0.0
  %7108 = vmatpush1.msra.mxu0 %v332
  %7109 = vmatprep.subr.mxu0 0.0
  %7110 = vmatpush2.msra.mxu0 0.0
  %7111 = vmatprep.subr.mxu0 0.0
  %7112 = vmatpush2.msra.mxu0 0.0
  %7113 = vmatprep.subr.mxu0 0.0
  %7114 = vmatpush2.msra.mxu0 0.0
  %7115 = vmatprep.subr.mxu0 0.0
  %7116 = vmatpush2.msra.mxu0 0.0
  %7117 = vmatprep.subr.mxu0 0.0
  %7118 = vmatpush2.msra.mxu0 0.0
  %7119 = vmatprep.subr.mxu0 0.0
  %7120 = vmatpush2.msra.mxu0 0.0
  %7121 = vmatprep.subr.mxu0 0.0
  %7122 = vmatpush2.msra.mxu0 0.0
  %7123 = vmatprep.subr.mxu0 0.0
  %7124 = vmatpush2.msra.mxu0 0.0
  %7125 = vmatprep.subr.mxu0 0.0
  %7126 = vmatpush2.msra.mxu0 0.0
  %7127 = vmatprep.subr.mxu0 0.0
  %7128 = vmatpush2.msra.mxu0 0.0
  %7129 = vmatprep.subr.mxu0 0.0
  %7130 = vmatpush2.msra.mxu0 0.0
  %7131 = vmatprep.subr.mxu0 0.0
  %7132 = vmatpush2.msra.mxu0 0.0
  %7133 = vmatprep.subr.mxu0 0.0
  %7134 = vmatpush2.msra.mxu0 0.0
  %7135 = vmatprep.subr.mxu0 0.0
  %7136 = vmatpush2.msra.mxu0 0.0
  %7137 = vmatprep.subr.mxu0 0.0
  %7138 = vmatpush2.msra.mxu0 %v349
  %7139 = vmatprep.subr.mxu0 0.0
  %7140 = vmatpush2.msra.mxu0 %v348
  %7141 = vmatprep.mubr.f32.mxu0 %v7019
  %7142 = vmatmul.mubr.f32.gmra.mxu0 %v6877
  %v7143 = vpop.f32.mrf.mxu0
  %v7144 = vadd.f32 0.0, %v7143
  %v7145 = vpop.f32.mrf.mxu0
  %7146 = vmatprep.mubr.f32.mxu0 %v7021
  %7147 = vmatmul.mubr.f32.gmra.mxu0 %v6882
  %v7148 = vpop.f32.mrf.mxu0
  %v7149 = vadd.f32 0.0, %v7148
  %v7150 = vpop.f32.mrf.mxu0
  %7151 = vmatprep.mubr.f32.mxu0 %v7023
  %7152 = vmatmul.mubr.f32.gmra.mxu0 %v6886
  %v7153 = vpop.f32.mrf.mxu0
  %v7154 = vadd.f32 0.0, %v7153
  %v7155 = vpop.f32.mrf.mxu0
  %7156 = vmatprep.mubr.f32.mxu0 %v7025
  %7157 = vmatmul.mubr.f32.gmra.mxu0 %v6890
  %v7158 = vpop.f32.mrf.mxu0
  %v7159 = vadd.f32 0.0, %v7158
  %v7160 = vpop.f32.mrf.mxu0
  %7161 = vmatprep.mubr.f32.mxu0 %v7027
  %7162 = vmatmul.mubr.f32.gmra.mxu0 %v6894
  %v7163 = vpop.f32.mrf.mxu0
  %v7164 = vadd.f32 0.0, %v7163
  %v7165 = vpop.f32.mrf.mxu0
  %7166 = vmatprep.mubr.f32.mxu0 %v7029
  %7167 = vmatmul.mubr.f32.gmra.mxu0 %v6898
  %v7168 = vpop.f32.mrf.mxu0
  %v7169 = vadd.f32 0.0, %v7168
  %v7170 = vpop.f32.mrf.mxu0
  %7171 = vmatprep.mubr.f32.mxu0 %v7031
  %7172 = vmatmul.mubr.f32.gmra.mxu0 %v6902
  %v7173 = vpop.f32.mrf.mxu0
  %v7174 = vadd.f32 0.0, %v7173
  %v7175 = vpop.f32.mrf.mxu0
  %7176 = vmatprep.mubr.f32.mxu0 %v7033
  %7177 = vmatmul.mubr.f32.gmra.mxu0 %v6906
  %v7178 = vpop.f32.mrf.mxu0
  %v7179 = vadd.f32 0.0, %v7178
  %v7180 = vpop.f32.mrf.mxu0
  %7181 = vmatprep.mubr.f32.mxu0 %v7035
  %7182 = vmatmul.mubr.f32.gmra.mxu0 %v6910
  %v7183 = vpop.f32.mrf.mxu0
  %v7184 = vadd.f32 0.0, %v7183
  %v7185 = vpop.f32.mrf.mxu0
  %7186 = vmatprep.mubr.f32.mxu0 %v7037
  %7187 = vmatmul.mubr.f32.gmra.mxu0 %v6914
  %v7188 = vpop.f32.mrf.mxu0
  %v7189 = vadd.f32 0.0, %v7188
  %v7190 = vpop.f32.mrf.mxu0
  %7191 = vmatprep.mubr.f32.mxu0 %v7039
  %7192 = vmatmul.mubr.f32.gmra.mxu0 %v6918
  %v7193 = vpop.f32.mrf.mxu0
  %v7194 = vadd.f32 0.0, %v7193
  %v7195 = vpop.f32.mrf.mxu0
  %7196 = vmatprep.mubr.f32.mxu0 %v7041
  %7197 = vmatmul.mubr.f32.gmra.mxu0 %v6922
  %v7198 = vpop.f32.mrf.mxu0
  %v7199 = vadd.f32 0.0, %v7198
  %v7200 = vpop.f32.mrf.mxu0
  %7201 = vmatprep.mubr.f32.mxu0 %v7043
  %7202 = vmatmul.mubr.f32.gmra.mxu0 %v6926
  %v7203 = vpop.f32.mrf.mxu0
  %v7204 = vadd.f32 0.0, %v7203
  %v7205 = vpop.f32.mrf.mxu0
  %7206 = vmatprep.mubr.f32.mxu0 %v7045
  %7207 = vmatmul.mubr.f32.gmra.mxu0 %v6930
  %v7208 = vpop.f32.mrf.mxu0
  %v7209 = vadd.f32 0.0, %v7208
  %v7210 = vpop.f32.mrf.mxu0
  %7211 = vmatprep.mubr.f32.mxu0 %v7047
  %7212 = vmatmul.mubr.f32.gmra.mxu0 %v6934
  %v7213 = vpop.f32.mrf.mxu0
  %v7214 = vadd.f32 0.0, %v7213
  %v7215 = vpop.f32.mrf.mxu0
  %7216 = vmatprep.mubr.f32.mxu0 %v7049
  %7217 = vmatmul.mubr.f32.gmra.mxu0 %v6938
  %v7218 = vpop.f32.mrf.mxu0
  %v7219 = vadd.f32 0.0, %v7218
  %v7220 = vpop.f32.mrf.mxu0
  %7221 = vmatprep.mubr.f32.mxu0 %v7051
  %7222 = vmatmul.mubr.f32.gmra.mxu0 %v6942
  %v7223 = vpop.f32.mrf.mxu0
  %v7224 = vadd.f32 0.0, %v7223
  %v7225 = vpop.f32.mrf.mxu0
  %7226 = vmatprep.mubr.f32.mxu0 %v7053
  %7227 = vmatmul.mubr.f32.gmra.mxu0 %v6946
  %v7228 = vpop.f32.mrf.mxu0
  %v7229 = vadd.f32 0.0, %v7228
  %v7230 = vpop.f32.mrf.mxu0
  %7231 = vmatprep.mubr.f32.mxu0 %v7055
  %7232 = vmatmul.mubr.f32.gmra.mxu0 %v6950
  %v7233 = vpop.f32.mrf.mxu0
  %v7234 = vadd.f32 0.0, %v7233
  %v7235 = vpop.f32.mrf.mxu0
  %7236 = vmatprep.mubr.f32.mxu0 %v7057
  %7237 = vmatmul.mubr.f32.gmra.mxu0 %v6954
  %v7238 = vpop.f32.mrf.mxu0
  %v7239 = vadd.f32 0.0, %v7238
  %v7240 = vpop.f32.mrf.mxu0
  %7241 = vmatprep.mubr.f32.mxu0 %v7059
  %7242 = vmatmul.mubr.f32.gmra.mxu0 %v6958
  %v7243 = vpop.f32.mrf.mxu0
  %v7244 = vadd.f32 0.0, %v7243
  %v7245 = vpop.f32.mrf.mxu0
  %7246 = vmatprep.mubr.f32.mxu0 %v7061
  %7247 = vmatmul.mubr.f32.gmra.mxu0 %v6962
  %v7248 = vpop.f32.mrf.mxu0
  %v7249 = vadd.f32 0.0, %v7248
  %v7250 = vpop.f32.mrf.mxu0
  %7251 = vmatprep.mubr.f32.mxu0 %v7063
  %7252 = vmatmul.mubr.f32.gmra.mxu0 %v6966
  %v7253 = vpop.f32.mrf.mxu0
  %v7254 = vadd.f32 0.0, %v7253
  %v7255 = vpop.f32.mrf.mxu0
  %7256 = vmatprep.mubr.f32.mxu0 %v7065
  %7257 = vmatmul.mubr.f32.gmra.mxu0 %v6970
  %v7258 = vpop.f32.mrf.mxu0
  %v7259 = vadd.f32 0.0, %v7258
  %v7260 = vpop.f32.mrf.mxu0
  %7261 = vmatprep.mubr.f32.mxu0 %v7067
  %7262 = vmatmul.mubr.f32.gmra.mxu0 %v6974
  %v7263 = vpop.f32.mrf.mxu0
  %v7264 = vadd.f32 0.0, %v7263
  %v7265 = vpop.f32.mrf.mxu0
  %7266 = vmatprep.mubr.f32.mxu0 %v7069
  %7267 = vmatmul.mubr.f32.gmra.mxu0 %v6978
  %v7268 = vpop.f32.mrf.mxu0
  %v7269 = vadd.f32 0.0, %v7268
  %v7270 = vpop.f32.mrf.mxu0
  %7271 = vmatprep.mubr.f32.mxu0 %v7071
  %7272 = vmatmul.mubr.f32.gmra.mxu0 %v6982
  %v7273 = vpop.f32.mrf.mxu0
  %v7274 = vadd.f32 0.0, %v7273
  %v7275 = vpop.f32.mrf.mxu0
  %7276 = vmatprep.mubr.f32.mxu0 %v7073
  %7277 = vmatmul.mubr.f32.gmra.mxu0 %v6986
  %v7278 = vpop.f32.mrf.mxu0
  %v7279 = vadd.f32 0.0, %v7278
  %v7280 = vpop.f32.mrf.mxu0
  %7281 = vmatprep.mubr.f32.mxu0 %v7075
  %7282 = vmatmul.mubr.f32.gmra.mxu0 %v6985
  %v7283 = vpop.f32.mrf.mxu0
  %v7284 = vadd.f32 0.0, %v7283
  %v7285 = vpop.f32.mrf.mxu0
  %7286 = vdwg.mxu0
  %v7287 = vsel %vm7018, %v6756, 0
  %v7289 = vsel %vm7018, %v6758, 0
  %v7291 = vsel %vm7018, %v6760, 0
  %v7293 = vsel %vm7018, %v6762, 0
  %v7295 = vsel %vm7018, %v6764, 0
  %v7297 = vsel %vm7018, %v6766, 0
  %v7299 = vsel %vm7018, %v6768, 0
  %v7301 = vsel %vm7018, %v6770, 0
  %v7303 = vsel %vm7018, %v6772, 0
  %v7305 = vsel %vm7018, %v6774, 0
  %v7307 = vsel %vm7018, %v6776, 0
  %v7309 = vsel %vm7018, %v6778, 0
  %v7311 = vsel %vm7018, %v6780, 0
  %v7313 = vsel %vm7018, %v6782, 0
  %v7315 = vsel %vm7018, %v6784, 0
  %v7317 = vsel %vm7018, %v6786, 0
  %v7319 = vsel %vm7018, %v6788, 0
  %v7321 = vsel %vm7018, %v6790, 0
  %v7323 = vsel %vm7018, %v6792, 0
  %v7325 = vsel %vm7018, %v6794, 0
  %v7327 = vsel %vm7018, %v6796, 0
  %v7329 = vsel %vm7018, %v6798, 0
  %v7331 = vsel %vm7018, %v6800, 0
  %v7333 = vsel %vm7018, %v6802, 0
  %v7335 = vsel %vm7018, %v6804, 0
  %v7337 = vsel %vm7018, %v6806, 0
  %v7339 = vsel %vm7018, %v6808, 0
  %v7341 = vsel %vm7018, %v6810, 0
  %v7343 = vsel %vm7018, %v6812, 0
  %7345 = vmatprep.subr.mxu0 0.0
  %7346 = vmatpush1.msra.mxu0 %v329
  %7347 = vmatprep.subr.mxu0 0.0
  %7348 = vmatpush1.msra.mxu0 %v328
  %7349 = vmatprep.subr.mxu0 0.0
  %7350 = vmatpush1.msra.mxu0 %v327
  %7351 = vmatprep.subr.mxu0 0.0
  %7352 = vmatpush1.msra.mxu0 %v326
  %7353 = vmatprep.subr.mxu0 0.0
  %7354 = vmatpush1.msra.mxu0 %v325
  %7355 = vmatprep.subr.mxu0 0.0
  %7356 = vmatpush1.msra.mxu0 %v324
  %7357 = vmatprep.subr.mxu0 0.0
  %7358 = vmatpush1.msra.mxu0 %v323
  %7359 = vmatprep.subr.mxu0 0.0
  %7360 = vmatpush1.msra.mxu0 %v322
  %7361 = vmatprep.subr.mxu0 0.0
  %7362 = vmatpush1.msra.mxu0 %v321
  %7363 = vmatprep.subr.mxu0 0.0
  %7364 = vmatpush1.msra.mxu0 %v320
  %7365 = vmatprep.subr.mxu0 0.0
  %7366 = vmatpush1.msra.mxu0 %v319
  %7367 = vmatprep.subr.mxu0 0.0
  %7368 = vmatpush1.msra.mxu0 %v318
  %7369 = vmatprep.subr.mxu0 0.0
  %7370 = vmatpush1.msra.mxu0 %v317
  %7371 = vmatprep.subr.mxu0 0.0
  %7372 = vmatpush1.msra.mxu0 %v316
  %7373 = vmatprep.subr.mxu0 0.0
  %7374 = vmatpush1.msra.mxu0 %v315
  %7375 = vmatprep.subr.mxu0 0.0
  %7376 = vmatpush1.msra.mxu0 %v314
  %7377 = vmatprep.subr.mxu0 0.0
  %7378 = vmatpush2.msra.mxu0 0.0
  %7379 = vmatprep.subr.mxu0 0.0
  %7380 = vmatpush2.msra.mxu0 0.0
  %7381 = vmatprep.subr.mxu0 0.0
  %7382 = vmatpush2.msra.mxu0 0.0
  %7383 = vmatprep.subr.mxu0 0.0
  %7384 = vmatpush2.msra.mxu0 0.0
  %7385 = vmatprep.subr.mxu0 0.0
  %7386 = vmatpush2.msra.mxu0 0.0
  %7387 = vmatprep.subr.mxu0 0.0
  %7388 = vmatpush2.msra.mxu0 0.0
  %7389 = vmatprep.subr.mxu0 0.0
  %7390 = vmatpush2.msra.mxu0 0.0
  %7391 = vmatprep.subr.mxu0 0.0
  %7392 = vmatpush2.msra.mxu0 0.0
  %7393 = vmatprep.subr.mxu0 0.0
  %7394 = vmatpush2.msra.mxu0 0.0
  %7395 = vmatprep.subr.mxu0 0.0
  %7396 = vmatpush2.msra.mxu0 0.0
  %7397 = vmatprep.subr.mxu0 0.0
  %7398 = vmatpush2.msra.mxu0 0.0
  %7399 = vmatprep.subr.mxu0 0.0
  %7400 = vmatpush2.msra.mxu0 0.0
  %7401 = vmatprep.subr.mxu0 0.0
  %7402 = vmatpush2.msra.mxu0 0.0
  %7403 = vmatprep.subr.mxu0 0.0
  %7404 = vmatpush2.msra.mxu0 0.0
  %7405 = vmatprep.subr.mxu0 0.0
  %7406 = vmatpush2.msra.mxu0 %v331
  %7407 = vmatprep.subr.mxu0 0.0
  %7408 = vmatpush2.msra.mxu0 %v330
  %7409 = vmatprep.mubr.f32.mxu0 %v7287
  %7410 = vmatmul.mubr.f32.gmra.mxu0 %v6755
  %v7411 = vpop.f32.mrf.mxu0
  %v7412 = vadd.f32 %v7144, %v7411
  %v7413 = vpop.f32.mrf.mxu0
  %7414 = vmatprep.mubr.f32.mxu0 %v7289
  %7415 = vmatmul.mubr.f32.gmra.mxu0 %v6757
  %v7416 = vpop.f32.mrf.mxu0
  %v7417 = vadd.f32 %v7149, %v7416
  %v7418 = vpop.f32.mrf.mxu0
  %7419 = vmatprep.mubr.f32.mxu0 %v7291
  %7420 = vmatmul.mubr.f32.gmra.mxu0 %v6759
  %v7421 = vpop.f32.mrf.mxu0
  %v7422 = vadd.f32 %v7154, %v7421
  %v7423 = vpop.f32.mrf.mxu0
  %7424 = vmatprep.mubr.f32.mxu0 %v7293
  %7425 = vmatmul.mubr.f32.gmra.mxu0 %v6761
  %v7426 = vpop.f32.mrf.mxu0
  %v7427 = vadd.f32 %v7159, %v7426
  %v7428 = vpop.f32.mrf.mxu0
  %7429 = vmatprep.mubr.f32.mxu0 %v7295
  %7430 = vmatmul.mubr.f32.gmra.mxu0 %v6763
  %v7431 = vpop.f32.mrf.mxu0
  %v7432 = vadd.f32 %v7164, %v7431
  %v7433 = vpop.f32.mrf.mxu0
  %7434 = vmatprep.mubr.f32.mxu0 %v7297
  %7435 = vmatmul.mubr.f32.gmra.mxu0 %v6765
  %v7436 = vpop.f32.mrf.mxu0
  %v7437 = vadd.f32 %v7169, %v7436
  %v7438 = vpop.f32.mrf.mxu0
  %7439 = vmatprep.mubr.f32.mxu0 %v7299
  %7440 = vmatmul.mubr.f32.gmra.mxu0 %v6767
  %v7441 = vpop.f32.mrf.mxu0
  %v7442 = vadd.f32 %v7174, %v7441
  %v7443 = vpop.f32.mrf.mxu0
  %7444 = vmatprep.mubr.f32.mxu0 %v7301
  %7445 = vmatmul.mubr.f32.gmra.mxu0 %v6769
  %v7446 = vpop.f32.mrf.mxu0
  %v7447 = vadd.f32 %v7179, %v7446
  %v7448 = vpop.f32.mrf.mxu0
  %7449 = vmatprep.mubr.f32.mxu0 %v7303
  %7450 = vmatmul.mubr.f32.gmra.mxu0 %v6771
  %v7451 = vpop.f32.mrf.mxu0
  %v7452 = vadd.f32 %v7184, %v7451
  %v7453 = vpop.f32.mrf.mxu0
  %7454 = vmatprep.mubr.f32.mxu0 %v7305
  %7455 = vmatmul.mubr.f32.gmra.mxu0 %v6773
  %v7456 = vpop.f32.mrf.mxu0
  %v7457 = vadd.f32 %v7189, %v7456
  %v7458 = vpop.f32.mrf.mxu0
  %7459 = vmatprep.mubr.f32.mxu0 %v7307
  %7460 = vmatmul.mubr.f32.gmra.mxu0 %v6775
  %v7461 = vpop.f32.mrf.mxu0
  %v7462 = vadd.f32 %v7194, %v7461
  %v7463 = vpop.f32.mrf.mxu0
  %7464 = vmatprep.mubr.f32.mxu0 %v7309
  %7465 = vmatmul.mubr.f32.gmra.mxu0 %v6777
  %v7466 = vpop.f32.mrf.mxu0
  %v7467 = vadd.f32 %v7199, %v7466
  %v7468 = vpop.f32.mrf.mxu0
  %7469 = vmatprep.mubr.f32.mxu0 %v7311
  %7470 = vmatmul.mubr.f32.gmra.mxu0 %v6779
  %v7471 = vpop.f32.mrf.mxu0
  %v7472 = vadd.f32 %v7204, %v7471
  %v7473 = vpop.f32.mrf.mxu0
  %7474 = vmatprep.mubr.f32.mxu0 %v7313
  %7475 = vmatmul.mubr.f32.gmra.mxu0 %v6781
  %v7476 = vpop.f32.mrf.mxu0
  %v7477 = vadd.f32 %v7209, %v7476
  %v7478 = vpop.f32.mrf.mxu0
  %7479 = vmatprep.mubr.f32.mxu0 %v7315
  %7480 = vmatmul.mubr.f32.gmra.mxu0 %v6783
  %v7481 = vpop.f32.mrf.mxu0
  %v7482 = vadd.f32 %v7214, %v7481
  %v7483 = vpop.f32.mrf.mxu0
  %7484 = vmatprep.mubr.f32.mxu0 %v7317
  %7485 = vmatmul.mubr.f32.gmra.mxu0 %v6785
  %v7486 = vpop.f32.mrf.mxu0
  %v7487 = vadd.f32 %v7219, %v7486
  %v7488 = vpop.f32.mrf.mxu0
  %7489 = vmatprep.mubr.f32.mxu0 %v7319
  %7490 = vmatmul.mubr.f32.gmra.mxu0 %v6787
  %v7491 = vpop.f32.mrf.mxu0
  %v7492 = vadd.f32 %v7224, %v7491
  %v7493 = vpop.f32.mrf.mxu0
  %7494 = vmatprep.mubr.f32.mxu0 %v7321
  %7495 = vmatmul.mubr.f32.gmra.mxu0 %v6789
  %v7496 = vpop.f32.mrf.mxu0
  %v7497 = vadd.f32 %v7229, %v7496
  %v7498 = vpop.f32.mrf.mxu0
  %7499 = vmatprep.mubr.f32.mxu0 %v7323
  %7500 = vmatmul.mubr.f32.gmra.mxu0 %v6791
  %v7501 = vpop.f32.mrf.mxu0
  %v7502 = vadd.f32 %v7234, %v7501
  %v7503 = vpop.f32.mrf.mxu0
  %7504 = vmatprep.mubr.f32.mxu0 %v7325
  %7505 = vmatmul.mubr.f32.gmra.mxu0 %v6793
  %v7506 = vpop.f32.mrf.mxu0
  %v7507 = vadd.f32 %v7239, %v7506
  %v7508 = vpop.f32.mrf.mxu0
  %7509 = vmatprep.mubr.f32.mxu0 %v7327
  %7510 = vmatmul.mubr.f32.gmra.mxu0 %v6795
  %v7511 = vpop.f32.mrf.mxu0
  %v7512 = vadd.f32 %v7244, %v7511
  %v7513 = vpop.f32.mrf.mxu0
  %7514 = vmatprep.mubr.f32.mxu0 %v7329
  %7515 = vmatmul.mubr.f32.gmra.mxu0 %v6797
  %v7516 = vpop.f32.mrf.mxu0
  %v7517 = vadd.f32 %v7249, %v7516
  %v7518 = vpop.f32.mrf.mxu0
  %7519 = vmatprep.mubr.f32.mxu0 %v7331
  %7520 = vmatmul.mubr.f32.gmra.mxu0 %v6799
  %v7521 = vpop.f32.mrf.mxu0
  %v7522 = vadd.f32 %v7254, %v7521
  %v7523 = vpop.f32.mrf.mxu0
  %7524 = vmatprep.mubr.f32.mxu0 %v7333
  %7525 = vmatmul.mubr.f32.gmra.mxu0 %v6801
  %v7526 = vpop.f32.mrf.mxu0
  %v7527 = vadd.f32 %v7259, %v7526
  %v7528 = vpop.f32.mrf.mxu0
  %7529 = vmatprep.mubr.f32.mxu0 %v7335
  %7530 = vmatmul.mubr.f32.gmra.mxu0 %v6803
  %v7531 = vpop.f32.mrf.mxu0
  %v7532 = vadd.f32 %v7264, %v7531
  %v7533 = vpop.f32.mrf.mxu0
  %7534 = vmatprep.mubr.f32.mxu0 %v7337
  %7535 = vmatmul.mubr.f32.gmra.mxu0 %v6805
  %v7536 = vpop.f32.mrf.mxu0
  %v7537 = vadd.f32 %v7269, %v7536
  %v7538 = vpop.f32.mrf.mxu0
  %7539 = vmatprep.mubr.f32.mxu0 %v7339
  %7540 = vmatmul.mubr.f32.gmra.mxu0 %v6807
  %v7541 = vpop.f32.mrf.mxu0
  %v7542 = vadd.f32 %v7274, %v7541
  %v7543 = vpop.f32.mrf.mxu0
  %7544 = vmatprep.mubr.f32.mxu0 %v7341
  %7545 = vmatmul.mubr.f32.gmra.mxu0 %v6809
  %v7546 = vpop.f32.mrf.mxu0
  %v7547 = vadd.f32 %v7279, %v7546
  %v7548 = vpop.f32.mrf.mxu0
  %7549 = vmatprep.mubr.f32.mxu0 %v7343
  %7550 = vmatmul.mubr.f32.gmra.mxu0 %v6811
  %v7551 = vpop.f32.mrf.mxu0
  %v7552 = vadd.f32 %v7284, %v7551
  %v7553 = vpop.f32.mrf.mxu0
  %7554 = vdwg.mxu0
  %v7556 = vsel %vm7018, %v6814, 0
  %7558 = vmatprep.subr.mxu0 0.0
  %7559 = vmatpush1.msra.mxu0 %v365
  %7560 = vmatprep.subr.mxu0 0.0
  %7561 = vmatpush1.msra.mxu0 %v364
  %7562 = vmatprep.subr.mxu0 0.0
  %7563 = vmatpush1.msra.mxu0 %v363
  %7564 = vmatprep.subr.mxu0 0.0
  %7565 = vmatpush1.msra.mxu0 %v362
  %7566 = vmatprep.subr.mxu0 0.0
  %7567 = vmatpush1.msra.mxu0 %v361
  %7568 = vmatprep.subr.mxu0 0.0
  %7569 = vmatpush1.msra.mxu0 %v360
  %7570 = vmatprep.subr.mxu0 0.0
  %7571 = vmatpush1.msra.mxu0 %v359
  %7572 = vmatprep.subr.mxu0 0.0
  %7573 = vmatpush1.msra.mxu0 %v358
  %7574 = vmatprep.subr.mxu0 0.0
  %7575 = vmatpush1.msra.mxu0 %v357
  %7576 = vmatprep.subr.mxu0 0.0
  %7577 = vmatpush1.msra.mxu0 %v356
  %7578 = vmatprep.subr.mxu0 0.0
  %7579 = vmatpush1.msra.mxu0 %v355
  %7580 = vmatprep.subr.mxu0 0.0
  %7581 = vmatpush1.msra.mxu0 %v354
  %7582 = vmatprep.subr.mxu0 0.0
  %7583 = vmatpush1.msra.mxu0 %v353
  %7584 = vmatprep.subr.mxu0 0.0
  %7585 = vmatpush1.msra.mxu0 %v352
  %7586 = vmatprep.subr.mxu0 0.0
  %7587 = vmatpush1.msra.mxu0 %v351
  %7588 = vmatprep.subr.mxu0 0.0
  %7589 = vmatpush1.msra.mxu0 %v350
  %7590 = vmatprep.subr.mxu0 0.0
  %7591 = vmatpush2.msra.mxu0 0.0
  %7592 = vmatprep.subr.mxu0 0.0
  %7593 = vmatpush2.msra.mxu0 0.0
  %7594 = vmatprep.subr.mxu0 0.0
  %7595 = vmatpush2.msra.mxu0 0.0
  %7596 = vmatprep.subr.mxu0 0.0
  %7597 = vmatpush2.msra.mxu0 0.0
  %7598 = vmatprep.subr.mxu0 0.0
  %7599 = vmatpush2.msra.mxu0 0.0
  %7600 = vmatprep.subr.mxu0 0.0
  %7601 = vmatpush2.msra.mxu0 0.0
  %7602 = vmatprep.subr.mxu0 0.0
  %7603 = vmatpush2.msra.mxu0 0.0
  %7604 = vmatprep.subr.mxu0 0.0
  %7605 = vmatpush2.msra.mxu0 0.0
  %7606 = vmatprep.subr.mxu0 0.0
  %7607 = vmatpush2.msra.mxu0 0.0
  %7608 = vmatprep.subr.mxu0 0.0
  %7609 = vmatpush2.msra.mxu0 0.0
  %7610 = vmatprep.subr.mxu0 0.0
  %7611 = vmatpush2.msra.mxu0 0.0
  %7612 = vmatprep.subr.mxu0 0.0
  %7613 = vmatpush2.msra.mxu0 0.0
  %7614 = vmatprep.subr.mxu0 0.0
  %7615 = vmatpush2.msra.mxu0 0.0
  %7616 = vmatprep.subr.mxu0 0.0
  %7617 = vmatpush2.msra.mxu0 0.0
  %7618 = vmatprep.subr.mxu0 0.0
  %7619 = vmatpush2.msra.mxu0 %v367
  %7620 = vmatprep.subr.mxu0 0.0
  %7621 = vmatpush2.msra.mxu0 %v366
  %7622 = vmatprep.mubr.f32.mxu0 %v7289
  %7623 = vmatmul.mubr.f32.gmra.mxu0 %v6757
  %v7624 = vpop.f32.mrf.mxu0
  %v7625 = vadd.f32 0.0, %v7624
  %v7626 = vpop.f32.mrf.mxu0
  %7627 = vmatprep.mubr.f32.mxu0 %v7291
  %7628 = vmatmul.mubr.f32.gmra.mxu0 %v6759
  %v7629 = vpop.f32.mrf.mxu0
  %v7630 = vadd.f32 0.0, %v7629
  %v7631 = vpop.f32.mrf.mxu0
  %7632 = vmatprep.mubr.f32.mxu0 %v7293
  %7633 = vmatmul.mubr.f32.gmra.mxu0 %v6761
  %v7634 = vpop.f32.mrf.mxu0
  %v7635 = vadd.f32 0.0, %v7634
  %v7636 = vpop.f32.mrf.mxu0
  %7637 = vmatprep.mubr.f32.mxu0 %v7295
  %7638 = vmatmul.mubr.f32.gmra.mxu0 %v6763
  %v7639 = vpop.f32.mrf.mxu0
  %v7640 = vadd.f32 0.0, %v7639
  %v7641 = vpop.f32.mrf.mxu0
  %7642 = vmatprep.mubr.f32.mxu0 %v7297
  %7643 = vmatmul.mubr.f32.gmra.mxu0 %v6765
  %v7644 = vpop.f32.mrf.mxu0
  %v7645 = vadd.f32 0.0, %v7644
  %v7646 = vpop.f32.mrf.mxu0
  %7647 = vmatprep.mubr.f32.mxu0 %v7299
  %7648 = vmatmul.mubr.f32.gmra.mxu0 %v6767
  %v7649 = vpop.f32.mrf.mxu0
  %v7650 = vadd.f32 0.0, %v7649
  %v7651 = vpop.f32.mrf.mxu0
  %7652 = vmatprep.mubr.f32.mxu0 %v7301
  %7653 = vmatmul.mubr.f32.gmra.mxu0 %v6769
  %v7654 = vpop.f32.mrf.mxu0
  %v7655 = vadd.f32 0.0, %v7654
  %v7656 = vpop.f32.mrf.mxu0
  %7657 = vmatprep.mubr.f32.mxu0 %v7303
  %7658 = vmatmul.mubr.f32.gmra.mxu0 %v6771
  %v7659 = vpop.f32.mrf.mxu0
  %v7660 = vadd.f32 0.0, %v7659
  %v7661 = vpop.f32.mrf.mxu0
  %7662 = vmatprep.mubr.f32.mxu0 %v7305
  %7663 = vmatmul.mubr.f32.gmra.mxu0 %v6773
  %v7664 = vpop.f32.mrf.mxu0
  %v7665 = vadd.f32 0.0, %v7664
  %v7666 = vpop.f32.mrf.mxu0
  %7667 = vmatprep.mubr.f32.mxu0 %v7307
  %7668 = vmatmul.mubr.f32.gmra.mxu0 %v6775
  %v7669 = vpop.f32.mrf.mxu0
  %v7670 = vadd.f32 0.0, %v7669
  %v7671 = vpop.f32.mrf.mxu0
  %7672 = vmatprep.mubr.f32.mxu0 %v7309
  %7673 = vmatmul.mubr.f32.gmra.mxu0 %v6777
  %v7674 = vpop.f32.mrf.mxu0
  %v7675 = vadd.f32 0.0, %v7674
  %v7676 = vpop.f32.mrf.mxu0
  %7677 = vmatprep.mubr.f32.mxu0 %v7311
  %7678 = vmatmul.mubr.f32.gmra.mxu0 %v6779
  %v7679 = vpop.f32.mrf.mxu0
  %v7680 = vadd.f32 0.0, %v7679
  %v7681 = vpop.f32.mrf.mxu0
  %7682 = vmatprep.mubr.f32.mxu0 %v7313
  %7683 = vmatmul.mubr.f32.gmra.mxu0 %v6781
  %v7684 = vpop.f32.mrf.mxu0
  %v7685 = vadd.f32 0.0, %v7684
  %v7686 = vpop.f32.mrf.mxu0
  %7687 = vmatprep.mubr.f32.mxu0 %v7315
  %7688 = vmatmul.mubr.f32.gmra.mxu0 %v6783
  %v7689 = vpop.f32.mrf.mxu0
  %v7690 = vadd.f32 0.0, %v7689
  %v7691 = vpop.f32.mrf.mxu0
  %7692 = vmatprep.mubr.f32.mxu0 %v7317
  %7693 = vmatmul.mubr.f32.gmra.mxu0 %v6785
  %v7694 = vpop.f32.mrf.mxu0
  %v7695 = vadd.f32 0.0, %v7694
  %v7696 = vpop.f32.mrf.mxu0
  %7697 = vmatprep.mubr.f32.mxu0 %v7319
  %7698 = vmatmul.mubr.f32.gmra.mxu0 %v6787
  %v7699 = vpop.f32.mrf.mxu0
  %v7700 = vadd.f32 0.0, %v7699
  %v7701 = vpop.f32.mrf.mxu0
  %7702 = vmatprep.mubr.f32.mxu0 %v7321
  %7703 = vmatmul.mubr.f32.gmra.mxu0 %v6789
  %v7704 = vpop.f32.mrf.mxu0
  %v7705 = vadd.f32 0.0, %v7704
  %v7706 = vpop.f32.mrf.mxu0
  %7707 = vmatprep.mubr.f32.mxu0 %v7323
  %7708 = vmatmul.mubr.f32.gmra.mxu0 %v6791
  %v7709 = vpop.f32.mrf.mxu0
  %v7710 = vadd.f32 0.0, %v7709
  %v7711 = vpop.f32.mrf.mxu0
  %7712 = vmatprep.mubr.f32.mxu0 %v7325
  %7713 = vmatmul.mubr.f32.gmra.mxu0 %v6793
  %v7714 = vpop.f32.mrf.mxu0
  %v7715 = vadd.f32 0.0, %v7714
  %v7716 = vpop.f32.mrf.mxu0
  %7717 = vmatprep.mubr.f32.mxu0 %v7327
  %7718 = vmatmul.mubr.f32.gmra.mxu0 %v6795
  %v7719 = vpop.f32.mrf.mxu0
  %v7720 = vadd.f32 0.0, %v7719
  %v7721 = vpop.f32.mrf.mxu0
  %7722 = vmatprep.mubr.f32.mxu0 %v7329
  %7723 = vmatmul.mubr.f32.gmra.mxu0 %v6797
  %v7724 = vpop.f32.mrf.mxu0
  %v7725 = vadd.f32 0.0, %v7724
  %v7726 = vpop.f32.mrf.mxu0
  %7727 = vmatprep.mubr.f32.mxu0 %v7331
  %7728 = vmatmul.mubr.f32.gmra.mxu0 %v6799
  %v7729 = vpop.f32.mrf.mxu0
  %v7730 = vadd.f32 0.0, %v7729
  %v7731 = vpop.f32.mrf.mxu0
  %7732 = vmatprep.mubr.f32.mxu0 %v7333
  %7733 = vmatmul.mubr.f32.gmra.mxu0 %v6801
  %v7734 = vpop.f32.mrf.mxu0
  %v7735 = vadd.f32 0.0, %v7734
  %v7736 = vpop.f32.mrf.mxu0
  %7737 = vmatprep.mubr.f32.mxu0 %v7335
  %7738 = vmatmul.mubr.f32.gmra.mxu0 %v6803
  %v7739 = vpop.f32.mrf.mxu0
  %v7740 = vadd.f32 0.0, %v7739
  %v7741 = vpop.f32.mrf.mxu0
  %7742 = vmatprep.mubr.f32.mxu0 %v7337
  %7743 = vmatmul.mubr.f32.gmra.mxu0 %v6805
  %v7744 = vpop.f32.mrf.mxu0
  %v7745 = vadd.f32 0.0, %v7744
  %v7746 = vpop.f32.mrf.mxu0
  %7747 = vmatprep.mubr.f32.mxu0 %v7339
  %7748 = vmatmul.mubr.f32.gmra.mxu0 %v6807
  %v7749 = vpop.f32.mrf.mxu0
  %v7750 = vadd.f32 0.0, %v7749
  %v7751 = vpop.f32.mrf.mxu0
  %7752 = vmatprep.mubr.f32.mxu0 %v7341
  %7753 = vmatmul.mubr.f32.gmra.mxu0 %v6809
  %v7754 = vpop.f32.mrf.mxu0
  %v7755 = vadd.f32 0.0, %v7754
  %v7756 = vpop.f32.mrf.mxu0
  %7757 = vmatprep.mubr.f32.mxu0 %v7343
  %7758 = vmatmul.mubr.f32.gmra.mxu0 %v6811
  %v7759 = vpop.f32.mrf.mxu0
  %v7760 = vadd.f32 0.0, %v7759
  %v7761 = vpop.f32.mrf.mxu0
  %7762 = vmatprep.mubr.f32.mxu0 %v7556
  %7763 = vmatmul.mubr.f32.gmra.mxu0 %v6813
  %v7764 = vpop.f32.mrf.mxu0
  %v7765 = vadd.f32 0.0, %v7764
  %v7766 = vpop.f32.mrf.mxu0
  %7767 = vdwg.mxu0
  %v7768 = vadd.f32 %v7412, %v7625
  %v7769 = vadd.f32 %v7417, %v7630
  %v7770 = vadd.f32 %v7422, %v7635
  %v7771 = vadd.f32 %v7427, %v7640
  %v7772 = vadd.f32 %v7432, %v7645
  %v7773 = vadd.f32 %v7437, %v7650
  %v7774 = vadd.f32 %v7442, %v7655
  %v7775 = vadd.f32 %v7447, %v7660
  %v7776 = vadd.f32 %v7452, %v7665
  %v7777 = vadd.f32 %v7457, %v7670
  %v7778 = vadd.f32 %v7462, %v7675
  %v7779 = vadd.f32 %v7467, %v7680
  %v7780 = vadd.f32 %v7472, %v7685
  %v7781 = vadd.f32 %v7477, %v7690
  %v7782 = vadd.f32 %v7482, %v7695
  %v7783 = vadd.f32 %v7487, %v7700
  %v7784 = vadd.f32 %v7492, %v7705
  %v7785 = vadd.f32 %v7497, %v7710
  %v7786 = vadd.f32 %v7502, %v7715
  %v7787 = vadd.f32 %v7507, %v7720
  %v7788 = vadd.f32 %v7512, %v7725
  %v7789 = vadd.f32 %v7517, %v7730
  %v7790 = vadd.f32 %v7522, %v7735
  %v7791 = vadd.f32 %v7527, %v7740
  %v7792 = vadd.f32 %v7532, %v7745
  %v7793 = vadd.f32 %v7537, %v7750
  %v7794 = vadd.f32 %v7542, %v7755
  %v7795 = vadd.f32 %v7547, %v7760
  %v7796 = vadd.f32 %v7552, %v7765
  %v7798 = vrot.slane %v6813, 4
  %v7799 = vsel %vm2041, %v6985, %v7798
  %v7800 = vrot.slane %v6814, 4
  %v7801 = vsel %vm2041, %v6987, %v7800
  %v7804 = vsel %vm7018, %v7801, 0
  %v7806 = vsel %vm7018, %v7800, 0
  %7808 = vmatprep.subr.mxu0 0.0
  %7809 = vmatpush1.msra.mxu0 %v383
  %7810 = vmatprep.subr.mxu0 0.0
  %7811 = vmatpush1.msra.mxu0 %v382
  %7812 = vmatprep.subr.mxu0 0.0
  %7813 = vmatpush1.msra.mxu0 %v381
  %7814 = vmatprep.subr.mxu0 0.0
  %7815 = vmatpush1.msra.mxu0 %v380
  %7816 = vmatprep.subr.mxu0 0.0
  %7817 = vmatpush1.msra.mxu0 %v379
  %7818 = vmatprep.subr.mxu0 0.0
  %7819 = vmatpush1.msra.mxu0 %v378
  %7820 = vmatprep.subr.mxu0 0.0
  %7821 = vmatpush1.msra.mxu0 %v377
  %7822 = vmatprep.subr.mxu0 0.0
  %7823 = vmatpush1.msra.mxu0 %v376
  %7824 = vmatprep.subr.mxu0 0.0
  %7825 = vmatpush1.msra.mxu0 %v375
  %7826 = vmatprep.subr.mxu0 0.0
  %7827 = vmatpush1.msra.mxu0 %v374
  %7828 = vmatprep.subr.mxu0 0.0
  %7829 = vmatpush1.msra.mxu0 %v373
  %7830 = vmatprep.subr.mxu0 0.0
  %7831 = vmatpush1.msra.mxu0 %v372
  %7832 = vmatprep.subr.mxu0 0.0
  %7833 = vmatpush1.msra.mxu0 %v371
  %7834 = vmatprep.subr.mxu0 0.0
  %7835 = vmatpush1.msra.mxu0 %v370
  %7836 = vmatprep.subr.mxu0 0.0
  %7837 = vmatpush1.msra.mxu0 %v369
  %7838 = vmatprep.subr.mxu0 0.0
  %7839 = vmatpush1.msra.mxu0 %v368
  %7840 = vmatprep.subr.mxu0 0.0
  %7841 = vmatpush2.msra.mxu0 0.0
  %7842 = vmatprep.subr.mxu0 0.0
  %7843 = vmatpush2.msra.mxu0 0.0
  %7844 = vmatprep.subr.mxu0 0.0
  %7845 = vmatpush2.msra.mxu0 0.0
  %7846 = vmatprep.subr.mxu0 0.0
  %7847 = vmatpush2.msra.mxu0 0.0
  %7848 = vmatprep.subr.mxu0 0.0
  %7849 = vmatpush2.msra.mxu0 0.0
  %7850 = vmatprep.subr.mxu0 0.0
  %7851 = vmatpush2.msra.mxu0 0.0
  %7852 = vmatprep.subr.mxu0 0.0
  %7853 = vmatpush2.msra.mxu0 0.0
  %7854 = vmatprep.subr.mxu0 0.0
  %7855 = vmatpush2.msra.mxu0 0.0
  %7856 = vmatprep.subr.mxu0 0.0
  %7857 = vmatpush2.msra.mxu0 0.0
  %7858 = vmatprep.subr.mxu0 0.0
  %7859 = vmatpush2.msra.mxu0 0.0
  %7860 = vmatprep.subr.mxu0 0.0
  %7861 = vmatpush2.msra.mxu0 0.0
  %7862 = vmatprep.subr.mxu0 0.0
  %7863 = vmatpush2.msra.mxu0 0.0
  %7864 = vmatprep.subr.mxu0 0.0
  %7865 = vmatpush2.msra.mxu0 0.0
  %7866 = vmatprep.subr.mxu0 0.0
  %7867 = vmatpush2.msra.mxu0 0.0
  %7868 = vmatprep.subr.mxu0 0.0
  %7869 = vmatpush2.msra.mxu0 %v385
  %7870 = vmatprep.subr.mxu0 0.0
  %7871 = vmatpush2.msra.mxu0 %v384
  %7872 = vmatprep.mubr.f32.mxu0 %v7021
  %7873 = vmatmul.mubr.f32.gmra.mxu0 %v6882
  %v7874 = vpop.f32.mrf.mxu0
  %v7875 = vadd.f32 0.0, %v7874
  %v7876 = vpop.f32.mrf.mxu0
  %7877 = vmatprep.mubr.f32.mxu0 %v7023
  %7878 = vmatmul.mubr.f32.gmra.mxu0 %v6886
  %v7879 = vpop.f32.mrf.mxu0
  %v7880 = vadd.f32 0.0, %v7879
  %v7881 = vpop.f32.mrf.mxu0
  %7882 = vmatprep.mubr.f32.mxu0 %v7025
  %7883 = vmatmul.mubr.f32.gmra.mxu0 %v6890
  %v7884 = vpop.f32.mrf.mxu0
  %v7885 = vadd.f32 0.0, %v7884
  %v7886 = vpop.f32.mrf.mxu0
  %7887 = vmatprep.mubr.f32.mxu0 %v7027
  %7888 = vmatmul.mubr.f32.gmra.mxu0 %v6894
  %v7889 = vpop.f32.mrf.mxu0
  %v7890 = vadd.f32 0.0, %v7889
  %v7891 = vpop.f32.mrf.mxu0
  %7892 = vmatprep.mubr.f32.mxu0 %v7029
  %7893 = vmatmul.mubr.f32.gmra.mxu0 %v6898
  %v7894 = vpop.f32.mrf.mxu0
  %v7895 = vadd.f32 0.0, %v7894
  %v7896 = vpop.f32.mrf.mxu0
  %7897 = vmatprep.mubr.f32.mxu0 %v7031
  %7898 = vmatmul.mubr.f32.gmra.mxu0 %v6902
  %v7899 = vpop.f32.mrf.mxu0
  %v7900 = vadd.f32 0.0, %v7899
  %v7901 = vpop.f32.mrf.mxu0
  %7902 = vmatprep.mubr.f32.mxu0 %v7033
  %7903 = vmatmul.mubr.f32.gmra.mxu0 %v6906
  %v7904 = vpop.f32.mrf.mxu0
  %v7905 = vadd.f32 0.0, %v7904
  %v7906 = vpop.f32.mrf.mxu0
  %7907 = vmatprep.mubr.f32.mxu0 %v7035
  %7908 = vmatmul.mubr.f32.gmra.mxu0 %v6910
  %v7909 = vpop.f32.mrf.mxu0
  %v7910 = vadd.f32 0.0, %v7909
  %v7911 = vpop.f32.mrf.mxu0
  %7912 = vmatprep.mubr.f32.mxu0 %v7037
  %7913 = vmatmul.mubr.f32.gmra.mxu0 %v6914
  %v7914 = vpop.f32.mrf.mxu0
  %v7915 = vadd.f32 0.0, %v7914
  %v7916 = vpop.f32.mrf.mxu0
  %7917 = vmatprep.mubr.f32.mxu0 %v7039
  %7918 = vmatmul.mubr.f32.gmra.mxu0 %v6918
  %v7919 = vpop.f32.mrf.mxu0
  %v7920 = vadd.f32 0.0, %v7919
  %v7921 = vpop.f32.mrf.mxu0
  %7922 = vmatprep.mubr.f32.mxu0 %v7041
  %7923 = vmatmul.mubr.f32.gmra.mxu0 %v6922
  %v7924 = vpop.f32.mrf.mxu0
  %v7925 = vadd.f32 0.0, %v7924
  %v7926 = vpop.f32.mrf.mxu0
  %7927 = vmatprep.mubr.f32.mxu0 %v7043
  %7928 = vmatmul.mubr.f32.gmra.mxu0 %v6926
  %v7929 = vpop.f32.mrf.mxu0
  %v7930 = vadd.f32 0.0, %v7929
  %v7931 = vpop.f32.mrf.mxu0
  %7932 = vmatprep.mubr.f32.mxu0 %v7045
  %7933 = vmatmul.mubr.f32.gmra.mxu0 %v6930
  %v7934 = vpop.f32.mrf.mxu0
  %v7935 = vadd.f32 0.0, %v7934
  %v7936 = vpop.f32.mrf.mxu0
  %7937 = vmatprep.mubr.f32.mxu0 %v7047
  %7938 = vmatmul.mubr.f32.gmra.mxu0 %v6934
  %v7939 = vpop.f32.mrf.mxu0
  %v7940 = vadd.f32 0.0, %v7939
  %v7941 = vpop.f32.mrf.mxu0
  %7942 = vmatprep.mubr.f32.mxu0 %v7049
  %7943 = vmatmul.mubr.f32.gmra.mxu0 %v6938
  %v7944 = vpop.f32.mrf.mxu0
  %v7945 = vadd.f32 0.0, %v7944
  %v7946 = vpop.f32.mrf.mxu0
  %7947 = vmatprep.mubr.f32.mxu0 %v7051
  %7948 = vmatmul.mubr.f32.gmra.mxu0 %v6942
  %v7949 = vpop.f32.mrf.mxu0
  %v7950 = vadd.f32 0.0, %v7949
  %v7951 = vpop.f32.mrf.mxu0
  %7952 = vmatprep.mubr.f32.mxu0 %v7053
  %7953 = vmatmul.mubr.f32.gmra.mxu0 %v6946
  %v7954 = vpop.f32.mrf.mxu0
  %v7955 = vadd.f32 0.0, %v7954
  %v7956 = vpop.f32.mrf.mxu0
  %7957 = vmatprep.mubr.f32.mxu0 %v7055
  %7958 = vmatmul.mubr.f32.gmra.mxu0 %v6950
  %v7959 = vpop.f32.mrf.mxu0
  %v7960 = vadd.f32 0.0, %v7959
  %v7961 = vpop.f32.mrf.mxu0
  %7962 = vmatprep.mubr.f32.mxu0 %v7057
  %7963 = vmatmul.mubr.f32.gmra.mxu0 %v6954
  %v7964 = vpop.f32.mrf.mxu0
  %v7965 = vadd.f32 0.0, %v7964
  %v7966 = vpop.f32.mrf.mxu0
  %7967 = vmatprep.mubr.f32.mxu0 %v7059
  %7968 = vmatmul.mubr.f32.gmra.mxu0 %v6958
  %v7969 = vpop.f32.mrf.mxu0
  %v7970 = vadd.f32 0.0, %v7969
  %v7971 = vpop.f32.mrf.mxu0
  %7972 = vmatprep.mubr.f32.mxu0 %v7061
  %7973 = vmatmul.mubr.f32.gmra.mxu0 %v6962
  %v7974 = vpop.f32.mrf.mxu0
  %v7975 = vadd.f32 0.0, %v7974
  %v7976 = vpop.f32.mrf.mxu0
  %7977 = vmatprep.mubr.f32.mxu0 %v7063
  %7978 = vmatmul.mubr.f32.gmra.mxu0 %v6966
  %v7979 = vpop.f32.mrf.mxu0
  %v7980 = vadd.f32 0.0, %v7979
  %v7981 = vpop.f32.mrf.mxu0
  %7982 = vmatprep.mubr.f32.mxu0 %v7065
  %7983 = vmatmul.mubr.f32.gmra.mxu0 %v6970
  %v7984 = vpop.f32.mrf.mxu0
  %v7985 = vadd.f32 0.0, %v7984
  %v7986 = vpop.f32.mrf.mxu0
  %7987 = vmatprep.mubr.f32.mxu0 %v7067
  %7988 = vmatmul.mubr.f32.gmra.mxu0 %v6974
  %v7989 = vpop.f32.mrf.mxu0
  %v7990 = vadd.f32 0.0, %v7989
  %v7991 = vpop.f32.mrf.mxu0
  %7992 = vmatprep.mubr.f32.mxu0 %v7069
  %7993 = vmatmul.mubr.f32.gmra.mxu0 %v6978
  %v7994 = vpop.f32.mrf.mxu0
  %v7995 = vadd.f32 0.0, %v7994
  %v7996 = vpop.f32.mrf.mxu0
  %7997 = vmatprep.mubr.f32.mxu0 %v7071
  %7998 = vmatmul.mubr.f32.gmra.mxu0 %v6982
  %v7999 = vpop.f32.mrf.mxu0
  %v8000 = vadd.f32 0.0, %v7999
  %v8001 = vpop.f32.mrf.mxu0
  %8002 = vmatprep.mubr.f32.mxu0 %v7073
  %8003 = vmatmul.mubr.f32.gmra.mxu0 %v6986
  %v8004 = vpop.f32.mrf.mxu0
  %v8005 = vadd.f32 0.0, %v8004
  %v8006 = vpop.f32.mrf.mxu0
  %8007 = vmatprep.mubr.f32.mxu0 %v7804
  %8008 = vmatmul.mubr.f32.gmra.mxu0 %v7799
  %v8009 = vpop.f32.mrf.mxu0
  %v8010 = vadd.f32 0.0, %v8009
  %v8011 = vpop.f32.mrf.mxu0
  %8012 = vmatprep.mubr.f32.mxu0 %v7806
  %8013 = vmatmul.mubr.f32.gmra.mxu0 %v7798
  %v8014 = vpop.f32.mrf.mxu0
  %v8015 = vadd.f32 0.0, %v8014
  %v8016 = vpop.f32.mrf.mxu0
  %8017 = vdwg.mxu0
  %v8018 = vadd.f32 %v7768, %v7875
  %v8019 = vadd.f32 %v7769, %v7880
  %v8020 = vadd.f32 %v7770, %v7885
  %v8021 = vadd.f32 %v7771, %v7890
  %v8022 = vadd.f32 %v7772, %v7895
  %v8023 = vadd.f32 %v7773, %v7900
  %v8024 = vadd.f32 %v7774, %v7905
  %v8025 = vadd.f32 %v7775, %v7910
  %v8026 = vadd.f32 %v7776, %v7915
  %v8027 = vadd.f32 %v7777, %v7920
  %v8028 = vadd.f32 %v7778, %v7925
  %v8029 = vadd.f32 %v7779, %v7930
  %v8030 = vadd.f32 %v7780, %v7935
  %v8031 = vadd.f32 %v7781, %v7940
  %v8032 = vadd.f32 %v7782, %v7945
  %v8033 = vadd.f32 %v7783, %v7950
  %v8034 = vadd.f32 %v7784, %v7955
  %v8035 = vadd.f32 %v7785, %v7960
  %v8036 = vadd.f32 %v7786, %v7965
  %v8037 = vadd.f32 %v7787, %v7970
  %v8038 = vadd.f32 %v7788, %v7975
  %v8039 = vadd.f32 %v7789, %v7980
  %v8040 = vadd.f32 %v7790, %v7985
  %v8041 = vadd.f32 %v7791, %v7990
  %v8042 = vadd.f32 %v7792, %v7995
  %v8043 = vadd.f32 %v7793, %v8000
  %v8044 = vadd.f32 %v7794, %v8005
  %v8045 = vadd.f32 %v7795, %v8010
  %v8046 = vadd.f32 %v7796, %v8015
  %v8048 = vsel %vm7018, %v6816, 0
  %8050 = vmatprep.subr.mxu0 0.0
  %8051 = vmatpush1.msra.mxu0 %v401
  %8052 = vmatprep.subr.mxu0 0.0
  %8053 = vmatpush1.msra.mxu0 %v400
  %8054 = vmatprep.subr.mxu0 0.0
  %8055 = vmatpush1.msra.mxu0 %v399
  %8056 = vmatprep.subr.mxu0 0.0
  %8057 = vmatpush1.msra.mxu0 %v398
  %8058 = vmatprep.subr.mxu0 0.0
  %8059 = vmatpush1.msra.mxu0 %v397
  %8060 = vmatprep.subr.mxu0 0.0
  %8061 = vmatpush1.msra.mxu0 %v396
  %8062 = vmatprep.subr.mxu0 0.0
  %8063 = vmatpush1.msra.mxu0 %v395
  %8064 = vmatprep.subr.mxu0 0.0
  %8065 = vmatpush1.msra.mxu0 %v394
  %8066 = vmatprep.subr.mxu0 0.0
  %8067 = vmatpush1.msra.mxu0 %v393
  %8068 = vmatprep.subr.mxu0 0.0
  %8069 = vmatpush1.msra.mxu0 %v392
  %8070 = vmatprep.subr.mxu0 0.0
  %8071 = vmatpush1.msra.mxu0 %v391
  %8072 = vmatprep.subr.mxu0 0.0
  %8073 = vmatpush1.msra.mxu0 %v390
  %8074 = vmatprep.subr.mxu0 0.0
  %8075 = vmatpush1.msra.mxu0 %v389
  %8076 = vmatprep.subr.mxu0 0.0
  %8077 = vmatpush1.msra.mxu0 %v388
  %8078 = vmatprep.subr.mxu0 0.0
  %8079 = vmatpush1.msra.mxu0 %v387
  %8080 = vmatprep.subr.mxu0 0.0
  %8081 = vmatpush1.msra.mxu0 %v386
  %8082 = vmatprep.subr.mxu0 0.0
  %8083 = vmatpush2.msra.mxu0 0.0
  %8084 = vmatprep.subr.mxu0 0.0
  %8085 = vmatpush2.msra.mxu0 0.0
  %8086 = vmatprep.subr.mxu0 0.0
  %8087 = vmatpush2.msra.mxu0 0.0
  %8088 = vmatprep.subr.mxu0 0.0
  %8089 = vmatpush2.msra.mxu0 0.0
  %8090 = vmatprep.subr.mxu0 0.0
  %8091 = vmatpush2.msra.mxu0 0.0
  %8092 = vmatprep.subr.mxu0 0.0
  %8093 = vmatpush2.msra.mxu0 0.0
  %8094 = vmatprep.subr.mxu0 0.0
  %8095 = vmatpush2.msra.mxu0 0.0
  %8096 = vmatprep.subr.mxu0 0.0
  %8097 = vmatpush2.msra.mxu0 0.0
  %8098 = vmatprep.subr.mxu0 0.0
  %8099 = vmatpush2.msra.mxu0 0.0
  %8100 = vmatprep.subr.mxu0 0.0
  %8101 = vmatpush2.msra.mxu0 0.0
  %8102 = vmatprep.subr.mxu0 0.0
  %8103 = vmatpush2.msra.mxu0 0.0
  %8104 = vmatprep.subr.mxu0 0.0
  %8105 = vmatpush2.msra.mxu0 0.0
  %8106 = vmatprep.subr.mxu0 0.0
  %8107 = vmatpush2.msra.mxu0 0.0
  %8108 = vmatprep.subr.mxu0 0.0
  %8109 = vmatpush2.msra.mxu0 0.0
  %8110 = vmatprep.subr.mxu0 0.0
  %8111 = vmatpush2.msra.mxu0 %v403
  %8112 = vmatprep.subr.mxu0 0.0
  %8113 = vmatpush2.msra.mxu0 %v402
  %8114 = vmatprep.mubr.f32.mxu0 %v7291
  %8115 = vmatmul.mubr.f32.gmra.mxu0 %v6759
  %v8116 = vpop.f32.mrf.mxu0
  %v8117 = vadd.f32 0.0, %v8116
  %v8118 = vpop.f32.mrf.mxu0
  %8119 = vmatprep.mubr.f32.mxu0 %v7293
  %8120 = vmatmul.mubr.f32.gmra.mxu0 %v6761
  %v8121 = vpop.f32.mrf.mxu0
  %v8122 = vadd.f32 0.0, %v8121
  %v8123 = vpop.f32.mrf.mxu0
  %8124 = vmatprep.mubr.f32.mxu0 %v7295
  %8125 = vmatmul.mubr.f32.gmra.mxu0 %v6763
  %v8126 = vpop.f32.mrf.mxu0
  %v8127 = vadd.f32 0.0, %v8126
  %v8128 = vpop.f32.mrf.mxu0
  %8129 = vmatprep.mubr.f32.mxu0 %v7297
  %8130 = vmatmul.mubr.f32.gmra.mxu0 %v6765
  %v8131 = vpop.f32.mrf.mxu0
  %v8132 = vadd.f32 0.0, %v8131
  %v8133 = vpop.f32.mrf.mxu0
  %8134 = vmatprep.mubr.f32.mxu0 %v7299
  %8135 = vmatmul.mubr.f32.gmra.mxu0 %v6767
  %v8136 = vpop.f32.mrf.mxu0
  %v8137 = vadd.f32 0.0, %v8136
  %v8138 = vpop.f32.mrf.mxu0
  %8139 = vmatprep.mubr.f32.mxu0 %v7301
  %8140 = vmatmul.mubr.f32.gmra.mxu0 %v6769
  %v8141 = vpop.f32.mrf.mxu0
  %v8142 = vadd.f32 0.0, %v8141
  %v8143 = vpop.f32.mrf.mxu0
  %8144 = vmatprep.mubr.f32.mxu0 %v7303
  %8145 = vmatmul.mubr.f32.gmra.mxu0 %v6771
  %v8146 = vpop.f32.mrf.mxu0
  %v8147 = vadd.f32 0.0, %v8146
  %v8148 = vpop.f32.mrf.mxu0
  %8149 = vmatprep.mubr.f32.mxu0 %v7305
  %8150 = vmatmul.mubr.f32.gmra.mxu0 %v6773
  %v8151 = vpop.f32.mrf.mxu0
  %v8152 = vadd.f32 0.0, %v8151
  %v8153 = vpop.f32.mrf.mxu0
  %8154 = vmatprep.mubr.f32.mxu0 %v7307
  %8155 = vmatmul.mubr.f32.gmra.mxu0 %v6775
  %v8156 = vpop.f32.mrf.mxu0
  %v8157 = vadd.f32 0.0, %v8156
  %v8158 = vpop.f32.mrf.mxu0
  %8159 = vmatprep.mubr.f32.mxu0 %v7309
  %8160 = vmatmul.mubr.f32.gmra.mxu0 %v6777
  %v8161 = vpop.f32.mrf.mxu0
  %v8162 = vadd.f32 0.0, %v8161
  %v8163 = vpop.f32.mrf.mxu0
  %8164 = vmatprep.mubr.f32.mxu0 %v7311
  %8165 = vmatmul.mubr.f32.gmra.mxu0 %v6779
  %v8166 = vpop.f32.mrf.mxu0
  %v8167 = vadd.f32 0.0, %v8166
  %v8168 = vpop.f32.mrf.mxu0
  %8169 = vmatprep.mubr.f32.mxu0 %v7313
  %8170 = vmatmul.mubr.f32.gmra.mxu0 %v6781
  %v8171 = vpop.f32.mrf.mxu0
  %v8172 = vadd.f32 0.0, %v8171
  %v8173 = vpop.f32.mrf.mxu0
  %8174 = vmatprep.mubr.f32.mxu0 %v7315
  %8175 = vmatmul.mubr.f32.gmra.mxu0 %v6783
  %v8176 = vpop.f32.mrf.mxu0
  %v8177 = vadd.f32 0.0, %v8176
  %v8178 = vpop.f32.mrf.mxu0
  %8179 = vmatprep.mubr.f32.mxu0 %v7317
  %8180 = vmatmul.mubr.f32.gmra.mxu0 %v6785
  %v8181 = vpop.f32.mrf.mxu0
  %v8182 = vadd.f32 0.0, %v8181
  %v8183 = vpop.f32.mrf.mxu0
  %8184 = vmatprep.mubr.f32.mxu0 %v7319
  %8185 = vmatmul.mubr.f32.gmra.mxu0 %v6787
  %v8186 = vpop.f32.mrf.mxu0
  %v8187 = vadd.f32 0.0, %v8186
  %v8188 = vpop.f32.mrf.mxu0
  %8189 = vmatprep.mubr.f32.mxu0 %v7321
  %8190 = vmatmul.mubr.f32.gmra.mxu0 %v6789
  %v8191 = vpop.f32.mrf.mxu0
  %v8192 = vadd.f32 0.0, %v8191
  %v8193 = vpop.f32.mrf.mxu0
  %8194 = vmatprep.mubr.f32.mxu0 %v7323
  %8195 = vmatmul.mubr.f32.gmra.mxu0 %v6791
  %v8196 = vpop.f32.mrf.mxu0
  %v8197 = vadd.f32 0.0, %v8196
  %v8198 = vpop.f32.mrf.mxu0
  %8199 = vmatprep.mubr.f32.mxu0 %v7325
  %8200 = vmatmul.mubr.f32.gmra.mxu0 %v6793
  %v8201 = vpop.f32.mrf.mxu0
  %v8202 = vadd.f32 0.0, %v8201
  %v8203 = vpop.f32.mrf.mxu0
  %8204 = vmatprep.mubr.f32.mxu0 %v7327
  %8205 = vmatmul.mubr.f32.gmra.mxu0 %v6795
  %v8206 = vpop.f32.mrf.mxu0
  %v8207 = vadd.f32 0.0, %v8206
  %v8208 = vpop.f32.mrf.mxu0
  %8209 = vmatprep.mubr.f32.mxu0 %v7329
  %8210 = vmatmul.mubr.f32.gmra.mxu0 %v6797
  %v8211 = vpop.f32.mrf.mxu0
  %v8212 = vadd.f32 0.0, %v8211
  %v8213 = vpop.f32.mrf.mxu0
  %8214 = vmatprep.mubr.f32.mxu0 %v7331
  %8215 = vmatmul.mubr.f32.gmra.mxu0 %v6799
  %v8216 = vpop.f32.mrf.mxu0
  %v8217 = vadd.f32 0.0, %v8216
  %v8218 = vpop.f32.mrf.mxu0
  %8219 = vmatprep.mubr.f32.mxu0 %v7333
  %8220 = vmatmul.mubr.f32.gmra.mxu0 %v6801
  %v8221 = vpop.f32.mrf.mxu0
  %v8222 = vadd.f32 0.0, %v8221
  %v8223 = vpop.f32.mrf.mxu0
  %8224 = vmatprep.mubr.f32.mxu0 %v7335
  %8225 = vmatmul.mubr.f32.gmra.mxu0 %v6803
  %v8226 = vpop.f32.mrf.mxu0
  %v8227 = vadd.f32 0.0, %v8226
  %v8228 = vpop.f32.mrf.mxu0
  %8229 = vmatprep.mubr.f32.mxu0 %v7337
  %8230 = vmatmul.mubr.f32.gmra.mxu0 %v6805
  %v8231 = vpop.f32.mrf.mxu0
  %v8232 = vadd.f32 0.0, %v8231
  %v8233 = vpop.f32.mrf.mxu0
  %8234 = vmatprep.mubr.f32.mxu0 %v7339
  %8235 = vmatmul.mubr.f32.gmra.mxu0 %v6807
  %v8236 = vpop.f32.mrf.mxu0
  %v8237 = vadd.f32 0.0, %v8236
  %v8238 = vpop.f32.mrf.mxu0
  %8239 = vmatprep.mubr.f32.mxu0 %v7341
  %8240 = vmatmul.mubr.f32.gmra.mxu0 %v6809
  %v8241 = vpop.f32.mrf.mxu0
  %v8242 = vadd.f32 0.0, %v8241
  %v8243 = vpop.f32.mrf.mxu0
  %8244 = vmatprep.mubr.f32.mxu0 %v7343
  %8245 = vmatmul.mubr.f32.gmra.mxu0 %v6811
  %v8246 = vpop.f32.mrf.mxu0
  %v8247 = vadd.f32 0.0, %v8246
  %v8248 = vpop.f32.mrf.mxu0
  %8249 = vmatprep.mubr.f32.mxu0 %v7556
  %8250 = vmatmul.mubr.f32.gmra.mxu0 %v6813
  %v8251 = vpop.f32.mrf.mxu0
  %v8252 = vadd.f32 0.0, %v8251
  %v8253 = vpop.f32.mrf.mxu0
  %8254 = vmatprep.mubr.f32.mxu0 %v8048
  %8255 = vmatmul.mubr.f32.gmra.mxu0 %v6815
  %v8256 = vpop.f32.mrf.mxu0
  %v8257 = vadd.f32 0.0, %v8256
  %v8258 = vpop.f32.mrf.mxu0
  %8259 = vdwg.mxu0
  %v8260 = vadd.f32 %v8018, %v8117
  %v8261 = vadd.f32 %v8019, %v8122
  %v8262 = vadd.f32 %v8020, %v8127
  %v8263 = vadd.f32 %v8021, %v8132
  %v8264 = vadd.f32 %v8022, %v8137
  %v8265 = vadd.f32 %v8023, %v8142
  %v8266 = vadd.f32 %v8024, %v8147
  %v8267 = vadd.f32 %v8025, %v8152
  %v8268 = vadd.f32 %v8026, %v8157
  %v8269 = vadd.f32 %v8027, %v8162
  %v8270 = vadd.f32 %v8028, %v8167
  %v8271 = vadd.f32 %v8029, %v8172
  %v8272 = vadd.f32 %v8030, %v8177
  %v8273 = vadd.f32 %v8031, %v8182
  %v8274 = vadd.f32 %v8032, %v8187
  %v8275 = vadd.f32 %v8033, %v8192
  %v8276 = vadd.f32 %v8034, %v8197
  %v8277 = vadd.f32 %v8035, %v8202
  %v8278 = vadd.f32 %v8036, %v8207
  %v8279 = vadd.f32 %v8037, %v8212
  %v8280 = vadd.f32 %v8038, %v8217
  %v8281 = vadd.f32 %v8039, %v8222
  %v8282 = vadd.f32 %v8040, %v8227
  %v8283 = vadd.f32 %v8041, %v8232
  %v8284 = vadd.f32 %v8042, %v8237
  %v8285 = vadd.f32 %v8043, %v8242
  %v8286 = vadd.f32 %v8044, %v8247
  %v8287 = vadd.f32 %v8045, %v8252
  %v8288 = vadd.f32 %v8046, %v8257
  %v8289 = vlaneseq
  %v8290 = vshrl.u32 %v8289, 7
  %v8291 = vlaneseq
  %v8292 = vand.u32 %v8291, 127
  %v8293 = vadd.s32 %v8292, 128
  %v8294 = vmul.u32 %v8290, 32
  %vm8295 = vcmp.eq.s32.totalorder %v8292, %v8294
  %vm8296 = vcmp.eq.s32.totalorder %v8293, %v8294
  %v8297 = vsel %vm8295, 1, 0
  %v8298 = vsel %vm8296, 1, 0
  %v8299 = vcvt.s32.f32 %v8297
  %v8300 = vcvt.s32.f32 %v8298
  %v8301 = vld [vmem:[%s6] sm:$0x1]
  %v8303 = vlaneseq
  %v8304 = vshrl.u32 %v8303, 7
  %v8305 = vsub.s32 0, %v8304
  %v8306 = vrot.slane %v8301, %v8305
  %vm8308 = vcmask 793600
  %v8310 = vsel %vm8308, %v8300, 0
  %vm8312 = vcmask 1040384
  %v8314 = vsel %vm8312, %v8288, 0
  %8316 = vmatprep.subr.mxu0 0.0
  %8317 = vmatpush1.msra.mxu0 %v8275
  %8318 = vmatprep.subr.mxu0 0.0
  %8319 = vmatpush1.msra.mxu0 %v8274
  %8320 = vmatprep.subr.mxu0 0.0
  %8321 = vmatpush1.msra.mxu0 %v8273
  %8322 = vmatprep.subr.mxu0 0.0
  %8323 = vmatpush1.msra.mxu0 %v8272
  %8324 = vmatprep.subr.mxu0 0.0
  %8325 = vmatpush1.msra.mxu0 %v8271
  %8326 = vmatprep.subr.mxu0 0.0
  %8327 = vmatpush1.msra.mxu0 %v8270
  %8328 = vmatprep.subr.mxu0 0.0
  %8329 = vmatpush1.msra.mxu0 %v8269
  %8330 = vmatprep.subr.mxu0 0.0
  %8331 = vmatpush1.msra.mxu0 %v8268
  %8332 = vmatprep.subr.mxu0 0.0
  %8333 = vmatpush1.msra.mxu0 %v8267
  %8334 = vmatprep.subr.mxu0 0.0
  %8335 = vmatpush1.msra.mxu0 %v8266
  %8336 = vmatprep.subr.mxu0 0.0
  %8337 = vmatpush1.msra.mxu0 %v8265
  %8338 = vmatprep.subr.mxu0 0.0
  %8339 = vmatpush1.msra.mxu0 %v8264
  %8340 = vmatprep.subr.mxu0 0.0
  %8341 = vmatpush1.msra.mxu0 %v8263
  %8342 = vmatprep.subr.mxu0 0.0
  %8343 = vmatpush1.msra.mxu0 %v8262
  %8344 = vmatprep.subr.mxu0 0.0
  %8345 = vmatpush1.msra.mxu0 %v8261
  %8346 = vmatprep.subr.mxu0 0.0
  %8347 = vmatpush1.msra.mxu0 %v8260
  %8348 = vmatprep.subr.mxu0 0.0
  %8349 = vmatpush2.msra.mxu0 0.0
  %8350 = vmatprep.subr.mxu0 0.0
  %8351 = vmatpush2.msra.mxu0 0.0
  %8352 = vmatprep.subr.mxu0 0.0
  %8353 = vmatpush2.msra.mxu0 0.0
  %8354 = vmatprep.subr.mxu0 0.0
  %8355 = vmatpush2.msra.mxu0 %v8314
  %8356 = vmatprep.subr.mxu0 0.0
  %8357 = vmatpush2.msra.mxu0 %v8287
  %8358 = vmatprep.subr.mxu0 0.0
  %8359 = vmatpush2.msra.mxu0 %v8286
  %8360 = vmatprep.subr.mxu0 0.0
  %8361 = vmatpush2.msra.mxu0 %v8285
  %8362 = vmatprep.subr.mxu0 0.0
  %8363 = vmatpush2.msra.mxu0 %v8284
  %8364 = vmatprep.subr.mxu0 0.0
  %8365 = vmatpush2.msra.mxu0 %v8283
  %8366 = vmatprep.subr.mxu0 0.0
  %8367 = vmatpush2.msra.mxu0 %v8282
  %8368 = vmatprep.subr.mxu0 0.0
  %8369 = vmatpush2.msra.mxu0 %v8281
  %8370 = vmatprep.subr.mxu0 0.0
  %8371 = vmatpush2.msra.mxu0 %v8280
  %8372 = vmatprep.subr.mxu0 0.0
  %8373 = vmatpush2.msra.mxu0 %v8279
  %8374 = vmatprep.subr.mxu0 0.0
  %8375 = vmatpush2.msra.mxu0 %v8278
  %8376 = vmatprep.subr.mxu0 0.0
  %8377 = vmatpush2.msra.mxu0 %v8277
  %8378 = vmatprep.subr.mxu0 0.0
  %8379 = vmatpush2.msra.mxu0 %v8276
  %8380 = vmatprep.mubr.f32.mxu0 %v8310
  %8381 = vmatmul.mubr.f32.gmra.mxu0 %v8299
  %v8382 = vpop.f32.mrf.mxu0
  %v8383 = vadd.f32 %v8306, %v8382
  %v8384 = vpop.f32.mrf.mxu0
  %8385 = vdwg.mxu0
  %v8386 = vmax.f32 %v8383, 0.0
  %v8387 = vld [vmem:[%s7] sm:$0xff]
  %v8388 = vld [vmem:[%s7 + $0x8] sm:$0xff]
  %v8389 = vld [vmem:[%s7 + $0x10] sm:$0xff]
  %v8390 = vld [vmem:[%s7 + $0x18] sm:$0xff]
  %v8391 = vld [vmem:[%s7 + $0x20] sm:$0xff]
  %v8392 = vld [vmem:[%s7 + $0x28] sm:$0xff]
  %v8393 = vld [vmem:[%s7 + $0x30] sm:$0xff]
  %v8394 = vld [vmem:[%s7 + $0x38] sm:$0xff]
  %v8395 = vld [vmem:[%s7 + $0x40] sm:$0xff]
  %v8396 = vld [vmem:[%s7 + $0x48] sm:$0xff]
  %v8397 = vld [vmem:[%s7 + $0x50] sm:$0xff]
  %v8398 = vld [vmem:[%s7 + $0x58] sm:$0xff]
  %v8399 = vld [vmem:[%s7 + $0x60] sm:$0xff]
  %v8400 = vld [vmem:[%s7 + $0x68] sm:$0xff]
  %v8401 = vld [vmem:[%s7 + $0x70] sm:$0xff]
  %v8402 = vld [vmem:[%s7 + $0x78] sm:$0xff]
  %v8403 = vld [vmem:[%s8] sm:$0x1]
  %v8405 = vlaneseq
  %v8406 = vshrl.u32 %v8405, 7
  %v8407 = vsub.s32 0, %v8406
  %v8408 = vrot.slane %v8403, %v8407
  %8410 = vmatprep.subr.mxu0 0.0
  %8411 = vmatpush1.msra.mxu0 %v8402
  %8412 = vmatprep.subr.mxu0 0.0
  %8413 = vmatpush1.msra.mxu0 %v8401
  %8414 = vmatprep.subr.mxu0 0.0
  %8415 = vmatpush1.msra.mxu0 %v8400
  %8416 = vmatprep.subr.mxu0 0.0
  %8417 = vmatpush1.msra.mxu0 %v8399
  %8418 = vmatprep.subr.mxu0 0.0
  %8419 = vmatpush1.msra.mxu0 %v8398
  %8420 = vmatprep.subr.mxu0 0.0
  %8421 = vmatpush1.msra.mxu0 %v8397
  %8422 = vmatprep.subr.mxu0 0.0
  %8423 = vmatpush1.msra.mxu0 %v8396
  %8424 = vmatprep.subr.mxu0 0.0
  %8425 = vmatpush1.msra.mxu0 %v8395
  %8426 = vmatprep.subr.mxu0 0.0
  %8427 = vmatpush1.msra.mxu0 %v8394
  %8428 = vmatprep.subr.mxu0 0.0
  %8429 = vmatpush1.msra.mxu0 %v8393
  %8430 = vmatprep.subr.mxu0 0.0
  %8431 = vmatpush1.msra.mxu0 %v8392
  %8432 = vmatprep.subr.mxu0 0.0
  %8433 = vmatpush1.msra.mxu0 %v8391
  %8434 = vmatprep.subr.mxu0 0.0
  %8435 = vmatpush1.msra.mxu0 %v8390
  %8436 = vmatprep.subr.mxu0 0.0
  %8437 = vmatpush1.msra.mxu0 %v8389
  %8438 = vmatprep.subr.mxu0 0.0
  %8439 = vmatpush1.msra.mxu0 %v8388
  %8440 = vmatprep.subr.mxu0 0.0
  %8441 = vmatpush1.msra.mxu0 %v8387
  %8442 = vmatprep.subr.mxu0 0.0
  %8443 = vmatpush2.msra.mxu0 0.0
  %8444 = vmatprep.subr.mxu0 0.0
  %8445 = vmatpush2.msra.mxu0 0.0
  %8446 = vmatprep.subr.mxu0 0.0
  %8447 = vmatpush2.msra.mxu0 0.0
  %8448 = vmatprep.subr.mxu0 0.0
  %8449 = vmatpush2.msra.mxu0 0.0
  %8450 = vmatprep.subr.mxu0 0.0
  %8451 = vmatpush2.msra.mxu0 0.0
  %8452 = vmatprep.subr.mxu0 0.0
  %8453 = vmatpush2.msra.mxu0 0.0
  %8454 = vmatprep.subr.mxu0 0.0
  %8455 = vmatpush2.msra.mxu0 0.0
  %8456 = vmatprep.subr.mxu0 0.0
  %8457 = vmatpush2.msra.mxu0 0.0
  %8458 = vmatprep.subr.mxu0 0.0
  %8459 = vmatpush2.msra.mxu0 0.0
  %8460 = vmatprep.subr.mxu0 0.0
  %8461 = vmatpush2.msra.mxu0 0.0
  %8462 = vmatprep.subr.mxu0 0.0
  %8463 = vmatpush2.msra.mxu0 0.0
  %8464 = vmatprep.subr.mxu0 0.0
  %8465 = vmatpush2.msra.mxu0 0.0
  %8466 = vmatprep.subr.mxu0 0.0
  %8467 = vmatpush2.msra.mxu0 0.0
  %8468 = vmatprep.subr.mxu0 0.0
  %8469 = vmatpush2.msra.mxu0 0.0
  %8470 = vmatprep.subr.mxu0 0.0
  %8471 = vmatpush2.msra.mxu0 0.0
  %8472 = vmatprep.subr.mxu0 0.0
  %8473 = vmatpush2.msra.mxu0 0.0
  %8474 = vmatprep.mubr.f32.mxu0 0.0
  %8475 = vmatmul.mubr.f32.gmra.mxu0 %v8386
  %v8476 = vpop.f32.mrf.mxu0
  %v8477 = vadd.f32 %v8408, %v8476
  %v8478 = vpop.f32.mrf.mxu0
  %8479 = vdwg.mxu0
  %v8480 = vmax.f32 %v8477, 0.0
  %v8481 = vld [vmem:[%s9] sm:$0xff]
  %v8482 = vld [vmem:[%s9 + $0x8] sm:$0xff]
  %v8483 = vld [vmem:[%s9 + $0x10] sm:$0xff]
  %v8484 = vld [vmem:[%s9 + $0x18] sm:$0xff]
  %v8485 = vld [vmem:[%s9 + $0x20] sm:$0xff]
  %v8486 = vld [vmem:[%s9 + $0x28] sm:$0xff]
  %v8487 = vld [vmem:[%s9 + $0x30] sm:$0xff]
  %v8488 = vld [vmem:[%s9 + $0x38] sm:$0xff]
  %v8489 = vld [vmem:[%s9 + $0x40] sm:$0xff]
  %v8490 = vld [vmem:[%s9 + $0x48] sm:$0xff]
  %v8491 = vld [vmem:[%s9 + $0x50] sm:$0xff]
  %v8492 = vld [vmem:[%s9 + $0x58] sm:$0xff]
  %v8493 = vld [vmem:[%s9 + $0x60] sm:$0xff]
  %v8494 = vld [vmem:[%s9 + $0x68] sm:$0xff]
  %v8495 = vld [vmem:[%s9 + $0x70] sm:$0xff]
  %v8496 = vld [vmem:[%s9 + $0x78] sm:$0xff]
  %v8497 = vld [vmem:[%s10] sm:$0x1]
  %v8499 = vlaneseq
  %v8500 = vshrl.u32 %v8499, 7
  %v8501 = vsub.s32 0, %v8500
  %v8502 = vrot.slane %v8497, %v8501
  %8504 = vmatprep.subr.mxu0 0.0
  %8505 = vmatpush1.msra.mxu0 %v8496
  %8506 = vmatprep.subr.mxu0 0.0
  %8507 = vmatpush1.msra.mxu0 %v8495
  %8508 = vmatprep.subr.mxu0 0.0
  %8509 = vmatpush1.msra.mxu0 %v8494
  %8510 = vmatprep.subr.mxu0 0.0
  %8511 = vmatpush1.msra.mxu0 %v8493
  %8512 = vmatprep.subr.mxu0 0.0
  %8513 = vmatpush1.msra.mxu0 %v8492
  %8514 = vmatprep.subr.mxu0 0.0
  %8515 = vmatpush1.msra.mxu0 %v8491
  %8516 = vmatprep.subr.mxu0 0.0
  %8517 = vmatpush1.msra.mxu0 %v8490
  %8518 = vmatprep.subr.mxu0 0.0
  %8519 = vmatpush1.msra.mxu0 %v8489
  %8520 = vmatprep.subr.mxu0 0.0
  %8521 = vmatpush1.msra.mxu0 %v8488
  %8522 = vmatprep.subr.mxu0 0.0
  %8523 = vmatpush1.msra.mxu0 %v8487
  %8524 = vmatprep.subr.mxu0 0.0
  %8525 = vmatpush1.msra.mxu0 %v8486
  %8526 = vmatprep.subr.mxu0 0.0
  %8527 = vmatpush1.msra.mxu0 %v8485
  %8528 = vmatprep.subr.mxu0 0.0
  %8529 = vmatpush1.msra.mxu0 %v8484
  %8530 = vmatprep.subr.mxu0 0.0
  %8531 = vmatpush1.msra.mxu0 %v8483
  %8532 = vmatprep.subr.mxu0 0.0
  %8533 = vmatpush1.msra.mxu0 %v8482
  %8534 = vmatprep.subr.mxu0 0.0
  %8535 = vmatpush1.msra.mxu0 %v8481
  %8536 = vmatprep.subr.mxu0 0.0
  %8537 = vmatpush2.msra.mxu0 0.0
  %8538 = vmatprep.subr.mxu0 0.0
  %8539 = vmatpush2.msra.mxu0 0.0
  %8540 = vmatprep.subr.mxu0 0.0
  %8541 = vmatpush2.msra.mxu0 0.0
  %8542 = vmatprep.subr.mxu0 0.0
  %8543 = vmatpush2.msra.mxu0 0.0
  %8544 = vmatprep.subr.mxu0 0.0
  %8545 = vmatpush2.msra.mxu0 0.0
  %8546 = vmatprep.subr.mxu0 0.0
  %8547 = vmatpush2.msra.mxu0 0.0
  %8548 = vmatprep.subr.mxu0 0.0
  %8549 = vmatpush2.msra.mxu0 0.0
  %8550 = vmatprep.subr.mxu0 0.0
  %8551 = vmatpush2.msra.mxu0 0.0
  %8552 = vmatprep.subr.mxu0 0.0
  %8553 = vmatpush2.msra.mxu0 0.0
  %8554 = vmatprep.subr.mxu0 0.0
  %8555 = vmatpush2.msra.mxu0 0.0
  %8556 = vmatprep.subr.mxu0 0.0
  %8557 = vmatpush2.msra.mxu0 0.0
  %8558 = vmatprep.subr.mxu0 0.0
  %8559 = vmatpush2.msra.mxu0 0.0
  %8560 = vmatprep.subr.mxu0 0.0
  %8561 = vmatpush2.msra.mxu0 0.0
  %8562 = vmatprep.subr.mxu0 0.0
  %8563 = vmatpush2.msra.mxu0 0.0
  %8564 = vmatprep.subr.mxu0 0.0
  %8565 = vmatpush2.msra.mxu0 0.0
  %8566 = vmatprep.subr.mxu0 0.0
  %8567 = vmatpush2.msra.mxu0 0.0
  %8568 = vmatprep.mubr.f32.mxu0 0.0
  %8569 = vmatmul.mubr.f32.gmra.mxu0 %v8480
  %v8570 = vpop.f32.mrf.mxu0
  %v8571 = vadd.f32 %v8502, %v8570
  %v8572 = vpop.f32.mrf.mxu0
  %8573 = vdwg.mxu0
  %vm8574 = vcmask 80896
  %v8575 = vsel %vm8574, %v8571, -inf
  %8576 = vmax.xlane.f32.xlu0 %v8575
  %v8577 = vpop.xlane.xlu0 %8576
  %v8578 = vsub.f32 %v8571, %v8577
  %v8579 = vmul.f32 %v8578, 1.442695
  %v8580 = vpow.pop %v8579
  %v8581 = vsel %vm8574, %v8580, 0.0
  %8582 = vadd.xlane.f32.xlu0 %v8581
  %v8583 = vpop.xlane.xlu0 %8582
  %v8584 = vrcp.pop %v8583
  %v8585 = vmul.f32 %v8580, %v8584
  %8586 = vst.msk [vmem:[%s11] sm:$0xff] %vm8574, %v8585
  // Predicated region
  $region46: #{lenet5_forward.1} parent=0 // pred_check
    _
  $region47: #{lenet5_forward.1} parent=0 // pred_check_branch
    %8588 = sbr.rel (0) target = $region49
  $region48: #{lenet5_forward.1} parent=0 // pred_region
    _
  $region49: #{lenet5_forward.1} parent=0 // pred_fallthru
    _
  // Predicated region
  $region50: #{lenet5_forward.1} parent=0 // pred_check
    _
  $region51: #{lenet5_forward.1} parent=0 // pred_check_branch
    %8590 = sbr.rel (0) target = $region53
  $region52: #{lenet5_forward.1} parent=0 // pred_region
    _
  $region53: #{lenet5_forward.1} parent=0 // pred_fallthru
    _

</llo_original>
